<compile_context>
chip_gen: v7x
topology: tpu7x:2x2x1
jax: 0.10.0
libtpu: 0.0.40
codegen_flags: <defaults>
</compile_context>

<pallas_src>
import functools

import jax
import jax.numpy as jnp
from jax.experimental import pallas as pl
from jax.experimental.pallas import tpu as pltpu


# --------------------------------------------------------------------------
# Fused per-batch-image kernel (channels-first, flat H*W lane axis)
# --------------------------------------------------------------------------
def _bottleneck_kernel(H, W, WD, C4, HALO,
                       x_ref, w_ash_ref, b_ash_ref, w2b_ref, b2b_ref,
                       w2c_ref, lk_dw_ref, lk_w1_ref, bias_c4_ref,
                       se_w1_ref, se_w2_ref, ghw_w_ref, band_cw_ref,
                       band_hc_ref, gate_b_ref, wmask_ref, bc_w_ref, bc_h_ref,
                       o_ref,
                       pad_ref, cwpad_ref, hcpad_ref):
    f32 = jnp.float32
    N = H * W
    LO = HALO                       # interior start column of the flat scratch

    def wmask(off):                 # (1, N) 0/1 mask: is (w + off) inside [0, W)?
        return wmask_ref[off + 9:off + 10, :]

    x = x_ref[0].astype(f32)        # (CIN, N)

    # ---- fused branch2a (1x1 + BN + relu) and shortcut (1x1 + BN): one matmul
    t = jnp.dot(w_ash_ref[...], x, preferred_element_type=f32) + b_ash_ref[...]
    a1 = jnp.maximum(t[0:WD, :], 0.0)          # (WD, N)
    short = t[WD:WD + C4, :]                   # (C4, N)

    # ---- zero the halos of the shared flat-padded scratch ONCE
    pad_ref[:, 0:LO] = jnp.zeros((C4, LO), f32)
    pad_ref[:, LO + N:LO + N + LO] = jnp.zeros((C4, LO), f32)

    # ---- branch2b: 3x3 conv (pad 1) + BN + relu as 9 whole-image matmuls
    pad_ref[0:WD, LO:LO + N] = a1
    acc = jnp.broadcast_to(b2b_ref[...], (WD, N))
    for dw in range(3):
        tmp = jnp.zeros((WD, N), f32)
        for dh in range(3):
            off = (dh - 1) * W + (dw - 1)
            tmp = tmp + jnp.dot(w2b_ref[dh * 3 + dw],
                                pad_ref[0:WD, LO + off:LO + off + N],
                                preferred_element_type=f32)
        acc = acc + tmp * wmask(dw - 1)
    a2 = jnp.maximum(acc, 0.0)                 # (WD, N)

    # ---- branch2c: 1x1 conv + BN (no act)
    u = jnp.dot(w2c_ref[...], a2, preferred_element_type=f32) + bias_c4_ref[:, 0:1]

    # ---- LSKA: 4 separable depthwise convs (lane-dense flat shifts) + 1x1
    def dw_conv(a_in, taps, dil, along_w, col0, bias_col):
        pad_ref[:, LO:LO + N] = a_in
        dacc = jnp.broadcast_to(bias_c4_ref[:, bias_col:bias_col + 1], (C4, N))
        half = (taps - 1) // 2
        for k in range(taps):
            woff = (k - half) * dil
            off = woff if along_w else woff * W
            piece = (pad_ref[:, LO + off:LO + off + N]
                     * lk_dw_ref[:, col0 + k:col0 + k + 1])
            if along_w:
                piece = piece * wmask(woff)
            dacc = dacc + piece
        return dacc

    a = dw_conv(u, 5, 1, True, 0, 1)      # conv0h          (1x5, pad 2)
    a = dw_conv(a, 5, 1, False, 5, 2)     # conv0v          (5x1, pad 2)
    a = dw_conv(a, 7, 3, True, 10, 3)     # conv_spatial_h  (1x7, dil 3, pad 9)
    a = dw_conv(a, 7, 3, False, 17, 4)    # conv_spatial_v  (7x1, dil 3, pad 9)
    attn = (jnp.dot(lk_w1_ref[...], a, preferred_element_type=f32)
            + bias_c4_ref[:, 5:6])
    lk_out = u * attn                      # (C4, N)

    # ---- SELayer (4-way squeeze-excite)
    y = jnp.mean(lk_out, axis=1, keepdims=True)                          # (C4,1)
    z = jnp.maximum(jnp.dot(se_w1_ref[...], y, preferred_element_type=f32), 0.0)
    se_scale = jax.nn.sigmoid(jnp.dot(se_w2_ref[...], z,
                                      preferred_element_type=f32))       # (C4,1)
    v = lk_out * se_scale                  # (C4, N)

    # ---- TripletAttention pooled planes for the cw (over H) / hc (over W) gates
    hcpad_ref[...] = jnp.zeros((2 * C4, H + 6), f32)
    cwpad_ref[...] = jnp.zeros((2 * C4, W + 6), f32)
    cw_max = cw_sum = None
    for h in range(H):
        s = v[:, h * W:(h + 1) * W]                    # (C4, W)
        if h == 0:
            cw_max, cw_sum = s, s
        else:
            cw_max = jnp.maximum(cw_max, s)
            cw_sum = cw_sum + s
        hcpad_ref[0:C4, 3 + h:4 + h] = jnp.max(s, axis=1, keepdims=True)
        hcpad_ref[C4:2 * C4, 3 + h:4 + h] = jnp.sum(s, axis=1, keepdims=True)
    cwpad_ref[0:C4, 3:3 + W] = cw_max
    cwpad_ref[C4:2 * C4, 3:3 + W] = cw_sum   # 1/H folded into band_cw mean columns

    # ---- gate 1 (hw): ZPool over C, 7x7 over (H, W); lane-dense flat shifts
    pad_ref[0:1, LO:LO + N] = jnp.max(v, axis=0, keepdims=True)
    pad_ref[1:2, LO:LO + N] = jnp.mean(v, axis=0, keepdims=True)
    acc_hw = jnp.broadcast_to(gate_b_ref[0:1, :], (1, N))
    for kw in range(7):
        t2 = jnp.zeros((2, N), f32)
        for kh in range(7):
            off = (kh - 3) * W + (kw - 3)
            t2 = t2 + (pad_ref[0:2, LO + off:LO + off + N]
                       * ghw_w_ref[:, kh * 7 + kw:kh * 7 + kw + 1])
        acc_hw = acc_hw + (t2[0:1, :] + t2[1:2, :]) * wmask(kw - 3)
    scale_hw = jax.nn.sigmoid(acc_hw)          # (1, N), broadcasts over C

    # ---- gate 2 (cw): ZPool over H, 7x7 over (C, W) -> 7 banded MXU matmuls
    acc_cw = jnp.broadcast_to(gate_b_ref[1:2, :], (C4, W))
    for kw in range(7):
        acc_cw = acc_cw + jnp.dot(band_cw_ref[kw], cwpad_ref[:, kw:kw + W],
                                  preferred_element_type=f32)
    scale_cwT = jax.nn.sigmoid(acc_cw)         # (C4, W)

    # ---- gate 3 (hc): ZPool over W, 7x7 over (H, C) -> 7 banded MXU matmuls
    acc_hc = jnp.broadcast_to(gate_b_ref[2:3, :], (C4, H))
    for kh in range(7):
        acc_hc = acc_hc + jnp.dot(band_hc_ref[kh], hcpad_ref[:, kh:kh + H],
                                  preferred_element_type=f32)
    scale_hcT = jax.nn.sigmoid(acc_hc)         # (C4, H)

    # ---- broadcast cw/hc scales back to (C4, N) via 0/1 matmuls, combine, relu
    scale_cw = jnp.dot(scale_cwT, bc_w_ref[...], preferred_element_type=f32)
    scale_hc = jnp.dot(scale_hcT, bc_h_ref[...], preferred_element_type=f32)
    gates = scale_hw + scale_cw + scale_hc
    out = jnp.maximum(v * gates * (1.0 / 3.0) + short, 0.0)
    o_ref[0] = out.astype(o_ref.dtype)


# --------------------------------------------------------------------------
# Wrapper
# --------------------------------------------------------------------------
def _rep_spec(arr):
    zeros = (0,) * arr.ndim
    return pl.BlockSpec(arr.shape, lambda b, _z=zeros: _z)


def bottleneck_ld_forward(x_nchw, p, ch_out):
    B, cin, H, W = x_nchw.shape
    n = H * W
    wd = ch_out
    c4 = 4 * ch_out
    halo = 9 * W                                # max flat shift (7x1 dil-3 conv)
    x = x_nchw.reshape(B, cin, n).astype(jnp.float32)      # free reshape (NCHW)

    kernel = functools.partial(_bottleneck_kernel, H, W, wd, c4, halo)
    order = ("w_ash", "b_ash", "w2b", "b2b", "w2c", "lk_dw", "lk_w1",
             "bias_c4", "se_w1", "se_w2", "ghw_w", "band_cw", "band_hc",
             "gate_b", "wmask", "bc_w", "bc_h")
    in_specs = [pl.BlockSpec((1, cin, n), lambda b: (b, 0, 0))]
    in_specs += [_rep_spec(p[k]) for k in order]

    out = pl.pallas_call(
        kernel,
        out_shape=jax.ShapeDtypeStruct((B, c4, n), jnp.float32),
        grid=(B,),
        in_specs=in_specs,
        out_specs=pl.BlockSpec((1, c4, n), lambda b: (b, 0, 0)),
        scratch_shapes=[
            pltpu.VMEM((c4, 2 * halo + n), jnp.float32),   # shared flat pad buffer
            pltpu.VMEM((2 * c4, W + 6), jnp.float32),      # cw-gate padded planes
            pltpu.VMEM((2 * c4, H + 6), jnp.float32),      # hc-gate padded planes
        ],
        compiler_params=pltpu.CompilerParams(
            dimension_semantics=("parallel",)),
    )(x, *[p[k] for k in order])
    return out.reshape(B, c4, H, W)            # free reshape back to NCHW


# --------------------------------------------------------------------------
# Host-side weight preparation (deterministic synthetic params)
# --------------------------------------------------------------------------
def _band_T(w2_77, c4, banded_axis_first, mean_scale):
    # Banded matrices for a 7x7 (2-in, 1-out) conv where one conv axis runs over
    # the channel axis:  band[k][c_out, s*c4 + c_in] = taps[c_in - c_out + 3]
    #   banded_axis_first=True : kh runs over channels (cw gate), loop index = kw
    #   banded_axis_first=False: kw runs over channels (hc gate), loop index = kh
    # mean_scale (1/H or 1/W) is folded into the mean-stat (s=1) columns.
    cin = jnp.arange(c4)[None, :]
    cout = jnp.arange(c4)[:, None]
    k = cin - cout + 3
    valid = (k >= 0) & (k <= 6)
    kc = jnp.clip(k, 0, 6)
    mats = []
    for loop_k in range(7):
        per_s = []
        for s in range(2):
            taps = w2_77[s, :, loop_k] if banded_axis_first else w2_77[s, loop_k, :]
            m = jnp.where(valid, taps[kc], 0.0)
            if s == 1:
                m = m * mean_scale
            per_s.append(m)
        mats.append(jnp.concatenate(per_s, axis=1))       # (c4, 2*c4)
    return jnp.stack(mats).astype(jnp.float32)            # (7, c4, 2*c4)


def _wmask_table(H, W):
    w = jnp.arange(H * W) % W
    offs = jnp.arange(-9, 10)
    valid = (w[None, :] + offs[:, None] >= 0) & (w[None, :] + offs[:, None] < W)
    return valid.astype(jnp.float32)                      # (19, H*W)


def _bcast_mats(H, W):
    n = jnp.arange(H * W)
    bc_w = (n[None, :] % W == jnp.arange(W)[:, None]).astype(jnp.float32)   # (W,N)
    bc_h = (n[None, :] // W == jnp.arange(H)[:, None]).astype(jnp.float32)  # (H,N)
    return bc_w, bc_h


def init_params(key, ch_in, ch_out, H, W):
    """Synthetic deterministic params, already in the layouts the kernel uses.
    Mapping from real PyTorch weights: ConvNormLayer convs are bias-free with
    eval-mode BN folded in; 1x1 conv (out,in,1,1)->(out,in); 3x3 -> per-tap
    (9,out,in) with t = kh*3+kw; LSKA depthwise (dim,1,*,*) taps -> columns of
    lk_dw; gate 7x7 convs (1,2,7,7) -> scalar tap table (hw) or banded C-axis
    matrices (cw/hc) with the ZPool mean folded into the s=1 half."""
    width = ch_out
    c4 = 4 * ch_out
    cr = c4 // 16
    keys = iter(jax.random.split(key, 64))

    def nrm(shape, s=0.1):
        return (s * jax.random.normal(next(keys), shape)).astype(jnp.float32)

    def bn_fold(c):
        gamma = 1.0 + nrm((c,))
        beta = nrm((c,))
        mean = nrm((c,))
        var = 0.5 + jnp.abs(nrm((c,), 0.3))
        scale = gamma / jnp.sqrt(var + 1e-5)
        return scale, beta - mean * scale

    p = {}
    # branch2a (1x1+BN+relu) fused with shortcut (1x1+BN): (WD+C4, CIN)
    s2a, b2a = bn_fold(width)
    w2a = nrm((width, ch_in), 0.2) * s2a[:, None]
    ssh, bsh = bn_fold(c4)
    wsh = nrm((c4, ch_in), 0.2) * ssh[:, None]
    p["w_ash"] = jnp.concatenate([w2a, wsh], axis=0)
    p["b_ash"] = jnp.concatenate([b2a, bsh])[:, None]

    # branch2b 3x3 (+BN+relu): per-tap (out, in) weights, t = kh*3 + kw
    s2b, b2b = bn_fold(width)
    w2b_raw = nrm((width, width, 3, 3), 0.2)
    p["w2b"] = jnp.stack([w2b_raw[:, :, kh, kw] * s2b[:, None]
                          for kh in range(3) for kw in range(3)])
    p["b2b"] = b2b[:, None]

    # branch2c 1x1 (+BN, no act)
    s2c, b2c = bn_fold(c4)
    p["w2c"] = nrm((c4, width), 0.2) * s2c[:, None]

    # LSKA: depthwise taps (cols 0-4 conv0h, 5-9 conv0v, 10-16 sp_h, 17-23 sp_v)
    p["lk_dw"] = nrm((c4, 24), 0.3)
    lk_b = [nrm((c4,)) for _ in range(4)]          # conv0h, conv0v, sp_h, sp_v
    p["lk_w1"] = nrm((c4, c4), 0.2)
    lk_b1 = nrm((c4,))
    p["bias_c4"] = jnp.stack([b2c] + lk_b + [lk_b1], axis=1)      # (c4, 6)

    # SELayer (reduction 16, cardinality 4); fc1..4 stacked, then fc
    p["se_w1"] = nrm((4 * cr, c4), 0.3)
    p["se_w2"] = nrm((c4, 4 * cr), 0.3)

    # TripletAttention gates: 7x7 conv (2->1, bias-free) with BN(1) folded in
    gate_b = []
    gw = {}
    for name in ("hw", "cw", "hc"):
        w = nrm((2, 7, 7), 0.2)                    # (stat {max,mean}, kh, kw)
        gamma = 1.0 + nrm(())
        beta = nrm(())
        mean = nrm(())
        var = 0.5 + jnp.abs(nrm((), 0.3))
        sc = gamma / jnp.sqrt(var + 1e-5)
        gw[name] = w * sc
        gate_b.append(beta - mean * sc)
    p["gate_b"] = jnp.stack(gate_b)[:, None]                       # (3, 1)
    p["ghw_w"] = gw["hw"].reshape(2, 49)                           # taps, kh*7+kw
    # cw gate: conv over (C, W) -> kh is the channel axis; mean scaled by 1/H
    p["band_cw"] = _band_T(gw["cw"], c4, banded_axis_first=True, mean_scale=1.0 / H)
    # hc gate: conv over (H, C) -> kw is the channel axis; mean scaled by 1/W
    p["band_hc"] = _band_T(gw["hc"], c4, banded_axis_first=False, mean_scale=1.0 / W)

    p["wmask"] = _wmask_table(H, W)
    p["bc_w"], p["bc_h"] = _bcast_mats(H, W)
    return p


if __name__ == "__main__":
    B, CH_IN, H, W = 2, 8, 16, 16
    CH_OUT = 4          # expansion=4 -> attention/output channels = 16
    x_nchw = jax.random.normal(jax.random.PRNGKey(0), (B, CH_IN, H, W), jnp.float32)
    params = init_params(jax.random.PRNGKey(42), CH_IN, CH_OUT, H, W)
    y = bottleneck_ld_forward(x_nchw, params, CH_OUT)     # (B, 16, H, W) NCHW
    jax.block_until_ready(y)
    print("KERNEL_OK")
</pallas_src>

<mosaic_0001>
module attributes {stable_mosaic.version = 11 : i64} {
  func.func @_bottleneck_kernel(%arg0: i32, %arg1: memref<1x8x256xf32, #tpu.memory_space<vmem>>, %arg2: memref<20x8xf32, #tpu.memory_space<vmem>>, %arg3: memref<20x1xf32, #tpu.memory_space<vmem>>, %arg4: memref<9x4x4xf32, #tpu.memory_space<vmem>>, %arg5: memref<4x1xf32, #tpu.memory_space<vmem>>, %arg6: memref<16x4xf32, #tpu.memory_space<vmem>>, %arg7: memref<16x24xf32, #tpu.memory_space<vmem>>, %arg8: memref<16x16xf32, #tpu.memory_space<vmem>>, %arg9: memref<16x6xf32, #tpu.memory_space<vmem>>, %arg10: memref<4x16xf32, #tpu.memory_space<vmem>>, %arg11: memref<16x4xf32, #tpu.memory_space<vmem>>, %arg12: memref<2x49xf32, #tpu.memory_space<vmem>>, %arg13: memref<7x16x32xf32, #tpu.memory_space<vmem>>, %arg14: memref<7x16x32xf32, #tpu.memory_space<vmem>>, %arg15: memref<3x1xf32, #tpu.memory_space<vmem>>, %arg16: memref<19x256xf32, #tpu.memory_space<vmem>>, %arg17: memref<16x256xf32, #tpu.memory_space<vmem>>, %arg18: memref<16x256xf32, #tpu.memory_space<vmem>>, %arg19: memref<1x16x256xf32, #tpu.memory_space<vmem>>, %arg20: memref<16x544xf32, #tpu.memory_space<vmem>>, %arg21: memref<32x22xf32, #tpu.memory_space<vmem>>, %arg22: memref<32x22xf32, #tpu.memory_space<vmem>>) attributes {dimension_semantics = [#tpu.dimension_semantics<parallel>], iteration_bounds = array<i64: 2>, scalar_prefetch = 0 : i64, scratch_operands = 3 : i64, tpu.core_type = #tpu.core_type<tc>, window_params = [{transform_indices = @transform_0, window_bounds = array<i64: 1, 8, 256>}, {pipeline_mode = #tpu.pipeline_mode<synchronous>, transform_indices = @transform_1, window_bounds = array<i64: 20, 8>}, {pipeline_mode = #tpu.pipeline_mode<synchronous>, transform_indices = @transform_2, window_bounds = array<i64: 20, 1>}, {pipeline_mode = #tpu.pipeline_mode<synchronous>, transform_indices = @transform_3, window_bounds = array<i64: 9, 4, 4>}, {pipeline_mode = #tpu.pipeline_mode<synchronous>, transform_indices = @transform_4, window_bounds = array<i64: 4, 1>}, {pipeline_mode = #tpu.pipeline_mode<synchronous>, transform_indices = @transform_5, window_bounds = array<i64: 16, 4>}, {pipeline_mode = #tpu.pipeline_mode<synchronous>, transform_indices = @transform_6, window_bounds = array<i64: 16, 24>}, {pipeline_mode = #tpu.pipeline_mode<synchronous>, transform_indices = @transform_7, window_bounds = array<i64: 16, 16>}, {pipeline_mode = #tpu.pipeline_mode<synchronous>, transform_indices = @transform_8, window_bounds = array<i64: 16, 6>}, {pipeline_mode = #tpu.pipeline_mode<synchronous>, transform_indices = @transform_9, window_bounds = array<i64: 4, 16>}, {pipeline_mode = #tpu.pipeline_mode<synchronous>, transform_indices = @transform_10, window_bounds = array<i64: 16, 4>}, {pipeline_mode = #tpu.pipeline_mode<synchronous>, transform_indices = @transform_11, window_bounds = array<i64: 2, 49>}, {pipeline_mode = #tpu.pipeline_mode<synchronous>, transform_indices = @transform_12, window_bounds = array<i64: 7, 16, 32>}, {pipeline_mode = #tpu.pipeline_mode<synchronous>, transform_indices = @transform_13, window_bounds = array<i64: 7, 16, 32>}, {pipeline_mode = #tpu.pipeline_mode<synchronous>, transform_indices = @transform_14, window_bounds = array<i64: 3, 1>}, {pipeline_mode = #tpu.pipeline_mode<synchronous>, transform_indices = @transform_15, window_bounds = array<i64: 19, 256>}, {pipeline_mode = #tpu.pipeline_mode<synchronous>, transform_indices = @transform_16, window_bounds = array<i64: 16, 256>}, {pipeline_mode = #tpu.pipeline_mode<synchronous>, transform_indices = @transform_17, window_bounds = array<i64: 16, 256>}, {transform_indices = @transform_18, window_bounds = array<i64: 1, 16, 256>}]} {
    %c0 = arith.constant 0 : index
    %c0_0 = arith.constant 0 : index
    %c0_1 = arith.constant 0 : index
    %0 = vector.load %arg1[%c0, %c0_0, %c0_1] : memref<1x8x256xf32, #tpu.memory_space<vmem>>, vector<1x8x256xf32>
    %1 = vector.shape_cast %0 : vector<1x8x256xf32> to vector<8x256xf32>
    %c0_2 = arith.constant 0 : index
    %c0_3 = arith.constant 0 : index
    %2 = vector.load %arg2[%c0_2, %c0_3] : memref<20x8xf32, #tpu.memory_space<vmem>>, vector<20x8xf32>
    %cst = arith.constant dense<0.000000e+00> : vector<20x256xf32>
    %3 = tpu.matmul %2, %1, %cst {dimension_numbers = #tpu.dot_dimension_numbers<[1], [0], [0], [1], [0, 0, 1, 1], [], []>} : vector<20x8xf32>, vector<8x256xf32>, vector<20x256xf32> -> vector<20x256xf32>
    %c0_4 = arith.constant 0 : index
    %c0_5 = arith.constant 0 : index
    %4 = vector.load %arg3[%c0_4, %c0_5] : memref<20x1xf32, #tpu.memory_space<vmem>>, vector<20x1xf32>
    %5 = vector.broadcast %4 : vector<20x1xf32> to vector<20x256xf32>
    %6 = arith.addf %3, %5 : vector<20x256xf32>
    %7 = vector.extract_strided_slice %6 {offsets = [0, 0], sizes = [4, 256], strides = [1, 1]} : vector<20x256xf32> to vector<4x256xf32>
    %cst_6 = arith.constant 0.000000e+00 : f32
    %8 = vector.broadcast %cst_6 : f32 to vector<4x256xf32>
    %9 = arith.maximumf %7, %8 : vector<4x256xf32>
    %10 = vector.extract_strided_slice %6 {offsets = [4, 0], sizes = [16, 256], strides = [1, 1]} : vector<20x256xf32> to vector<16x256xf32>
    %cst_7 = arith.constant 0.000000e+00 : f32
    %11 = vector.broadcast %cst_7 : f32 to vector<16x144xf32>
    %c0_8 = arith.constant 0 : index
    %c0_9 = arith.constant 0 : index
    %12 = vector.load %arg20[%c0_8, %c0_9] : memref<16x544xf32, #tpu.memory_space<vmem>>, vector<16x144xf32>
    tpu.vector_store %arg20[%c0_8, %c0_9], %11 {strides = array<i32>} : memref<16x544xf32, #tpu.memory_space<vmem>>, vector<16x144xf32>,
    %cst_10 = arith.constant 0.000000e+00 : f32
    %13 = vector.broadcast %cst_10 : f32 to vector<16x144xf32>
    %c0_11 = arith.constant 0 : index
    %c400 = arith.constant 400 : index
    %14 = vector.load %arg20[%c0_11, %c400] : memref<16x544xf32, #tpu.memory_space<vmem>>, vector<16x144xf32>
    tpu.vector_store %arg20[%c0_11, %c400], %13 {strides = array<i32>} : memref<16x544xf32, #tpu.memory_space<vmem>>, vector<16x144xf32>,
    %c0_12 = arith.constant 0 : index
    %c144 = arith.constant 144 : index
    %15 = vector.load %arg20[%c0_12, %c144] : memref<16x544xf32, #tpu.memory_space<vmem>>, vector<4x256xf32>
    tpu.vector_store %arg20[%c0_12, %c144], %9 {strides = array<i32>} : memref<16x544xf32, #tpu.memory_space<vmem>>, vector<4x256xf32>,
    %c0_13 = arith.constant 0 : index
    %c0_14 = arith.constant 0 : index
    %16 = vector.load %arg5[%c0_13, %c0_14] : memref<4x1xf32, #tpu.memory_space<vmem>>, vector<4x1xf32>
    %17 = vector.shape_cast %16 : vector<4x1xf32> to vector<4x1xf32>
    %18 = vector.broadcast %17 : vector<4x1xf32> to vector<4x256xf32>
    %cst_15 = arith.constant 0.000000e+00 : f32
    %19 = vector.broadcast %cst_15 : f32 to vector<4x256xf32>
    %c0_16 = arith.constant 0 : index
    %c0_17 = arith.constant 0 : index
    %c0_18 = arith.constant 0 : index
    %20 = vector.load %arg4[%c0_16, %c0_17, %c0_18] : memref<9x4x4xf32, #tpu.memory_space<vmem>>, vector<1x4x4xf32>
    %21 = vector.shape_cast %20 : vector<1x4x4xf32> to vector<4x4xf32>
    %c0_19 = arith.constant 0 : index
    %c127 = arith.constant 127 : index
    %22 = vector.load %arg20[%c0_19, %c127] : memref<16x544xf32, #tpu.memory_space<vmem>>, vector<4x256xf32>
    %cst_20 = arith.constant dense<0.000000e+00> : vector<4x256xf32>
    %23 = tpu.matmul %21, %22, %cst_20 {dimension_numbers = #tpu.dot_dimension_numbers<[1], [0], [0], [1], [0, 0, 1, 1], [], []>} : vector<4x4xf32>, vector<4x256xf32>, vector<4x256xf32> -> vector<4x256xf32>
    %24 = arith.addf %19, %23 : vector<4x256xf32>
    %c3 = arith.constant 3 : index
    %c0_21 = arith.constant 0 : index
    %c0_22 = arith.constant 0 : index
    %25 = vector.load %arg4[%c3, %c0_21, %c0_22] : memref<9x4x4xf32, #tpu.memory_space<vmem>>, vector<1x4x4xf32>
    %26 = vector.shape_cast %25 : vector<1x4x4xf32> to vector<4x4xf32>
    %c0_23 = arith.constant 0 : index
    %c143 = arith.constant 143 : index
    %27 = vector.load %arg20[%c0_23, %c143] : memref<16x544xf32, #tpu.memory_space<vmem>>, vector<4x256xf32>
    %cst_24 = arith.constant dense<0.000000e+00> : vector<4x256xf32>
    %28 = tpu.matmul %26, %27, %cst_24 {dimension_numbers = #tpu.dot_dimension_numbers<[1], [0], [0], [1], [0, 0, 1, 1], [], []>} : vector<4x4xf32>, vector<4x256xf32>, vector<4x256xf32> -> vector<4x256xf32>
    %29 = arith.addf %24, %28 : vector<4x256xf32>
    %c6 = arith.constant 6 : index
    %c0_25 = arith.constant 0 : index
    %c0_26 = arith.constant 0 : index
    %30 = vector.load %arg4[%c6, %c0_25, %c0_26] : memref<9x4x4xf32, #tpu.memory_space<vmem>>, vector<1x4x4xf32>
    %31 = vector.shape_cast %30 : vector<1x4x4xf32> to vector<4x4xf32>
    %c0_27 = arith.constant 0 : index
    %c159 = arith.constant 159 : index
    %32 = vector.load %arg20[%c0_27, %c159] : memref<16x544xf32, #tpu.memory_space<vmem>>, vector<4x256xf32>
    %cst_28 = arith.constant dense<0.000000e+00> : vector<4x256xf32>
    %33 = tpu.matmul %31, %32, %cst_28 {dimension_numbers = #tpu.dot_dimension_numbers<[1], [0], [0], [1], [0, 0, 1, 1], [], []>} : vector<4x4xf32>, vector<4x256xf32>, vector<4x256xf32> -> vector<4x256xf32>
    %34 = arith.addf %29, %33 : vector<4x256xf32>
    %c8 = arith.constant 8 : index
    %c0_29 = arith.constant 0 : index
    %35 = vector.load %arg16[%c8, %c0_29] : memref<19x256xf32, #tpu.memory_space<vmem>>, vector<1x256xf32>
    %36 = vector.broadcast %35 : vector<1x256xf32> to vector<4x256xf32>
    %37 = arith.mulf %34, %36 : vector<4x256xf32>
    %38 = arith.addf %18, %37 : vector<4x256xf32>
    %cst_30 = arith.constant 0.000000e+00 : f32
    %39 = vector.broadcast %cst_30 : f32 to vector<4x256xf32>
    %c1 = arith.constant 1 : index
    %c0_31 = arith.constant 0 : index
    %c0_32 = arith.constant 0 : index
    %40 = vector.load %arg4[%c1, %c0_31, %c0_32] : memref<9x4x4xf32, #tpu.memory_space<vmem>>, vector<1x4x4xf32>
    %41 = vector.shape_cast %40 : vector<1x4x4xf32> to vector<4x4xf32>
    %c0_33 = arith.constant 0 : index
    %c128 = arith.constant 128 : index
    %42 = vector.load %arg20[%c0_33, %c128] : memref<16x544xf32, #tpu.memory_space<vmem>>, vector<4x256xf32>
    %cst_34 = arith.constant dense<0.000000e+00> : vector<4x256xf32>
    %43 = tpu.matmul %41, %42, %cst_34 {dimension_numbers = #tpu.dot_dimension_numbers<[1], [0], [0], [1], [0, 0, 1, 1], [], []>} : vector<4x4xf32>, vector<4x256xf32>, vector<4x256xf32> -> vector<4x256xf32>
    %44 = arith.addf %39, %43 : vector<4x256xf32>
    %c4 = arith.constant 4 : index
    %c0_35 = arith.constant 0 : index
    %c0_36 = arith.constant 0 : index
    %45 = vector.load %arg4[%c4, %c0_35, %c0_36] : memref<9x4x4xf32, #tpu.memory_space<vmem>>, vector<1x4x4xf32>
    %46 = vector.shape_cast %45 : vector<1x4x4xf32> to vector<4x4xf32>
    %c0_37 = arith.constant 0 : index
    %c144_38 = arith.constant 144 : index
    %47 = vector.load %arg20[%c0_37, %c144_38] : memref<16x544xf32, #tpu.memory_space<vmem>>, vector<4x256xf32>
    %cst_39 = arith.constant dense<0.000000e+00> : vector<4x256xf32>
    %48 = tpu.matmul %46, %47, %cst_39 {dimension_numbers = #tpu.dot_dimension_numbers<[1], [0], [0], [1], [0, 0, 1, 1], [], []>} : vector<4x4xf32>, vector<4x256xf32>, vector<4x256xf32> -> vector<4x256xf32>
    %49 = arith.addf %44, %48 : vector<4x256xf32>
    %c7 = arith.constant 7 : index
    %c0_40 = arith.constant 0 : index
    %c0_41 = arith.constant 0 : index
    %50 = vector.load %arg4[%c7, %c0_40, %c0_41] : memref<9x4x4xf32, #tpu.memory_space<vmem>>, vector<1x4x4xf32>
    %51 = vector.shape_cast %50 : vector<1x4x4xf32> to vector<4x4xf32>
    %c0_42 = arith.constant 0 : index
    %c160 = arith.constant 160 : index
    %52 = vector.load %arg20[%c0_42, %c160] : memref<16x544xf32, #tpu.memory_space<vmem>>, vector<4x256xf32>
    %cst_43 = arith.constant dense<0.000000e+00> : vector<4x256xf32>
    %53 = tpu.matmul %51, %52, %cst_43 {dimension_numbers = #tpu.dot_dimension_numbers<[1], [0], [0], [1], [0, 0, 1, 1], [], []>} : vector<4x4xf32>, vector<4x256xf32>, vector<4x256xf32> -> vector<4x256xf32>
    %54 = arith.addf %49, %53 : vector<4x256xf32>
    %c9 = arith.constant 9 : index
    %c0_44 = arith.constant 0 : index
    %55 = vector.load %arg16[%c9, %c0_44] : memref<19x256xf32, #tpu.memory_space<vmem>>, vector<1x256xf32>
    %56 = vector.broadcast %55 : vector<1x256xf32> to vector<4x256xf32>
    %57 = arith.mulf %54, %56 : vector<4x256xf32>
    %58 = arith.addf %38, %57 : vector<4x256xf32>
    %cst_45 = arith.constant 0.000000e+00 : f32
    %59 = vector.broadcast %cst_45 : f32 to vector<4x256xf32>
    %c2 = arith.constant 2 : index
    %c0_46 = arith.constant 0 : index
    %c0_47 = arith.constant 0 : index
    %60 = vector.load %arg4[%c2, %c0_46, %c0_47] : memref<9x4x4xf32, #tpu.memory_space<vmem>>, vector<1x4x4xf32>
    %61 = vector.shape_cast %60 : vector<1x4x4xf32> to vector<4x4xf32>
    %c0_48 = arith.constant 0 : index
    %c129 = arith.constant 129 : index
    %62 = vector.load %arg20[%c0_48, %c129] : memref<16x544xf32, #tpu.memory_space<vmem>>, vector<4x256xf32>
    %cst_49 = arith.constant dense<0.000000e+00> : vector<4x256xf32>
    %63 = tpu.matmul %61, %62, %cst_49 {dimension_numbers = #tpu.dot_dimension_numbers<[1], [0], [0], [1], [0, 0, 1, 1], [], []>} : vector<4x4xf32>, vector<4x256xf32>, vector<4x256xf32> -> vector<4x256xf32>
    %64 = arith.addf %59, %63 : vector<4x256xf32>
    %c5 = arith.constant 5 : index
    %c0_50 = arith.constant 0 : index
    %c0_51 = arith.constant 0 : index
    %65 = vector.load %arg4[%c5, %c0_50, %c0_51] : memref<9x4x4xf32, #tpu.memory_space<vmem>>, vector<1x4x4xf32>
    %66 = vector.shape_cast %65 : vector<1x4x4xf32> to vector<4x4xf32>
    %c0_52 = arith.constant 0 : index
    %c145 = arith.constant 145 : index
    %67 = vector.load %arg20[%c0_52, %c145] : memref<16x544xf32, #tpu.memory_space<vmem>>, vector<4x256xf32>
    %cst_53 = arith.constant dense<0.000000e+00> : vector<4x256xf32>
    %68 = tpu.matmul %66, %67, %cst_53 {dimension_numbers = #tpu.dot_dimension_numbers<[1], [0], [0], [1], [0, 0, 1, 1], [], []>} : vector<4x4xf32>, vector<4x256xf32>, vector<4x256xf32> -> vector<4x256xf32>
    %69 = arith.addf %64, %68 : vector<4x256xf32>
    %c8_54 = arith.constant 8 : index
    %c0_55 = arith.constant 0 : index
    %c0_56 = arith.constant 0 : index
    %70 = vector.load %arg4[%c8_54, %c0_55, %c0_56] : memref<9x4x4xf32, #tpu.memory_space<vmem>>, vector<1x4x4xf32>
    %71 = vector.shape_cast %70 : vector<1x4x4xf32> to vector<4x4xf32>
    %c0_57 = arith.constant 0 : index
    %c161 = arith.constant 161 : index
    %72 = vector.load %arg20[%c0_57, %c161] : memref<16x544xf32, #tpu.memory_space<vmem>>, vector<4x256xf32>
    %cst_58 = arith.constant dense<0.000000e+00> : vector<4x256xf32>
    %73 = tpu.matmul %71, %72, %cst_58 {dimension_numbers = #tpu.dot_dimension_numbers<[1], [0], [0], [1], [0, 0, 1, 1], [], []>} : vector<4x4xf32>, vector<4x256xf32>, vector<4x256xf32> -> vector<4x256xf32>
    %74 = arith.addf %69, %73 : vector<4x256xf32>
    %c10 = arith.constant 10 : index
    %c0_59 = arith.constant 0 : index
    %75 = vector.load %arg16[%c10, %c0_59] : memref<19x256xf32, #tpu.memory_space<vmem>>, vector<1x256xf32>
    %76 = vector.broadcast %75 : vector<1x256xf32> to vector<4x256xf32>
    %77 = arith.mulf %74, %76 : vector<4x256xf32>
    %78 = arith.addf %58, %77 : vector<4x256xf32>
    %cst_60 = arith.constant 0.000000e+00 : f32
    %79 = vector.broadcast %cst_60 : f32 to vector<4x256xf32>
    %80 = arith.maximumf %78, %79 : vector<4x256xf32>
    %c0_61 = arith.constant 0 : index
    %c0_62 = arith.constant 0 : index
    %81 = vector.load %arg6[%c0_61, %c0_62] : memref<16x4xf32, #tpu.memory_space<vmem>>, vector<16x4xf32>
    %cst_63 = arith.constant dense<0.000000e+00> : vector<16x256xf32>
    %82 = tpu.matmul %81, %80, %cst_63 {dimension_numbers = #tpu.dot_dimension_numbers<[1], [0], [0], [1], [0, 0, 1, 1], [], []>} : vector<16x4xf32>, vector<4x256xf32>, vector<16x256xf32> -> vector<16x256xf32>
    %c0_64 = arith.constant 0 : index
    %c0_65 = arith.constant 0 : index
    %83 = vector.load %arg9[%c0_64, %c0_65] : memref<16x6xf32, #tpu.memory_space<vmem>>, vector<16x1xf32>
    %84 = vector.broadcast %83 : vector<16x1xf32> to vector<16x256xf32>
    %85 = arith.addf %82, %84 : vector<16x256xf32>
    %c0_66 = arith.constant 0 : index
    %c144_67 = arith.constant 144 : index
    %86 = vector.load %arg20[%c0_66, %c144_67] : memref<16x544xf32, #tpu.memory_space<vmem>>, vector<16x256xf32>
    tpu.vector_store %arg20[%c0_66, %c144_67], %85 {strides = array<i32>} : memref<16x544xf32, #tpu.memory_space<vmem>>, vector<16x256xf32>,
    %c0_68 = arith.constant 0 : index
    %c1_69 = arith.constant 1 : index
    %87 = vector.load %arg9[%c0_68, %c1_69] : memref<16x6xf32, #tpu.memory_space<vmem>>, vector<16x1xf32>
    %88 = vector.shape_cast %87 : vector<16x1xf32> to vector<16x1xf32>
    %89 = vector.broadcast %88 : vector<16x1xf32> to vector<16x256xf32>
    %c0_70 = arith.constant 0 : index
    %c142 = arith.constant 142 : index
    %90 = vector.load %arg20[%c0_70, %c142] : memref<16x544xf32, #tpu.memory_space<vmem>>, vector<16x256xf32>
    %c0_71 = arith.constant 0 : index
    %c0_72 = arith.constant 0 : index
    %91 = vector.load %arg7[%c0_71, %c0_72] : memref<16x24xf32, #tpu.memory_space<vmem>>, vector<16x1xf32>
    %92 = vector.broadcast %91 : vector<16x1xf32> to vector<16x256xf32>
    %93 = arith.mulf %90, %92 : vector<16x256xf32>
    %c7_73 = arith.constant 7 : index
    %c0_74 = arith.constant 0 : index
    %94 = vector.load %arg16[%c7_73, %c0_74] : memref<19x256xf32, #tpu.memory_space<vmem>>, vector<1x256xf32>
    %95 = vector.broadcast %94 : vector<1x256xf32> to vector<16x256xf32>
    %96 = arith.mulf %93, %95 : vector<16x256xf32>
    %97 = arith.addf %89, %96 : vector<16x256xf32>
    %c0_75 = arith.constant 0 : index
    %c143_76 = arith.constant 143 : index
    %98 = vector.load %arg20[%c0_75, %c143_76] : memref<16x544xf32, #tpu.memory_space<vmem>>, vector<16x256xf32>
    %c0_77 = arith.constant 0 : index
    %c1_78 = arith.constant 1 : index
    %99 = vector.load %arg7[%c0_77, %c1_78] : memref<16x24xf32, #tpu.memory_space<vmem>>, vector<16x1xf32>
    %100 = vector.broadcast %99 : vector<16x1xf32> to vector<16x256xf32>
    %101 = arith.mulf %98, %100 : vector<16x256xf32>
    %c8_79 = arith.constant 8 : index
    %c0_80 = arith.constant 0 : index
    %102 = vector.load %arg16[%c8_79, %c0_80] : memref<19x256xf32, #tpu.memory_space<vmem>>, vector<1x256xf32>
    %103 = vector.broadcast %102 : vector<1x256xf32> to vector<16x256xf32>
    %104 = arith.mulf %101, %103 : vector<16x256xf32>
    %105 = arith.addf %97, %104 : vector<16x256xf32>
    %c0_81 = arith.constant 0 : index
    %c144_82 = arith.constant 144 : index
    %106 = vector.load %arg20[%c0_81, %c144_82] : memref<16x544xf32, #tpu.memory_space<vmem>>, vector<16x256xf32>
    %c0_83 = arith.constant 0 : index
    %c2_84 = arith.constant 2 : index
    %107 = vector.load %arg7[%c0_83, %c2_84] : memref<16x24xf32, #tpu.memory_space<vmem>>, vector<16x1xf32>
    %108 = vector.broadcast %107 : vector<16x1xf32> to vector<16x256xf32>
    %109 = arith.mulf %106, %108 : vector<16x256xf32>
    %c9_85 = arith.constant 9 : index
    %c0_86 = arith.constant 0 : index
    %110 = vector.load %arg16[%c9_85, %c0_86] : memref<19x256xf32, #tpu.memory_space<vmem>>, vector<1x256xf32>
    %111 = vector.broadcast %110 : vector<1x256xf32> to vector<16x256xf32>
    %112 = arith.mulf %109, %111 : vector<16x256xf32>
    %113 = arith.addf %105, %112 : vector<16x256xf32>
    %c0_87 = arith.constant 0 : index
    %c145_88 = arith.constant 145 : index
    %114 = vector.load %arg20[%c0_87, %c145_88] : memref<16x544xf32, #tpu.memory_space<vmem>>, vector<16x256xf32>
    %c0_89 = arith.constant 0 : index
    %c3_90 = arith.constant 3 : index
    %115 = vector.load %arg7[%c0_89, %c3_90] : memref<16x24xf32, #tpu.memory_space<vmem>>, vector<16x1xf32>
    %116 = vector.broadcast %115 : vector<16x1xf32> to vector<16x256xf32>
    %117 = arith.mulf %114, %116 : vector<16x256xf32>
    %c10_91 = arith.constant 10 : index
    %c0_92 = arith.constant 0 : index
    %118 = vector.load %arg16[%c10_91, %c0_92] : memref<19x256xf32, #tpu.memory_space<vmem>>, vector<1x256xf32>
    %119 = vector.broadcast %118 : vector<1x256xf32> to vector<16x256xf32>
    %120 = arith.mulf %117, %119 : vector<16x256xf32>
    %121 = arith.addf %113, %120 : vector<16x256xf32>
    %c0_93 = arith.constant 0 : index
    %c146 = arith.constant 146 : index
    %122 = vector.load %arg20[%c0_93, %c146] : memref<16x544xf32, #tpu.memory_space<vmem>>, vector<16x256xf32>
    %c0_94 = arith.constant 0 : index
    %c4_95 = arith.constant 4 : index
    %123 = vector.load %arg7[%c0_94, %c4_95] : memref<16x24xf32, #tpu.memory_space<vmem>>, vector<16x1xf32>
    %124 = vector.broadcast %123 : vector<16x1xf32> to vector<16x256xf32>
    %125 = arith.mulf %122, %124 : vector<16x256xf32>
    %c11 = arith.constant 11 : index
    %c0_96 = arith.constant 0 : index
    %126 = vector.load %arg16[%c11, %c0_96] : memref<19x256xf32, #tpu.memory_space<vmem>>, vector<1x256xf32>
    %127 = vector.broadcast %126 : vector<1x256xf32> to vector<16x256xf32>
    %128 = arith.mulf %125, %127 : vector<16x256xf32>
    %129 = arith.addf %121, %128 : vector<16x256xf32>
    %c0_97 = arith.constant 0 : index
    %c144_98 = arith.constant 144 : index
    %130 = vector.load %arg20[%c0_97, %c144_98] : memref<16x544xf32, #tpu.memory_space<vmem>>, vector<16x256xf32>
    tpu.vector_store %arg20[%c0_97, %c144_98], %129 {strides = array<i32>} : memref<16x544xf32, #tpu.memory_space<vmem>>, vector<16x256xf32>,
    %c0_99 = arith.constant 0 : index
    %c2_100 = arith.constant 2 : index
    %131 = vector.load %arg9[%c0_99, %c2_100] : memref<16x6xf32, #tpu.memory_space<vmem>>, vector<16x1xf32>
    %132 = vector.shape_cast %131 : vector<16x1xf32> to vector<16x1xf32>
    %133 = vector.broadcast %132 : vector<16x1xf32> to vector<16x256xf32>
    %c0_101 = arith.constant 0 : index
    %c112 = arith.constant 112 : index
    %134 = vector.load %arg20[%c0_101, %c112] : memref<16x544xf32, #tpu.memory_space<vmem>>, vector<16x256xf32>
    %c0_102 = arith.constant 0 : index
    %c5_103 = arith.constant 5 : index
    %135 = vector.load %arg7[%c0_102, %c5_103] : memref<16x24xf32, #tpu.memory_space<vmem>>, vector<16x1xf32>
    %136 = vector.broadcast %135 : vector<16x1xf32> to vector<16x256xf32>
    %137 = arith.mulf %134, %136 : vector<16x256xf32>
    %138 = arith.addf %133, %137 : vector<16x256xf32>
    %c0_104 = arith.constant 0 : index
    %c128_105 = arith.constant 128 : index
    %139 = vector.load %arg20[%c0_104, %c128_105] : memref<16x544xf32, #tpu.memory_space<vmem>>, vector<16x256xf32>
    %c0_106 = arith.constant 0 : index
    %c6_107 = arith.constant 6 : index
    %140 = vector.load %arg7[%c0_106, %c6_107] : memref<16x24xf32, #tpu.memory_space<vmem>>, vector<16x1xf32>
    %141 = vector.broadcast %140 : vector<16x1xf32> to vector<16x256xf32>
    %142 = arith.mulf %139, %141 : vector<16x256xf32>
    %143 = arith.addf %138, %142 : vector<16x256xf32>
    %c0_108 = arith.constant 0 : index
    %c144_109 = arith.constant 144 : index
    %144 = vector.load %arg20[%c0_108, %c144_109] : memref<16x544xf32, #tpu.memory_space<vmem>>, vector<16x256xf32>
    %c0_110 = arith.constant 0 : index
    %c7_111 = arith.constant 7 : index
    %145 = vector.load %arg7[%c0_110, %c7_111] : memref<16x24xf32, #tpu.memory_space<vmem>>, vector<16x1xf32>
    %146 = vector.broadcast %145 : vector<16x1xf32> to vector<16x256xf32>
    %147 = arith.mulf %144, %146 : vector<16x256xf32>
    %148 = arith.addf %143, %147 : vector<16x256xf32>
    %c0_112 = arith.constant 0 : index
    %c160_113 = arith.constant 160 : index
    %149 = vector.load %arg20[%c0_112, %c160_113] : memref<16x544xf32, #tpu.memory_space<vmem>>, vector<16x256xf32>
    %c0_114 = arith.constant 0 : index
    %c8_115 = arith.constant 8 : index
    %150 = vector.load %arg7[%c0_114, %c8_115] : memref<16x24xf32, #tpu.memory_space<vmem>>, vector<16x1xf32>
    %151 = vector.broadcast %150 : vector<16x1xf32> to vector<16x256xf32>
    %152 = arith.mulf %149, %151 : vector<16x256xf32>
    %153 = arith.addf %148, %152 : vector<16x256xf32>
    %c0_116 = arith.constant 0 : index
    %c176 = arith.constant 176 : index
    %154 = vector.load %arg20[%c0_116, %c176] : memref<16x544xf32, #tpu.memory_space<vmem>>, vector<16x256xf32>
    %c0_117 = arith.constant 0 : index
    %c9_118 = arith.constant 9 : index
    %155 = vector.load %arg7[%c0_117, %c9_118] : memref<16x24xf32, #tpu.memory_space<vmem>>, vector<16x1xf32>
    %156 = vector.broadcast %155 : vector<16x1xf32> to vector<16x256xf32>
    %157 = arith.mulf %154, %156 : vector<16x256xf32>
    %158 = arith.addf %153, %157 : vector<16x256xf32>
    %c0_119 = arith.constant 0 : index
    %c144_120 = arith.constant 144 : index
    %159 = vector.load %arg20[%c0_119, %c144_120] : memref<16x544xf32, #tpu.memory_space<vmem>>, vector<16x256xf32>
    tpu.vector_store %arg20[%c0_119, %c144_120], %158 {strides = array<i32>} : memref<16x544xf32, #tpu.memory_space<vmem>>, vector<16x256xf32>,
    %c0_121 = arith.constant 0 : index
    %c3_122 = arith.constant 3 : index
    %160 = vector.load %arg9[%c0_121, %c3_122] : memref<16x6xf32, #tpu.memory_space<vmem>>, vector<16x1xf32>
    %161 = vector.shape_cast %160 : vector<16x1xf32> to vector<16x1xf32>
    %162 = vector.broadcast %161 : vector<16x1xf32> to vector<16x256xf32>
    %c0_123 = arith.constant 0 : index
    %c135 = arith.constant 135 : index
    %163 = vector.load %arg20[%c0_123, %c135] : memref<16x544xf32, #tpu.memory_space<vmem>>, vector<16x256xf32>
    %c0_124 = arith.constant 0 : index
    %c10_125 = arith.constant 10 : index
    %164 = vector.load %arg7[%c0_124, %c10_125] : memref<16x24xf32, #tpu.memory_space<vmem>>, vector<16x1xf32>
    %165 = vector.broadcast %164 : vector<16x1xf32> to vector<16x256xf32>
    %166 = arith.mulf %163, %165 : vector<16x256xf32>
    %c0_126 = arith.constant 0 : index
    %c0_127 = arith.constant 0 : index
    %167 = vector.load %arg16[%c0_126, %c0_127] : memref<19x256xf32, #tpu.memory_space<vmem>>, vector<1x256xf32>
    %168 = vector.broadcast %167 : vector<1x256xf32> to vector<16x256xf32>
    %169 = arith.mulf %166, %168 : vector<16x256xf32>
    %170 = arith.addf %162, %169 : vector<16x256xf32>
    %c0_128 = arith.constant 0 : index
    %c138 = arith.constant 138 : index
    %171 = vector.load %arg20[%c0_128, %c138] : memref<16x544xf32, #tpu.memory_space<vmem>>, vector<16x256xf32>
    %c0_129 = arith.constant 0 : index
    %c11_130 = arith.constant 11 : index
    %172 = vector.load %arg7[%c0_129, %c11_130] : memref<16x24xf32, #tpu.memory_space<vmem>>, vector<16x1xf32>
    %173 = vector.broadcast %172 : vector<16x1xf32> to vector<16x256xf32>
    %174 = arith.mulf %171, %173 : vector<16x256xf32>
    %c3_131 = arith.constant 3 : index
    %c0_132 = arith.constant 0 : index
    %175 = vector.load %arg16[%c3_131, %c0_132] : memref<19x256xf32, #tpu.memory_space<vmem>>, vector<1x256xf32>
    %176 = vector.broadcast %175 : vector<1x256xf32> to vector<16x256xf32>
    %177 = arith.mulf %174, %176 : vector<16x256xf32>
    %178 = arith.addf %170, %177 : vector<16x256xf32>
    %c0_133 = arith.constant 0 : index
    %c141 = arith.constant 141 : index
    %179 = vector.load %arg20[%c0_133, %c141] : memref<16x544xf32, #tpu.memory_space<vmem>>, vector<16x256xf32>
    %c0_134 = arith.constant 0 : index
    %c12 = arith.constant 12 : index
    %180 = vector.load %arg7[%c0_134, %c12] : memref<16x24xf32, #tpu.memory_space<vmem>>, vector<16x1xf32>
    %181 = vector.broadcast %180 : vector<16x1xf32> to vector<16x256xf32>
    %182 = arith.mulf %179, %181 : vector<16x256xf32>
    %c6_135 = arith.constant 6 : index
    %c0_136 = arith.constant 0 : index
    %183 = vector.load %arg16[%c6_135, %c0_136] : memref<19x256xf32, #tpu.memory_space<vmem>>, vector<1x256xf32>
    %184 = vector.broadcast %183 : vector<1x256xf32> to vector<16x256xf32>
    %185 = arith.mulf %182, %184 : vector<16x256xf32>
    %186 = arith.addf %178, %185 : vector<16x256xf32>
    %c0_137 = arith.constant 0 : index
    %c144_138 = arith.constant 144 : index
    %187 = vector.load %arg20[%c0_137, %c144_138] : memref<16x544xf32, #tpu.memory_space<vmem>>, vector<16x256xf32>
    %c0_139 = arith.constant 0 : index
    %c13 = arith.constant 13 : index
    %188 = vector.load %arg7[%c0_139, %c13] : memref<16x24xf32, #tpu.memory_space<vmem>>, vector<16x1xf32>
    %189 = vector.broadcast %188 : vector<16x1xf32> to vector<16x256xf32>
    %190 = arith.mulf %187, %189 : vector<16x256xf32>
    %c9_140 = arith.constant 9 : index
    %c0_141 = arith.constant 0 : index
    %191 = vector.load %arg16[%c9_140, %c0_141] : memref<19x256xf32, #tpu.memory_space<vmem>>, vector<1x256xf32>
    %192 = vector.broadcast %191 : vector<1x256xf32> to vector<16x256xf32>
    %193 = arith.mulf %190, %192 : vector<16x256xf32>
    %194 = arith.addf %186, %193 : vector<16x256xf32>
    %c0_142 = arith.constant 0 : index
    %c147 = arith.constant 147 : index
    %195 = vector.load %arg20[%c0_142, %c147] : memref<16x544xf32, #tpu.memory_space<vmem>>, vector<16x256xf32>
    %c0_143 = arith.constant 0 : index
    %c14 = arith.constant 14 : index
    %196 = vector.load %arg7[%c0_143, %c14] : memref<16x24xf32, #tpu.memory_space<vmem>>, vector<16x1xf32>
    %197 = vector.broadcast %196 : vector<16x1xf32> to vector<16x256xf32>
    %198 = arith.mulf %195, %197 : vector<16x256xf32>
    %c12_144 = arith.constant 12 : index
    %c0_145 = arith.constant 0 : index
    %199 = vector.load %arg16[%c12_144, %c0_145] : memref<19x256xf32, #tpu.memory_space<vmem>>, vector<1x256xf32>
    %200 = vector.broadcast %199 : vector<1x256xf32> to vector<16x256xf32>
    %201 = arith.mulf %198, %200 : vector<16x256xf32>
    %202 = arith.addf %194, %201 : vector<16x256xf32>
    %c0_146 = arith.constant 0 : index
    %c150 = arith.constant 150 : index
    %203 = vector.load %arg20[%c0_146, %c150] : memref<16x544xf32, #tpu.memory_space<vmem>>, vector<16x256xf32>
    %c0_147 = arith.constant 0 : index
    %c15 = arith.constant 15 : index
    %204 = vector.load %arg7[%c0_147, %c15] : memref<16x24xf32, #tpu.memory_space<vmem>>, vector<16x1xf32>
    %205 = vector.broadcast %204 : vector<16x1xf32> to vector<16x256xf32>
    %206 = arith.mulf %203, %205 : vector<16x256xf32>
    %c15_148 = arith.constant 15 : index
    %c0_149 = arith.constant 0 : index
    %207 = vector.load %arg16[%c15_148, %c0_149] : memref<19x256xf32, #tpu.memory_space<vmem>>, vector<1x256xf32>
    %208 = vector.broadcast %207 : vector<1x256xf32> to vector<16x256xf32>
    %209 = arith.mulf %206, %208 : vector<16x256xf32>
    %210 = arith.addf %202, %209 : vector<16x256xf32>
    %c0_150 = arith.constant 0 : index
    %c153 = arith.constant 153 : index
    %211 = vector.load %arg20[%c0_150, %c153] : memref<16x544xf32, #tpu.memory_space<vmem>>, vector<16x256xf32>
    %c0_151 = arith.constant 0 : index
    %c16 = arith.constant 16 : index
    %212 = vector.load %arg7[%c0_151, %c16] : memref<16x24xf32, #tpu.memory_space<vmem>>, vector<16x1xf32>
    %213 = vector.broadcast %212 : vector<16x1xf32> to vector<16x256xf32>
    %214 = arith.mulf %211, %213 : vector<16x256xf32>
    %c18 = arith.constant 18 : index
    %c0_152 = arith.constant 0 : index
    %215 = vector.load %arg16[%c18, %c0_152] : memref<19x256xf32, #tpu.memory_space<vmem>>, vector<1x256xf32>
    %216 = vector.broadcast %215 : vector<1x256xf32> to vector<16x256xf32>
    %217 = arith.mulf %214, %216 : vector<16x256xf32>
    %218 = arith.addf %210, %217 : vector<16x256xf32>
    %c0_153 = arith.constant 0 : index
    %c144_154 = arith.constant 144 : index
    %219 = vector.load %arg20[%c0_153, %c144_154] : memref<16x544xf32, #tpu.memory_space<vmem>>, vector<16x256xf32>
    tpu.vector_store %arg20[%c0_153, %c144_154], %218 {strides = array<i32>} : memref<16x544xf32, #tpu.memory_space<vmem>>, vector<16x256xf32>,
    %c0_155 = arith.constant 0 : index
    %c4_156 = arith.constant 4 : index
    %220 = vector.load %arg9[%c0_155, %c4_156] : memref<16x6xf32, #tpu.memory_space<vmem>>, vector<16x1xf32>
    %221 = vector.shape_cast %220 : vector<16x1xf32> to vector<16x1xf32>
    %222 = vector.broadcast %221 : vector<16x1xf32> to vector<16x256xf32>
    %c0_157 = arith.constant 0 : index
    %c0_158 = arith.constant 0 : index
    %223 = vector.load %arg20[%c0_157, %c0_158] : memref<16x544xf32, #tpu.memory_space<vmem>>, vector<16x256xf32>
    %c0_159 = arith.constant 0 : index
    %c17 = arith.constant 17 : index
    %224 = vector.load %arg7[%c0_159, %c17] : memref<16x24xf32, #tpu.memory_space<vmem>>, vector<16x1xf32>
    %225 = vector.broadcast %224 : vector<16x1xf32> to vector<16x256xf32>
    %226 = arith.mulf %223, %225 : vector<16x256xf32>
    %227 = arith.addf %222, %226 : vector<16x256xf32>
    %c0_160 = arith.constant 0 : index
    %c48 = arith.constant 48 : index
    %228 = vector.load %arg20[%c0_160, %c48] : memref<16x544xf32, #tpu.memory_space<vmem>>, vector<16x256xf32>
    %c0_161 = arith.constant 0 : index
    %c18_162 = arith.constant 18 : index
    %229 = vector.load %arg7[%c0_161, %c18_162] : memref<16x24xf32, #tpu.memory_space<vmem>>, vector<16x1xf32>
    %230 = vector.broadcast %229 : vector<16x1xf32> to vector<16x256xf32>
    %231 = arith.mulf %228, %230 : vector<16x256xf32>
    %232 = arith.addf %227, %231 : vector<16x256xf32>
    %c0_163 = arith.constant 0 : index
    %c96 = arith.constant 96 : index
    %233 = vector.load %arg20[%c0_163, %c96] : memref<16x544xf32, #tpu.memory_space<vmem>>, vector<16x256xf32>
    %c0_164 = arith.constant 0 : index
    %c19 = arith.constant 19 : index
    %234 = vector.load %arg7[%c0_164, %c19] : memref<16x24xf32, #tpu.memory_space<vmem>>, vector<16x1xf32>
    %235 = vector.broadcast %234 : vector<16x1xf32> to vector<16x256xf32>
    %236 = arith.mulf %233, %235 : vector<16x256xf32>
    %237 = arith.addf %232, %236 : vector<16x256xf32>
    %c0_165 = arith.constant 0 : index
    %c144_166 = arith.constant 144 : index
    %238 = vector.load %arg20[%c0_165, %c144_166] : memref<16x544xf32, #tpu.memory_space<vmem>>, vector<16x256xf32>
    %c0_167 = arith.constant 0 : index
    %c20 = arith.constant 20 : index
    %239 = vector.load %arg7[%c0_167, %c20] : memref<16x24xf32, #tpu.memory_space<vmem>>, vector<16x1xf32>
    %240 = vector.broadcast %239 : vector<16x1xf32> to vector<16x256xf32>
    %241 = arith.mulf %238, %240 : vector<16x256xf32>
    %242 = arith.addf %237, %241 : vector<16x256xf32>
    %c0_168 = arith.constant 0 : index
    %c192 = arith.constant 192 : index
    %243 = vector.load %arg20[%c0_168, %c192] : memref<16x544xf32, #tpu.memory_space<vmem>>, vector<16x256xf32>
    %c0_169 = arith.constant 0 : index
    %c21 = arith.constant 21 : index
    %244 = vector.load %arg7[%c0_169, %c21] : memref<16x24xf32, #tpu.memory_space<vmem>>, vector<16x1xf32>
    %245 = vector.broadcast %244 : vector<16x1xf32> to vector<16x256xf32>
    %246 = arith.mulf %243, %245 : vector<16x256xf32>
    %247 = arith.addf %242, %246 : vector<16x256xf32>
    %c0_170 = arith.constant 0 : index
    %c240 = arith.constant 240 : index
    %248 = vector.load %arg20[%c0_170, %c240] : memref<16x544xf32, #tpu.memory_space<vmem>>, vector<16x256xf32>
    %c0_171 = arith.constant 0 : index
    %c22 = arith.constant 22 : index
    %249 = vector.load %arg7[%c0_171, %c22] : memref<16x24xf32, #tpu.memory_space<vmem>>, vector<16x1xf32>
    %250 = vector.broadcast %249 : vector<16x1xf32> to vector<16x256xf32>
    %251 = arith.mulf %248, %250 : vector<16x256xf32>
    %252 = arith.addf %247, %251 : vector<16x256xf32>
    %c0_172 = arith.constant 0 : index
    %c288 = arith.constant 288 : index
    %253 = vector.load %arg20[%c0_172, %c288] : memref<16x544xf32, #tpu.memory_space<vmem>>, vector<16x256xf32>
    %c0_173 = arith.constant 0 : index
    %c23 = arith.constant 23 : index
    %254 = vector.load %arg7[%c0_173, %c23] : memref<16x24xf32, #tpu.memory_space<vmem>>, vector<16x1xf32>
    %255 = vector.broadcast %254 : vector<16x1xf32> to vector<16x256xf32>
    %256 = arith.mulf %253, %255 : vector<16x256xf32>
    %257 = arith.addf %252, %256 : vector<16x256xf32>
    %c0_174 = arith.constant 0 : index
    %c0_175 = arith.constant 0 : index
    %258 = vector.load %arg8[%c0_174, %c0_175] : memref<16x16xf32, #tpu.memory_space<vmem>>, vector<16x16xf32>
    %cst_176 = arith.constant dense<0.000000e+00> : vector<16x256xf32>
    %259 = tpu.matmul %258, %257, %cst_176 {dimension_numbers = #tpu.dot_dimension_numbers<[1], [0], [0], [1], [0, 0, 1, 1], [], []>} : vector<16x16xf32>, vector<16x256xf32>, vector<16x256xf32> -> vector<16x256xf32>
    %c0_177 = arith.constant 0 : index
    %c5_178 = arith.constant 5 : index
    %260 = vector.load %arg9[%c0_177, %c5_178] : memref<16x6xf32, #tpu.memory_space<vmem>>, vector<16x1xf32>
    %261 = vector.broadcast %260 : vector<16x1xf32> to vector<16x256xf32>
    %262 = arith.addf %259, %261 : vector<16x256xf32>
    %263 = arith.mulf %85, %262 : vector<16x256xf32>
    %cst_179 = arith.constant dense<0.000000e+00> : vector<16xf32>
    %264 = vector.multi_reduction <add>, %263, %cst_179 [1] : vector<16x256xf32> to vector<16xf32>
    %265 = vector.shape_cast %264 : vector<16xf32> to vector<16x1xf32>
    %cst_180 = arith.constant 2.560000e+02 : f32
    %266 = vector.broadcast %cst_180 : f32 to vector<16x1xf32>
    %267 = arith.divf %265, %266 : vector<16x1xf32>
    %c0_181 = arith.constant 0 : index
    %c0_182 = arith.constant 0 : index
    %268 = vector.load %arg10[%c0_181, %c0_182] : memref<4x16xf32, #tpu.memory_space<vmem>>, vector<4x16xf32>
    %cst_183 = arith.constant dense<0.000000e+00> : vector<4x1xf32>
    %269 = tpu.matmul %268, %267, %cst_183 {dimension_numbers = #tpu.dot_dimension_numbers<[1], [0], [0], [1], [0, 0, 1, 1], [], []>} : vector<4x16xf32>, vector<16x1xf32>, vector<4x1xf32> -> vector<4x1xf32>
    %cst_184 = arith.constant 0.000000e+00 : f32
    %270 = vector.broadcast %cst_184 : f32 to vector<4x1xf32>
    %271 = arith.maximumf %269, %270 : vector<4x1xf32>
    %c0_185 = arith.constant 0 : index
    %c0_186 = arith.constant 0 : index
    %272 = vector.load %arg11[%c0_185, %c0_186] : memref<16x4xf32, #tpu.memory_space<vmem>>, vector<16x4xf32>
    %cst_187 = arith.constant dense<0.000000e+00> : vector<16x1xf32>
    %273 = tpu.matmul %272, %271, %cst_187 {dimension_numbers = #tpu.dot_dimension_numbers<[1], [0], [0], [1], [0, 0, 1, 1], [], []>} : vector<16x4xf32>, vector<4x1xf32>, vector<16x1xf32> -> vector<16x1xf32>
    %274 = arith.negf %273 : vector<16x1xf32>
    %275 = math.exp %274 : vector<16x1xf32>
    %cst_188 = arith.constant 1.000000e+00 : f32
    %276 = vector.broadcast %cst_188 : f32 to vector<16x1xf32>
    %277 = arith.addf %276, %275 : vector<16x1xf32>
    %278 = arith.divf %276, %277 : vector<16x1xf32>
    %279 = vector.broadcast %278 : vector<16x1xf32> to vector<16x256xf32>
    %280 = arith.mulf %263, %279 : vector<16x256xf32>
    %cst_189 = arith.constant 0.000000e+00 : f32
    %281 = vector.broadcast %cst_189 : f32 to vector<32x22xf32>
    %c0_190 = arith.constant 0 : index
    %c0_191 = arith.constant 0 : index
    %282 = vector.load %arg22[%c0_190, %c0_191] : memref<32x22xf32, #tpu.memory_space<vmem>>, vector<32x22xf32>
    tpu.vector_store %arg22[%c0_190, %c0_191], %281 {strides = array<i32>} : memref<32x22xf32, #tpu.memory_space<vmem>>, vector<32x22xf32>,
    %cst_192 = arith.constant 0.000000e+00 : f32
    %283 = vector.broadcast %cst_192 : f32 to vector<32x22xf32>
    %c0_193 = arith.constant 0 : index
    %c0_194 = arith.constant 0 : index
    %284 = vector.load %arg21[%c0_193, %c0_194] : memref<32x22xf32, #tpu.memory_space<vmem>>, vector<32x22xf32>
    tpu.vector_store %arg21[%c0_193, %c0_194], %283 {strides = array<i32>} : memref<32x22xf32, #tpu.memory_space<vmem>>, vector<32x22xf32>,
    %285 = vector.extract_strided_slice %280 {offsets = [0, 0], sizes = [16, 16], strides = [1, 1]} : vector<16x256xf32> to vector<16x16xf32>
    %cst_195 = arith.constant dense<0xFF800000> : vector<16xf32>
    %286 = vector.multi_reduction <maximumf>, %285, %cst_195 [1] : vector<16x16xf32> to vector<16xf32>
    %287 = vector.shape_cast %286 : vector<16xf32> to vector<16x1xf32>
    %c0_196 = arith.constant 0 : index
    %c3_197 = arith.constant 3 : index
    %288 = vector.load %arg22[%c0_196, %c3_197] : memref<32x22xf32, #tpu.memory_space<vmem>>, vector<16x1xf32>
    tpu.vector_store %arg22[%c0_196, %c3_197], %287 {strides = array<i32>} : memref<32x22xf32, #tpu.memory_space<vmem>>, vector<16x1xf32>,
    %cst_198 = arith.constant dense<0.000000e+00> : vector<16xf32>
    %289 = vector.multi_reduction <add>, %285, %cst_198 [1] : vector<16x16xf32> to vector<16xf32>
    %290 = vector.shape_cast %289 : vector<16xf32> to vector<16x1xf32>
    %c16_199 = arith.constant 16 : index
    %c3_200 = arith.constant 3 : index
    %291 = vector.load %arg22[%c16_199, %c3_200] : memref<32x22xf32, #tpu.memory_space<vmem>>, vector<16x1xf32>
    tpu.vector_store %arg22[%c16_199, %c3_200], %290 {strides = array<i32>} : memref<32x22xf32, #tpu.memory_space<vmem>>, vector<16x1xf32>,
    %292 = vector.extract_strided_slice %280 {offsets = [0, 16], sizes = [16, 16], strides = [1, 1]} : vector<16x256xf32> to vector<16x16xf32>
    %293 = arith.maximumf %285, %292 : vector<16x16xf32>
    %294 = arith.addf %285, %292 : vector<16x16xf32>
    %cst_201 = arith.constant dense<0xFF800000> : vector<16xf32>
    %295 = vector.multi_reduction <maximumf>, %292, %cst_201 [1] : vector<16x16xf32> to vector<16xf32>
    %296 = vector.shape_cast %295 : vector<16xf32> to vector<16x1xf32>
    %c0_202 = arith.constant 0 : index
    %c4_203 = arith.constant 4 : index
    %297 = vector.load %arg22[%c0_202, %c4_203] : memref<32x22xf32, #tpu.memory_space<vmem>>, vector<16x1xf32>
    tpu.vector_store %arg22[%c0_202, %c4_203], %296 {strides = array<i32>} : memref<32x22xf32, #tpu.memory_space<vmem>>, vector<16x1xf32>,
    %cst_204 = arith.constant dense<0.000000e+00> : vector<16xf32>
    %298 = vector.multi_reduction <add>, %292, %cst_204 [1] : vector<16x16xf32> to vector<16xf32>
    %299 = vector.shape_cast %298 : vector<16xf32> to vector<16x1xf32>
    %c16_205 = arith.constant 16 : index
    %c4_206 = arith.constant 4 : index
    %300 = vector.load %arg22[%c16_205, %c4_206] : memref<32x22xf32, #tpu.memory_space<vmem>>, vector<16x1xf32>
    tpu.vector_store %arg22[%c16_205, %c4_206], %299 {strides = array<i32>} : memref<32x22xf32, #tpu.memory_space<vmem>>, vector<16x1xf32>,
    %301 = vector.extract_strided_slice %280 {offsets = [0, 32], sizes = [16, 16], strides = [1, 1]} : vector<16x256xf32> to vector<16x16xf32>
    %302 = arith.maximumf %293, %301 : vector<16x16xf32>
    %303 = arith.addf %294, %301 : vector<16x16xf32>
    %cst_207 = arith.constant dense<0xFF800000> : vector<16xf32>
    %304 = vector.multi_reduction <maximumf>, %301, %cst_207 [1] : vector<16x16xf32> to vector<16xf32>
    %305 = vector.shape_cast %304 : vector<16xf32> to vector<16x1xf32>
    %c0_208 = arith.constant 0 : index
    %c5_209 = arith.constant 5 : index
    %306 = vector.load %arg22[%c0_208, %c5_209] : memref<32x22xf32, #tpu.memory_space<vmem>>, vector<16x1xf32>
    tpu.vector_store %arg22[%c0_208, %c5_209], %305 {strides = array<i32>} : memref<32x22xf32, #tpu.memory_space<vmem>>, vector<16x1xf32>,
    %cst_210 = arith.constant dense<0.000000e+00> : vector<16xf32>
    %307 = vector.multi_reduction <add>, %301, %cst_210 [1] : vector<16x16xf32> to vector<16xf32>
    %308 = vector.shape_cast %307 : vector<16xf32> to vector<16x1xf32>
    %c16_211 = arith.constant 16 : index
    %c5_212 = arith.constant 5 : index
    %309 = vector.load %arg22[%c16_211, %c5_212] : memref<32x22xf32, #tpu.memory_space<vmem>>, vector<16x1xf32>
    tpu.vector_store %arg22[%c16_211, %c5_212], %308 {strides = array<i32>} : memref<32x22xf32, #tpu.memory_space<vmem>>, vector<16x1xf32>,
    %310 = vector.extract_strided_slice %280 {offsets = [0, 48], sizes = [16, 16], strides = [1, 1]} : vector<16x256xf32> to vector<16x16xf32>
    %311 = arith.maximumf %302, %310 : vector<16x16xf32>
    %312 = arith.addf %303, %310 : vector<16x16xf32>
    %cst_213 = arith.constant dense<0xFF800000> : vector<16xf32>
    %313 = vector.multi_reduction <maximumf>, %310, %cst_213 [1] : vector<16x16xf32> to vector<16xf32>
    %314 = vector.shape_cast %313 : vector<16xf32> to vector<16x1xf32>
    %c0_214 = arith.constant 0 : index
    %c6_215 = arith.constant 6 : index
    %315 = vector.load %arg22[%c0_214, %c6_215] : memref<32x22xf32, #tpu.memory_space<vmem>>, vector<16x1xf32>
    tpu.vector_store %arg22[%c0_214, %c6_215], %314 {strides = array<i32>} : memref<32x22xf32, #tpu.memory_space<vmem>>, vector<16x1xf32>,
    %cst_216 = arith.constant dense<0.000000e+00> : vector<16xf32>
    %316 = vector.multi_reduction <add>, %310, %cst_216 [1] : vector<16x16xf32> to vector<16xf32>
    %317 = vector.shape_cast %316 : vector<16xf32> to vector<16x1xf32>
    %c16_217 = arith.constant 16 : index
    %c6_218 = arith.constant 6 : index
    %318 = vector.load %arg22[%c16_217, %c6_218] : memref<32x22xf32, #tpu.memory_space<vmem>>, vector<16x1xf32>
    tpu.vector_store %arg22[%c16_217, %c6_218], %317 {strides = array<i32>} : memref<32x22xf32, #tpu.memory_space<vmem>>, vector<16x1xf32>,
    %319 = vector.extract_strided_slice %280 {offsets = [0, 64], sizes = [16, 16], strides = [1, 1]} : vector<16x256xf32> to vector<16x16xf32>
    %320 = arith.maximumf %311, %319 : vector<16x16xf32>
    %321 = arith.addf %312, %319 : vector<16x16xf32>
    %cst_219 = arith.constant dense<0xFF800000> : vector<16xf32>
    %322 = vector.multi_reduction <maximumf>, %319, %cst_219 [1] : vector<16x16xf32> to vector<16xf32>
    %323 = vector.shape_cast %322 : vector<16xf32> to vector<16x1xf32>
    %c0_220 = arith.constant 0 : index
    %c7_221 = arith.constant 7 : index
    %324 = vector.load %arg22[%c0_220, %c7_221] : memref<32x22xf32, #tpu.memory_space<vmem>>, vector<16x1xf32>
    tpu.vector_store %arg22[%c0_220, %c7_221], %323 {strides = array<i32>} : memref<32x22xf32, #tpu.memory_space<vmem>>, vector<16x1xf32>,
    %cst_222 = arith.constant dense<0.000000e+00> : vector<16xf32>
    %325 = vector.multi_reduction <add>, %319, %cst_222 [1] : vector<16x16xf32> to vector<16xf32>
    %326 = vector.shape_cast %325 : vector<16xf32> to vector<16x1xf32>
    %c16_223 = arith.constant 16 : index
    %c7_224 = arith.constant 7 : index
    %327 = vector.load %arg22[%c16_223, %c7_224] : memref<32x22xf32, #tpu.memory_space<vmem>>, vector<16x1xf32>
    tpu.vector_store %arg22[%c16_223, %c7_224], %326 {strides = array<i32>} : memref<32x22xf32, #tpu.memory_space<vmem>>, vector<16x1xf32>,
    %328 = vector.extract_strided_slice %280 {offsets = [0, 80], sizes = [16, 16], strides = [1, 1]} : vector<16x256xf32> to vector<16x16xf32>
    %329 = arith.maximumf %320, %328 : vector<16x16xf32>
    %330 = arith.addf %321, %328 : vector<16x16xf32>
    %cst_225 = arith.constant dense<0xFF800000> : vector<16xf32>
    %331 = vector.multi_reduction <maximumf>, %328, %cst_225 [1] : vector<16x16xf32> to vector<16xf32>
    %332 = vector.shape_cast %331 : vector<16xf32> to vector<16x1xf32>
    %c0_226 = arith.constant 0 : index
    %c8_227 = arith.constant 8 : index
    %333 = vector.load %arg22[%c0_226, %c8_227] : memref<32x22xf32, #tpu.memory_space<vmem>>, vector<16x1xf32>
    tpu.vector_store %arg22[%c0_226, %c8_227], %332 {strides = array<i32>} : memref<32x22xf32, #tpu.memory_space<vmem>>, vector<16x1xf32>,
    %cst_228 = arith.constant dense<0.000000e+00> : vector<16xf32>
    %334 = vector.multi_reduction <add>, %328, %cst_228 [1] : vector<16x16xf32> to vector<16xf32>
    %335 = vector.shape_cast %334 : vector<16xf32> to vector<16x1xf32>
    %c16_229 = arith.constant 16 : index
    %c8_230 = arith.constant 8 : index
    %336 = vector.load %arg22[%c16_229, %c8_230] : memref<32x22xf32, #tpu.memory_space<vmem>>, vector<16x1xf32>
    tpu.vector_store %arg22[%c16_229, %c8_230], %335 {strides = array<i32>} : memref<32x22xf32, #tpu.memory_space<vmem>>, vector<16x1xf32>,
    %337 = vector.extract_strided_slice %280 {offsets = [0, 96], sizes = [16, 16], strides = [1, 1]} : vector<16x256xf32> to vector<16x16xf32>
    %338 = arith.maximumf %329, %337 : vector<16x16xf32>
    %339 = arith.addf %330, %337 : vector<16x16xf32>
    %cst_231 = arith.constant dense<0xFF800000> : vector<16xf32>
    %340 = vector.multi_reduction <maximumf>, %337, %cst_231 [1] : vector<16x16xf32> to vector<16xf32>
    %341 = vector.shape_cast %340 : vector<16xf32> to vector<16x1xf32>
    %c0_232 = arith.constant 0 : index
    %c9_233 = arith.constant 9 : index
    %342 = vector.load %arg22[%c0_232, %c9_233] : memref<32x22xf32, #tpu.memory_space<vmem>>, vector<16x1xf32>
    tpu.vector_store %arg22[%c0_232, %c9_233], %341 {strides = array<i32>} : memref<32x22xf32, #tpu.memory_space<vmem>>, vector<16x1xf32>,
    %cst_234 = arith.constant dense<0.000000e+00> : vector<16xf32>
    %343 = vector.multi_reduction <add>, %337, %cst_234 [1] : vector<16x16xf32> to vector<16xf32>
    %344 = vector.shape_cast %343 : vector<16xf32> to vector<16x1xf32>
    %c16_235 = arith.constant 16 : index
    %c9_236 = arith.constant 9 : index
    %345 = vector.load %arg22[%c16_235, %c9_236] : memref<32x22xf32, #tpu.memory_space<vmem>>, vector<16x1xf32>
    tpu.vector_store %arg22[%c16_235, %c9_236], %344 {strides = array<i32>} : memref<32x22xf32, #tpu.memory_space<vmem>>, vector<16x1xf32>,
    %346 = vector.extract_strided_slice %280 {offsets = [0, 112], sizes = [16, 16], strides = [1, 1]} : vector<16x256xf32> to vector<16x16xf32>
    %347 = arith.maximumf %338, %346 : vector<16x16xf32>
    %348 = arith.addf %339, %346 : vector<16x16xf32>
    %cst_237 = arith.constant dense<0xFF800000> : vector<16xf32>
    %349 = vector.multi_reduction <maximumf>, %346, %cst_237 [1] : vector<16x16xf32> to vector<16xf32>
    %350 = vector.shape_cast %349 : vector<16xf32> to vector<16x1xf32>
    %c0_238 = arith.constant 0 : index
    %c10_239 = arith.constant 10 : index
    %351 = vector.load %arg22[%c0_238, %c10_239] : memref<32x22xf32, #tpu.memory_space<vmem>>, vector<16x1xf32>
    tpu.vector_store %arg22[%c0_238, %c10_239], %350 {strides = array<i32>} : memref<32x22xf32, #tpu.memory_space<vmem>>, vector<16x1xf32>,
    %cst_240 = arith.constant dense<0.000000e+00> : vector<16xf32>
    %352 = vector.multi_reduction <add>, %346, %cst_240 [1] : vector<16x16xf32> to vector<16xf32>
    %353 = vector.shape_cast %352 : vector<16xf32> to vector<16x1xf32>
    %c16_241 = arith.constant 16 : index
    %c10_242 = arith.constant 10 : index
    %354 = vector.load %arg22[%c16_241, %c10_242] : memref<32x22xf32, #tpu.memory_space<vmem>>, vector<16x1xf32>
    tpu.vector_store %arg22[%c16_241, %c10_242], %353 {strides = array<i32>} : memref<32x22xf32, #tpu.memory_space<vmem>>, vector<16x1xf32>,
    %355 = vector.extract_strided_slice %280 {offsets = [0, 128], sizes = [16, 16], strides = [1, 1]} : vector<16x256xf32> to vector<16x16xf32>
    %356 = arith.maximumf %347, %355 : vector<16x16xf32>
    %357 = arith.addf %348, %355 : vector<16x16xf32>
    %cst_243 = arith.constant dense<0xFF800000> : vector<16xf32>
    %358 = vector.multi_reduction <maximumf>, %355, %cst_243 [1] : vector<16x16xf32> to vector<16xf32>
    %359 = vector.shape_cast %358 : vector<16xf32> to vector<16x1xf32>
    %c0_244 = arith.constant 0 : index
    %c11_245 = arith.constant 11 : index
    %360 = vector.load %arg22[%c0_244, %c11_245] : memref<32x22xf32, #tpu.memory_space<vmem>>, vector<16x1xf32>
    tpu.vector_store %arg22[%c0_244, %c11_245], %359 {strides = array<i32>} : memref<32x22xf32, #tpu.memory_space<vmem>>, vector<16x1xf32>,
    %cst_246 = arith.constant dense<0.000000e+00> : vector<16xf32>
    %361 = vector.multi_reduction <add>, %355, %cst_246 [1] : vector<16x16xf32> to vector<16xf32>
    %362 = vector.shape_cast %361 : vector<16xf32> to vector<16x1xf32>
    %c16_247 = arith.constant 16 : index
    %c11_248 = arith.constant 11 : index
    %363 = vector.load %arg22[%c16_247, %c11_248] : memref<32x22xf32, #tpu.memory_space<vmem>>, vector<16x1xf32>
    tpu.vector_store %arg22[%c16_247, %c11_248], %362 {strides = array<i32>} : memref<32x22xf32, #tpu.memory_space<vmem>>, vector<16x1xf32>,
    %364 = vector.extract_strided_slice %280 {offsets = [0, 144], sizes = [16, 16], strides = [1, 1]} : vector<16x256xf32> to vector<16x16xf32>
    %365 = arith.maximumf %356, %364 : vector<16x16xf32>
    %366 = arith.addf %357, %364 : vector<16x16xf32>
    %cst_249 = arith.constant dense<0xFF800000> : vector<16xf32>
    %367 = vector.multi_reduction <maximumf>, %364, %cst_249 [1] : vector<16x16xf32> to vector<16xf32>
    %368 = vector.shape_cast %367 : vector<16xf32> to vector<16x1xf32>
    %c0_250 = arith.constant 0 : index
    %c12_251 = arith.constant 12 : index
    %369 = vector.load %arg22[%c0_250, %c12_251] : memref<32x22xf32, #tpu.memory_space<vmem>>, vector<16x1xf32>
    tpu.vector_store %arg22[%c0_250, %c12_251], %368 {strides = array<i32>} : memref<32x22xf32, #tpu.memory_space<vmem>>, vector<16x1xf32>,
    %cst_252 = arith.constant dense<0.000000e+00> : vector<16xf32>
    %370 = vector.multi_reduction <add>, %364, %cst_252 [1] : vector<16x16xf32> to vector<16xf32>
    %371 = vector.shape_cast %370 : vector<16xf32> to vector<16x1xf32>
    %c16_253 = arith.constant 16 : index
    %c12_254 = arith.constant 12 : index
    %372 = vector.load %arg22[%c16_253, %c12_254] : memref<32x22xf32, #tpu.memory_space<vmem>>, vector<16x1xf32>
    tpu.vector_store %arg22[%c16_253, %c12_254], %371 {strides = array<i32>} : memref<32x22xf32, #tpu.memory_space<vmem>>, vector<16x1xf32>,
    %373 = vector.extract_strided_slice %280 {offsets = [0, 160], sizes = [16, 16], strides = [1, 1]} : vector<16x256xf32> to vector<16x16xf32>
    %374 = arith.maximumf %365, %373 : vector<16x16xf32>
    %375 = arith.addf %366, %373 : vector<16x16xf32>
    %cst_255 = arith.constant dense<0xFF800000> : vector<16xf32>
    %376 = vector.multi_reduction <maximumf>, %373, %cst_255 [1] : vector<16x16xf32> to vector<16xf32>
    %377 = vector.shape_cast %376 : vector<16xf32> to vector<16x1xf32>
    %c0_256 = arith.constant 0 : index
    %c13_257 = arith.constant 13 : index
    %378 = vector.load %arg22[%c0_256, %c13_257] : memref<32x22xf32, #tpu.memory_space<vmem>>, vector<16x1xf32>
    tpu.vector_store %arg22[%c0_256, %c13_257], %377 {strides = array<i32>} : memref<32x22xf32, #tpu.memory_space<vmem>>, vector<16x1xf32>,
    %cst_258 = arith.constant dense<0.000000e+00> : vector<16xf32>
    %379 = vector.multi_reduction <add>, %373, %cst_258 [1] : vector<16x16xf32> to vector<16xf32>
    %380 = vector.shape_cast %379 : vector<16xf32> to vector<16x1xf32>
    %c16_259 = arith.constant 16 : index
    %c13_260 = arith.constant 13 : index
    %381 = vector.load %arg22[%c16_259, %c13_260] : memref<32x22xf32, #tpu.memory_space<vmem>>, vector<16x1xf32>
    tpu.vector_store %arg22[%c16_259, %c13_260], %380 {strides = array<i32>} : memref<32x22xf32, #tpu.memory_space<vmem>>, vector<16x1xf32>,
    %382 = vector.extract_strided_slice %280 {offsets = [0, 176], sizes = [16, 16], strides = [1, 1]} : vector<16x256xf32> to vector<16x16xf32>
    %383 = arith.maximumf %374, %382 : vector<16x16xf32>
    %384 = arith.addf %375, %382 : vector<16x16xf32>
    %cst_261 = arith.constant dense<0xFF800000> : vector<16xf32>
    %385 = vector.multi_reduction <maximumf>, %382, %cst_261 [1] : vector<16x16xf32> to vector<16xf32>
    %386 = vector.shape_cast %385 : vector<16xf32> to vector<16x1xf32>
    %c0_262 = arith.constant 0 : index
    %c14_263 = arith.constant 14 : index
    %387 = vector.load %arg22[%c0_262, %c14_263] : memref<32x22xf32, #tpu.memory_space<vmem>>, vector<16x1xf32>
    tpu.vector_store %arg22[%c0_262, %c14_263], %386 {strides = array<i32>} : memref<32x22xf32, #tpu.memory_space<vmem>>, vector<16x1xf32>,
    %cst_264 = arith.constant dense<0.000000e+00> : vector<16xf32>
    %388 = vector.multi_reduction <add>, %382, %cst_264 [1] : vector<16x16xf32> to vector<16xf32>
    %389 = vector.shape_cast %388 : vector<16xf32> to vector<16x1xf32>
    %c16_265 = arith.constant 16 : index
    %c14_266 = arith.constant 14 : index
    %390 = vector.load %arg22[%c16_265, %c14_266] : memref<32x22xf32, #tpu.memory_space<vmem>>, vector<16x1xf32>
    tpu.vector_store %arg22[%c16_265, %c14_266], %389 {strides = array<i32>} : memref<32x22xf32, #tpu.memory_space<vmem>>, vector<16x1xf32>,
    %391 = vector.extract_strided_slice %280 {offsets = [0, 192], sizes = [16, 16], strides = [1, 1]} : vector<16x256xf32> to vector<16x16xf32>
    %392 = arith.maximumf %383, %391 : vector<16x16xf32>
    %393 = arith.addf %384, %391 : vector<16x16xf32>
    %cst_267 = arith.constant dense<0xFF800000> : vector<16xf32>
    %394 = vector.multi_reduction <maximumf>, %391, %cst_267 [1] : vector<16x16xf32> to vector<16xf32>
    %395 = vector.shape_cast %394 : vector<16xf32> to vector<16x1xf32>
    %c0_268 = arith.constant 0 : index
    %c15_269 = arith.constant 15 : index
    %396 = vector.load %arg22[%c0_268, %c15_269] : memref<32x22xf32, #tpu.memory_space<vmem>>, vector<16x1xf32>
    tpu.vector_store %arg22[%c0_268, %c15_269], %395 {strides = array<i32>} : memref<32x22xf32, #tpu.memory_space<vmem>>, vector<16x1xf32>,
    %cst_270 = arith.constant dense<0.000000e+00> : vector<16xf32>
    %397 = vector.multi_reduction <add>, %391, %cst_270 [1] : vector<16x16xf32> to vector<16xf32>
    %398 = vector.shape_cast %397 : vector<16xf32> to vector<16x1xf32>
    %c16_271 = arith.constant 16 : index
    %c15_272 = arith.constant 15 : index
    %399 = vector.load %arg22[%c16_271, %c15_272] : memref<32x22xf32, #tpu.memory_space<vmem>>, vector<16x1xf32>
    tpu.vector_store %arg22[%c16_271, %c15_272], %398 {strides = array<i32>} : memref<32x22xf32, #tpu.memory_space<vmem>>, vector<16x1xf32>,
    %400 = vector.extract_strided_slice %280 {offsets = [0, 208], sizes = [16, 16], strides = [1, 1]} : vector<16x256xf32> to vector<16x16xf32>
    %401 = arith.maximumf %392, %400 : vector<16x16xf32>
    %402 = arith.addf %393, %400 : vector<16x16xf32>
    %cst_273 = arith.constant dense<0xFF800000> : vector<16xf32>
    %403 = vector.multi_reduction <maximumf>, %400, %cst_273 [1] : vector<16x16xf32> to vector<16xf32>
    %404 = vector.shape_cast %403 : vector<16xf32> to vector<16x1xf32>
    %c0_274 = arith.constant 0 : index
    %c16_275 = arith.constant 16 : index
    %405 = vector.load %arg22[%c0_274, %c16_275] : memref<32x22xf32, #tpu.memory_space<vmem>>, vector<16x1xf32>
    tpu.vector_store %arg22[%c0_274, %c16_275], %404 {strides = array<i32>} : memref<32x22xf32, #tpu.memory_space<vmem>>, vector<16x1xf32>,
    %cst_276 = arith.constant dense<0.000000e+00> : vector<16xf32>
    %406 = vector.multi_reduction <add>, %400, %cst_276 [1] : vector<16x16xf32> to vector<16xf32>
    %407 = vector.shape_cast %406 : vector<16xf32> to vector<16x1xf32>
    %c16_277 = arith.constant 16 : index
    %c16_278 = arith.constant 16 : index
    %408 = vector.load %arg22[%c16_277, %c16_278] : memref<32x22xf32, #tpu.memory_space<vmem>>, vector<16x1xf32>
    tpu.vector_store %arg22[%c16_277, %c16_278], %407 {strides = array<i32>} : memref<32x22xf32, #tpu.memory_space<vmem>>, vector<16x1xf32>,
    %409 = vector.extract_strided_slice %280 {offsets = [0, 224], sizes = [16, 16], strides = [1, 1]} : vector<16x256xf32> to vector<16x16xf32>
    %410 = arith.maximumf %401, %409 : vector<16x16xf32>
    %411 = arith.addf %402, %409 : vector<16x16xf32>
    %cst_279 = arith.constant dense<0xFF800000> : vector<16xf32>
    %412 = vector.multi_reduction <maximumf>, %409, %cst_279 [1] : vector<16x16xf32> to vector<16xf32>
    %413 = vector.shape_cast %412 : vector<16xf32> to vector<16x1xf32>
    %c0_280 = arith.constant 0 : index
    %c17_281 = arith.constant 17 : index
    %414 = vector.load %arg22[%c0_280, %c17_281] : memref<32x22xf32, #tpu.memory_space<vmem>>, vector<16x1xf32>
    tpu.vector_store %arg22[%c0_280, %c17_281], %413 {strides = array<i32>} : memref<32x22xf32, #tpu.memory_space<vmem>>, vector<16x1xf32>,
    %cst_282 = arith.constant dense<0.000000e+00> : vector<16xf32>
    %415 = vector.multi_reduction <add>, %409, %cst_282 [1] : vector<16x16xf32> to vector<16xf32>
    %416 = vector.shape_cast %415 : vector<16xf32> to vector<16x1xf32>
    %c16_283 = arith.constant 16 : index
    %c17_284 = arith.constant 17 : index
    %417 = vector.load %arg22[%c16_283, %c17_284] : memref<32x22xf32, #tpu.memory_space<vmem>>, vector<16x1xf32>
    tpu.vector_store %arg22[%c16_283, %c17_284], %416 {strides = array<i32>} : memref<32x22xf32, #tpu.memory_space<vmem>>, vector<16x1xf32>,
    %418 = vector.extract_strided_slice %280 {offsets = [0, 240], sizes = [16, 16], strides = [1, 1]} : vector<16x256xf32> to vector<16x16xf32>
    %419 = arith.maximumf %410, %418 : vector<16x16xf32>
    %420 = arith.addf %411, %418 : vector<16x16xf32>
    %cst_285 = arith.constant dense<0xFF800000> : vector<16xf32>
    %421 = vector.multi_reduction <maximumf>, %418, %cst_285 [1] : vector<16x16xf32> to vector<16xf32>
    %422 = vector.shape_cast %421 : vector<16xf32> to vector<16x1xf32>
    %c0_286 = arith.constant 0 : index
    %c18_287 = arith.constant 18 : index
    %423 = vector.load %arg22[%c0_286, %c18_287] : memref<32x22xf32, #tpu.memory_space<vmem>>, vector<16x1xf32>
    tpu.vector_store %arg22[%c0_286, %c18_287], %422 {strides = array<i32>} : memref<32x22xf32, #tpu.memory_space<vmem>>, vector<16x1xf32>,
    %cst_288 = arith.constant dense<0.000000e+00> : vector<16xf32>
    %424 = vector.multi_reduction <add>, %418, %cst_288 [1] : vector<16x16xf32> to vector<16xf32>
    %425 = vector.shape_cast %424 : vector<16xf32> to vector<16x1xf32>
    %c16_289 = arith.constant 16 : index
    %c18_290 = arith.constant 18 : index
    %426 = vector.load %arg22[%c16_289, %c18_290] : memref<32x22xf32, #tpu.memory_space<vmem>>, vector<16x1xf32>
    tpu.vector_store %arg22[%c16_289, %c18_290], %425 {strides = array<i32>} : memref<32x22xf32, #tpu.memory_space<vmem>>, vector<16x1xf32>,
    %c0_291 = arith.constant 0 : index
    %c3_292 = arith.constant 3 : index
    %427 = vector.load %arg21[%c0_291, %c3_292] : memref<32x22xf32, #tpu.memory_space<vmem>>, vector<16x16xf32>
    tpu.vector_store %arg21[%c0_291, %c3_292], %419 {strides = array<i32>} : memref<32x22xf32, #tpu.memory_space<vmem>>, vector<16x16xf32>,
    %c16_293 = arith.constant 16 : index
    %c3_294 = arith.constant 3 : index
    %428 = vector.load %arg21[%c16_293, %c3_294] : memref<32x22xf32, #tpu.memory_space<vmem>>, vector<16x16xf32>
    tpu.vector_store %arg21[%c16_293, %c3_294], %420 {strides = array<i32>} : memref<32x22xf32, #tpu.memory_space<vmem>>, vector<16x16xf32>,
    %cst_295 = arith.constant dense<0xFF800000> : vector<256xf32>
    %429 = vector.multi_reduction <maximumf>, %280, %cst_295 [0] : vector<16x256xf32> to vector<256xf32>
    %430 = vector.shape_cast %429 : vector<256xf32> to vector<1x256xf32>
    %c0_296 = arith.constant 0 : index
    %c144_297 = arith.constant 144 : index
    %431 = vector.load %arg20[%c0_296, %c144_297] : memref<16x544xf32, #tpu.memory_space<vmem>>, vector<1x256xf32>
    tpu.vector_store %arg20[%c0_296, %c144_297], %430 {strides = array<i32>} : memref<16x544xf32, #tpu.memory_space<vmem>>, vector<1x256xf32>,
    %cst_298 = arith.constant dense<0.000000e+00> : vector<256xf32>
    %432 = vector.multi_reduction <add>, %280, %cst_298 [0] : vector<16x256xf32> to vector<256xf32>
    %433 = vector.shape_cast %432 : vector<256xf32> to vector<1x256xf32>
    %cst_299 = arith.constant 1.600000e+01 : f32
    %434 = vector.broadcast %cst_299 : f32 to vector<1x256xf32>
    %435 = arith.divf %433, %434 : vector<1x256xf32>
    %c1_300 = arith.constant 1 : index
    %c144_301 = arith.constant 144 : index
    %436 = vector.load %arg20[%c1_300, %c144_301] : memref<16x544xf32, #tpu.memory_space<vmem>>, vector<1x256xf32>
    tpu.vector_store %arg20[%c1_300, %c144_301], %435 {strides = array<i32>} : memref<16x544xf32, #tpu.memory_space<vmem>>, vector<1x256xf32>,
    %c0_302 = arith.constant 0 : index
    %c0_303 = arith.constant 0 : index
    %437 = vector.load %arg15[%c0_302, %c0_303] : memref<3x1xf32, #tpu.memory_space<vmem>>, vector<1x1xf32>
    %438 = vector.shape_cast %437 : vector<1x1xf32> to vector<1x1xf32>
    %439 = vector.broadcast %438 : vector<1x1xf32> to vector<1x256xf32>
    %cst_304 = arith.constant 0.000000e+00 : f32
    %440 = vector.broadcast %cst_304 : f32 to vector<2x256xf32>
    %c0_305 = arith.constant 0 : index
    %c93 = arith.constant 93 : index
    %441 = vector.load %arg20[%c0_305, %c93] : memref<16x544xf32, #tpu.memory_space<vmem>>, vector<2x256xf32>
    %c0_306 = arith.constant 0 : index
    %c0_307 = arith.constant 0 : index
    %442 = vector.load %arg12[%c0_306, %c0_307] : memref<2x49xf32, #tpu.memory_space<vmem>>, vector<2x1xf32>
    %443 = vector.broadcast %442 : vector<2x1xf32> to vector<2x256xf32>
    %444 = arith.mulf %441, %443 : vector<2x256xf32>
    %445 = arith.addf %440, %444 : vector<2x256xf32>
    %c0_308 = arith.constant 0 : index
    %c109 = arith.constant 109 : index
    %446 = vector.load %arg20[%c0_308, %c109] : memref<16x544xf32, #tpu.memory_space<vmem>>, vector<2x256xf32>
    %c0_309 = arith.constant 0 : index
    %c7_310 = arith.constant 7 : index
    %447 = vector.load %arg12[%c0_309, %c7_310] : memref<2x49xf32, #tpu.memory_space<vmem>>, vector<2x1xf32>
    %448 = vector.broadcast %447 : vector<2x1xf32> to vector<2x256xf32>
    %449 = arith.mulf %446, %448 : vector<2x256xf32>
    %450 = arith.addf %445, %449 : vector<2x256xf32>
    %c0_311 = arith.constant 0 : index
    %c125 = arith.constant 125 : index
    %451 = vector.load %arg20[%c0_311, %c125] : memref<16x544xf32, #tpu.memory_space<vmem>>, vector<2x256xf32>
    %c0_312 = arith.constant 0 : index
    %c14_313 = arith.constant 14 : index
    %452 = vector.load %arg12[%c0_312, %c14_313] : memref<2x49xf32, #tpu.memory_space<vmem>>, vector<2x1xf32>
    %453 = vector.broadcast %452 : vector<2x1xf32> to vector<2x256xf32>
    %454 = arith.mulf %451, %453 : vector<2x256xf32>
    %455 = arith.addf %450, %454 : vector<2x256xf32>
    %c0_314 = arith.constant 0 : index
    %c141_315 = arith.constant 141 : index
    %456 = vector.load %arg20[%c0_314, %c141_315] : memref<16x544xf32, #tpu.memory_space<vmem>>, vector<2x256xf32>
    %c0_316 = arith.constant 0 : index
    %c21_317 = arith.constant 21 : index
    %457 = vector.load %arg12[%c0_316, %c21_317] : memref<2x49xf32, #tpu.memory_space<vmem>>, vector<2x1xf32>
    %458 = vector.broadcast %457 : vector<2x1xf32> to vector<2x256xf32>
    %459 = arith.mulf %456, %458 : vector<2x256xf32>
    %460 = arith.addf %455, %459 : vector<2x256xf32>
    %c0_318 = arith.constant 0 : index
    %c157 = arith.constant 157 : index
    %461 = vector.load %arg20[%c0_318, %c157] : memref<16x544xf32, #tpu.memory_space<vmem>>, vector<2x256xf32>
    %c0_319 = arith.constant 0 : index
    %c28 = arith.constant 28 : index
    %462 = vector.load %arg12[%c0_319, %c28] : memref<2x49xf32, #tpu.memory_space<vmem>>, vector<2x1xf32>
    %463 = vector.broadcast %462 : vector<2x1xf32> to vector<2x256xf32>
    %464 = arith.mulf %461, %463 : vector<2x256xf32>
    %465 = arith.addf %460, %464 : vector<2x256xf32>
    %c0_320 = arith.constant 0 : index
    %c173 = arith.constant 173 : index
    %466 = vector.load %arg20[%c0_320, %c173] : memref<16x544xf32, #tpu.memory_space<vmem>>, vector<2x256xf32>
    %c0_321 = arith.constant 0 : index
    %c35 = arith.constant 35 : index
    %467 = vector.load %arg12[%c0_321, %c35] : memref<2x49xf32, #tpu.memory_space<vmem>>, vector<2x1xf32>
    %468 = vector.broadcast %467 : vector<2x1xf32> to vector<2x256xf32>
    %469 = arith.mulf %466, %468 : vector<2x256xf32>
    %470 = arith.addf %465, %469 : vector<2x256xf32>
    %c0_322 = arith.constant 0 : index
    %c189 = arith.constant 189 : index
    %471 = vector.load %arg20[%c0_322, %c189] : memref<16x544xf32, #tpu.memory_space<vmem>>, vector<2x256xf32>
    %c0_323 = arith.constant 0 : index
    %c42 = arith.constant 42 : index
    %472 = vector.load %arg12[%c0_323, %c42] : memref<2x49xf32, #tpu.memory_space<vmem>>, vector<2x1xf32>
    %473 = vector.broadcast %472 : vector<2x1xf32> to vector<2x256xf32>
    %474 = arith.mulf %471, %473 : vector<2x256xf32>
    %475 = arith.addf %470, %474 : vector<2x256xf32>
    %476 = vector.extract_strided_slice %475 {offsets = [0, 0], sizes = [1, 256], strides = [1, 1]} : vector<2x256xf32> to vector<1x256xf32>
    %477 = vector.extract_strided_slice %475 {offsets = [1, 0], sizes = [1, 256], strides = [1, 1]} : vector<2x256xf32> to vector<1x256xf32>
    %478 = arith.addf %476, %477 : vector<1x256xf32>
    %c6_324 = arith.constant 6 : index
    %c0_325 = arith.constant 0 : index
    %479 = vector.load %arg16[%c6_324, %c0_325] : memref<19x256xf32, #tpu.memory_space<vmem>>, vector<1x256xf32>
    %480 = arith.mulf %478, %479 : vector<1x256xf32>
    %481 = arith.addf %439, %480 : vector<1x256xf32>
    %cst_326 = arith.constant 0.000000e+00 : f32
    %482 = vector.broadcast %cst_326 : f32 to vector<2x256xf32>
    %c0_327 = arith.constant 0 : index
    %c94 = arith.constant 94 : index
    %483 = vector.load %arg20[%c0_327, %c94] : memref<16x544xf32, #tpu.memory_space<vmem>>, vector<2x256xf32>
    %c0_328 = arith.constant 0 : index
    %c1_329 = arith.constant 1 : index
    %484 = vector.load %arg12[%c0_328, %c1_329] : memref<2x49xf32, #tpu.memory_space<vmem>>, vector<2x1xf32>
    %485 = vector.broadcast %484 : vector<2x1xf32> to vector<2x256xf32>
    %486 = arith.mulf %483, %485 : vector<2x256xf32>
    %487 = arith.addf %482, %486 : vector<2x256xf32>
    %c0_330 = arith.constant 0 : index
    %c110 = arith.constant 110 : index
    %488 = vector.load %arg20[%c0_330, %c110] : memref<16x544xf32, #tpu.memory_space<vmem>>, vector<2x256xf32>
    %c0_331 = arith.constant 0 : index
    %c8_332 = arith.constant 8 : index
    %489 = vector.load %arg12[%c0_331, %c8_332] : memref<2x49xf32, #tpu.memory_space<vmem>>, vector<2x1xf32>
    %490 = vector.broadcast %489 : vector<2x1xf32> to vector<2x256xf32>
    %491 = arith.mulf %488, %490 : vector<2x256xf32>
    %492 = arith.addf %487, %491 : vector<2x256xf32>
    %c0_333 = arith.constant 0 : index
    %c126 = arith.constant 126 : index
    %493 = vector.load %arg20[%c0_333, %c126] : memref<16x544xf32, #tpu.memory_space<vmem>>, vector<2x256xf32>
    %c0_334 = arith.constant 0 : index
    %c15_335 = arith.constant 15 : index
    %494 = vector.load %arg12[%c0_334, %c15_335] : memref<2x49xf32, #tpu.memory_space<vmem>>, vector<2x1xf32>
    %495 = vector.broadcast %494 : vector<2x1xf32> to vector<2x256xf32>
    %496 = arith.mulf %493, %495 : vector<2x256xf32>
    %497 = arith.addf %492, %496 : vector<2x256xf32>
    %c0_336 = arith.constant 0 : index
    %c142_337 = arith.constant 142 : index
    %498 = vector.load %arg20[%c0_336, %c142_337] : memref<16x544xf32, #tpu.memory_space<vmem>>, vector<2x256xf32>
    %c0_338 = arith.constant 0 : index
    %c22_339 = arith.constant 22 : index
    %499 = vector.load %arg12[%c0_338, %c22_339] : memref<2x49xf32, #tpu.memory_space<vmem>>, vector<2x1xf32>
    %500 = vector.broadcast %499 : vector<2x1xf32> to vector<2x256xf32>
    %501 = arith.mulf %498, %500 : vector<2x256xf32>
    %502 = arith.addf %497, %501 : vector<2x256xf32>
    %c0_340 = arith.constant 0 : index
    %c158 = arith.constant 158 : index
    %503 = vector.load %arg20[%c0_340, %c158] : memref<16x544xf32, #tpu.memory_space<vmem>>, vector<2x256xf32>
    %c0_341 = arith.constant 0 : index
    %c29 = arith.constant 29 : index
    %504 = vector.load %arg12[%c0_341, %c29] : memref<2x49xf32, #tpu.memory_space<vmem>>, vector<2x1xf32>
    %505 = vector.broadcast %504 : vector<2x1xf32> to vector<2x256xf32>
    %506 = arith.mulf %503, %505 : vector<2x256xf32>
    %507 = arith.addf %502, %506 : vector<2x256xf32>
    %c0_342 = arith.constant 0 : index
    %c174 = arith.constant 174 : index
    %508 = vector.load %arg20[%c0_342, %c174] : memref<16x544xf32, #tpu.memory_space<vmem>>, vector<2x256xf32>
    %c0_343 = arith.constant 0 : index
    %c36 = arith.constant 36 : index
    %509 = vector.load %arg12[%c0_343, %c36] : memref<2x49xf32, #tpu.memory_space<vmem>>, vector<2x1xf32>
    %510 = vector.broadcast %509 : vector<2x1xf32> to vector<2x256xf32>
    %511 = arith.mulf %508, %510 : vector<2x256xf32>
    %512 = arith.addf %507, %511 : vector<2x256xf32>
    %c0_344 = arith.constant 0 : index
    %c190 = arith.constant 190 : index
    %513 = vector.load %arg20[%c0_344, %c190] : memref<16x544xf32, #tpu.memory_space<vmem>>, vector<2x256xf32>
    %c0_345 = arith.constant 0 : index
    %c43 = arith.constant 43 : index
    %514 = vector.load %arg12[%c0_345, %c43] : memref<2x49xf32, #tpu.memory_space<vmem>>, vector<2x1xf32>
    %515 = vector.broadcast %514 : vector<2x1xf32> to vector<2x256xf32>
    %516 = arith.mulf %513, %515 : vector<2x256xf32>
    %517 = arith.addf %512, %516 : vector<2x256xf32>
    %518 = vector.extract_strided_slice %517 {offsets = [0, 0], sizes = [1, 256], strides = [1, 1]} : vector<2x256xf32> to vector<1x256xf32>
    %519 = vector.extract_strided_slice %517 {offsets = [1, 0], sizes = [1, 256], strides = [1, 1]} : vector<2x256xf32> to vector<1x256xf32>
    %520 = arith.addf %518, %519 : vector<1x256xf32>
    %c7_346 = arith.constant 7 : index
    %c0_347 = arith.constant 0 : index
    %521 = vector.load %arg16[%c7_346, %c0_347] : memref<19x256xf32, #tpu.memory_space<vmem>>, vector<1x256xf32>
    %522 = arith.mulf %520, %521 : vector<1x256xf32>
    %523 = arith.addf %481, %522 : vector<1x256xf32>
    %cst_348 = arith.constant 0.000000e+00 : f32
    %524 = vector.broadcast %cst_348 : f32 to vector<2x256xf32>
    %c0_349 = arith.constant 0 : index
    %c95 = arith.constant 95 : index
    %525 = vector.load %arg20[%c0_349, %c95] : memref<16x544xf32, #tpu.memory_space<vmem>>, vector<2x256xf32>
    %c0_350 = arith.constant 0 : index
    %c2_351 = arith.constant 2 : index
    %526 = vector.load %arg12[%c0_350, %c2_351] : memref<2x49xf32, #tpu.memory_space<vmem>>, vector<2x1xf32>
    %527 = vector.broadcast %526 : vector<2x1xf32> to vector<2x256xf32>
    %528 = arith.mulf %525, %527 : vector<2x256xf32>
    %529 = arith.addf %524, %528 : vector<2x256xf32>
    %c0_352 = arith.constant 0 : index
    %c111 = arith.constant 111 : index
    %530 = vector.load %arg20[%c0_352, %c111] : memref<16x544xf32, #tpu.memory_space<vmem>>, vector<2x256xf32>
    %c0_353 = arith.constant 0 : index
    %c9_354 = arith.constant 9 : index
    %531 = vector.load %arg12[%c0_353, %c9_354] : memref<2x49xf32, #tpu.memory_space<vmem>>, vector<2x1xf32>
    %532 = vector.broadcast %531 : vector<2x1xf32> to vector<2x256xf32>
    %533 = arith.mulf %530, %532 : vector<2x256xf32>
    %534 = arith.addf %529, %533 : vector<2x256xf32>
    %c0_355 = arith.constant 0 : index
    %c127_356 = arith.constant 127 : index
    %535 = vector.load %arg20[%c0_355, %c127_356] : memref<16x544xf32, #tpu.memory_space<vmem>>, vector<2x256xf32>
    %c0_357 = arith.constant 0 : index
    %c16_358 = arith.constant 16 : index
    %536 = vector.load %arg12[%c0_357, %c16_358] : memref<2x49xf32, #tpu.memory_space<vmem>>, vector<2x1xf32>
    %537 = vector.broadcast %536 : vector<2x1xf32> to vector<2x256xf32>
    %538 = arith.mulf %535, %537 : vector<2x256xf32>
    %539 = arith.addf %534, %538 : vector<2x256xf32>
    %c0_359 = arith.constant 0 : index
    %c143_360 = arith.constant 143 : index
    %540 = vector.load %arg20[%c0_359, %c143_360] : memref<16x544xf32, #tpu.memory_space<vmem>>, vector<2x256xf32>
    %c0_361 = arith.constant 0 : index
    %c23_362 = arith.constant 23 : index
    %541 = vector.load %arg12[%c0_361, %c23_362] : memref<2x49xf32, #tpu.memory_space<vmem>>, vector<2x1xf32>
    %542 = vector.broadcast %541 : vector<2x1xf32> to vector<2x256xf32>
    %543 = arith.mulf %540, %542 : vector<2x256xf32>
    %544 = arith.addf %539, %543 : vector<2x256xf32>
    %c0_363 = arith.constant 0 : index
    %c159_364 = arith.constant 159 : index
    %545 = vector.load %arg20[%c0_363, %c159_364] : memref<16x544xf32, #tpu.memory_space<vmem>>, vector<2x256xf32>
    %c0_365 = arith.constant 0 : index
    %c30 = arith.constant 30 : index
    %546 = vector.load %arg12[%c0_365, %c30] : memref<2x49xf32, #tpu.memory_space<vmem>>, vector<2x1xf32>
    %547 = vector.broadcast %546 : vector<2x1xf32> to vector<2x256xf32>
    %548 = arith.mulf %545, %547 : vector<2x256xf32>
    %549 = arith.addf %544, %548 : vector<2x256xf32>
    %c0_366 = arith.constant 0 : index
    %c175 = arith.constant 175 : index
    %550 = vector.load %arg20[%c0_366, %c175] : memref<16x544xf32, #tpu.memory_space<vmem>>, vector<2x256xf32>
    %c0_367 = arith.constant 0 : index
    %c37 = arith.constant 37 : index
    %551 = vector.load %arg12[%c0_367, %c37] : memref<2x49xf32, #tpu.memory_space<vmem>>, vector<2x1xf32>
    %552 = vector.broadcast %551 : vector<2x1xf32> to vector<2x256xf32>
    %553 = arith.mulf %550, %552 : vector<2x256xf32>
    %554 = arith.addf %549, %553 : vector<2x256xf32>
    %c0_368 = arith.constant 0 : index
    %c191 = arith.constant 191 : index
    %555 = vector.load %arg20[%c0_368, %c191] : memref<16x544xf32, #tpu.memory_space<vmem>>, vector<2x256xf32>
    %c0_369 = arith.constant 0 : index
    %c44 = arith.constant 44 : index
    %556 = vector.load %arg12[%c0_369, %c44] : memref<2x49xf32, #tpu.memory_space<vmem>>, vector<2x1xf32>
    %557 = vector.broadcast %556 : vector<2x1xf32> to vector<2x256xf32>
    %558 = arith.mulf %555, %557 : vector<2x256xf32>
    %559 = arith.addf %554, %558 : vector<2x256xf32>
    %560 = vector.extract_strided_slice %559 {offsets = [0, 0], sizes = [1, 256], strides = [1, 1]} : vector<2x256xf32> to vector<1x256xf32>
    %561 = vector.extract_strided_slice %559 {offsets = [1, 0], sizes = [1, 256], strides = [1, 1]} : vector<2x256xf32> to vector<1x256xf32>
    %562 = arith.addf %560, %561 : vector<1x256xf32>
    %c8_370 = arith.constant 8 : index
    %c0_371 = arith.constant 0 : index
    %563 = vector.load %arg16[%c8_370, %c0_371] : memref<19x256xf32, #tpu.memory_space<vmem>>, vector<1x256xf32>
    %564 = arith.mulf %562, %563 : vector<1x256xf32>
    %565 = arith.addf %523, %564 : vector<1x256xf32>
    %cst_372 = arith.constant 0.000000e+00 : f32
    %566 = vector.broadcast %cst_372 : f32 to vector<2x256xf32>
    %c0_373 = arith.constant 0 : index
    %c96_374 = arith.constant 96 : index
    %567 = vector.load %arg20[%c0_373, %c96_374] : memref<16x544xf32, #tpu.memory_space<vmem>>, vector<2x256xf32>
    %c0_375 = arith.constant 0 : index
    %c3_376 = arith.constant 3 : index
    %568 = vector.load %arg12[%c0_375, %c3_376] : memref<2x49xf32, #tpu.memory_space<vmem>>, vector<2x1xf32>
    %569 = vector.broadcast %568 : vector<2x1xf32> to vector<2x256xf32>
    %570 = arith.mulf %567, %569 : vector<2x256xf32>
    %571 = arith.addf %566, %570 : vector<2x256xf32>
    %c0_377 = arith.constant 0 : index
    %c112_378 = arith.constant 112 : index
    %572 = vector.load %arg20[%c0_377, %c112_378] : memref<16x544xf32, #tpu.memory_space<vmem>>, vector<2x256xf32>
    %c0_379 = arith.constant 0 : index
    %c10_380 = arith.constant 10 : index
    %573 = vector.load %arg12[%c0_379, %c10_380] : memref<2x49xf32, #tpu.memory_space<vmem>>, vector<2x1xf32>
    %574 = vector.broadcast %573 : vector<2x1xf32> to vector<2x256xf32>
    %575 = arith.mulf %572, %574 : vector<2x256xf32>
    %576 = arith.addf %571, %575 : vector<2x256xf32>
    %c0_381 = arith.constant 0 : index
    %c128_382 = arith.constant 128 : index
    %577 = vector.load %arg20[%c0_381, %c128_382] : memref<16x544xf32, #tpu.memory_space<vmem>>, vector<2x256xf32>
    %c0_383 = arith.constant 0 : index
    %c17_384 = arith.constant 17 : index
    %578 = vector.load %arg12[%c0_383, %c17_384] : memref<2x49xf32, #tpu.memory_space<vmem>>, vector<2x1xf32>
    %579 = vector.broadcast %578 : vector<2x1xf32> to vector<2x256xf32>
    %580 = arith.mulf %577, %579 : vector<2x256xf32>
    %581 = arith.addf %576, %580 : vector<2x256xf32>
    %c0_385 = arith.constant 0 : index
    %c144_386 = arith.constant 144 : index
    %582 = vector.load %arg20[%c0_385, %c144_386] : memref<16x544xf32, #tpu.memory_space<vmem>>, vector<2x256xf32>
    %c0_387 = arith.constant 0 : index
    %c24 = arith.constant 24 : index
    %583 = vector.load %arg12[%c0_387, %c24] : memref<2x49xf32, #tpu.memory_space<vmem>>, vector<2x1xf32>
    %584 = vector.broadcast %583 : vector<2x1xf32> to vector<2x256xf32>
    %585 = arith.mulf %582, %584 : vector<2x256xf32>
    %586 = arith.addf %581, %585 : vector<2x256xf32>
    %c0_388 = arith.constant 0 : index
    %c160_389 = arith.constant 160 : index
    %587 = vector.load %arg20[%c0_388, %c160_389] : memref<16x544xf32, #tpu.memory_space<vmem>>, vector<2x256xf32>
    %c0_390 = arith.constant 0 : index
    %c31 = arith.constant 31 : index
    %588 = vector.load %arg12[%c0_390, %c31] : memref<2x49xf32, #tpu.memory_space<vmem>>, vector<2x1xf32>
    %589 = vector.broadcast %588 : vector<2x1xf32> to vector<2x256xf32>
    %590 = arith.mulf %587, %589 : vector<2x256xf32>
    %591 = arith.addf %586, %590 : vector<2x256xf32>
    %c0_391 = arith.constant 0 : index
    %c176_392 = arith.constant 176 : index
    %592 = vector.load %arg20[%c0_391, %c176_392] : memref<16x544xf32, #tpu.memory_space<vmem>>, vector<2x256xf32>
    %c0_393 = arith.constant 0 : index
    %c38 = arith.constant 38 : index
    %593 = vector.load %arg12[%c0_393, %c38] : memref<2x49xf32, #tpu.memory_space<vmem>>, vector<2x1xf32>
    %594 = vector.broadcast %593 : vector<2x1xf32> to vector<2x256xf32>
    %595 = arith.mulf %592, %594 : vector<2x256xf32>
    %596 = arith.addf %591, %595 : vector<2x256xf32>
    %c0_394 = arith.constant 0 : index
    %c192_395 = arith.constant 192 : index
    %597 = vector.load %arg20[%c0_394, %c192_395] : memref<16x544xf32, #tpu.memory_space<vmem>>, vector<2x256xf32>
    %c0_396 = arith.constant 0 : index
    %c45 = arith.constant 45 : index
    %598 = vector.load %arg12[%c0_396, %c45] : memref<2x49xf32, #tpu.memory_space<vmem>>, vector<2x1xf32>
    %599 = vector.broadcast %598 : vector<2x1xf32> to vector<2x256xf32>
    %600 = arith.mulf %597, %599 : vector<2x256xf32>
    %601 = arith.addf %596, %600 : vector<2x256xf32>
    %602 = vector.extract_strided_slice %601 {offsets = [0, 0], sizes = [1, 256], strides = [1, 1]} : vector<2x256xf32> to vector<1x256xf32>
    %603 = vector.extract_strided_slice %601 {offsets = [1, 0], sizes = [1, 256], strides = [1, 1]} : vector<2x256xf32> to vector<1x256xf32>
    %604 = arith.addf %602, %603 : vector<1x256xf32>
    %c9_397 = arith.constant 9 : index
    %c0_398 = arith.constant 0 : index
    %605 = vector.load %arg16[%c9_397, %c0_398] : memref<19x256xf32, #tpu.memory_space<vmem>>, vector<1x256xf32>
    %606 = arith.mulf %604, %605 : vector<1x256xf32>
    %607 = arith.addf %565, %606 : vector<1x256xf32>
    %cst_399 = arith.constant 0.000000e+00 : f32
    %608 = vector.broadcast %cst_399 : f32 to vector<2x256xf32>
    %c0_400 = arith.constant 0 : index
    %c97 = arith.constant 97 : index
    %609 = vector.load %arg20[%c0_400, %c97] : memref<16x544xf32, #tpu.memory_space<vmem>>, vector<2x256xf32>
    %c0_401 = arith.constant 0 : index
    %c4_402 = arith.constant 4 : index
    %610 = vector.load %arg12[%c0_401, %c4_402] : memref<2x49xf32, #tpu.memory_space<vmem>>, vector<2x1xf32>
    %611 = vector.broadcast %610 : vector<2x1xf32> to vector<2x256xf32>
    %612 = arith.mulf %609, %611 : vector<2x256xf32>
    %613 = arith.addf %608, %612 : vector<2x256xf32>
    %c0_403 = arith.constant 0 : index
    %c113 = arith.constant 113 : index
    %614 = vector.load %arg20[%c0_403, %c113] : memref<16x544xf32, #tpu.memory_space<vmem>>, vector<2x256xf32>
    %c0_404 = arith.constant 0 : index
    %c11_405 = arith.constant 11 : index
    %615 = vector.load %arg12[%c0_404, %c11_405] : memref<2x49xf32, #tpu.memory_space<vmem>>, vector<2x1xf32>
    %616 = vector.broadcast %615 : vector<2x1xf32> to vector<2x256xf32>
    %617 = arith.mulf %614, %616 : vector<2x256xf32>
    %618 = arith.addf %613, %617 : vector<2x256xf32>
    %c0_406 = arith.constant 0 : index
    %c129_407 = arith.constant 129 : index
    %619 = vector.load %arg20[%c0_406, %c129_407] : memref<16x544xf32, #tpu.memory_space<vmem>>, vector<2x256xf32>
    %c0_408 = arith.constant 0 : index
    %c18_409 = arith.constant 18 : index
    %620 = vector.load %arg12[%c0_408, %c18_409] : memref<2x49xf32, #tpu.memory_space<vmem>>, vector<2x1xf32>
    %621 = vector.broadcast %620 : vector<2x1xf32> to vector<2x256xf32>
    %622 = arith.mulf %619, %621 : vector<2x256xf32>
    %623 = arith.addf %618, %622 : vector<2x256xf32>
    %c0_410 = arith.constant 0 : index
    %c145_411 = arith.constant 145 : index
    %624 = vector.load %arg20[%c0_410, %c145_411] : memref<16x544xf32, #tpu.memory_space<vmem>>, vector<2x256xf32>
    %c0_412 = arith.constant 0 : index
    %c25 = arith.constant 25 : index
    %625 = vector.load %arg12[%c0_412, %c25] : memref<2x49xf32, #tpu.memory_space<vmem>>, vector<2x1xf32>
    %626 = vector.broadcast %625 : vector<2x1xf32> to vector<2x256xf32>
    %627 = arith.mulf %624, %626 : vector<2x256xf32>
    %628 = arith.addf %623, %627 : vector<2x256xf32>
    %c0_413 = arith.constant 0 : index
    %c161_414 = arith.constant 161 : index
    %629 = vector.load %arg20[%c0_413, %c161_414] : memref<16x544xf32, #tpu.memory_space<vmem>>, vector<2x256xf32>
    %c0_415 = arith.constant 0 : index
    %c32 = arith.constant 32 : index
    %630 = vector.load %arg12[%c0_415, %c32] : memref<2x49xf32, #tpu.memory_space<vmem>>, vector<2x1xf32>
    %631 = vector.broadcast %630 : vector<2x1xf32> to vector<2x256xf32>
    %632 = arith.mulf %629, %631 : vector<2x256xf32>
    %633 = arith.addf %628, %632 : vector<2x256xf32>
    %c0_416 = arith.constant 0 : index
    %c177 = arith.constant 177 : index
    %634 = vector.load %arg20[%c0_416, %c177] : memref<16x544xf32, #tpu.memory_space<vmem>>, vector<2x256xf32>
    %c0_417 = arith.constant 0 : index
    %c39 = arith.constant 39 : index
    %635 = vector.load %arg12[%c0_417, %c39] : memref<2x49xf32, #tpu.memory_space<vmem>>, vector<2x1xf32>
    %636 = vector.broadcast %635 : vector<2x1xf32> to vector<2x256xf32>
    %637 = arith.mulf %634, %636 : vector<2x256xf32>
    %638 = arith.addf %633, %637 : vector<2x256xf32>
    %c0_418 = arith.constant 0 : index
    %c193 = arith.constant 193 : index
    %639 = vector.load %arg20[%c0_418, %c193] : memref<16x544xf32, #tpu.memory_space<vmem>>, vector<2x256xf32>
    %c0_419 = arith.constant 0 : index
    %c46 = arith.constant 46 : index
    %640 = vector.load %arg12[%c0_419, %c46] : memref<2x49xf32, #tpu.memory_space<vmem>>, vector<2x1xf32>
    %641 = vector.broadcast %640 : vector<2x1xf32> to vector<2x256xf32>
    %642 = arith.mulf %639, %641 : vector<2x256xf32>
    %643 = arith.addf %638, %642 : vector<2x256xf32>
    %644 = vector.extract_strided_slice %643 {offsets = [0, 0], sizes = [1, 256], strides = [1, 1]} : vector<2x256xf32> to vector<1x256xf32>
    %645 = vector.extract_strided_slice %643 {offsets = [1, 0], sizes = [1, 256], strides = [1, 1]} : vector<2x256xf32> to vector<1x256xf32>
    %646 = arith.addf %644, %645 : vector<1x256xf32>
    %c10_420 = arith.constant 10 : index
    %c0_421 = arith.constant 0 : index
    %647 = vector.load %arg16[%c10_420, %c0_421] : memref<19x256xf32, #tpu.memory_space<vmem>>, vector<1x256xf32>
    %648 = arith.mulf %646, %647 : vector<1x256xf32>
    %649 = arith.addf %607, %648 : vector<1x256xf32>
    %cst_422 = arith.constant 0.000000e+00 : f32
    %650 = vector.broadcast %cst_422 : f32 to vector<2x256xf32>
    %c0_423 = arith.constant 0 : index
    %c98 = arith.constant 98 : index
    %651 = vector.load %arg20[%c0_423, %c98] : memref<16x544xf32, #tpu.memory_space<vmem>>, vector<2x256xf32>
    %c0_424 = arith.constant 0 : index
    %c5_425 = arith.constant 5 : index
    %652 = vector.load %arg12[%c0_424, %c5_425] : memref<2x49xf32, #tpu.memory_space<vmem>>, vector<2x1xf32>
    %653 = vector.broadcast %652 : vector<2x1xf32> to vector<2x256xf32>
    %654 = arith.mulf %651, %653 : vector<2x256xf32>
    %655 = arith.addf %650, %654 : vector<2x256xf32>
    %c0_426 = arith.constant 0 : index
    %c114 = arith.constant 114 : index
    %656 = vector.load %arg20[%c0_426, %c114] : memref<16x544xf32, #tpu.memory_space<vmem>>, vector<2x256xf32>
    %c0_427 = arith.constant 0 : index
    %c12_428 = arith.constant 12 : index
    %657 = vector.load %arg12[%c0_427, %c12_428] : memref<2x49xf32, #tpu.memory_space<vmem>>, vector<2x1xf32>
    %658 = vector.broadcast %657 : vector<2x1xf32> to vector<2x256xf32>
    %659 = arith.mulf %656, %658 : vector<2x256xf32>
    %660 = arith.addf %655, %659 : vector<2x256xf32>
    %c0_429 = arith.constant 0 : index
    %c130 = arith.constant 130 : index
    %661 = vector.load %arg20[%c0_429, %c130] : memref<16x544xf32, #tpu.memory_space<vmem>>, vector<2x256xf32>
    %c0_430 = arith.constant 0 : index
    %c19_431 = arith.constant 19 : index
    %662 = vector.load %arg12[%c0_430, %c19_431] : memref<2x49xf32, #tpu.memory_space<vmem>>, vector<2x1xf32>
    %663 = vector.broadcast %662 : vector<2x1xf32> to vector<2x256xf32>
    %664 = arith.mulf %661, %663 : vector<2x256xf32>
    %665 = arith.addf %660, %664 : vector<2x256xf32>
    %c0_432 = arith.constant 0 : index
    %c146_433 = arith.constant 146 : index
    %666 = vector.load %arg20[%c0_432, %c146_433] : memref<16x544xf32, #tpu.memory_space<vmem>>, vector<2x256xf32>
    %c0_434 = arith.constant 0 : index
    %c26 = arith.constant 26 : index
    %667 = vector.load %arg12[%c0_434, %c26] : memref<2x49xf32, #tpu.memory_space<vmem>>, vector<2x1xf32>
    %668 = vector.broadcast %667 : vector<2x1xf32> to vector<2x256xf32>
    %669 = arith.mulf %666, %668 : vector<2x256xf32>
    %670 = arith.addf %665, %669 : vector<2x256xf32>
    %c0_435 = arith.constant 0 : index
    %c162 = arith.constant 162 : index
    %671 = vector.load %arg20[%c0_435, %c162] : memref<16x544xf32, #tpu.memory_space<vmem>>, vector<2x256xf32>
    %c0_436 = arith.constant 0 : index
    %c33 = arith.constant 33 : index
    %672 = vector.load %arg12[%c0_436, %c33] : memref<2x49xf32, #tpu.memory_space<vmem>>, vector<2x1xf32>
    %673 = vector.broadcast %672 : vector<2x1xf32> to vector<2x256xf32>
    %674 = arith.mulf %671, %673 : vector<2x256xf32>
    %675 = arith.addf %670, %674 : vector<2x256xf32>
    %c0_437 = arith.constant 0 : index
    %c178 = arith.constant 178 : index
    %676 = vector.load %arg20[%c0_437, %c178] : memref<16x544xf32, #tpu.memory_space<vmem>>, vector<2x256xf32>
    %c0_438 = arith.constant 0 : index
    %c40 = arith.constant 40 : index
    %677 = vector.load %arg12[%c0_438, %c40] : memref<2x49xf32, #tpu.memory_space<vmem>>, vector<2x1xf32>
    %678 = vector.broadcast %677 : vector<2x1xf32> to vector<2x256xf32>
    %679 = arith.mulf %676, %678 : vector<2x256xf32>
    %680 = arith.addf %675, %679 : vector<2x256xf32>
    %c0_439 = arith.constant 0 : index
    %c194 = arith.constant 194 : index
    %681 = vector.load %arg20[%c0_439, %c194] : memref<16x544xf32, #tpu.memory_space<vmem>>, vector<2x256xf32>
    %c0_440 = arith.constant 0 : index
    %c47 = arith.constant 47 : index
    %682 = vector.load %arg12[%c0_440, %c47] : memref<2x49xf32, #tpu.memory_space<vmem>>, vector<2x1xf32>
    %683 = vector.broadcast %682 : vector<2x1xf32> to vector<2x256xf32>
    %684 = arith.mulf %681, %683 : vector<2x256xf32>
    %685 = arith.addf %680, %684 : vector<2x256xf32>
    %686 = vector.extract_strided_slice %685 {offsets = [0, 0], sizes = [1, 256], strides = [1, 1]} : vector<2x256xf32> to vector<1x256xf32>
    %687 = vector.extract_strided_slice %685 {offsets = [1, 0], sizes = [1, 256], strides = [1, 1]} : vector<2x256xf32> to vector<1x256xf32>
    %688 = arith.addf %686, %687 : vector<1x256xf32>
    %c11_441 = arith.constant 11 : index
    %c0_442 = arith.constant 0 : index
    %689 = vector.load %arg16[%c11_441, %c0_442] : memref<19x256xf32, #tpu.memory_space<vmem>>, vector<1x256xf32>
    %690 = arith.mulf %688, %689 : vector<1x256xf32>
    %691 = arith.addf %649, %690 : vector<1x256xf32>
    %cst_443 = arith.constant 0.000000e+00 : f32
    %692 = vector.broadcast %cst_443 : f32 to vector<2x256xf32>
    %c0_444 = arith.constant 0 : index
    %c99 = arith.constant 99 : index
    %693 = vector.load %arg20[%c0_444, %c99] : memref<16x544xf32, #tpu.memory_space<vmem>>, vector<2x256xf32>
    %c0_445 = arith.constant 0 : index
    %c6_446 = arith.constant 6 : index
    %694 = vector.load %arg12[%c0_445, %c6_446] : memref<2x49xf32, #tpu.memory_space<vmem>>, vector<2x1xf32>
    %695 = vector.broadcast %694 : vector<2x1xf32> to vector<2x256xf32>
    %696 = arith.mulf %693, %695 : vector<2x256xf32>
    %697 = arith.addf %692, %696 : vector<2x256xf32>
    %c0_447 = arith.constant 0 : index
    %c115 = arith.constant 115 : index
    %698 = vector.load %arg20[%c0_447, %c115] : memref<16x544xf32, #tpu.memory_space<vmem>>, vector<2x256xf32>
    %c0_448 = arith.constant 0 : index
    %c13_449 = arith.constant 13 : index
    %699 = vector.load %arg12[%c0_448, %c13_449] : memref<2x49xf32, #tpu.memory_space<vmem>>, vector<2x1xf32>
    %700 = vector.broadcast %699 : vector<2x1xf32> to vector<2x256xf32>
    %701 = arith.mulf %698, %700 : vector<2x256xf32>
    %702 = arith.addf %697, %701 : vector<2x256xf32>
    %c0_450 = arith.constant 0 : index
    %c131 = arith.constant 131 : index
    %703 = vector.load %arg20[%c0_450, %c131] : memref<16x544xf32, #tpu.memory_space<vmem>>, vector<2x256xf32>
    %c0_451 = arith.constant 0 : index
    %c20_452 = arith.constant 20 : index
    %704 = vector.load %arg12[%c0_451, %c20_452] : memref<2x49xf32, #tpu.memory_space<vmem>>, vector<2x1xf32>
    %705 = vector.broadcast %704 : vector<2x1xf32> to vector<2x256xf32>
    %706 = arith.mulf %703, %705 : vector<2x256xf32>
    %707 = arith.addf %702, %706 : vector<2x256xf32>
    %c0_453 = arith.constant 0 : index
    %c147_454 = arith.constant 147 : index
    %708 = vector.load %arg20[%c0_453, %c147_454] : memref<16x544xf32, #tpu.memory_space<vmem>>, vector<2x256xf32>
    %c0_455 = arith.constant 0 : index
    %c27 = arith.constant 27 : index
    %709 = vector.load %arg12[%c0_455, %c27] : memref<2x49xf32, #tpu.memory_space<vmem>>, vector<2x1xf32>
    %710 = vector.broadcast %709 : vector<2x1xf32> to vector<2x256xf32>
    %711 = arith.mulf %708, %710 : vector<2x256xf32>
    %712 = arith.addf %707, %711 : vector<2x256xf32>
    %c0_456 = arith.constant 0 : index
    %c163 = arith.constant 163 : index
    %713 = vector.load %arg20[%c0_456, %c163] : memref<16x544xf32, #tpu.memory_space<vmem>>, vector<2x256xf32>
    %c0_457 = arith.constant 0 : index
    %c34 = arith.constant 34 : index
    %714 = vector.load %arg12[%c0_457, %c34] : memref<2x49xf32, #tpu.memory_space<vmem>>, vector<2x1xf32>
    %715 = vector.broadcast %714 : vector<2x1xf32> to vector<2x256xf32>
    %716 = arith.mulf %713, %715 : vector<2x256xf32>
    %717 = arith.addf %712, %716 : vector<2x256xf32>
    %c0_458 = arith.constant 0 : index
    %c179 = arith.constant 179 : index
    %718 = vector.load %arg20[%c0_458, %c179] : memref<16x544xf32, #tpu.memory_space<vmem>>, vector<2x256xf32>
    %c0_459 = arith.constant 0 : index
    %c41 = arith.constant 41 : index
    %719 = vector.load %arg12[%c0_459, %c41] : memref<2x49xf32, #tpu.memory_space<vmem>>, vector<2x1xf32>
    %720 = vector.broadcast %719 : vector<2x1xf32> to vector<2x256xf32>
    %721 = arith.mulf %718, %720 : vector<2x256xf32>
    %722 = arith.addf %717, %721 : vector<2x256xf32>
    %c0_460 = arith.constant 0 : index
    %c195 = arith.constant 195 : index
    %723 = vector.load %arg20[%c0_460, %c195] : memref<16x544xf32, #tpu.memory_space<vmem>>, vector<2x256xf32>
    %c0_461 = arith.constant 0 : index
    %c48_462 = arith.constant 48 : index
    %724 = vector.load %arg12[%c0_461, %c48_462] : memref<2x49xf32, #tpu.memory_space<vmem>>, vector<2x1xf32>
    %725 = vector.broadcast %724 : vector<2x1xf32> to vector<2x256xf32>
    %726 = arith.mulf %723, %725 : vector<2x256xf32>
    %727 = arith.addf %722, %726 : vector<2x256xf32>
    %728 = vector.extract_strided_slice %727 {offsets = [0, 0], sizes = [1, 256], strides = [1, 1]} : vector<2x256xf32> to vector<1x256xf32>
    %729 = vector.extract_strided_slice %727 {offsets = [1, 0], sizes = [1, 256], strides = [1, 1]} : vector<2x256xf32> to vector<1x256xf32>
    %730 = arith.addf %728, %729 : vector<1x256xf32>
    %c12_463 = arith.constant 12 : index
    %c0_464 = arith.constant 0 : index
    %731 = vector.load %arg16[%c12_463, %c0_464] : memref<19x256xf32, #tpu.memory_space<vmem>>, vector<1x256xf32>
    %732 = arith.mulf %730, %731 : vector<1x256xf32>
    %733 = arith.addf %691, %732 : vector<1x256xf32>
    %734 = arith.negf %733 : vector<1x256xf32>
    %735 = math.exp %734 : vector<1x256xf32>
    %cst_465 = arith.constant 1.000000e+00 : f32
    %736 = vector.broadcast %cst_465 : f32 to vector<1x256xf32>
    %737 = arith.addf %736, %735 : vector<1x256xf32>
    %738 = arith.divf %736, %737 : vector<1x256xf32>
    %c1_466 = arith.constant 1 : index
    %c0_467 = arith.constant 0 : index
    %739 = vector.load %arg15[%c1_466, %c0_467] : memref<3x1xf32, #tpu.memory_space<vmem>>, vector<1x1xf32>
    %740 = vector.shape_cast %739 : vector<1x1xf32> to vector<1x1xf32>
    %741 = vector.broadcast %740 : vector<1x1xf32> to vector<16x16xf32>
    %c0_468 = arith.constant 0 : index
    %c0_469 = arith.constant 0 : index
    %c0_470 = arith.constant 0 : index
    %742 = vector.load %arg13[%c0_468, %c0_469, %c0_470] : memref<7x16x32xf32, #tpu.memory_space<vmem>>, vector<1x16x32xf32>
    %743 = vector.shape_cast %742 : vector<1x16x32xf32> to vector<16x32xf32>
    %c0_471 = arith.constant 0 : index
    %c0_472 = arith.constant 0 : index
    %744 = vector.load %arg21[%c0_471, %c0_472] : memref<32x22xf32, #tpu.memory_space<vmem>>, vector<32x16xf32>
    %cst_473 = arith.constant dense<0.000000e+00> : vector<16x16xf32>
    %745 = tpu.matmul %743, %744, %cst_473 {dimension_numbers = #tpu.dot_dimension_numbers<[1], [0], [0], [1], [0, 0, 1, 1], [], []>} : vector<16x32xf32>, vector<32x16xf32>, vector<16x16xf32> -> vector<16x16xf32>
    %746 = arith.addf %741, %745 : vector<16x16xf32>
    %c1_474 = arith.constant 1 : index
    %c0_475 = arith.constant 0 : index
    %c0_476 = arith.constant 0 : index
    %747 = vector.load %arg13[%c1_474, %c0_475, %c0_476] : memref<7x16x32xf32, #tpu.memory_space<vmem>>, vector<1x16x32xf32>
    %748 = vector.shape_cast %747 : vector<1x16x32xf32> to vector<16x32xf32>
    %c0_477 = arith.constant 0 : index
    %c1_478 = arith.constant 1 : index
    %749 = vector.load %arg21[%c0_477, %c1_478] : memref<32x22xf32, #tpu.memory_space<vmem>>, vector<32x16xf32>
    %cst_479 = arith.constant dense<0.000000e+00> : vector<16x16xf32>
    %750 = tpu.matmul %748, %749, %cst_479 {dimension_numbers = #tpu.dot_dimension_numbers<[1], [0], [0], [1], [0, 0, 1, 1], [], []>} : vector<16x32xf32>, vector<32x16xf32>, vector<16x16xf32> -> vector<16x16xf32>
    %751 = arith.addf %746, %750 : vector<16x16xf32>
    %c2_480 = arith.constant 2 : index
    %c0_481 = arith.constant 0 : index
    %c0_482 = arith.constant 0 : index
    %752 = vector.load %arg13[%c2_480, %c0_481, %c0_482] : memref<7x16x32xf32, #tpu.memory_space<vmem>>, vector<1x16x32xf32>
    %753 = vector.shape_cast %752 : vector<1x16x32xf32> to vector<16x32xf32>
    %c0_483 = arith.constant 0 : index
    %c2_484 = arith.constant 2 : index
    %754 = vector.load %arg21[%c0_483, %c2_484] : memref<32x22xf32, #tpu.memory_space<vmem>>, vector<32x16xf32>
    %cst_485 = arith.constant dense<0.000000e+00> : vector<16x16xf32>
    %755 = tpu.matmul %753, %754, %cst_485 {dimension_numbers = #tpu.dot_dimension_numbers<[1], [0], [0], [1], [0, 0, 1, 1], [], []>} : vector<16x32xf32>, vector<32x16xf32>, vector<16x16xf32> -> vector<16x16xf32>
    %756 = arith.addf %751, %755 : vector<16x16xf32>
    %c3_486 = arith.constant 3 : index
    %c0_487 = arith.constant 0 : index
    %c0_488 = arith.constant 0 : index
    %757 = vector.load %arg13[%c3_486, %c0_487, %c0_488] : memref<7x16x32xf32, #tpu.memory_space<vmem>>, vector<1x16x32xf32>
    %758 = vector.shape_cast %757 : vector<1x16x32xf32> to vector<16x32xf32>
    %c0_489 = arith.constant 0 : index
    %c3_490 = arith.constant 3 : index
    %759 = vector.load %arg21[%c0_489, %c3_490] : memref<32x22xf32, #tpu.memory_space<vmem>>, vector<32x16xf32>
    %cst_491 = arith.constant dense<0.000000e+00> : vector<16x16xf32>
    %760 = tpu.matmul %758, %759, %cst_491 {dimension_numbers = #tpu.dot_dimension_numbers<[1], [0], [0], [1], [0, 0, 1, 1], [], []>} : vector<16x32xf32>, vector<32x16xf32>, vector<16x16xf32> -> vector<16x16xf32>
    %761 = arith.addf %756, %760 : vector<16x16xf32>
    %c4_492 = arith.constant 4 : index
    %c0_493 = arith.constant 0 : index
    %c0_494 = arith.constant 0 : index
    %762 = vector.load %arg13[%c4_492, %c0_493, %c0_494] : memref<7x16x32xf32, #tpu.memory_space<vmem>>, vector<1x16x32xf32>
    %763 = vector.shape_cast %762 : vector<1x16x32xf32> to vector<16x32xf32>
    %c0_495 = arith.constant 0 : index
    %c4_496 = arith.constant 4 : index
    %764 = vector.load %arg21[%c0_495, %c4_496] : memref<32x22xf32, #tpu.memory_space<vmem>>, vector<32x16xf32>
    %cst_497 = arith.constant dense<0.000000e+00> : vector<16x16xf32>
    %765 = tpu.matmul %763, %764, %cst_497 {dimension_numbers = #tpu.dot_dimension_numbers<[1], [0], [0], [1], [0, 0, 1, 1], [], []>} : vector<16x32xf32>, vector<32x16xf32>, vector<16x16xf32> -> vector<16x16xf32>
    %766 = arith.addf %761, %765 : vector<16x16xf32>
    %c5_498 = arith.constant 5 : index
    %c0_499 = arith.constant 0 : index
    %c0_500 = arith.constant 0 : index
    %767 = vector.load %arg13[%c5_498, %c0_499, %c0_500] : memref<7x16x32xf32, #tpu.memory_space<vmem>>, vector<1x16x32xf32>
    %768 = vector.shape_cast %767 : vector<1x16x32xf32> to vector<16x32xf32>
    %c0_501 = arith.constant 0 : index
    %c5_502 = arith.constant 5 : index
    %769 = vector.load %arg21[%c0_501, %c5_502] : memref<32x22xf32, #tpu.memory_space<vmem>>, vector<32x16xf32>
    %cst_503 = arith.constant dense<0.000000e+00> : vector<16x16xf32>
    %770 = tpu.matmul %768, %769, %cst_503 {dimension_numbers = #tpu.dot_dimension_numbers<[1], [0], [0], [1], [0, 0, 1, 1], [], []>} : vector<16x32xf32>, vector<32x16xf32>, vector<16x16xf32> -> vector<16x16xf32>
    %771 = arith.addf %766, %770 : vector<16x16xf32>
    %c6_504 = arith.constant 6 : index
    %c0_505 = arith.constant 0 : index
    %c0_506 = arith.constant 0 : index
    %772 = vector.load %arg13[%c6_504, %c0_505, %c0_506] : memref<7x16x32xf32, #tpu.memory_space<vmem>>, vector<1x16x32xf32>
    %773 = vector.shape_cast %772 : vector<1x16x32xf32> to vector<16x32xf32>
    %c0_507 = arith.constant 0 : index
    %c6_508 = arith.constant 6 : index
    %774 = vector.load %arg21[%c0_507, %c6_508] : memref<32x22xf32, #tpu.memory_space<vmem>>, vector<32x16xf32>
    %cst_509 = arith.constant dense<0.000000e+00> : vector<16x16xf32>
    %775 = tpu.matmul %773, %774, %cst_509 {dimension_numbers = #tpu.dot_dimension_numbers<[1], [0], [0], [1], [0, 0, 1, 1], [], []>} : vector<16x32xf32>, vector<32x16xf32>, vector<16x16xf32> -> vector<16x16xf32>
    %776 = arith.addf %771, %775 : vector<16x16xf32>
    %777 = arith.negf %776 : vector<16x16xf32>
    %778 = math.exp %777 : vector<16x16xf32>
    %cst_510 = arith.constant 1.000000e+00 : f32
    %779 = vector.broadcast %cst_510 : f32 to vector<16x16xf32>
    %780 = arith.addf %779, %778 : vector<16x16xf32>
    %781 = arith.divf %779, %780 : vector<16x16xf32>
    %c2_511 = arith.constant 2 : index
    %c0_512 = arith.constant 0 : index
    %782 = vector.load %arg15[%c2_511, %c0_512] : memref<3x1xf32, #tpu.memory_space<vmem>>, vector<1x1xf32>
    %783 = vector.shape_cast %782 : vector<1x1xf32> to vector<1x1xf32>
    %784 = vector.broadcast %783 : vector<1x1xf32> to vector<16x16xf32>
    %c0_513 = arith.constant 0 : index
    %c0_514 = arith.constant 0 : index
    %c0_515 = arith.constant 0 : index
    %785 = vector.load %arg14[%c0_513, %c0_514, %c0_515] : memref<7x16x32xf32, #tpu.memory_space<vmem>>, vector<1x16x32xf32>
    %786 = vector.shape_cast %785 : vector<1x16x32xf32> to vector<16x32xf32>
    %c0_516 = arith.constant 0 : index
    %c0_517 = arith.constant 0 : index
    %787 = vector.load %arg22[%c0_516, %c0_517] : memref<32x22xf32, #tpu.memory_space<vmem>>, vector<32x16xf32>
    %cst_518 = arith.constant dense<0.000000e+00> : vector<16x16xf32>
    %788 = tpu.matmul %786, %787, %cst_518 {dimension_numbers = #tpu.dot_dimension_numbers<[1], [0], [0], [1], [0, 0, 1, 1], [], []>} : vector<16x32xf32>, vector<32x16xf32>, vector<16x16xf32> -> vector<16x16xf32>
    %789 = arith.addf %784, %788 : vector<16x16xf32>
    %c1_519 = arith.constant 1 : index
    %c0_520 = arith.constant 0 : index
    %c0_521 = arith.constant 0 : index
    %790 = vector.load %arg14[%c1_519, %c0_520, %c0_521] : memref<7x16x32xf32, #tpu.memory_space<vmem>>, vector<1x16x32xf32>
    %791 = vector.shape_cast %790 : vector<1x16x32xf32> to vector<16x32xf32>
    %c0_522 = arith.constant 0 : index
    %c1_523 = arith.constant 1 : index
    %792 = vector.load %arg22[%c0_522, %c1_523] : memref<32x22xf32, #tpu.memory_space<vmem>>, vector<32x16xf32>
    %cst_524 = arith.constant dense<0.000000e+00> : vector<16x16xf32>
    %793 = tpu.matmul %791, %792, %cst_524 {dimension_numbers = #tpu.dot_dimension_numbers<[1], [0], [0], [1], [0, 0, 1, 1], [], []>} : vector<16x32xf32>, vector<32x16xf32>, vector<16x16xf32> -> vector<16x16xf32>
    %794 = arith.addf %789, %793 : vector<16x16xf32>
    %c2_525 = arith.constant 2 : index
    %c0_526 = arith.constant 0 : index
    %c0_527 = arith.constant 0 : index
    %795 = vector.load %arg14[%c2_525, %c0_526, %c0_527] : memref<7x16x32xf32, #tpu.memory_space<vmem>>, vector<1x16x32xf32>
    %796 = vector.shape_cast %795 : vector<1x16x32xf32> to vector<16x32xf32>
    %c0_528 = arith.constant 0 : index
    %c2_529 = arith.constant 2 : index
    %797 = vector.load %arg22[%c0_528, %c2_529] : memref<32x22xf32, #tpu.memory_space<vmem>>, vector<32x16xf32>
    %cst_530 = arith.constant dense<0.000000e+00> : vector<16x16xf32>
    %798 = tpu.matmul %796, %797, %cst_530 {dimension_numbers = #tpu.dot_dimension_numbers<[1], [0], [0], [1], [0, 0, 1, 1], [], []>} : vector<16x32xf32>, vector<32x16xf32>, vector<16x16xf32> -> vector<16x16xf32>
    %799 = arith.addf %794, %798 : vector<16x16xf32>
    %c3_531 = arith.constant 3 : index
    %c0_532 = arith.constant 0 : index
    %c0_533 = arith.constant 0 : index
    %800 = vector.load %arg14[%c3_531, %c0_532, %c0_533] : memref<7x16x32xf32, #tpu.memory_space<vmem>>, vector<1x16x32xf32>
    %801 = vector.shape_cast %800 : vector<1x16x32xf32> to vector<16x32xf32>
    %c0_534 = arith.constant 0 : index
    %c3_535 = arith.constant 3 : index
    %802 = vector.load %arg22[%c0_534, %c3_535] : memref<32x22xf32, #tpu.memory_space<vmem>>, vector<32x16xf32>
    %cst_536 = arith.constant dense<0.000000e+00> : vector<16x16xf32>
    %803 = tpu.matmul %801, %802, %cst_536 {dimension_numbers = #tpu.dot_dimension_numbers<[1], [0], [0], [1], [0, 0, 1, 1], [], []>} : vector<16x32xf32>, vector<32x16xf32>, vector<16x16xf32> -> vector<16x16xf32>
    %804 = arith.addf %799, %803 : vector<16x16xf32>
    %c4_537 = arith.constant 4 : index
    %c0_538 = arith.constant 0 : index
    %c0_539 = arith.constant 0 : index
    %805 = vector.load %arg14[%c4_537, %c0_538, %c0_539] : memref<7x16x32xf32, #tpu.memory_space<vmem>>, vector<1x16x32xf32>
    %806 = vector.shape_cast %805 : vector<1x16x32xf32> to vector<16x32xf32>
    %c0_540 = arith.constant 0 : index
    %c4_541 = arith.constant 4 : index
    %807 = vector.load %arg22[%c0_540, %c4_541] : memref<32x22xf32, #tpu.memory_space<vmem>>, vector<32x16xf32>
    %cst_542 = arith.constant dense<0.000000e+00> : vector<16x16xf32>
    %808 = tpu.matmul %806, %807, %cst_542 {dimension_numbers = #tpu.dot_dimension_numbers<[1], [0], [0], [1], [0, 0, 1, 1], [], []>} : vector<16x32xf32>, vector<32x16xf32>, vector<16x16xf32> -> vector<16x16xf32>
    %809 = arith.addf %804, %808 : vector<16x16xf32>
    %c5_543 = arith.constant 5 : index
    %c0_544 = arith.constant 0 : index
    %c0_545 = arith.constant 0 : index
    %810 = vector.load %arg14[%c5_543, %c0_544, %c0_545] : memref<7x16x32xf32, #tpu.memory_space<vmem>>, vector<1x16x32xf32>
    %811 = vector.shape_cast %810 : vector<1x16x32xf32> to vector<16x32xf32>
    %c0_546 = arith.constant 0 : index
    %c5_547 = arith.constant 5 : index
    %812 = vector.load %arg22[%c0_546, %c5_547] : memref<32x22xf32, #tpu.memory_space<vmem>>, vector<32x16xf32>
    %cst_548 = arith.constant dense<0.000000e+00> : vector<16x16xf32>
    %813 = tpu.matmul %811, %812, %cst_548 {dimension_numbers = #tpu.dot_dimension_numbers<[1], [0], [0], [1], [0, 0, 1, 1], [], []>} : vector<16x32xf32>, vector<32x16xf32>, vector<16x16xf32> -> vector<16x16xf32>
    %814 = arith.addf %809, %813 : vector<16x16xf32>
    %c6_549 = arith.constant 6 : index
    %c0_550 = arith.constant 0 : index
    %c0_551 = arith.constant 0 : index
    %815 = vector.load %arg14[%c6_549, %c0_550, %c0_551] : memref<7x16x32xf32, #tpu.memory_space<vmem>>, vector<1x16x32xf32>
    %816 = vector.shape_cast %815 : vector<1x16x32xf32> to vector<16x32xf32>
    %c0_552 = arith.constant 0 : index
    %c6_553 = arith.constant 6 : index
    %817 = vector.load %arg22[%c0_552, %c6_553] : memref<32x22xf32, #tpu.memory_space<vmem>>, vector<32x16xf32>
    %cst_554 = arith.constant dense<0.000000e+00> : vector<16x16xf32>
    %818 = tpu.matmul %816, %817, %cst_554 {dimension_numbers = #tpu.dot_dimension_numbers<[1], [0], [0], [1], [0, 0, 1, 1], [], []>} : vector<16x32xf32>, vector<32x16xf32>, vector<16x16xf32> -> vector<16x16xf32>
    %819 = arith.addf %814, %818 : vector<16x16xf32>
    %820 = arith.negf %819 : vector<16x16xf32>
    %821 = math.exp %820 : vector<16x16xf32>
    %cst_555 = arith.constant 1.000000e+00 : f32
    %822 = vector.broadcast %cst_555 : f32 to vector<16x16xf32>
    %823 = arith.addf %822, %821 : vector<16x16xf32>
    %824 = arith.divf %822, %823 : vector<16x16xf32>
    %c0_556 = arith.constant 0 : index
    %c0_557 = arith.constant 0 : index
    %825 = vector.load %arg17[%c0_556, %c0_557] : memref<16x256xf32, #tpu.memory_space<vmem>>, vector<16x256xf32>
    %cst_558 = arith.constant dense<0.000000e+00> : vector<16x256xf32>
    %826 = tpu.matmul %781, %825, %cst_558 {dimension_numbers = #tpu.dot_dimension_numbers<[1], [0], [0], [1], [0, 0, 1, 1], [], []>} : vector<16x16xf32>, vector<16x256xf32>, vector<16x256xf32> -> vector<16x256xf32>
    %c0_559 = arith.constant 0 : index
    %c0_560 = arith.constant 0 : index
    %827 = vector.load %arg18[%c0_559, %c0_560] : memref<16x256xf32, #tpu.memory_space<vmem>>, vector<16x256xf32>
    %cst_561 = arith.constant dense<0.000000e+00> : vector<16x256xf32>
    %828 = tpu.matmul %824, %827, %cst_561 {dimension_numbers = #tpu.dot_dimension_numbers<[1], [0], [0], [1], [0, 0, 1, 1], [], []>} : vector<16x16xf32>, vector<16x256xf32>, vector<16x256xf32> -> vector<16x256xf32>
    %829 = vector.broadcast %738 : vector<1x256xf32> to vector<16x256xf32>
    %830 = arith.addf %829, %826 : vector<16x256xf32>
    %831 = arith.addf %830, %828 : vector<16x256xf32>
    %832 = arith.mulf %280, %831 : vector<16x256xf32>
    %cst_562 = arith.constant 0.333333343 : f32
    %833 = vector.broadcast %cst_562 : f32 to vector<16x256xf32>
    %834 = arith.mulf %832, %833 : vector<16x256xf32>
    %835 = arith.addf %834, %10 : vector<16x256xf32>
    %cst_563 = arith.constant 0.000000e+00 : f32
    %836 = vector.broadcast %cst_563 : f32 to vector<16x256xf32>
    %837 = arith.maximumf %835, %836 : vector<16x256xf32>
    %c0_564 = arith.constant 0 : index
    %c0_565 = arith.constant 0 : index
    %c0_566 = arith.constant 0 : index
    %838 = vector.load %arg19[%c0_564, %c0_565, %c0_566] : memref<1x16x256xf32, #tpu.memory_space<vmem>>, vector<1x16x256xf32>
    %839 = vector.shape_cast %838 : vector<1x16x256xf32> to vector<16x256xf32>
    %840 = vector.shape_cast %837 : vector<16x256xf32> to vector<1x16x256xf32>
    tpu.vector_store %arg19[%c0_564, %c0_565, %c0_566], %840 {strides = array<i32>} : memref<1x16x256xf32, #tpu.memory_space<vmem>>, vector<1x16x256xf32>,
    return
  }
  func.func @transform_0(%arg0: i32) -> (i32, i32, i32) {
    %c0_i32 = arith.constant 0 : i32
    %c0_i32_0 = arith.constant 0 : i32
    %c0_i32_1 = arith.constant 0 : i32
    return %arg0, %c0_i32, %c0_i32_0 : i32, i32, i32
  }
  func.func @transform_1(%arg0: i32) -> (i32, i32) {
    %c0_i32 = arith.constant 0 : i32
    %c0_i32_0 = arith.constant 0 : i32
    %c0_i32_1 = arith.constant 0 : i32
    return %c0_i32, %c0_i32_0 : i32, i32
  }
  func.func @transform_2(%arg0: i32) -> (i32, i32) {
    %c0_i32 = arith.constant 0 : i32
    %c0_i32_0 = arith.constant 0 : i32
    %c0_i32_1 = arith.constant 0 : i32
    return %c0_i32, %c0_i32_0 : i32, i32
  }
  func.func @transform_3(%arg0: i32) -> (i32, i32, i32) {
    %c0_i32 = arith.constant 0 : i32
    %c0_i32_0 = arith.constant 0 : i32
    %c0_i32_1 = arith.constant 0 : i32
    %c0_i32_2 = arith.constant 0 : i32
    return %c0_i32, %c0_i32_0, %c0_i32_1 : i32, i32, i32
  }
  func.func @transform_4(%arg0: i32) -> (i32, i32) {
    %c0_i32 = arith.constant 0 : i32
    %c0_i32_0 = arith.constant 0 : i32
    %c0_i32_1 = arith.constant 0 : i32
    return %c0_i32, %c0_i32_0 : i32, i32
  }
  func.func @transform_5(%arg0: i32) -> (i32, i32) {
    %c0_i32 = arith.constant 0 : i32
    %c0_i32_0 = arith.constant 0 : i32
    %c0_i32_1 = arith.constant 0 : i32
    return %c0_i32, %c0_i32_0 : i32, i32
  }
  func.func @transform_6(%arg0: i32) -> (i32, i32) {
    %c0_i32 = arith.constant 0 : i32
    %c0_i32_0 = arith.constant 0 : i32
    %c0_i32_1 = arith.constant 0 : i32
    return %c0_i32, %c0_i32_0 : i32, i32
  }
  func.func @transform_7(%arg0: i32) -> (i32, i32) {
    %c0_i32 = arith.constant 0 : i32
    %c0_i32_0 = arith.constant 0 : i32
    %c0_i32_1 = arith.constant 0 : i32
    return %c0_i32, %c0_i32_0 : i32, i32
  }
  func.func @transform_8(%arg0: i32) -> (i32, i32) {
    %c0_i32 = arith.constant 0 : i32
    %c0_i32_0 = arith.constant 0 : i32
    %c0_i32_1 = arith.constant 0 : i32
    return %c0_i32, %c0_i32_0 : i32, i32
  }
  func.func @transform_9(%arg0: i32) -> (i32, i32) {
    %c0_i32 = arith.constant 0 : i32
    %c0_i32_0 = arith.constant 0 : i32
    %c0_i32_1 = arith.constant 0 : i32
    return %c0_i32, %c0_i32_0 : i32, i32
  }
  func.func @transform_10(%arg0: i32) -> (i32, i32) {
    %c0_i32 = arith.constant 0 : i32
    %c0_i32_0 = arith.constant 0 : i32
    %c0_i32_1 = arith.constant 0 : i32
    return %c0_i32, %c0_i32_0 : i32, i32
  }
  func.func @transform_11(%arg0: i32) -> (i32, i32) {
    %c0_i32 = arith.constant 0 : i32
    %c0_i32_0 = arith.constant 0 : i32
    %c0_i32_1 = arith.constant 0 : i32
    return %c0_i32, %c0_i32_0 : i32, i32
  }
  func.func @transform_12(%arg0: i32) -> (i32, i32, i32) {
    %c0_i32 = arith.constant 0 : i32
    %c0_i32_0 = arith.constant 0 : i32
    %c0_i32_1 = arith.constant 0 : i32
    %c0_i32_2 = arith.constant 0 : i32
    return %c0_i32, %c0_i32_0, %c0_i32_1 : i32, i32, i32
  }
  func.func @transform_13(%arg0: i32) -> (i32, i32, i32) {
    %c0_i32 = arith.constant 0 : i32
    %c0_i32_0 = arith.constant 0 : i32
    %c0_i32_1 = arith.constant 0 : i32
    %c0_i32_2 = arith.constant 0 : i32
    return %c0_i32, %c0_i32_0, %c0_i32_1 : i32, i32, i32
  }
  func.func @transform_14(%arg0: i32) -> (i32, i32) {
    %c0_i32 = arith.constant 0 : i32
    %c0_i32_0 = arith.constant 0 : i32
    %c0_i32_1 = arith.constant 0 : i32
    return %c0_i32, %c0_i32_0 : i32, i32
  }
  func.func @transform_15(%arg0: i32) -> (i32, i32) {
    %c0_i32 = arith.constant 0 : i32
    %c0_i32_0 = arith.constant 0 : i32
    %c0_i32_1 = arith.constant 0 : i32
    return %c0_i32, %c0_i32_0 : i32, i32
  }
  func.func @transform_16(%arg0: i32) -> (i32, i32) {
    %c0_i32 = arith.constant 0 : i32
    %c0_i32_0 = arith.constant 0 : i32
    %c0_i32_1 = arith.constant 0 : i32
    return %c0_i32, %c0_i32_0 : i32, i32
  }
  func.func @transform_17(%arg0: i32) -> (i32, i32) {
    %c0_i32 = arith.constant 0 : i32
    %c0_i32_0 = arith.constant 0 : i32
    %c0_i32_1 = arith.constant 0 : i32
    return %c0_i32, %c0_i32_0 : i32, i32
  }
  func.func @transform_18(%arg0: i32) -> (i32, i32, i32) {
    %c0_i32 = arith.constant 0 : i32
    %c0_i32_0 = arith.constant 0 : i32
    %c0_i32_1 = arith.constant 0 : i32
    return %arg0, %c0_i32, %c0_i32_0 : i32, i32, i32
  }
}

</mosaic_0001>

<llo_original>
// kernel: tpu_custom_call.1
$region0: #{tpu_custom_call.1}
  #allocation0 [shape = 'u32[]', space=smem, size = 0x4, offset = 0x4, fixed_abs, tag = 'smem constant byte address 0x4 - core index']
  #allocation1 [shape = 'u32[144,128]{1,0:T(1,128)}', space=vmem, size = 0x12000, scoped, tag = 'internal scratch']
  #allocation2 [shape = 'f32[16,544]{1,0:T(8,128)}', space=vmem, size = 0xa000, scoped, tag = 'scratch operand']
  #allocation3 [shape = 'f32[32,22]{1,0:T(8,128)}', space=vmem, size = 0x4000, scoped, tag = 'scratch operand']
  #allocation4 [shape = 'f32[32,22]{1,0:T(8,128)}', space=vmem, size = 0x4000, scoped, tag = 'scratch operand']
  %s0 = inlined_call_operand.hbm [shape: f32[2,8,256], index: 0, kind: input, shape index: {}]
  %s1 = inlined_call_operand.vmem [shape: f32[20,8], index: 1, kind: input, shape index: {}]
  %s2 = inlined_call_operand.vmem [shape: f32[20,1], index: 2, kind: input, shape index: {}]
  %s3 = inlined_call_operand.vmem [shape: f32[9,4,4], index: 3, kind: input, shape index: {}]
  %s4 = inlined_call_operand.vmem [shape: f32[4,1], index: 4, kind: input, shape index: {}]
  %s5 = inlined_call_operand.vmem [shape: f32[16,4], index: 5, kind: input, shape index: {}]
  %s6 = inlined_call_operand.hbm [shape: f32[16,24], index: 6, kind: input, shape index: {}]
  %s7 = inlined_call_operand.hbm [shape: f32[16,16], index: 7, kind: input, shape index: {}]
  %s8 = inlined_call_operand.vmem [shape: f32[16,6], index: 8, kind: input, shape index: {}]
  %s9 = inlined_call_operand.hbm [shape: f32[4,16], index: 9, kind: input, shape index: {}]
  %s10 = inlined_call_operand.vmem [shape: f32[16,4], index: 10, kind: input, shape index: {}]
  %s11 = inlined_call_operand.hbm [shape: f32[2,49], index: 11, kind: input, shape index: {}]
  %s12 = inlined_call_operand.vmem [shape: f32[7,16,32], index: 12, kind: input, shape index: {}]
  %s13 = inlined_call_operand.vmem [shape: f32[7,16,32], index: 13, kind: input, shape index: {}]
  %s14 = inlined_call_operand.vmem [shape: f32[3,1], index: 14, kind: input, shape index: {}]
  %s15 = inlined_call_operand.hbm [shape: f32[19,256], index: 15, kind: input, shape index: {}]
  %s16 = inlined_call_operand.hbm [shape: f32[16,256], index: 16, kind: input, shape index: {}]
  %s17 = inlined_call_operand.hbm [shape: f32[16,256], index: 17, kind: input, shape index: {}]
  %s18 = inlined_call_operand.hbm [shape: f32[2,16,256], index: 18, kind: output, shape index: {}]
  %s19 = sld [smem:[#allocation0]]
  $region137: #{tpu_custom_call.1} parent=0
    _
  %s21 = ssub.s32 1, %s19
  %s22 = scalar_select 0, %s21, %s19
  $region1: #{tpu_custom_call.1} parent=0
    #allocation5 [shape = 'u8[16384]{0}', space=vmem, size = 0x4000, scoped, tag = 'input window, operand 0']
    #allocation6 [shape = 's32[2]{0}', space=sflag, size = 0x8, scoped, tag = 'scoped memory for tpu_custom_call.1']
    #allocation7 [shape = 's32[2]{0}', space=sflag, size = 0x8, scoped, tag = 'scoped memory for tpu_custom_call.1']
    #allocation8 [shape = 'u8[8192]{0}', space=vmem, size = 0x2000, scoped, tag = 'input window, operand 6, single buffered']
    #allocation9 [shape = 's32[1]{0}', space=sflag, size = 0x4, scoped, tag = 'scoped memory for tpu_custom_call.1']
    #allocation10 [shape = 'u8[8192]{0}', space=vmem, size = 0x2000, scoped, tag = 'input window, operand 7, single buffered']
    #allocation11 [shape = 'u8[2048]{0}', space=vmem, size = 0x800, scoped, tag = 'input window, operand 9, single buffered']
    #allocation12 [shape = 's32[1]{0}', space=sflag, size = 0x4, scoped, tag = 'scoped memory for tpu_custom_call.1']
    #allocation13 [shape = 'u8[1024]{0}', space=vmem, size = 0x400, scoped, tag = 'input window, operand 11, single buffered']
    #allocation14 [shape = 'u8[24576]{0}', space=vmem, size = 0x6000, scoped, tag = 'input window, operand 15, single buffered']
    #allocation15 [shape = 's32[1]{0}', space=sflag, size = 0x4, scoped, tag = 'scoped memory for tpu_custom_call.1']
    #allocation16 [shape = 'u8[16384]{0}', space=vmem, size = 0x4000, scoped, tag = 'input window, operand 16, single buffered']
    #allocation17 [shape = 'u8[16384]{0}', space=vmem, size = 0x4000, scoped, tag = 'input window, operand 17, single buffered']
    #allocation18 [shape = 's32[1]{0}', space=sflag, size = 0x4, scoped, tag = 'scoped memory for tpu_custom_call.1']
    #allocation19 [shape = 'u8[32768]{0}', space=vmem, size = 0x8000, scoped, tag = 'output window, operand 0']
    %23 = vsyncpa [#allocation6], 0
    %s24 = scalar_lea.sflag [#allocation6], 1
    %25 = vsyncpa %s24, 0
    %26 = vsyncpa [#allocation9], 0
    %27 = vsyncpa [#allocation12], 0
    %28 = vsyncpa [#allocation15], 0
    %29 = vsyncpa [#allocation18], 0
    %30 = vsyncpa [#allocation7], 0
    %s31 = scalar_lea.sflag [#allocation7], 1
    %32 = vsyncpa %s31, 0
    loop: start=0, step=1, limit=4
    $region2: #{tpu_custom_call.1} parent=1 // loop_pre_header
      _
    $region3: #{tpu_custom_call.1} parent=1 // loop_header
      %s34 = sphi 0, %s38
      %p35 = scmp.ge.s32.totalorder %s34, 4
      %s44 = sphi 0, %s46
      %s47 = sphi 0, %s44
      %s48 = sphi 0, %s47
      %s64 = sphi 0, %s48
      %s68 = sphi 0, %s68
      %s70 = sphi 0, %s68
      %s71 = sphi 0, %s70
      %s85 = sphi 0, %s71
      %s89 = sphi 0, %s89
      %s91 = sphi 0, %s89
      %s92 = sphi 0, %s91
      %s106 = sphi 0, %s92
      %s110 = sphi 0, %s110
      %s112 = sphi 0, %s110
      %s113 = sphi 0, %s112
      %s127 = sphi 0, %s113
      %s131 = sphi 0, %s131
      %s133 = sphi 0, %s131
      %s134 = sphi 0, %s133
      %s148 = sphi 0, %s134
      %s152 = sphi 0, %s152
      %s154 = sphi 0, %s152
      %s155 = sphi 0, %s154
      %s169 = sphi 0, %s155
      %s173 = sphi 0, %s173
      %s175 = sphi 0, %s173
      %s176 = sphi 0, %s175
      %s190 = sphi 0, %s176
      %s194 = sphi 0, %s194
      %s196 = sphi 0, %s194
      %s197 = sphi 0, %s196
      %s211 = sphi 0, %s197
      %s215 = sphi 0, %s215
      %s217 = sphi 0, %s215
      %s218 = sphi 0, %s217
      %s232 = sphi 0, %s218
      %s236 = sphi 0, %s236
      %s238 = sphi 0, %s236
      %s239 = sphi 0, %s238
      %s253 = sphi 0, %s239
      %s257 = sphi 0, %s257
      %s259 = sphi 0, %s257
      %s260 = sphi 0, %s259
      %s274 = sphi 0, %s260
      %s278 = sphi 0, %s278
      %s280 = sphi 0, %s278
      %s281 = sphi 0, %s280
      %s295 = sphi 0, %s281
      %s299 = sphi 0, %s299
      %s301 = sphi 0, %s299
      %s302 = sphi 0, %s301
      %s316 = sphi 0, %s302
      %s320 = sphi 0, %s320
      %s322 = sphi 0, %s320
      %s323 = sphi 0, %s322
      %s337 = sphi 0, %s323
      %s341 = sphi 0, %s341
      %s343 = sphi 0, %s341
      %s344 = sphi 0, %s343
      %s358 = sphi 0, %s344
      %s362 = sphi 0, %s362
      %s364 = sphi 0, %s362
      %s365 = sphi 0, %s364
      %s379 = sphi 0, %s365
      %s383 = sphi 0, %s383
      %s385 = sphi 0, %s383
      %s386 = sphi 0, %s385
      %s400 = sphi 0, %s386
      %s404 = sphi 0, %s404
      %s406 = sphi 0, %s404
      %s407 = sphi 0, %s406
      %s421 = sphi 0, %s407
      %s427 = sphi 0, %s429
      %s430 = sphi 0, %s427
      %s431 = sphi 0, %s430
      %s447 = sphi 0, %s431
    $region4: #{tpu_custom_call.1} parent=1 // loop_header_branch
      %37 = sbr.rel (%p35) target = $region8
    $region5: #{tpu_custom_call.1} parent=1 // loop_body
      %s39 = ssub.s32 %s34, 1
      %s40 = ssub.s32 %s34, 2
      %s41 = sadd.s32 %s34, 1
      %s42 = ssub.s32 %s34, %s41
      %p43 = scmp.eq.s32.totalorder %s42, 0
      %s45 = sadd.s32 %s44, 1
      %s46 = scalar_select %p43, %s44, %s45
      %p49 = pneg %p43
      %p50 = scmp.eq.s32.totalorder %s34, 1
      %p51 = por %p49, %p50
      %p52 = scmp.ne.s32.totalorder %s44, %s47
      %p53 = scmp.eq.s32.totalorder %s34, 0
      %p54 = por %p52, %p53
      %p55 = scmp.ne.s32.totalorder %s44, %s47
      %p56 = scmp.eq.s32.totalorder %s39, 1
      %p57 = por %p55, %p56
      %p58 = scmp.ne.s32.totalorder %s47, %s48
      %p59 = scmp.eq.s32.totalorder %s39, 0
      %p60 = por %p58, %p59
      %p61 = scmp.ne.s32.totalorder %s47, %s48
      %p62 = scmp.eq.s32.totalorder %s40, 1
      %p63 = por %p61, %p62
      %p65 = scmp.ne.s32.totalorder %s48, %s64
      %p66 = scmp.eq.s32.totalorder %s40, 0
      %p67 = por %p65, %p66
      %s69 = sadd.s32 %s68, 1
      %p72 = scmp.eq.s32.totalorder %s34, 1
      %p73 = scmp.ne.s32.totalorder %s68, %s70
      %p74 = scmp.eq.s32.totalorder %s34, 0
      %p75 = por %p73, %p74
      %p76 = scmp.ne.s32.totalorder %s68, %s70
      %p77 = scmp.eq.s32.totalorder %s39, 1
      %p78 = por %p76, %p77
      %p79 = scmp.ne.s32.totalorder %s70, %s71
      %p80 = scmp.eq.s32.totalorder %s39, 0
      %p81 = por %p79, %p80
      %p82 = scmp.ne.s32.totalorder %s70, %s71
      %p83 = scmp.eq.s32.totalorder %s40, 1
      %p84 = por %p82, %p83
      %p86 = scmp.ne.s32.totalorder %s71, %s85
      %p87 = scmp.eq.s32.totalorder %s40, 0
      %p88 = por %p86, %p87
      %s90 = sadd.s32 %s89, 1
      %p93 = scmp.eq.s32.totalorder %s34, 1
      %p94 = scmp.ne.s32.totalorder %s89, %s91
      %p95 = scmp.eq.s32.totalorder %s34, 0
      %p96 = por %p94, %p95
      %p97 = scmp.ne.s32.totalorder %s89, %s91
      %p98 = scmp.eq.s32.totalorder %s39, 1
      %p99 = por %p97, %p98
      %p100 = scmp.ne.s32.totalorder %s91, %s92
      %p101 = scmp.eq.s32.totalorder %s39, 0
      %p102 = por %p100, %p101
      %p103 = scmp.ne.s32.totalorder %s91, %s92
      %p104 = scmp.eq.s32.totalorder %s40, 1
      %p105 = por %p103, %p104
      %p107 = scmp.ne.s32.totalorder %s92, %s106
      %p108 = scmp.eq.s32.totalorder %s40, 0
      %p109 = por %p107, %p108
      %s111 = sadd.s32 %s110, 1
      %p114 = scmp.eq.s32.totalorder %s34, 1
      %p115 = scmp.ne.s32.totalorder %s110, %s112
      %p116 = scmp.eq.s32.totalorder %s34, 0
      %p117 = por %p115, %p116
      %p118 = scmp.ne.s32.totalorder %s110, %s112
      %p119 = scmp.eq.s32.totalorder %s39, 1
      %p120 = por %p118, %p119
      %p121 = scmp.ne.s32.totalorder %s112, %s113
      %p122 = scmp.eq.s32.totalorder %s39, 0
      %p123 = por %p121, %p122
      %p124 = scmp.ne.s32.totalorder %s112, %s113
      %p125 = scmp.eq.s32.totalorder %s40, 1
      %p126 = por %p124, %p125
      %p128 = scmp.ne.s32.totalorder %s113, %s127
      %p129 = scmp.eq.s32.totalorder %s40, 0
      %p130 = por %p128, %p129
      %s132 = sadd.s32 %s131, 1
      %p135 = scmp.eq.s32.totalorder %s34, 1
      %p136 = scmp.ne.s32.totalorder %s131, %s133
      %p137 = scmp.eq.s32.totalorder %s34, 0
      %p138 = por %p136, %p137
      %p139 = scmp.ne.s32.totalorder %s131, %s133
      %p140 = scmp.eq.s32.totalorder %s39, 1
      %p141 = por %p139, %p140
      %p142 = scmp.ne.s32.totalorder %s133, %s134
      %p143 = scmp.eq.s32.totalorder %s39, 0
      %p144 = por %p142, %p143
      %p145 = scmp.ne.s32.totalorder %s133, %s134
      %p146 = scmp.eq.s32.totalorder %s40, 1
      %p147 = por %p145, %p146
      %p149 = scmp.ne.s32.totalorder %s134, %s148
      %p150 = scmp.eq.s32.totalorder %s40, 0
      %p151 = por %p149, %p150
      %s153 = sadd.s32 %s152, 1
      %p156 = scmp.eq.s32.totalorder %s34, 1
      %p157 = scmp.ne.s32.totalorder %s152, %s154
      %p158 = scmp.eq.s32.totalorder %s34, 0
      %p159 = por %p157, %p158
      %p160 = scmp.ne.s32.totalorder %s152, %s154
      %p161 = scmp.eq.s32.totalorder %s39, 1
      %p162 = por %p160, %p161
      %p163 = scmp.ne.s32.totalorder %s154, %s155
      %p164 = scmp.eq.s32.totalorder %s39, 0
      %p165 = por %p163, %p164
      %p166 = scmp.ne.s32.totalorder %s154, %s155
      %p167 = scmp.eq.s32.totalorder %s40, 1
      %p168 = por %p166, %p167
      %p170 = scmp.ne.s32.totalorder %s155, %s169
      %p171 = scmp.eq.s32.totalorder %s40, 0
      %p172 = por %p170, %p171
      %s174 = sadd.s32 %s173, 1
      %p177 = scmp.eq.s32.totalorder %s34, 1
      %p178 = scmp.ne.s32.totalorder %s173, %s175
      %p179 = scmp.eq.s32.totalorder %s34, 0
      %p180 = por %p178, %p179
      %p181 = scmp.ne.s32.totalorder %s173, %s175
      %p182 = scmp.eq.s32.totalorder %s39, 1
      %p183 = por %p181, %p182
      %p184 = scmp.ne.s32.totalorder %s175, %s176
      %p185 = scmp.eq.s32.totalorder %s39, 0
      %p186 = por %p184, %p185
      %p187 = scmp.ne.s32.totalorder %s175, %s176
      %p188 = scmp.eq.s32.totalorder %s40, 1
      %p189 = por %p187, %p188
      %p191 = scmp.ne.s32.totalorder %s176, %s190
      %p192 = scmp.eq.s32.totalorder %s40, 0
      %p193 = por %p191, %p192
      %s195 = sadd.s32 %s194, 1
      %p198 = scmp.eq.s32.totalorder %s34, 1
      %p199 = scmp.ne.s32.totalorder %s194, %s196
      %p200 = scmp.eq.s32.totalorder %s34, 0
      %p201 = por %p199, %p200
      %p202 = scmp.ne.s32.totalorder %s194, %s196
      %p203 = scmp.eq.s32.totalorder %s39, 1
      %p204 = por %p202, %p203
      %p205 = scmp.ne.s32.totalorder %s196, %s197
      %p206 = scmp.eq.s32.totalorder %s39, 0
      %p207 = por %p205, %p206
      %p208 = scmp.ne.s32.totalorder %s196, %s197
      %p209 = scmp.eq.s32.totalorder %s40, 1
      %p210 = por %p208, %p209
      %p212 = scmp.ne.s32.totalorder %s197, %s211
      %p213 = scmp.eq.s32.totalorder %s40, 0
      %p214 = por %p212, %p213
      %s216 = sadd.s32 %s215, 1
      %p219 = scmp.eq.s32.totalorder %s34, 1
      %p220 = scmp.ne.s32.totalorder %s215, %s217
      %p221 = scmp.eq.s32.totalorder %s34, 0
      %p222 = por %p220, %p221
      %p223 = scmp.ne.s32.totalorder %s215, %s217
      %p224 = scmp.eq.s32.totalorder %s39, 1
      %p225 = por %p223, %p224
      %p226 = scmp.ne.s32.totalorder %s217, %s218
      %p227 = scmp.eq.s32.totalorder %s39, 0
      %p228 = por %p226, %p227
      %p229 = scmp.ne.s32.totalorder %s217, %s218
      %p230 = scmp.eq.s32.totalorder %s40, 1
      %p231 = por %p229, %p230
      %p233 = scmp.ne.s32.totalorder %s218, %s232
      %p234 = scmp.eq.s32.totalorder %s40, 0
      %p235 = por %p233, %p234
      %s237 = sadd.s32 %s236, 1
      %p240 = scmp.eq.s32.totalorder %s34, 1
      %p241 = scmp.ne.s32.totalorder %s236, %s238
      %p242 = scmp.eq.s32.totalorder %s34, 0
      %p243 = por %p241, %p242
      %p244 = scmp.ne.s32.totalorder %s236, %s238
      %p245 = scmp.eq.s32.totalorder %s39, 1
      %p246 = por %p244, %p245
      %p247 = scmp.ne.s32.totalorder %s238, %s239
      %p248 = scmp.eq.s32.totalorder %s39, 0
      %p249 = por %p247, %p248
      %p250 = scmp.ne.s32.totalorder %s238, %s239
      %p251 = scmp.eq.s32.totalorder %s40, 1
      %p252 = por %p250, %p251
      %p254 = scmp.ne.s32.totalorder %s239, %s253
      %p255 = scmp.eq.s32.totalorder %s40, 0
      %p256 = por %p254, %p255
      %s258 = sadd.s32 %s257, 1
      %p261 = scmp.eq.s32.totalorder %s34, 1
      %p262 = scmp.ne.s32.totalorder %s257, %s259
      %p263 = scmp.eq.s32.totalorder %s34, 0
      %p264 = por %p262, %p263
      %p265 = scmp.ne.s32.totalorder %s257, %s259
      %p266 = scmp.eq.s32.totalorder %s39, 1
      %p267 = por %p265, %p266
      %p268 = scmp.ne.s32.totalorder %s259, %s260
      %p269 = scmp.eq.s32.totalorder %s39, 0
      %p270 = por %p268, %p269
      %p271 = scmp.ne.s32.totalorder %s259, %s260
      %p272 = scmp.eq.s32.totalorder %s40, 1
      %p273 = por %p271, %p272
      %p275 = scmp.ne.s32.totalorder %s260, %s274
      %p276 = scmp.eq.s32.totalorder %s40, 0
      %p277 = por %p275, %p276
      %s279 = sadd.s32 %s278, 1
      %p282 = scmp.eq.s32.totalorder %s34, 1
      %p283 = scmp.ne.s32.totalorder %s278, %s280
      %p284 = scmp.eq.s32.totalorder %s34, 0
      %p285 = por %p283, %p284
      %p286 = scmp.ne.s32.totalorder %s278, %s280
      %p287 = scmp.eq.s32.totalorder %s39, 1
      %p288 = por %p286, %p287
      %p289 = scmp.ne.s32.totalorder %s280, %s281
      %p290 = scmp.eq.s32.totalorder %s39, 0
      %p291 = por %p289, %p290
      %p292 = scmp.ne.s32.totalorder %s280, %s281
      %p293 = scmp.eq.s32.totalorder %s40, 1
      %p294 = por %p292, %p293
      %p296 = scmp.ne.s32.totalorder %s281, %s295
      %p297 = scmp.eq.s32.totalorder %s40, 0
      %p298 = por %p296, %p297
      %s300 = sadd.s32 %s299, 1
      %p303 = scmp.eq.s32.totalorder %s34, 1
      %p304 = scmp.ne.s32.totalorder %s299, %s301
      %p305 = scmp.eq.s32.totalorder %s34, 0
      %p306 = por %p304, %p305
      %p307 = scmp.ne.s32.totalorder %s299, %s301
      %p308 = scmp.eq.s32.totalorder %s39, 1
      %p309 = por %p307, %p308
      %p310 = scmp.ne.s32.totalorder %s301, %s302
      %p311 = scmp.eq.s32.totalorder %s39, 0
      %p312 = por %p310, %p311
      %p313 = scmp.ne.s32.totalorder %s301, %s302
      %p314 = scmp.eq.s32.totalorder %s40, 1
      %p315 = por %p313, %p314
      %p317 = scmp.ne.s32.totalorder %s302, %s316
      %p318 = scmp.eq.s32.totalorder %s40, 0
      %p319 = por %p317, %p318
      %s321 = sadd.s32 %s320, 1
      %p324 = scmp.eq.s32.totalorder %s34, 1
      %p325 = scmp.ne.s32.totalorder %s320, %s322
      %p326 = scmp.eq.s32.totalorder %s34, 0
      %p327 = por %p325, %p326
      %p328 = scmp.ne.s32.totalorder %s320, %s322
      %p329 = scmp.eq.s32.totalorder %s39, 1
      %p330 = por %p328, %p329
      %p331 = scmp.ne.s32.totalorder %s322, %s323
      %p332 = scmp.eq.s32.totalorder %s39, 0
      %p333 = por %p331, %p332
      %p334 = scmp.ne.s32.totalorder %s322, %s323
      %p335 = scmp.eq.s32.totalorder %s40, 1
      %p336 = por %p334, %p335
      %p338 = scmp.ne.s32.totalorder %s323, %s337
      %p339 = scmp.eq.s32.totalorder %s40, 0
      %p340 = por %p338, %p339
      %s342 = sadd.s32 %s341, 1
      %p345 = scmp.eq.s32.totalorder %s34, 1
      %p346 = scmp.ne.s32.totalorder %s341, %s343
      %p347 = scmp.eq.s32.totalorder %s34, 0
      %p348 = por %p346, %p347
      %p349 = scmp.ne.s32.totalorder %s341, %s343
      %p350 = scmp.eq.s32.totalorder %s39, 1
      %p351 = por %p349, %p350
      %p352 = scmp.ne.s32.totalorder %s343, %s344
      %p353 = scmp.eq.s32.totalorder %s39, 0
      %p354 = por %p352, %p353
      %p355 = scmp.ne.s32.totalorder %s343, %s344
      %p356 = scmp.eq.s32.totalorder %s40, 1
      %p357 = por %p355, %p356
      %p359 = scmp.ne.s32.totalorder %s344, %s358
      %p360 = scmp.eq.s32.totalorder %s40, 0
      %p361 = por %p359, %p360
      %s363 = sadd.s32 %s362, 1
      %p366 = scmp.eq.s32.totalorder %s34, 1
      %p367 = scmp.ne.s32.totalorder %s362, %s364
      %p368 = scmp.eq.s32.totalorder %s34, 0
      %p369 = por %p367, %p368
      %p370 = scmp.ne.s32.totalorder %s362, %s364
      %p371 = scmp.eq.s32.totalorder %s39, 1
      %p372 = por %p370, %p371
      %p373 = scmp.ne.s32.totalorder %s364, %s365
      %p374 = scmp.eq.s32.totalorder %s39, 0
      %p375 = por %p373, %p374
      %p376 = scmp.ne.s32.totalorder %s364, %s365
      %p377 = scmp.eq.s32.totalorder %s40, 1
      %p378 = por %p376, %p377
      %p380 = scmp.ne.s32.totalorder %s365, %s379
      %p381 = scmp.eq.s32.totalorder %s40, 0
      %p382 = por %p380, %p381
      %s384 = sadd.s32 %s383, 1
      %p387 = scmp.eq.s32.totalorder %s34, 1
      %p388 = scmp.ne.s32.totalorder %s383, %s385
      %p389 = scmp.eq.s32.totalorder %s34, 0
      %p390 = por %p388, %p389
      %p391 = scmp.ne.s32.totalorder %s383, %s385
      %p392 = scmp.eq.s32.totalorder %s39, 1
      %p393 = por %p391, %p392
      %p394 = scmp.ne.s32.totalorder %s385, %s386
      %p395 = scmp.eq.s32.totalorder %s39, 0
      %p396 = por %p394, %p395
      %p397 = scmp.ne.s32.totalorder %s385, %s386
      %p398 = scmp.eq.s32.totalorder %s40, 1
      %p399 = por %p397, %p398
      %p401 = scmp.ne.s32.totalorder %s386, %s400
      %p402 = scmp.eq.s32.totalorder %s40, 0
      %p403 = por %p401, %p402
      %s405 = sadd.s32 %s404, 1
      %p408 = scmp.eq.s32.totalorder %s34, 1
      %p409 = scmp.ne.s32.totalorder %s404, %s406
      %p410 = scmp.eq.s32.totalorder %s34, 0
      %p411 = por %p409, %p410
      %p412 = scmp.ne.s32.totalorder %s404, %s406
      %p413 = scmp.eq.s32.totalorder %s39, 1
      %p414 = por %p412, %p413
      %p415 = scmp.ne.s32.totalorder %s406, %s407
      %p416 = scmp.eq.s32.totalorder %s39, 0
      %p417 = por %p415, %p416
      %p418 = scmp.ne.s32.totalorder %s406, %s407
      %p419 = scmp.eq.s32.totalorder %s40, 1
      %p420 = por %p418, %p419
      %p422 = scmp.ne.s32.totalorder %s407, %s421
      %p423 = scmp.eq.s32.totalorder %s40, 0
      %p424 = por %p422, %p423
      %s425 = ssub.s32 %s34, %s41
      %p426 = scmp.eq.s32.totalorder %s425, 0
      %s428 = sadd.s32 %s427, 1
      %s429 = scalar_select %p426, %s427, %s428
      %p432 = pneg %p426
      %p433 = scmp.eq.s32.totalorder %s34, 1
      %p434 = por %p432, %p433
      %p435 = scmp.ne.s32.totalorder %s427, %s430
      %p436 = scmp.eq.s32.totalorder %s34, 0
      %p437 = por %p435, %p436
      %p438 = scmp.ne.s32.totalorder %s427, %s430
      %p439 = scmp.eq.s32.totalorder %s39, 1
      %p440 = por %p438, %p439
      %p441 = scmp.ne.s32.totalorder %s430, %s431
      %p442 = scmp.eq.s32.totalorder %s39, 0
      %p443 = por %p441, %p442
      %p444 = scmp.ne.s32.totalorder %s430, %s431
      %p445 = scmp.eq.s32.totalorder %s40, 1
      %p446 = por %p444, %p445
      %p448 = scmp.ne.s32.totalorder %s431, %s447
      %p449 = scmp.eq.s32.totalorder %s40, 0
      %p450 = por %p448, %p449
      %p451 = scmp.le.s32.totalorder 1, %s34
      %p452 = scmp.lt.s32.totalorder %s34, 3
      %p453 = pnand %p451, %p452
      %p454 = pneg %p453
      // Predicated region
      $region9: #{tpu_custom_call.1} parent=5 // pred_check
        _
      $region10: #{tpu_custom_call.1} parent=5 // pred_check_branch
        %456 = sbr.rel (%p453) target = $region12
      $region11: #{tpu_custom_call.1} parent=5 // pred_region
        %s457 = ssub.s32 %s34, 1
        // Predicated region
        $region13: #{tpu_custom_call.1} parent=11 // pred_check
          %p458 = pneg %p81
        $region14: #{tpu_custom_call.1} parent=11 // pred_check_branch
          %460 = sbr.rel (%p458) target = $region16
        $region15: #{tpu_custom_call.1} parent=11 // pred_region
          _
        $region16: #{tpu_custom_call.1} parent=11 // pred_fallthru
          _
        // Predicated region
        $region17: #{tpu_custom_call.1} parent=11 // pred_check
          %p461 = pneg %p102
        $region18: #{tpu_custom_call.1} parent=11 // pred_check_branch
          %463 = sbr.rel (%p461) target = $region20
        $region19: #{tpu_custom_call.1} parent=11 // pred_region
          _
        $region20: #{tpu_custom_call.1} parent=11 // pred_fallthru
          _
        // Predicated region
        $region21: #{tpu_custom_call.1} parent=11 // pred_check
          %p464 = pneg %p123
        $region22: #{tpu_custom_call.1} parent=11 // pred_check_branch
          %466 = sbr.rel (%p464) target = $region24
        $region23: #{tpu_custom_call.1} parent=11 // pred_region
          _
        $region24: #{tpu_custom_call.1} parent=11 // pred_fallthru
          _
        // Predicated region
        $region25: #{tpu_custom_call.1} parent=11 // pred_check
          %p467 = pneg %p144
        $region26: #{tpu_custom_call.1} parent=11 // pred_check_branch
          %469 = sbr.rel (%p467) target = $region28
        $region27: #{tpu_custom_call.1} parent=11 // pred_region
          _
        $region28: #{tpu_custom_call.1} parent=11 // pred_fallthru
          _
        // Predicated region
        $region29: #{tpu_custom_call.1} parent=11 // pred_check
          %p470 = pneg %p165
        $region30: #{tpu_custom_call.1} parent=11 // pred_check_branch
          %472 = sbr.rel (%p470) target = $region32
        $region31: #{tpu_custom_call.1} parent=11 // pred_region
          _
        $region32: #{tpu_custom_call.1} parent=11 // pred_fallthru
          _
        // Predicated region
        $region33: #{tpu_custom_call.1} parent=11 // pred_check
          %p473 = pneg %p186
        $region34: #{tpu_custom_call.1} parent=11 // pred_check_branch
          %475 = sbr.rel (%p473) target = $region36
        $region35: #{tpu_custom_call.1} parent=11 // pred_region
          %s477 = ssub.s32 256, 256
          %478 = vsyncadd [#allocation9], %s477
          %s479 = sshll.u32 [#allocation8], 4
          %s480 = int_to_ptr.vmem [resolvable:$true] %s479
          %485 = dma.hbm_to_vmem [thread:$0]  %s6, 256, %s480, [#allocation9], 128, 128, 8
        $region36: #{tpu_custom_call.1} parent=11 // pred_fallthru
          _
        // Predicated region
        $region37: #{tpu_custom_call.1} parent=11 // pred_check
          %p486 = pneg %p207
        $region38: #{tpu_custom_call.1} parent=11 // pred_check_branch
          %488 = sbr.rel (%p486) target = $region40
        $region39: #{tpu_custom_call.1} parent=11 // pred_region
          %s490 = ssub.s32 256, 256
          %491 = vsyncadd [#allocation9], %s490
          %s492 = sshll.u32 [#allocation10], 4
          %s493 = int_to_ptr.vmem [resolvable:$true] %s492
          %498 = dma.hbm_to_vmem [thread:$0]  %s7, 256, %s493, [#allocation9], 128, 128, 8
        $region40: #{tpu_custom_call.1} parent=11 // pred_fallthru
          _
        // Predicated region
        $region41: #{tpu_custom_call.1} parent=11 // pred_check
          %p499 = pneg %p228
        $region42: #{tpu_custom_call.1} parent=11 // pred_check_branch
          %501 = sbr.rel (%p499) target = $region44
        $region43: #{tpu_custom_call.1} parent=11 // pred_region
          _
        $region44: #{tpu_custom_call.1} parent=11 // pred_fallthru
          _
        // Predicated region
        $region45: #{tpu_custom_call.1} parent=11 // pred_check
          %p502 = pneg %p249
        $region46: #{tpu_custom_call.1} parent=11 // pred_check_branch
          %504 = sbr.rel (%p502) target = $region48
        $region47: #{tpu_custom_call.1} parent=11 // pred_region
          %s506 = ssub.s32 64, 64
          %507 = vsyncadd [#allocation12], %s506
          %s509 = sshll.u32 [#allocation11], 4
          %s510 = int_to_ptr.vmem [resolvable:$true] %s509
          %512 = dma.hbm_to_vmem [thread:$0]  %s9, 64, %s510, [#allocation12]
        $region48: #{tpu_custom_call.1} parent=11 // pred_fallthru
          _
        // Predicated region
        $region49: #{tpu_custom_call.1} parent=11 // pred_check
          %p513 = pneg %p270
        $region50: #{tpu_custom_call.1} parent=11 // pred_check_branch
          %515 = sbr.rel (%p513) target = $region52
        $region51: #{tpu_custom_call.1} parent=11 // pred_region
          _
        $region52: #{tpu_custom_call.1} parent=11 // pred_fallthru
          _
        // Predicated region
        $region53: #{tpu_custom_call.1} parent=11 // pred_check
          %p516 = pneg %p291
        $region54: #{tpu_custom_call.1} parent=11 // pred_check_branch
          %518 = sbr.rel (%p516) target = $region56
        $region55: #{tpu_custom_call.1} parent=11 // pred_region
          %s520 = ssub.s32 32, 32
          %521 = vsyncadd [#allocation12], %s520
          %s523 = sshll.u32 [#allocation13], 4
          %s524 = int_to_ptr.vmem [resolvable:$true] %s523
          %526 = dma.hbm_to_vmem [thread:$0]  %s11, 32, %s524, [#allocation12]
        $region56: #{tpu_custom_call.1} parent=11 // pred_fallthru
          _
        // Predicated region
        $region57: #{tpu_custom_call.1} parent=11 // pred_check
          %p527 = pneg %p312
        $region58: #{tpu_custom_call.1} parent=11 // pred_check_branch
          %529 = sbr.rel (%p527) target = $region60
        $region59: #{tpu_custom_call.1} parent=11 // pred_region
          _
        $region60: #{tpu_custom_call.1} parent=11 // pred_fallthru
          _
        // Predicated region
        $region61: #{tpu_custom_call.1} parent=11 // pred_check
          %p530 = pneg %p333
        $region62: #{tpu_custom_call.1} parent=11 // pred_check_branch
          %532 = sbr.rel (%p530) target = $region64
        $region63: #{tpu_custom_call.1} parent=11 // pred_region
          _
        $region64: #{tpu_custom_call.1} parent=11 // pred_fallthru
          _
        // Predicated region
        $region65: #{tpu_custom_call.1} parent=11 // pred_check
          %p533 = pneg %p354
        $region66: #{tpu_custom_call.1} parent=11 // pred_check_branch
          %535 = sbr.rel (%p533) target = $region68
        $region67: #{tpu_custom_call.1} parent=11 // pred_region
          _
        $region68: #{tpu_custom_call.1} parent=11 // pred_fallthru
          _
        // Predicated region
        $region69: #{tpu_custom_call.1} parent=11 // pred_check
          %p536 = pneg %p375
        $region70: #{tpu_custom_call.1} parent=11 // pred_check_branch
          %538 = sbr.rel (%p536) target = $region72
        $region71: #{tpu_custom_call.1} parent=11 // pred_region
          %s540 = ssub.s32 768, 768
          %541 = vsyncadd [#allocation15], %s540
          %s542 = sshll.u32 [#allocation14], 4
          %s543 = int_to_ptr.vmem [resolvable:$true] %s542
          %548 = dma.hbm_to_vmem [thread:$0]  %s15, 768, %s543, [#allocation15], 256, 256, 16
        $region72: #{tpu_custom_call.1} parent=11 // pred_fallthru
          _
        // Predicated region
        $region73: #{tpu_custom_call.1} parent=11 // pred_check
          %p549 = pneg %p396
        $region74: #{tpu_custom_call.1} parent=11 // pred_check_branch
          %551 = sbr.rel (%p549) target = $region76
        $region75: #{tpu_custom_call.1} parent=11 // pred_region
          %s553 = ssub.s32 512, 512
          %554 = vsyncadd [#allocation15], %s553
          %s555 = sshll.u32 [#allocation16], 4
          %s556 = int_to_ptr.vmem [resolvable:$true] %s555
          %561 = dma.hbm_to_vmem [thread:$0]  %s16, 512, %s556, [#allocation15], 256, 256, 16
        $region76: #{tpu_custom_call.1} parent=11 // pred_fallthru
          _
        // Predicated region
        $region77: #{tpu_custom_call.1} parent=11 // pred_check
          %p562 = pneg %p417
        $region78: #{tpu_custom_call.1} parent=11 // pred_check_branch
          %564 = sbr.rel (%p562) target = $region80
        $region79: #{tpu_custom_call.1} parent=11 // pred_region
          %s566 = ssub.s32 512, 512
          %567 = vsyncadd [#allocation18], %s566
          %s568 = sshll.u32 [#allocation17], 4
          %s569 = int_to_ptr.vmem [resolvable:$true] %s568
          %574 = dma.hbm_to_vmem [thread:$0]  %s17, 512, %s569, [#allocation18], 256, 256, 16
        $region80: #{tpu_custom_call.1} parent=11 // pred_fallthru
          _
      $region12: #{tpu_custom_call.1} parent=5 // pred_fallthru
        _
      %p575 = scmp.lt.s32.totalorder %s34, 2
      // Predicated region
      $region81: #{tpu_custom_call.1} parent=5 // pred_check
        %p576 = pneg %p575
      $region82: #{tpu_custom_call.1} parent=5 // pred_check_branch
        %578 = sbr.rel (%p576) target = $region84
      $region83: #{tpu_custom_call.1} parent=5 // pred_region
        // Predicated region
        $region85: #{tpu_custom_call.1} parent=83 // pred_check
          %p579 = pneg %p54
        $region86: #{tpu_custom_call.1} parent=83 // pred_check_branch
          %581 = sbr.rel (%p579) target = $region88
        $region87: #{tpu_custom_call.1} parent=83 // pred_region
          %s582 = sand.u32 %s44, 1
          %s583 = scalar_lea.sflag [#allocation6], %s582
          %s584 = sand.u32 %s44, 1
          %s585 = smul.addr %s584, 16
          %s586 = scalar_lea.vmem [#allocation5], %s585
          %s588 = ssub.s32 256, 256
          %589 = vsyncadd %s583, %s588
          %s590 = smul.addr %s34, 2
          %s591 = smul.addr %s590, 128
          %s592 = scalar_lea.hbm %s0, %s591
          %s594 = sshll.u32 %s586, 4
          %s595 = int_to_ptr.vmem [resolvable:$true] %s594
          %597 = dma.hbm_to_vmem [thread:$0]  %s592, 256, %s595, %s583
        $region88: #{tpu_custom_call.1} parent=83 // pred_fallthru
          _
      $region84: #{tpu_custom_call.1} parent=5 // pred_fallthru
        _
      %p598 = scmp.le.s32.totalorder 1, %s34
      %p599 = scmp.lt.s32.totalorder %s34, 3
      %p600 = pnand %p598, %p599
      %p601 = pneg %p600
      // Predicated region
      $region89: #{tpu_custom_call.1} parent=5 // pred_check
        _
      $region90: #{tpu_custom_call.1} parent=5 // pred_check_branch
        %603 = sbr.rel (%p600) target = $region92
      $region91: #{tpu_custom_call.1} parent=5 // pred_region
        %s604 = ssub.s32 %s34, 1
        %s605 = sand.u32 %s47, 1
        %s606 = scalar_lea.sflag [#allocation6], %s605
        %s607 = sand.u32 %s47, 1
        %s608 = smul.addr %s607, 16
        %s609 = scalar_lea.vmem [#allocation5], %s608
        // Predicated region
        $region93: #{tpu_custom_call.1} parent=91 // pred_check
          %p610 = pneg %p60
        $region94: #{tpu_custom_call.1} parent=91 // pred_check_branch
          %612 = sbr.rel (%p610) target = $region96
        $region95: #{tpu_custom_call.1} parent=91 // pred_region
          %613 = dma.done %s606, 256
        $region96: #{tpu_custom_call.1} parent=91 // pred_fallthru
          _
        // Predicated region
        $region97: #{tpu_custom_call.1} parent=91 // pred_check
          %p614 = pneg %p186
        $region98: #{tpu_custom_call.1} parent=91 // pred_check_branch
          %616 = sbr.rel (%p614) target = $region100
        $region99: #{tpu_custom_call.1} parent=91 // pred_region
          %617 = dma.done [#allocation9], 256
        $region100: #{tpu_custom_call.1} parent=91 // pred_fallthru
          _
        // Predicated region
        $region101: #{tpu_custom_call.1} parent=91 // pred_check
          %p618 = pneg %p207
        $region102: #{tpu_custom_call.1} parent=91 // pred_check_branch
          %620 = sbr.rel (%p618) target = $region104
        $region103: #{tpu_custom_call.1} parent=91 // pred_region
          %621 = dma.done [#allocation9], 256
        $region104: #{tpu_custom_call.1} parent=91 // pred_fallthru
          _
        // Predicated region
        $region105: #{tpu_custom_call.1} parent=91 // pred_check
          %p622 = pneg %p249
        $region106: #{tpu_custom_call.1} parent=91 // pred_check_branch
          %624 = sbr.rel (%p622) target = $region108
        $region107: #{tpu_custom_call.1} parent=91 // pred_region
          %625 = dma.done [#allocation12], 64
        $region108: #{tpu_custom_call.1} parent=91 // pred_fallthru
          _
        // Predicated region
        $region109: #{tpu_custom_call.1} parent=91 // pred_check
          %p626 = pneg %p291
        $region110: #{tpu_custom_call.1} parent=91 // pred_check_branch
          %628 = sbr.rel (%p626) target = $region112
        $region111: #{tpu_custom_call.1} parent=91 // pred_region
          %629 = dma.done [#allocation12], 32
        $region112: #{tpu_custom_call.1} parent=91 // pred_fallthru
          _
        // Predicated region
        $region113: #{tpu_custom_call.1} parent=91 // pred_check
          %p630 = pneg %p375
        $region114: #{tpu_custom_call.1} parent=91 // pred_check_branch
          %632 = sbr.rel (%p630) target = $region116
        $region115: #{tpu_custom_call.1} parent=91 // pred_region
          %633 = dma.done [#allocation15], 768
        $region116: #{tpu_custom_call.1} parent=91 // pred_fallthru
          _
        // Predicated region
        $region117: #{tpu_custom_call.1} parent=91 // pred_check
          %p634 = pneg %p396
        $region118: #{tpu_custom_call.1} parent=91 // pred_check_branch
          %636 = sbr.rel (%p634) target = $region120
        $region119: #{tpu_custom_call.1} parent=91 // pred_region
          %637 = dma.done [#allocation15], 512
        $region120: #{tpu_custom_call.1} parent=91 // pred_fallthru
          _
        // Predicated region
        $region121: #{tpu_custom_call.1} parent=91 // pred_check
          %p638 = pneg %p417
        $region122: #{tpu_custom_call.1} parent=91 // pred_check_branch
          %640 = sbr.rel (%p638) target = $region124
        $region123: #{tpu_custom_call.1} parent=91 // pred_region
          %641 = dma.done [#allocation18], 512
        $region124: #{tpu_custom_call.1} parent=91 // pred_fallthru
          _
        %s642 = sand.u32 %s47, 1
        %s643 = scalar_lea.sflag [#allocation6], %s642
        %s644 = sand.u32 %s47, 1
        %s645 = smul.addr %s644, 16
        %s646 = scalar_lea.vmem [#allocation5], %s645
        %p647 = pneg %p60
        %p648 = pneg %p57
        %p649 = pneg %p81
        %p650 = pneg %p78
        %p651 = pneg %p102
        %p652 = pneg %p99
        %p653 = pneg %p123
        %p654 = pneg %p120
        %p655 = pneg %p144
        %p656 = pneg %p141
        %p657 = pneg %p165
        %p658 = pneg %p162
        %p659 = pneg %p186
        %p660 = pneg %p183
        %p661 = pneg %p207
        %p662 = pneg %p204
        %p663 = pneg %p228
        %p664 = pneg %p225
        %p665 = pneg %p249
        %p666 = pneg %p246
        %p667 = pneg %p270
        %p668 = pneg %p267
        %p669 = pneg %p291
        %p670 = pneg %p288
        %p671 = pneg %p312
        %p672 = pneg %p309
        %p673 = pneg %p333
        %p674 = pneg %p330
        %p675 = pneg %p354
        %p676 = pneg %p351
        %p677 = pneg %p375
        %p678 = pneg %p372
        %p679 = pneg %p396
        %p680 = pneg %p393
        %p681 = pneg %p417
        %p682 = pneg %p414
        %p683 = pneg %p443
        %p684 = pneg %p440
        %s685 = sand.u32 %s430, 1
        %s686 = scalar_lea.sflag [#allocation7], %s685
        %s687 = sand.u32 %s430, 1
        %s688 = smul.addr %s687, 32
        %s689 = scalar_lea.vmem [#allocation19], %s688
        %v690 = vld [vmem:[%s609] sm:$0xff]
        %v691 = vld [vmem:[%s609 + $0x8] sm:$0xff]
        %v692 = vld [vmem:[%s1] sm:$0xff]
        %v693 = vld [vmem:[%s1 + $0x8] sm:$0xff]
        %v694 = vld [vmem:[%s1 + $0x10] sm:$0xf]
        %v695 = vld [vmem:[%s2] sm:$0xff]
        %v696 = vld [vmem:[%s2 + $0x8] sm:$0xff]
        %v697 = vld [vmem:[%s2 + $0x10] sm:$0xf]
        %699 = vset.pattern.permute.xlu0 0
        %700 = vperm.xlu0 %699, %v695
        %v701 = vpop.permute.xlu0 %700
        %704 = vset.pattern.permute.xlu0 0
        %705 = vperm.xlu0 %704, %v696
        %v706 = vpop.permute.xlu0 %705
        %709 = vset.pattern.permute.xlu0 0
        %710 = vperm.xlu0 %709, %v697
        %v711 = vpop.permute.xlu0 %710
        %vm713 = vcmask 64512
        %v715 = vsel %vm713, %v692, 0
        %v718 = vsel %vm713, %v693, 0
        %v721 = vsel %vm713, %v694, 0
        %723 = vmatprep.subr.mxu0 %v691
        %724 = vmatpush1.msra.mxu0 %v690
        %725 = vmatprep.subr.mxu0 0.0
        %726 = vmatpush1.msra.mxu0 0.0
        %727 = vmatprep.subr.mxu0 0.0
        %728 = vmatpush1.msra.mxu0 0.0
        %729 = vmatprep.subr.mxu0 0.0
        %730 = vmatpush1.msra.mxu0 0.0
        %731 = vmatprep.subr.mxu0 0.0
        %732 = vmatpush1.msra.mxu0 0.0
        %733 = vmatprep.subr.mxu0 0.0
        %734 = vmatpush1.msra.mxu0 0.0
        %735 = vmatprep.subr.mxu0 0.0
        %736 = vmatpush1.msra.mxu0 0.0
        %737 = vmatprep.subr.mxu0 0.0
        %738 = vmatpush1.msra.mxu0 0.0
        %739 = vmatprep.subr.mxu0 0.0
        %740 = vmatpush1.msra.mxu0 0.0
        %741 = vmatprep.subr.mxu0 0.0
        %742 = vmatpush1.msra.mxu0 0.0
        %743 = vmatprep.subr.mxu0 0.0
        %744 = vmatpush1.msra.mxu0 0.0
        %745 = vmatprep.subr.mxu0 0.0
        %746 = vmatpush1.msra.mxu0 0.0
        %747 = vmatprep.subr.mxu0 0.0
        %748 = vmatpush1.msra.mxu0 0.0
        %749 = vmatprep.subr.mxu0 0.0
        %750 = vmatpush1.msra.mxu0 0.0
        %751 = vmatprep.subr.mxu0 0.0
        %752 = vmatpush1.msra.mxu0 0.0
        %753 = vmatprep.subr.mxu0 0.0
        %754 = vmatpush1.msra.mxu0 0.0
        %755 = vmatprep.subr.mxu0 0.0
        %756 = vmatpush1.msra.mxu0 0.0
        %757 = vmatprep.subr.mxu0 0.0
        %758 = vmatpush1.msra.mxu0 0.0
        %759 = vmatprep.subr.mxu0 0.0
        %760 = vmatpush1.msra.mxu0 0.0
        %761 = vmatprep.subr.mxu0 0.0
        %762 = vmatpush1.msra.mxu0 0.0
        %763 = vmatprep.subr.mxu0 0.0
        %764 = vmatpush1.msra.mxu0 0.0
        %765 = vmatprep.subr.mxu0 0.0
        %766 = vmatpush1.msra.mxu0 0.0
        %767 = vmatprep.subr.mxu0 0.0
        %768 = vmatpush1.msra.mxu0 0.0
        %769 = vmatprep.subr.mxu0 0.0
        %770 = vmatpush1.msra.mxu0 0.0
        %771 = vmatprep.subr.mxu0 0.0
        %772 = vmatpush1.msra.mxu0 0.0
        %773 = vmatprep.subr.mxu0 0.0
        %774 = vmatpush1.msra.mxu0 0.0
        %775 = vmatprep.subr.mxu0 0.0
        %776 = vmatpush1.msra.mxu0 0.0
        %777 = vmatprep.subr.mxu0 0.0
        %778 = vmatpush1.msra.mxu0 0.0
        %779 = vmatprep.subr.mxu0 0.0
        %780 = vmatpush1.msra.mxu0 0.0
        %781 = vmatprep.subr.mxu0 0.0
        %782 = vmatpush1.msra.mxu0 0.0
        %783 = vmatprep.subr.mxu0 0.0
        %784 = vmatpush1.msra.mxu0 0.0
        %785 = vmatprep.subr.mxu0 0.0
        %786 = vmatpush1.msra.mxu0 0.0
        %787 = vmatprep.mubr.f32.mxu0 0.0
        %788 = vmatmul.mubr.f32.gmra.mrb[0].mxu0 %v715
        %v789 = vpop.f32.mrb[0].mxu0
        %v790 = vadd.f32 %v701, %v789
        %v791 = vpop.f32.mrb[0].mxu0
        %v792 = vadd.f32 %v701, %v791
        %793 = vmatprep.mubr.f32.mxu0 0.0
        %794 = vmatmul.mubr.f32.gmra.mrb[0].mxu0 %v718
        %v795 = vpop.f32.mrb[0].mxu0
        %v796 = vadd.f32 %v706, %v795
        %v797 = vpop.f32.mrb[0].mxu0
        %v798 = vadd.f32 %v706, %v797
        %799 = vmatprep.mubr.f32.mxu0 0.0
        %800 = vmatmul.mubr.f32.gmra.mrb[0].mxu0 %v721
        %v801 = vpop.f32.mrb[0].mxu0
        %v802 = vadd.f32 %v711, %v801
        %v803 = vpop.f32.mrb[0].mxu0
        %v804 = vadd.f32 %v711, %v803
        %805 = vdwg.mxu0
        %v806 = vmax.f32 %v790, 0.0
        %v807 = vmax.f32 %v792, 0.0
        %808 = vst [vmem:[#allocation2] sm:$0xff] 0.0
        %vm809 = vcmask 130048
        %810 = vst.msk [vmem:[#allocation2 + $0x8] sm:$0xff] %vm809, 0.0
        %811 = vst [vmem:[#allocation2 + $0x28] sm:$0xff] 0.0
        %812 = vst.msk [vmem:[#allocation2 + $0x30] sm:$0xff] %vm809, 0.0
        %vm813 = vcmask 1047680
        %814 = vst.msk [vmem:[#allocation2 + $0x18] sm:$0xff] %vm813, 0.0
        %vm815 = vcmask 261120
        %816 = vst.msk [vmem:[#allocation2 + $0x20] sm:$0xff] %vm815, 0.0
        %817 = vst.msk [vmem:[#allocation2 + $0x40] sm:$0xff] %vm813, 0.0
        %818 = vst.msk [vmem:[#allocation2 + $0x48] sm:$0xff] %vm815, 0.0
        %821 = vrot.lane.b32.xlu0 %v806, 16
        %v822 = vpop.permute.xlu0 %821
        %823 = vrot.lane.b32.xlu0 %v807, 16
        %v824 = vpop.permute.xlu0 %823
        %v825 = vsel %vm809, %v822, %v824
        %vm829 = vcmask 1043584
        %830 = vst.msk [vmem:[#allocation2 + $0x8] sm:$0xf] %vm829, %v822
        %831 = vst [vmem:[#allocation2 + $0x10] sm:$0xf] %v825
        %vm832 = vcmask 125952
        %833 = vst.msk [vmem:[#allocation2 + $0x18] sm:$0xf] %vm832, %v824
        %v834 = vld [vmem:[%s4] sm:$0xf]
        %836 = vset.pattern.permute.xlu0 0
        %837 = vperm.xlu0 %836, %v834
        %v838 = vpop.permute.xlu0 %837
        %v840 = vld [vmem:[%s3] sm:$0xf]
        %v841 = vld [vmem:[#allocation2] sm:$0xf]
        %v842 = vld [vmem:[#allocation2 + $0x8] sm:$0xf]
        %v843 = vld [vmem:[#allocation2 + $0x10] sm:$0xf]
        %s844 = scalar_lea.vmem %s3, 12
        %v845 = vld [vmem:[%s844] sm:$0xf]
        %v846 = vld [vmem:[#allocation2 + $0x18] sm:$0xf]
        %850 = vrot.lane.b32.xlu0 %v842, 113
        %v851 = vpop.permute.xlu0 %850
        %852 = vrot.lane.b32.xlu0 %v843, 113
        %v853 = vpop.permute.xlu0 %852
        %854 = vrot.lane.b32.xlu0 %v846, 113
        %v855 = vpop.permute.xlu0 %854
        %vm856 = vcmask 924672
        %v857 = vsel %vm856, %v851, %v853
        %v858 = vsel %vm856, %v853, %v855
        %vm859 = vcmask 31744
        %v861 = vsel %vm859, %v845, 0
        %vm863 = vcmask 1043456
        %v864 = vsel %vm863, %v857, 0
        %v866 = vsel %vm863, %v858, 0
        %868 = vmatprep.subr.mxu0 %v866
        %869 = vmatpush1.msra.mxu0 %v864
        %870 = vmatprep.subr.mxu0 0.0
        %871 = vmatpush1.msra.mxu0 0.0
        %872 = vmatprep.subr.mxu0 0.0
        %873 = vmatpush1.msra.mxu0 0.0
        %874 = vmatprep.subr.mxu0 0.0
        %875 = vmatpush1.msra.mxu0 0.0
        %876 = vmatprep.subr.mxu0 0.0
        %877 = vmatpush1.msra.mxu0 0.0
        %878 = vmatprep.subr.mxu0 0.0
        %879 = vmatpush1.msra.mxu0 0.0
        %880 = vmatprep.subr.mxu0 0.0
        %881 = vmatpush1.msra.mxu0 0.0
        %882 = vmatprep.subr.mxu0 0.0
        %883 = vmatpush1.msra.mxu0 0.0
        %884 = vmatprep.subr.mxu0 0.0
        %885 = vmatpush1.msra.mxu0 0.0
        %886 = vmatprep.subr.mxu0 0.0
        %887 = vmatpush1.msra.mxu0 0.0
        %888 = vmatprep.subr.mxu0 0.0
        %889 = vmatpush1.msra.mxu0 0.0
        %890 = vmatprep.subr.mxu0 0.0
        %891 = vmatpush1.msra.mxu0 0.0
        %892 = vmatprep.subr.mxu0 0.0
        %893 = vmatpush1.msra.mxu0 0.0
        %894 = vmatprep.subr.mxu0 0.0
        %895 = vmatpush1.msra.mxu0 0.0
        %896 = vmatprep.subr.mxu0 0.0
        %897 = vmatpush1.msra.mxu0 0.0
        %898 = vmatprep.subr.mxu0 0.0
        %899 = vmatpush1.msra.mxu0 0.0
        %900 = vmatprep.subr.mxu0 0.0
        %901 = vmatpush1.msra.mxu0 0.0
        %902 = vmatprep.subr.mxu0 0.0
        %903 = vmatpush1.msra.mxu0 0.0
        %904 = vmatprep.subr.mxu0 0.0
        %905 = vmatpush1.msra.mxu0 0.0
        %906 = vmatprep.subr.mxu0 0.0
        %907 = vmatpush1.msra.mxu0 0.0
        %908 = vmatprep.subr.mxu0 0.0
        %909 = vmatpush1.msra.mxu0 0.0
        %910 = vmatprep.subr.mxu0 0.0
        %911 = vmatpush1.msra.mxu0 0.0
        %912 = vmatprep.subr.mxu0 0.0
        %913 = vmatpush1.msra.mxu0 0.0
        %914 = vmatprep.subr.mxu0 0.0
        %915 = vmatpush1.msra.mxu0 0.0
        %916 = vmatprep.subr.mxu0 0.0
        %917 = vmatpush1.msra.mxu0 0.0
        %918 = vmatprep.subr.mxu0 0.0
        %919 = vmatpush1.msra.mxu0 0.0
        %920 = vmatprep.subr.mxu0 0.0
        %921 = vmatpush1.msra.mxu0 0.0
        %922 = vmatprep.subr.mxu0 0.0
        %923 = vmatpush1.msra.mxu0 0.0
        %924 = vmatprep.subr.mxu0 0.0
        %925 = vmatpush1.msra.mxu0 0.0
        %926 = vmatprep.subr.mxu0 0.0
        %927 = vmatpush1.msra.mxu0 0.0
        %928 = vmatprep.subr.mxu0 0.0
        %929 = vmatpush1.msra.mxu0 0.0
        %930 = vmatprep.subr.mxu0 0.0
        %931 = vmatpush1.msra.mxu0 0.0
        %932 = vmatprep.mubr.f32.mxu0 0.0
        %933 = vmatmul.mubr.f32.gmra.mrb[0].mxu0 %v861
        %v934 = vpop.f32.mrb[0].mxu0
        %v935 = vadd.f32 0.0, %v934
        %v936 = vpop.f32.mrb[0].mxu0
        %v937 = vadd.f32 0.0, %v936
        %938 = vdwg.mxu0
        %940 = vrot.lane.b32.xlu0 %v841, 1
        %v941 = vpop.permute.xlu0 %940
        %942 = vrot.lane.b32.xlu0 %v842, 1
        %v943 = vpop.permute.xlu0 %942
        %944 = vrot.lane.b32.xlu0 %v843, 1
        %v945 = vpop.permute.xlu0 %944
        %vm946 = vcmask 7168
        %v947 = vsel %vm946, %v941, %v943
        %v948 = vsel %vm946, %v943, %v945
        %v950 = vsel %vm859, %v840, 0
        %v952 = vsel %vm863, %v947, 0
        %v954 = vsel %vm863, %v948, 0
        %956 = vmatprep.subr.mxu0 %v954
        %957 = vmatpush1.msra.mxu0 %v952
        %958 = vmatprep.subr.mxu0 0.0
        %959 = vmatpush1.msra.mxu0 0.0
        %960 = vmatprep.subr.mxu0 0.0
        %961 = vmatpush1.msra.mxu0 0.0
        %962 = vmatprep.subr.mxu0 0.0
        %963 = vmatpush1.msra.mxu0 0.0
        %964 = vmatprep.subr.mxu0 0.0
        %965 = vmatpush1.msra.mxu0 0.0
        %966 = vmatprep.subr.mxu0 0.0
        %967 = vmatpush1.msra.mxu0 0.0
        %968 = vmatprep.subr.mxu0 0.0
        %969 = vmatpush1.msra.mxu0 0.0
        %970 = vmatprep.subr.mxu0 0.0
        %971 = vmatpush1.msra.mxu0 0.0
        %972 = vmatprep.subr.mxu0 0.0
        %973 = vmatpush1.msra.mxu0 0.0
        %974 = vmatprep.subr.mxu0 0.0
        %975 = vmatpush1.msra.mxu0 0.0
        %976 = vmatprep.subr.mxu0 0.0
        %977 = vmatpush1.msra.mxu0 0.0
        %978 = vmatprep.subr.mxu0 0.0
        %979 = vmatpush1.msra.mxu0 0.0
        %980 = vmatprep.subr.mxu0 0.0
        %981 = vmatpush1.msra.mxu0 0.0
        %982 = vmatprep.subr.mxu0 0.0
        %983 = vmatpush1.msra.mxu0 0.0
        %984 = vmatprep.subr.mxu0 0.0
        %985 = vmatpush1.msra.mxu0 0.0
        %986 = vmatprep.subr.mxu0 0.0
        %987 = vmatpush1.msra.mxu0 0.0
        %988 = vmatprep.subr.mxu0 0.0
        %989 = vmatpush1.msra.mxu0 0.0
        %990 = vmatprep.subr.mxu0 0.0
        %991 = vmatpush1.msra.mxu0 0.0
        %992 = vmatprep.subr.mxu0 0.0
        %993 = vmatpush1.msra.mxu0 0.0
        %994 = vmatprep.subr.mxu0 0.0
        %995 = vmatpush1.msra.mxu0 0.0
        %996 = vmatprep.subr.mxu0 0.0
        %997 = vmatpush1.msra.mxu0 0.0
        %998 = vmatprep.subr.mxu0 0.0
        %999 = vmatpush1.msra.mxu0 0.0
        %1000 = vmatprep.subr.mxu0 0.0
        %1001 = vmatpush1.msra.mxu0 0.0
        %1002 = vmatprep.subr.mxu0 0.0
        %1003 = vmatpush1.msra.mxu0 0.0
        %1004 = vmatprep.subr.mxu0 0.0
        %1005 = vmatpush1.msra.mxu0 0.0
        %1006 = vmatprep.subr.mxu0 0.0
        %1007 = vmatpush1.msra.mxu0 0.0
        %1008 = vmatprep.subr.mxu0 0.0
        %1009 = vmatpush1.msra.mxu0 0.0
        %1010 = vmatprep.subr.mxu0 0.0
        %1011 = vmatpush1.msra.mxu0 0.0
        %1012 = vmatprep.subr.mxu0 0.0
        %1013 = vmatpush1.msra.mxu0 0.0
        %1014 = vmatprep.subr.mxu0 0.0
        %1015 = vmatpush1.msra.mxu0 0.0
        %1016 = vmatprep.subr.mxu0 0.0
        %1017 = vmatpush1.msra.mxu0 0.0
        %1018 = vmatprep.subr.mxu0 0.0
        %1019 = vmatpush1.msra.mxu0 0.0
        %1020 = vmatprep.mubr.f32.mxu0 0.0
        %1021 = vmatmul.mubr.f32.gmra.mrb[0].mxu0 %v950
        %v1022 = vpop.f32.mrb[0].mxu0
        %v1023 = vadd.f32 %v935, %v1022
        %v1024 = vpop.f32.mrb[0].mxu0
        %v1025 = vadd.f32 %v937, %v1024
        %1026 = vdwg.mxu0
        %s1027 = scalar_lea.vmem %s3, 24
        %v1028 = vld [vmem:[%s1027] sm:$0xf]
        %1029 = vrot.lane.b32.xlu0 %v842, 97
        %v1030 = vpop.permute.xlu0 %1029
        %1031 = vrot.lane.b32.xlu0 %v843, 97
        %v1032 = vpop.permute.xlu0 %1031
        %1033 = vrot.lane.b32.xlu0 %v846, 97
        %v1034 = vpop.permute.xlu0 %1033
        %vm1035 = vcmask 793600
        %v1036 = vsel %vm1035, %v1030, %v1032
        %v1037 = vsel %vm1035, %v1032, %v1034
        %v1039 = vsel %vm859, %v1028, 0
        %v1041 = vsel %vm863, %v1036, 0
        %v1043 = vsel %vm863, %v1037, 0
        %1045 = vmatprep.subr.mxu0 %v1043
        %1046 = vmatpush1.msra.mxu0 %v1041
        %1047 = vmatprep.subr.mxu0 0.0
        %1048 = vmatpush1.msra.mxu0 0.0
        %1049 = vmatprep.subr.mxu0 0.0
        %1050 = vmatpush1.msra.mxu0 0.0
        %1051 = vmatprep.subr.mxu0 0.0
        %1052 = vmatpush1.msra.mxu0 0.0
        %1053 = vmatprep.subr.mxu0 0.0
        %1054 = vmatpush1.msra.mxu0 0.0
        %1055 = vmatprep.subr.mxu0 0.0
        %1056 = vmatpush1.msra.mxu0 0.0
        %1057 = vmatprep.subr.mxu0 0.0
        %1058 = vmatpush1.msra.mxu0 0.0
        %1059 = vmatprep.subr.mxu0 0.0
        %1060 = vmatpush1.msra.mxu0 0.0
        %1061 = vmatprep.subr.mxu0 0.0
        %1062 = vmatpush1.msra.mxu0 0.0
        %1063 = vmatprep.subr.mxu0 0.0
        %1064 = vmatpush1.msra.mxu0 0.0
        %1065 = vmatprep.subr.mxu0 0.0
        %1066 = vmatpush1.msra.mxu0 0.0
        %1067 = vmatprep.subr.mxu0 0.0
        %1068 = vmatpush1.msra.mxu0 0.0
        %1069 = vmatprep.subr.mxu0 0.0
        %1070 = vmatpush1.msra.mxu0 0.0
        %1071 = vmatprep.subr.mxu0 0.0
        %1072 = vmatpush1.msra.mxu0 0.0
        %1073 = vmatprep.subr.mxu0 0.0
        %1074 = vmatpush1.msra.mxu0 0.0
        %1075 = vmatprep.subr.mxu0 0.0
        %1076 = vmatpush1.msra.mxu0 0.0
        %1077 = vmatprep.subr.mxu0 0.0
        %1078 = vmatpush1.msra.mxu0 0.0
        %1079 = vmatprep.subr.mxu0 0.0
        %1080 = vmatpush1.msra.mxu0 0.0
        %1081 = vmatprep.subr.mxu0 0.0
        %1082 = vmatpush1.msra.mxu0 0.0
        %1083 = vmatprep.subr.mxu0 0.0
        %1084 = vmatpush1.msra.mxu0 0.0
        %1085 = vmatprep.subr.mxu0 0.0
        %1086 = vmatpush1.msra.mxu0 0.0
        %1087 = vmatprep.subr.mxu0 0.0
        %1088 = vmatpush1.msra.mxu0 0.0
        %1089 = vmatprep.subr.mxu0 0.0
        %1090 = vmatpush1.msra.mxu0 0.0
        %1091 = vmatprep.subr.mxu0 0.0
        %1092 = vmatpush1.msra.mxu0 0.0
        %1093 = vmatprep.subr.mxu0 0.0
        %1094 = vmatpush1.msra.mxu0 0.0
        %1095 = vmatprep.subr.mxu0 0.0
        %1096 = vmatpush1.msra.mxu0 0.0
        %1097 = vmatprep.subr.mxu0 0.0
        %1098 = vmatpush1.msra.mxu0 0.0
        %1099 = vmatprep.subr.mxu0 0.0
        %1100 = vmatpush1.msra.mxu0 0.0
        %1101 = vmatprep.subr.mxu0 0.0
        %1102 = vmatpush1.msra.mxu0 0.0
        %1103 = vmatprep.subr.mxu0 0.0
        %1104 = vmatpush1.msra.mxu0 0.0
        %1105 = vmatprep.subr.mxu0 0.0
        %1106 = vmatpush1.msra.mxu0 0.0
        %1107 = vmatprep.subr.mxu0 0.0
        %1108 = vmatpush1.msra.mxu0 0.0
        %1109 = vmatprep.mubr.f32.mxu0 0.0
        %1110 = vmatmul.mubr.f32.gmra.mrb[0].mxu0 %v1039
        %v1111 = vpop.f32.mrb[0].mxu0
        %v1112 = vadd.f32 0.0, %v1111
        %v1113 = vpop.f32.mrb[0].mxu0
        %v1114 = vadd.f32 0.0, %v1113
        %1115 = vdwg.mxu0
        %v1116 = vadd.f32 %v1023, %v1112
        %v1117 = vadd.f32 %v1025, %v1114
        %s1118 = scalar_lea.vmem [#allocation14], 16
        %v1119 = vld [vmem:[%s1118] ss:$8 sm:$0x3]
        %v1121 = vlaneseq
        %v1122 = vshrl.u32 %v1121, 7
        %v1123 = vsub.s32 0, %v1122
        %v1124 = vrot.slane %v1119, %v1123
        %v1125 = vlaneseq
        %v1126 = vshrl.u32 %v1125, 7
        %v1127 = vsub.s32 1, %v1126
        %v1128 = vrot.slane %v1119, %v1127
        %v1131 = vmul.f32 %v1116, %v1124
        %v1132 = vmul.f32 %v1117, %v1128
        %v1133 = vadd.f32 %v838, %v1131
        %v1134 = vadd.f32 %v838, %v1132
        %s1135 = scalar_lea.vmem %s3, 4
        %v1136 = vld [vmem:[%s1135] sm:$0xf]
        %s1137 = scalar_lea.vmem %s3, 16
        %v1138 = vld [vmem:[%s1137] sm:$0xf]
        %1139 = vrot.lane.b32.xlu0 %v842, 112
        %v1140 = vpop.permute.xlu0 %1139
        %1141 = vrot.lane.b32.xlu0 %v843, 112
        %v1142 = vpop.permute.xlu0 %1141
        %1143 = vrot.lane.b32.xlu0 %v846, 112
        %v1144 = vpop.permute.xlu0 %1143
        %vm1145 = vcmask 916480
        %v1146 = vsel %vm1145, %v1140, %v1142
        %v1147 = vsel %vm1145, %v1142, %v1144
        %v1149 = vsel %vm859, %v1138, 0
        %v1151 = vsel %vm863, %v1146, 0
        %v1153 = vsel %vm863, %v1147, 0
        %1155 = vmatprep.subr.mxu0 %v1153
        %1156 = vmatpush1.msra.mxu0 %v1151
        %1157 = vmatprep.subr.mxu0 0.0
        %1158 = vmatpush1.msra.mxu0 0.0
        %1159 = vmatprep.subr.mxu0 0.0
        %1160 = vmatpush1.msra.mxu0 0.0
        %1161 = vmatprep.subr.mxu0 0.0
        %1162 = vmatpush1.msra.mxu0 0.0
        %1163 = vmatprep.subr.mxu0 0.0
        %1164 = vmatpush1.msra.mxu0 0.0
        %1165 = vmatprep.subr.mxu0 0.0
        %1166 = vmatpush1.msra.mxu0 0.0
        %1167 = vmatprep.subr.mxu0 0.0
        %1168 = vmatpush1.msra.mxu0 0.0
        %1169 = vmatprep.subr.mxu0 0.0
        %1170 = vmatpush1.msra.mxu0 0.0
        %1171 = vmatprep.subr.mxu0 0.0
        %1172 = vmatpush1.msra.mxu0 0.0
        %1173 = vmatprep.subr.mxu0 0.0
        %1174 = vmatpush1.msra.mxu0 0.0
        %1175 = vmatprep.subr.mxu0 0.0
        %1176 = vmatpush1.msra.mxu0 0.0
        %1177 = vmatprep.subr.mxu0 0.0
        %1178 = vmatpush1.msra.mxu0 0.0
        %1179 = vmatprep.subr.mxu0 0.0
        %1180 = vmatpush1.msra.mxu0 0.0
        %1181 = vmatprep.subr.mxu0 0.0
        %1182 = vmatpush1.msra.mxu0 0.0
        %1183 = vmatprep.subr.mxu0 0.0
        %1184 = vmatpush1.msra.mxu0 0.0
        %1185 = vmatprep.subr.mxu0 0.0
        %1186 = vmatpush1.msra.mxu0 0.0
        %1187 = vmatprep.subr.mxu0 0.0
        %1188 = vmatpush1.msra.mxu0 0.0
        %1189 = vmatprep.subr.mxu0 0.0
        %1190 = vmatpush1.msra.mxu0 0.0
        %1191 = vmatprep.subr.mxu0 0.0
        %1192 = vmatpush1.msra.mxu0 0.0
        %1193 = vmatprep.subr.mxu0 0.0
        %1194 = vmatpush1.msra.mxu0 0.0
        %1195 = vmatprep.subr.mxu0 0.0
        %1196 = vmatpush1.msra.mxu0 0.0
        %1197 = vmatprep.subr.mxu0 0.0
        %1198 = vmatpush1.msra.mxu0 0.0
        %1199 = vmatprep.subr.mxu0 0.0
        %1200 = vmatpush1.msra.mxu0 0.0
        %1201 = vmatprep.subr.mxu0 0.0
        %1202 = vmatpush1.msra.mxu0 0.0
        %1203 = vmatprep.subr.mxu0 0.0
        %1204 = vmatpush1.msra.mxu0 0.0
        %1205 = vmatprep.subr.mxu0 0.0
        %1206 = vmatpush1.msra.mxu0 0.0
        %1207 = vmatprep.subr.mxu0 0.0
        %1208 = vmatpush1.msra.mxu0 0.0
        %1209 = vmatprep.subr.mxu0 0.0
        %1210 = vmatpush1.msra.mxu0 0.0
        %1211 = vmatprep.subr.mxu0 0.0
        %1212 = vmatpush1.msra.mxu0 0.0
        %1213 = vmatprep.subr.mxu0 0.0
        %1214 = vmatpush1.msra.mxu0 0.0
        %1215 = vmatprep.subr.mxu0 0.0
        %1216 = vmatpush1.msra.mxu0 0.0
        %1217 = vmatprep.subr.mxu0 0.0
        %1218 = vmatpush1.msra.mxu0 0.0
        %1219 = vmatprep.mubr.f32.mxu0 0.0
        %1220 = vmatmul.mubr.f32.gmra.mrb[0].mxu0 %v1149
        %v1221 = vpop.f32.mrb[0].mxu0
        %v1222 = vadd.f32 0.0, %v1221
        %v1223 = vpop.f32.mrb[0].mxu0
        %v1224 = vadd.f32 0.0, %v1223
        %1225 = vdwg.mxu0
        %v1227 = vsel %vm859, %v1136, 0
        %v1229 = vsel %vm863, %v842, 0
        %v1231 = vsel %vm863, %v843, 0
        %1233 = vmatprep.subr.mxu0 %v1231
        %1234 = vmatpush1.msra.mxu0 %v1229
        %1235 = vmatprep.subr.mxu0 0.0
        %1236 = vmatpush1.msra.mxu0 0.0
        %1237 = vmatprep.subr.mxu0 0.0
        %1238 = vmatpush1.msra.mxu0 0.0
        %1239 = vmatprep.subr.mxu0 0.0
        %1240 = vmatpush1.msra.mxu0 0.0
        %1241 = vmatprep.subr.mxu0 0.0
        %1242 = vmatpush1.msra.mxu0 0.0
        %1243 = vmatprep.subr.mxu0 0.0
        %1244 = vmatpush1.msra.mxu0 0.0
        %1245 = vmatprep.subr.mxu0 0.0
        %1246 = vmatpush1.msra.mxu0 0.0
        %1247 = vmatprep.subr.mxu0 0.0
        %1248 = vmatpush1.msra.mxu0 0.0
        %1249 = vmatprep.subr.mxu0 0.0
        %1250 = vmatpush1.msra.mxu0 0.0
        %1251 = vmatprep.subr.mxu0 0.0
        %1252 = vmatpush1.msra.mxu0 0.0
        %1253 = vmatprep.subr.mxu0 0.0
        %1254 = vmatpush1.msra.mxu0 0.0
        %1255 = vmatprep.subr.mxu0 0.0
        %1256 = vmatpush1.msra.mxu0 0.0
        %1257 = vmatprep.subr.mxu0 0.0
        %1258 = vmatpush1.msra.mxu0 0.0
        %1259 = vmatprep.subr.mxu0 0.0
        %1260 = vmatpush1.msra.mxu0 0.0
        %1261 = vmatprep.subr.mxu0 0.0
        %1262 = vmatpush1.msra.mxu0 0.0
        %1263 = vmatprep.subr.mxu0 0.0
        %1264 = vmatpush1.msra.mxu0 0.0
        %1265 = vmatprep.subr.mxu0 0.0
        %1266 = vmatpush1.msra.mxu0 0.0
        %1267 = vmatprep.subr.mxu0 0.0
        %1268 = vmatpush1.msra.mxu0 0.0
        %1269 = vmatprep.subr.mxu0 0.0
        %1270 = vmatpush1.msra.mxu0 0.0
        %1271 = vmatprep.subr.mxu0 0.0
        %1272 = vmatpush1.msra.mxu0 0.0
        %1273 = vmatprep.subr.mxu0 0.0
        %1274 = vmatpush1.msra.mxu0 0.0
        %1275 = vmatprep.subr.mxu0 0.0
        %1276 = vmatpush1.msra.mxu0 0.0
        %1277 = vmatprep.subr.mxu0 0.0
        %1278 = vmatpush1.msra.mxu0 0.0
        %1279 = vmatprep.subr.mxu0 0.0
        %1280 = vmatpush1.msra.mxu0 0.0
        %1281 = vmatprep.subr.mxu0 0.0
        %1282 = vmatpush1.msra.mxu0 0.0
        %1283 = vmatprep.subr.mxu0 0.0
        %1284 = vmatpush1.msra.mxu0 0.0
        %1285 = vmatprep.subr.mxu0 0.0
        %1286 = vmatpush1.msra.mxu0 0.0
        %1287 = vmatprep.subr.mxu0 0.0
        %1288 = vmatpush1.msra.mxu0 0.0
        %1289 = vmatprep.subr.mxu0 0.0
        %1290 = vmatpush1.msra.mxu0 0.0
        %1291 = vmatprep.subr.mxu0 0.0
        %1292 = vmatpush1.msra.mxu0 0.0
        %1293 = vmatprep.subr.mxu0 0.0
        %1294 = vmatpush1.msra.mxu0 0.0
        %1295 = vmatprep.subr.mxu0 0.0
        %1296 = vmatpush1.msra.mxu0 0.0
        %1297 = vmatprep.mubr.f32.mxu0 0.0
        %1298 = vmatmul.mubr.f32.gmra.mrb[0].mxu0 %v1227
        %v1299 = vpop.f32.mrb[0].mxu0
        %v1300 = vadd.f32 %v1222, %v1299
        %v1301 = vpop.f32.mrb[0].mxu0
        %v1302 = vadd.f32 %v1224, %v1301
        %1303 = vdwg.mxu0
        %s1304 = scalar_lea.vmem %s3, 28
        %v1305 = vld [vmem:[%s1304] sm:$0xf]
        %1306 = vrot.lane.b32.xlu0 %v842, 96
        %v1307 = vpop.permute.xlu0 %1306
        %1308 = vrot.lane.b32.xlu0 %v843, 96
        %v1309 = vpop.permute.xlu0 %1308
        %1310 = vrot.lane.b32.xlu0 %v846, 96
        %v1311 = vpop.permute.xlu0 %1310
        %vm1312 = vcmask 785408
        %v1313 = vsel %vm1312, %v1307, %v1309
        %v1314 = vsel %vm1312, %v1309, %v1311
        %v1316 = vsel %vm859, %v1305, 0
        %v1318 = vsel %vm863, %v1313, 0
        %v1320 = vsel %vm863, %v1314, 0
        %1322 = vmatprep.subr.mxu0 %v1320
        %1323 = vmatpush1.msra.mxu0 %v1318
        %1324 = vmatprep.subr.mxu0 0.0
        %1325 = vmatpush1.msra.mxu0 0.0
        %1326 = vmatprep.subr.mxu0 0.0
        %1327 = vmatpush1.msra.mxu0 0.0
        %1328 = vmatprep.subr.mxu0 0.0
        %1329 = vmatpush1.msra.mxu0 0.0
        %1330 = vmatprep.subr.mxu0 0.0
        %1331 = vmatpush1.msra.mxu0 0.0
        %1332 = vmatprep.subr.mxu0 0.0
        %1333 = vmatpush1.msra.mxu0 0.0
        %1334 = vmatprep.subr.mxu0 0.0
        %1335 = vmatpush1.msra.mxu0 0.0
        %1336 = vmatprep.subr.mxu0 0.0
        %1337 = vmatpush1.msra.mxu0 0.0
        %1338 = vmatprep.subr.mxu0 0.0
        %1339 = vmatpush1.msra.mxu0 0.0
        %1340 = vmatprep.subr.mxu0 0.0
        %1341 = vmatpush1.msra.mxu0 0.0
        %1342 = vmatprep.subr.mxu0 0.0
        %1343 = vmatpush1.msra.mxu0 0.0
        %1344 = vmatprep.subr.mxu0 0.0
        %1345 = vmatpush1.msra.mxu0 0.0
        %1346 = vmatprep.subr.mxu0 0.0
        %1347 = vmatpush1.msra.mxu0 0.0
        %1348 = vmatprep.subr.mxu0 0.0
        %1349 = vmatpush1.msra.mxu0 0.0
        %1350 = vmatprep.subr.mxu0 0.0
        %1351 = vmatpush1.msra.mxu0 0.0
        %1352 = vmatprep.subr.mxu0 0.0
        %1353 = vmatpush1.msra.mxu0 0.0
        %1354 = vmatprep.subr.mxu0 0.0
        %1355 = vmatpush1.msra.mxu0 0.0
        %1356 = vmatprep.subr.mxu0 0.0
        %1357 = vmatpush1.msra.mxu0 0.0
        %1358 = vmatprep.subr.mxu0 0.0
        %1359 = vmatpush1.msra.mxu0 0.0
        %1360 = vmatprep.subr.mxu0 0.0
        %1361 = vmatpush1.msra.mxu0 0.0
        %1362 = vmatprep.subr.mxu0 0.0
        %1363 = vmatpush1.msra.mxu0 0.0
        %1364 = vmatprep.subr.mxu0 0.0
        %1365 = vmatpush1.msra.mxu0 0.0
        %1366 = vmatprep.subr.mxu0 0.0
        %1367 = vmatpush1.msra.mxu0 0.0
        %1368 = vmatprep.subr.mxu0 0.0
        %1369 = vmatpush1.msra.mxu0 0.0
        %1370 = vmatprep.subr.mxu0 0.0
        %1371 = vmatpush1.msra.mxu0 0.0
        %1372 = vmatprep.subr.mxu0 0.0
        %1373 = vmatpush1.msra.mxu0 0.0
        %1374 = vmatprep.subr.mxu0 0.0
        %1375 = vmatpush1.msra.mxu0 0.0
        %1376 = vmatprep.subr.mxu0 0.0
        %1377 = vmatpush1.msra.mxu0 0.0
        %1378 = vmatprep.subr.mxu0 0.0
        %1379 = vmatpush1.msra.mxu0 0.0
        %1380 = vmatprep.subr.mxu0 0.0
        %1381 = vmatpush1.msra.mxu0 0.0
        %1382 = vmatprep.subr.mxu0 0.0
        %1383 = vmatpush1.msra.mxu0 0.0
        %1384 = vmatprep.subr.mxu0 0.0
        %1385 = vmatpush1.msra.mxu0 0.0
        %1386 = vmatprep.mubr.f32.mxu0 0.0
        %1387 = vmatmul.mubr.f32.gmra.mrb[0].mxu0 %v1316
        %v1388 = vpop.f32.mrb[0].mxu0
        %v1389 = vadd.f32 0.0, %v1388
        %v1390 = vpop.f32.mrb[0].mxu0
        %v1391 = vadd.f32 0.0, %v1390
        %1392 = vdwg.mxu0
        %v1393 = vadd.f32 %v1300, %v1389
        %v1394 = vadd.f32 %v1302, %v1391
        %s1395 = scalar_lea.vmem [#allocation14], 17
        %v1396 = vld [vmem:[%s1395] ss:$8 sm:$0x3]
        %v1398 = vlaneseq
        %v1399 = vshrl.u32 %v1398, 7
        %v1400 = vsub.s32 0, %v1399
        %v1401 = vrot.slane %v1396, %v1400
        %v1402 = vlaneseq
        %v1403 = vshrl.u32 %v1402, 7
        %v1404 = vsub.s32 1, %v1403
        %v1405 = vrot.slane %v1396, %v1404
        %v1408 = vmul.f32 %v1393, %v1401
        %v1409 = vmul.f32 %v1394, %v1405
        %v1410 = vadd.f32 %v1133, %v1408
        %v1411 = vadd.f32 %v1134, %v1409
        %s1412 = scalar_lea.vmem %s3, 8
        %v1413 = vld [vmem:[%s1412] sm:$0xf]
        %s1414 = scalar_lea.vmem %s3, 20
        %v1415 = vld [vmem:[%s1414] sm:$0xf]
        %1416 = vrot.lane.b32.xlu0 %v842, 111
        %v1417 = vpop.permute.xlu0 %1416
        %1418 = vrot.lane.b32.xlu0 %v843, 111
        %v1419 = vpop.permute.xlu0 %1418
        %1420 = vrot.lane.b32.xlu0 %v846, 111
        %v1421 = vpop.permute.xlu0 %1420
        %vm1422 = vcmask 908288
        %v1423 = vsel %vm1422, %v1417, %v1419
        %v1424 = vsel %vm1422, %v1419, %v1421
        %v1426 = vsel %vm859, %v1415, 0
        %v1428 = vsel %vm863, %v1423, 0
        %v1430 = vsel %vm863, %v1424, 0
        %1432 = vmatprep.subr.mxu0 %v1430
        %1433 = vmatpush1.msra.mxu0 %v1428
        %1434 = vmatprep.subr.mxu0 0.0
        %1435 = vmatpush1.msra.mxu0 0.0
        %1436 = vmatprep.subr.mxu0 0.0
        %1437 = vmatpush1.msra.mxu0 0.0
        %1438 = vmatprep.subr.mxu0 0.0
        %1439 = vmatpush1.msra.mxu0 0.0
        %1440 = vmatprep.subr.mxu0 0.0
        %1441 = vmatpush1.msra.mxu0 0.0
        %1442 = vmatprep.subr.mxu0 0.0
        %1443 = vmatpush1.msra.mxu0 0.0
        %1444 = vmatprep.subr.mxu0 0.0
        %1445 = vmatpush1.msra.mxu0 0.0
        %1446 = vmatprep.subr.mxu0 0.0
        %1447 = vmatpush1.msra.mxu0 0.0
        %1448 = vmatprep.subr.mxu0 0.0
        %1449 = vmatpush1.msra.mxu0 0.0
        %1450 = vmatprep.subr.mxu0 0.0
        %1451 = vmatpush1.msra.mxu0 0.0
        %1452 = vmatprep.subr.mxu0 0.0
        %1453 = vmatpush1.msra.mxu0 0.0
        %1454 = vmatprep.subr.mxu0 0.0
        %1455 = vmatpush1.msra.mxu0 0.0
        %1456 = vmatprep.subr.mxu0 0.0
        %1457 = vmatpush1.msra.mxu0 0.0
        %1458 = vmatprep.subr.mxu0 0.0
        %1459 = vmatpush1.msra.mxu0 0.0
        %1460 = vmatprep.subr.mxu0 0.0
        %1461 = vmatpush1.msra.mxu0 0.0
        %1462 = vmatprep.subr.mxu0 0.0
        %1463 = vmatpush1.msra.mxu0 0.0
        %1464 = vmatprep.subr.mxu0 0.0
        %1465 = vmatpush1.msra.mxu0 0.0
        %1466 = vmatprep.subr.mxu0 0.0
        %1467 = vmatpush1.msra.mxu0 0.0
        %1468 = vmatprep.subr.mxu0 0.0
        %1469 = vmatpush1.msra.mxu0 0.0
        %1470 = vmatprep.subr.mxu0 0.0
        %1471 = vmatpush1.msra.mxu0 0.0
        %1472 = vmatprep.subr.mxu0 0.0
        %1473 = vmatpush1.msra.mxu0 0.0
        %1474 = vmatprep.subr.mxu0 0.0
        %1475 = vmatpush1.msra.mxu0 0.0
        %1476 = vmatprep.subr.mxu0 0.0
        %1477 = vmatpush1.msra.mxu0 0.0
        %1478 = vmatprep.subr.mxu0 0.0
        %1479 = vmatpush1.msra.mxu0 0.0
        %1480 = vmatprep.subr.mxu0 0.0
        %1481 = vmatpush1.msra.mxu0 0.0
        %1482 = vmatprep.subr.mxu0 0.0
        %1483 = vmatpush1.msra.mxu0 0.0
        %1484 = vmatprep.subr.mxu0 0.0
        %1485 = vmatpush1.msra.mxu0 0.0
        %1486 = vmatprep.subr.mxu0 0.0
        %1487 = vmatpush1.msra.mxu0 0.0
        %1488 = vmatprep.subr.mxu0 0.0
        %1489 = vmatpush1.msra.mxu0 0.0
        %1490 = vmatprep.subr.mxu0 0.0
        %1491 = vmatpush1.msra.mxu0 0.0
        %1492 = vmatprep.subr.mxu0 0.0
        %1493 = vmatpush1.msra.mxu0 0.0
        %1494 = vmatprep.subr.mxu0 0.0
        %1495 = vmatpush1.msra.mxu0 0.0
        %1496 = vmatprep.mubr.f32.mxu0 0.0
        %1497 = vmatmul.mubr.f32.gmra.mrb[0].mxu0 %v1426
        %v1498 = vpop.f32.mrb[0].mxu0
        %v1499 = vadd.f32 0.0, %v1498
        %v1500 = vpop.f32.mrb[0].mxu0
        %v1501 = vadd.f32 0.0, %v1500
        %1502 = vdwg.mxu0
        %1503 = vrot.lane.b32.xlu0 %v842, 127
        %v1504 = vpop.permute.xlu0 %1503
        %1505 = vrot.lane.b32.xlu0 %v843, 127
        %v1506 = vpop.permute.xlu0 %1505
        %1507 = vrot.lane.b32.xlu0 %v846, 127
        %v1508 = vpop.permute.xlu0 %1507
        %vm1509 = vcmask 1039360
        %v1510 = vsel %vm1509, %v1504, %v1506
        %v1511 = vsel %vm1509, %v1506, %v1508
        %v1513 = vsel %vm859, %v1413, 0
        %v1515 = vsel %vm863, %v1510, 0
        %v1517 = vsel %vm863, %v1511, 0
        %1519 = vmatprep.subr.mxu0 %v1517
        %1520 = vmatpush1.msra.mxu0 %v1515
        %1521 = vmatprep.subr.mxu0 0.0
        %1522 = vmatpush1.msra.mxu0 0.0
        %1523 = vmatprep.subr.mxu0 0.0
        %1524 = vmatpush1.msra.mxu0 0.0
        %1525 = vmatprep.subr.mxu0 0.0
        %1526 = vmatpush1.msra.mxu0 0.0
        %1527 = vmatprep.subr.mxu0 0.0
        %1528 = vmatpush1.msra.mxu0 0.0
        %1529 = vmatprep.subr.mxu0 0.0
        %1530 = vmatpush1.msra.mxu0 0.0
        %1531 = vmatprep.subr.mxu0 0.0
        %1532 = vmatpush1.msra.mxu0 0.0
        %1533 = vmatprep.subr.mxu0 0.0
        %1534 = vmatpush1.msra.mxu0 0.0
        %1535 = vmatprep.subr.mxu0 0.0
        %1536 = vmatpush1.msra.mxu0 0.0
        %1537 = vmatprep.subr.mxu0 0.0
        %1538 = vmatpush1.msra.mxu0 0.0
        %1539 = vmatprep.subr.mxu0 0.0
        %1540 = vmatpush1.msra.mxu0 0.0
        %1541 = vmatprep.subr.mxu0 0.0
        %1542 = vmatpush1.msra.mxu0 0.0
        %1543 = vmatprep.subr.mxu0 0.0
        %1544 = vmatpush1.msra.mxu0 0.0
        %1545 = vmatprep.subr.mxu0 0.0
        %1546 = vmatpush1.msra.mxu0 0.0
        %1547 = vmatprep.subr.mxu0 0.0
        %1548 = vmatpush1.msra.mxu0 0.0
        %1549 = vmatprep.subr.mxu0 0.0
        %1550 = vmatpush1.msra.mxu0 0.0
        %1551 = vmatprep.subr.mxu0 0.0
        %1552 = vmatpush1.msra.mxu0 0.0
        %1553 = vmatprep.subr.mxu0 0.0
        %1554 = vmatpush1.msra.mxu0 0.0
        %1555 = vmatprep.subr.mxu0 0.0
        %1556 = vmatpush1.msra.mxu0 0.0
        %1557 = vmatprep.subr.mxu0 0.0
        %1558 = vmatpush1.msra.mxu0 0.0
        %1559 = vmatprep.subr.mxu0 0.0
        %1560 = vmatpush1.msra.mxu0 0.0
        %1561 = vmatprep.subr.mxu0 0.0
        %1562 = vmatpush1.msra.mxu0 0.0
        %1563 = vmatprep.subr.mxu0 0.0
        %1564 = vmatpush1.msra.mxu0 0.0
        %1565 = vmatprep.subr.mxu0 0.0
        %1566 = vmatpush1.msra.mxu0 0.0
        %1567 = vmatprep.subr.mxu0 0.0
        %1568 = vmatpush1.msra.mxu0 0.0
        %1569 = vmatprep.subr.mxu0 0.0
        %1570 = vmatpush1.msra.mxu0 0.0
        %1571 = vmatprep.subr.mxu0 0.0
        %1572 = vmatpush1.msra.mxu0 0.0
        %1573 = vmatprep.subr.mxu0 0.0
        %1574 = vmatpush1.msra.mxu0 0.0
        %1575 = vmatprep.subr.mxu0 0.0
        %1576 = vmatpush1.msra.mxu0 0.0
        %1577 = vmatprep.subr.mxu0 0.0
        %1578 = vmatpush1.msra.mxu0 0.0
        %1579 = vmatprep.subr.mxu0 0.0
        %1580 = vmatpush1.msra.mxu0 0.0
        %1581 = vmatprep.subr.mxu0 0.0
        %1582 = vmatpush1.msra.mxu0 0.0
        %1583 = vmatprep.mubr.f32.mxu0 0.0
        %1584 = vmatmul.mubr.f32.gmra.mrb[0].mxu0 %v1513
        %v1585 = vpop.f32.mrb[0].mxu0
        %v1586 = vadd.f32 %v1499, %v1585
        %v1587 = vpop.f32.mrb[0].mxu0
        %v1588 = vadd.f32 %v1501, %v1587
        %1589 = vdwg.mxu0
        %s1590 = scalar_lea.vmem %s3, 32
        %v1591 = vld [vmem:[%s1590] sm:$0xf]
        %1592 = vrot.lane.b32.xlu0 %v842, 95
        %v1593 = vpop.permute.xlu0 %1592
        %1594 = vrot.lane.b32.xlu0 %v843, 95
        %v1595 = vpop.permute.xlu0 %1594
        %1596 = vrot.lane.b32.xlu0 %v846, 95
        %v1597 = vpop.permute.xlu0 %1596
        %vm1598 = vcmask 777216
        %v1599 = vsel %vm1598, %v1593, %v1595
        %v1600 = vsel %vm1598, %v1595, %v1597
        %v1602 = vsel %vm859, %v1591, 0
        %v1604 = vsel %vm863, %v1599, 0
        %v1606 = vsel %vm863, %v1600, 0
        %1608 = vmatprep.subr.mxu0 %v1606
        %1609 = vmatpush1.msra.mxu0 %v1604
        %1610 = vmatprep.subr.mxu0 0.0
        %1611 = vmatpush1.msra.mxu0 0.0
        %1612 = vmatprep.subr.mxu0 0.0
        %1613 = vmatpush1.msra.mxu0 0.0
        %1614 = vmatprep.subr.mxu0 0.0
        %1615 = vmatpush1.msra.mxu0 0.0
        %1616 = vmatprep.subr.mxu0 0.0
        %1617 = vmatpush1.msra.mxu0 0.0
        %1618 = vmatprep.subr.mxu0 0.0
        %1619 = vmatpush1.msra.mxu0 0.0
        %1620 = vmatprep.subr.mxu0 0.0
        %1621 = vmatpush1.msra.mxu0 0.0
        %1622 = vmatprep.subr.mxu0 0.0
        %1623 = vmatpush1.msra.mxu0 0.0
        %1624 = vmatprep.subr.mxu0 0.0
        %1625 = vmatpush1.msra.mxu0 0.0
        %1626 = vmatprep.subr.mxu0 0.0
        %1627 = vmatpush1.msra.mxu0 0.0
        %1628 = vmatprep.subr.mxu0 0.0
        %1629 = vmatpush1.msra.mxu0 0.0
        %1630 = vmatprep.subr.mxu0 0.0
        %1631 = vmatpush1.msra.mxu0 0.0
        %1632 = vmatprep.subr.mxu0 0.0
        %1633 = vmatpush1.msra.mxu0 0.0
        %1634 = vmatprep.subr.mxu0 0.0
        %1635 = vmatpush1.msra.mxu0 0.0
        %1636 = vmatprep.subr.mxu0 0.0
        %1637 = vmatpush1.msra.mxu0 0.0
        %1638 = vmatprep.subr.mxu0 0.0
        %1639 = vmatpush1.msra.mxu0 0.0
        %1640 = vmatprep.subr.mxu0 0.0
        %1641 = vmatpush1.msra.mxu0 0.0
        %1642 = vmatprep.subr.mxu0 0.0
        %1643 = vmatpush1.msra.mxu0 0.0
        %1644 = vmatprep.subr.mxu0 0.0
        %1645 = vmatpush1.msra.mxu0 0.0
        %1646 = vmatprep.subr.mxu0 0.0
        %1647 = vmatpush1.msra.mxu0 0.0
        %1648 = vmatprep.subr.mxu0 0.0
        %1649 = vmatpush1.msra.mxu0 0.0
        %1650 = vmatprep.subr.mxu0 0.0
        %1651 = vmatpush1.msra.mxu0 0.0
        %1652 = vmatprep.subr.mxu0 0.0
        %1653 = vmatpush1.msra.mxu0 0.0
        %1654 = vmatprep.subr.mxu0 0.0
        %1655 = vmatpush1.msra.mxu0 0.0
        %1656 = vmatprep.subr.mxu0 0.0
        %1657 = vmatpush1.msra.mxu0 0.0
        %1658 = vmatprep.subr.mxu0 0.0
        %1659 = vmatpush1.msra.mxu0 0.0
        %1660 = vmatprep.subr.mxu0 0.0
        %1661 = vmatpush1.msra.mxu0 0.0
        %1662 = vmatprep.subr.mxu0 0.0
        %1663 = vmatpush1.msra.mxu0 0.0
        %1664 = vmatprep.subr.mxu0 0.0
        %1665 = vmatpush1.msra.mxu0 0.0
        %1666 = vmatprep.subr.mxu0 0.0
        %1667 = vmatpush1.msra.mxu0 0.0
        %1668 = vmatprep.subr.mxu0 0.0
        %1669 = vmatpush1.msra.mxu0 0.0
        %1670 = vmatprep.subr.mxu0 0.0
        %1671 = vmatpush1.msra.mxu0 0.0
        %1672 = vmatprep.mubr.f32.mxu0 0.0
        %1673 = vmatmul.mubr.f32.gmra.mrb[0].mxu0 %v1602
        %v1674 = vpop.f32.mrb[0].mxu0
        %v1675 = vadd.f32 0.0, %v1674
        %v1676 = vpop.f32.mrb[0].mxu0
        %v1677 = vadd.f32 0.0, %v1676
        %1678 = vdwg.mxu0
        %v1679 = vadd.f32 %v1586, %v1675
        %v1680 = vadd.f32 %v1588, %v1677
        %s1681 = scalar_lea.vmem [#allocation14], 18
        %v1682 = vld [vmem:[%s1681] ss:$8 sm:$0x3]
        %v1684 = vlaneseq
        %v1685 = vshrl.u32 %v1684, 7
        %v1686 = vsub.s32 0, %v1685
        %v1687 = vrot.slane %v1682, %v1686
        %v1688 = vlaneseq
        %v1689 = vshrl.u32 %v1688, 7
        %v1690 = vsub.s32 1, %v1689
        %v1691 = vrot.slane %v1682, %v1690
        %v1694 = vmul.f32 %v1679, %v1687
        %v1695 = vmul.f32 %v1680, %v1691
        %v1696 = vadd.f32 %v1410, %v1694
        %v1697 = vadd.f32 %v1411, %v1695
        %v1698 = vmax.f32 %v1696, 0.0
        %v1699 = vmax.f32 %v1697, 0.0
        %v1700 = vld [vmem:[%s5] sm:$0xff]
        %v1701 = vld [vmem:[%s5 + $0x8] sm:$0xff]
        %v1702 = vld [vmem:[%s8] sm:$0xff]
        %v1703 = vld [vmem:[%s8 + $0x8] sm:$0xff]
        %1705 = vset.pattern.permute.xlu0 0
        %1706 = vperm.xlu0 %1705, %v1702
        %v1707 = vpop.permute.xlu0 %1706
        %1710 = vset.pattern.permute.xlu0 0
        %1711 = vperm.xlu0 %1710, %v1703
        %v1712 = vpop.permute.xlu0 %1711
        %v1715 = vsel %vm859, %v1700, 0
        %v1718 = vsel %vm859, %v1701, 0
        %v1721 = vsel %vm863, %v1698, 0
        %v1724 = vsel %vm863, %v1699, 0
        %1726 = vmatprep.subr.mxu0 %v1724
        %1727 = vmatpush1.msra.mxu0 %v1721
        %1728 = vmatprep.subr.mxu0 0.0
        %1729 = vmatpush1.msra.mxu0 0.0
        %1730 = vmatprep.subr.mxu0 0.0
        %1731 = vmatpush1.msra.mxu0 0.0
        %1732 = vmatprep.subr.mxu0 0.0
        %1733 = vmatpush1.msra.mxu0 0.0
        %1734 = vmatprep.subr.mxu0 0.0
        %1735 = vmatpush1.msra.mxu0 0.0
        %1736 = vmatprep.subr.mxu0 0.0
        %1737 = vmatpush1.msra.mxu0 0.0
        %1738 = vmatprep.subr.mxu0 0.0
        %1739 = vmatpush1.msra.mxu0 0.0
        %1740 = vmatprep.subr.mxu0 0.0
        %1741 = vmatpush1.msra.mxu0 0.0
        %1742 = vmatprep.subr.mxu0 0.0
        %1743 = vmatpush1.msra.mxu0 0.0
        %1744 = vmatprep.subr.mxu0 0.0
        %1745 = vmatpush1.msra.mxu0 0.0
        %1746 = vmatprep.subr.mxu0 0.0
        %1747 = vmatpush1.msra.mxu0 0.0
        %1748 = vmatprep.subr.mxu0 0.0
        %1749 = vmatpush1.msra.mxu0 0.0
        %1750 = vmatprep.subr.mxu0 0.0
        %1751 = vmatpush1.msra.mxu0 0.0
        %1752 = vmatprep.subr.mxu0 0.0
        %1753 = vmatpush1.msra.mxu0 0.0
        %1754 = vmatprep.subr.mxu0 0.0
        %1755 = vmatpush1.msra.mxu0 0.0
        %1756 = vmatprep.subr.mxu0 0.0
        %1757 = vmatpush1.msra.mxu0 0.0
        %1758 = vmatprep.subr.mxu0 0.0
        %1759 = vmatpush1.msra.mxu0 0.0
        %1760 = vmatprep.subr.mxu0 0.0
        %1761 = vmatpush1.msra.mxu0 0.0
        %1762 = vmatprep.subr.mxu0 0.0
        %1763 = vmatpush1.msra.mxu0 0.0
        %1764 = vmatprep.subr.mxu0 0.0
        %1765 = vmatpush1.msra.mxu0 0.0
        %1766 = vmatprep.subr.mxu0 0.0
        %1767 = vmatpush1.msra.mxu0 0.0
        %1768 = vmatprep.subr.mxu0 0.0
        %1769 = vmatpush1.msra.mxu0 0.0
        %1770 = vmatprep.subr.mxu0 0.0
        %1771 = vmatpush1.msra.mxu0 0.0
        %1772 = vmatprep.subr.mxu0 0.0
        %1773 = vmatpush1.msra.mxu0 0.0
        %1774 = vmatprep.subr.mxu0 0.0
        %1775 = vmatpush1.msra.mxu0 0.0
        %1776 = vmatprep.subr.mxu0 0.0
        %1777 = vmatpush1.msra.mxu0 0.0
        %1778 = vmatprep.subr.mxu0 0.0
        %1779 = vmatpush1.msra.mxu0 0.0
        %1780 = vmatprep.subr.mxu0 0.0
        %1781 = vmatpush1.msra.mxu0 0.0
        %1782 = vmatprep.subr.mxu0 0.0
        %1783 = vmatpush1.msra.mxu0 0.0
        %1784 = vmatprep.subr.mxu0 0.0
        %1785 = vmatpush1.msra.mxu0 0.0
        %1786 = vmatprep.subr.mxu0 0.0
        %1787 = vmatpush1.msra.mxu0 0.0
        %1788 = vmatprep.subr.mxu0 0.0
        %1789 = vmatpush1.msra.mxu0 0.0
        %1790 = vmatprep.mubr.f32.mxu0 0.0
        %1791 = vmatmul.mubr.f32.gmra.mrb[0].mxu0 %v1715
        %v1792 = vpop.f32.mrb[0].mxu0
        %v1793 = vadd.f32 %v1707, %v1792
        %v1794 = vpop.f32.mrb[0].mxu0
        %v1795 = vadd.f32 %v1707, %v1794
        %1796 = vmatprep.mubr.f32.mxu0 0.0
        %1797 = vmatmul.mubr.f32.gmra.mrb[0].mxu0 %v1718
        %v1798 = vpop.f32.mrb[0].mxu0
        %v1799 = vadd.f32 %v1712, %v1798
        %v1800 = vpop.f32.mrb[0].mxu0
        %v1801 = vadd.f32 %v1712, %v1800
        %1802 = vdwg.mxu0
        %1807 = vrot.lane.b32.xlu0 %v1793, 16
        %v1808 = vpop.permute.xlu0 %1807
        %1809 = vrot.lane.b32.xlu0 %v1795, 16
        %v1810 = vpop.permute.xlu0 %1809
        %1811 = vrot.lane.b32.xlu0 %v1799, 16
        %v1812 = vpop.permute.xlu0 %1811
        %1813 = vrot.lane.b32.xlu0 %v1801, 16
        %v1814 = vpop.permute.xlu0 %1813
        %v1815 = vsel %vm809, %v1808, %v1810
        %v1816 = vsel %vm809, %v1812, %v1814
        %1823 = vst.msk [vmem:[#allocation2 + $0x8] sm:$0xff] %vm813, %v1808
        %1824 = vst [vmem:[#allocation2 + $0x10] sm:$0xff] %v1815
        %1825 = vst.msk [vmem:[#allocation2 + $0x18] sm:$0xff] %vm809, %v1810
        %1826 = vst.msk [vmem:[#allocation2 + $0x30] sm:$0xff] %vm813, %v1812
        %1827 = vst [vmem:[#allocation2 + $0x38] sm:$0xff] %v1816
        %1828 = vst.msk [vmem:[#allocation2 + $0x40] sm:$0xff] %vm809, %v1814
        %v1829 = vld [vmem:[%s8] sm:$0xff]
        %v1830 = vld [vmem:[%s8 + $0x8] sm:$0xff]
        %1832 = vset.pattern.permute.xlu0 1
        %1833 = vperm.xlu0 %1832, %v1829
        %v1834 = vpop.permute.xlu0 %1833
        %1837 = vset.pattern.permute.xlu0 1
        %1838 = vperm.xlu0 %1837, %v1830
        %v1839 = vpop.permute.xlu0 %1838
        %v1841 = vld [vmem:[#allocation2 + $0x8] sm:$0xff]
        %v1842 = vld [vmem:[#allocation2 + $0x10] sm:$0xff]
        %v1843 = vld [vmem:[#allocation2 + $0x18] sm:$0xff]
        %v1844 = vld [vmem:[#allocation2 + $0x30] sm:$0xff]
        %v1845 = vld [vmem:[#allocation2 + $0x38] sm:$0xff]
        %v1846 = vld [vmem:[#allocation2 + $0x40] sm:$0xff]
        %v1847 = vld [vmem:[#allocation8] sm:$0xff]
        %v1848 = vld [vmem:[#allocation8 + $0x8] sm:$0xff]
        %1850 = vset.pattern.permute.xlu0 0
        %1851 = vperm.xlu0 %1850, %v1847
        %v1852 = vpop.permute.xlu0 %1851
        %1855 = vset.pattern.permute.xlu0 0
        %1856 = vperm.xlu0 %1855, %v1848
        %v1857 = vpop.permute.xlu0 %1856
        %v1859 = vmul.f32 %v1841, %v1852
        %v1860 = vmul.f32 %v1842, %v1852
        %v1861 = vmul.f32 %v1843, %v1852
        %v1862 = vmul.f32 %v1844, %v1857
        %v1863 = vmul.f32 %v1845, %v1857
        %v1864 = vmul.f32 %v1846, %v1857
        %s1865 = scalar_lea.vmem [#allocation14], 7
        %v1866 = vld [vmem:[%s1865] ss:$8 sm:$0x3]
        %v1868 = vlaneseq
        %v1869 = vshrl.u32 %v1868, 7
        %v1870 = vsub.s32 0, %v1869
        %v1871 = vrot.slane %v1866, %v1870
        %v1872 = vlaneseq
        %v1873 = vshrl.u32 %v1872, 7
        %v1874 = vsub.s32 1, %v1873
        %v1875 = vrot.slane %v1866, %v1874
        %1876 = vrot.lane.b32.xlu0 %v1871, 14
        %v1877 = vpop.permute.xlu0 %1876
        %1878 = vrot.lane.b32.xlu0 %v1875, 14
        %v1879 = vpop.permute.xlu0 %1878
        %vm1880 = vcmask 113664
        %v1881 = vsel %vm1880, %v1877, %v1879
        %v1885 = vmul.f32 %v1859, %v1877
        %v1886 = vmul.f32 %v1860, %v1881
        %v1887 = vmul.f32 %v1861, %v1879
        %v1888 = vmul.f32 %v1862, %v1877
        %v1889 = vmul.f32 %v1863, %v1881
        %v1890 = vmul.f32 %v1864, %v1879
        %v1891 = vadd.f32 %v1834, %v1885
        %v1892 = vadd.f32 %v1834, %v1886
        %v1893 = vadd.f32 %v1834, %v1887
        %v1894 = vadd.f32 %v1839, %v1888
        %v1895 = vadd.f32 %v1839, %v1889
        %v1896 = vadd.f32 %v1839, %v1890
        %1897 = vset.pattern.permute.xlu0 1
        %1898 = vperm.xlu0 %1897, %v1847
        %v1899 = vpop.permute.xlu0 %1898
        %1901 = vset.pattern.permute.xlu0 1
        %1902 = vperm.xlu0 %1901, %v1848
        %v1903 = vpop.permute.xlu0 %1902
        %v1905 = vmul.f32 %v1841, %v1899
        %v1906 = vmul.f32 %v1842, %v1899
        %v1907 = vmul.f32 %v1843, %v1899
        %v1908 = vmul.f32 %v1844, %v1903
        %v1909 = vmul.f32 %v1845, %v1903
        %v1910 = vmul.f32 %v1846, %v1903
        %v1911 = vld [vmem:[%s1118] ss:$8 sm:$0x3]
        %v1913 = vlaneseq
        %v1914 = vshrl.u32 %v1913, 7
        %v1915 = vsub.s32 0, %v1914
        %v1916 = vrot.slane %v1911, %v1915
        %v1917 = vlaneseq
        %v1918 = vshrl.u32 %v1917, 7
        %v1919 = vsub.s32 1, %v1918
        %v1920 = vrot.slane %v1911, %v1919
        %1921 = vrot.lane.b32.xlu0 %v1916, 15
        %v1922 = vpop.permute.xlu0 %1921
        %1923 = vrot.lane.b32.xlu0 %v1920, 15
        %v1924 = vpop.permute.xlu0 %1923
        %vm1925 = vcmask 121856
        %v1926 = vsel %vm1925, %v1922, %v1924
        %v1930 = vmul.f32 %v1905, %v1922
        %v1931 = vmul.f32 %v1906, %v1926
        %v1932 = vmul.f32 %v1907, %v1924
        %v1933 = vmul.f32 %v1908, %v1922
        %v1934 = vmul.f32 %v1909, %v1926
        %v1935 = vmul.f32 %v1910, %v1924
        %1942 = vrot.lane.b32.xlu0 %v1930, 127
        %v1943 = vpop.permute.xlu0 %1942
        %1944 = vrot.lane.b32.xlu0 %v1931, 127
        %v1945 = vpop.permute.xlu0 %1944
        %1946 = vrot.lane.b32.xlu0 %v1932, 127
        %v1947 = vpop.permute.xlu0 %1946
        %1948 = vrot.lane.b32.xlu0 %v1933, 127
        %v1949 = vpop.permute.xlu0 %1948
        %1950 = vrot.lane.b32.xlu0 %v1934, 127
        %v1951 = vpop.permute.xlu0 %1950
        %1952 = vrot.lane.b32.xlu0 %v1935, 127
        %v1953 = vpop.permute.xlu0 %1952
        %v1954 = vsel %vm1509, %v1943, %v1945
        %v1955 = vsel %vm1509, %v1945, %v1947
        %v1956 = vsel %vm1509, %v1949, %v1951
        %v1957 = vsel %vm1509, %v1951, %v1953
        %v1964 = vadd.f32 %v1891, %v1954
        %v1965 = vadd.f32 %v1892, %v1955
        %v1966 = vadd.f32 %v1893, %v1947
        %v1967 = vadd.f32 %v1894, %v1956
        %v1968 = vadd.f32 %v1895, %v1957
        %v1969 = vadd.f32 %v1896, %v1953
        %1970 = vset.pattern.permute.xlu0 2
        %1971 = vperm.xlu0 %1970, %v1847
        %v1972 = vpop.permute.xlu0 %1971
        %1974 = vset.pattern.permute.xlu0 2
        %1975 = vperm.xlu0 %1974, %v1848
        %v1976 = vpop.permute.xlu0 %1975
        %v1978 = vmul.f32 %v1841, %v1972
        %v1979 = vmul.f32 %v1842, %v1972
        %v1980 = vmul.f32 %v1843, %v1972
        %v1981 = vmul.f32 %v1844, %v1976
        %v1982 = vmul.f32 %v1845, %v1976
        %v1983 = vmul.f32 %v1846, %v1976
        %v1984 = vld [vmem:[%s1395] ss:$8 sm:$0x3]
        %v1986 = vlaneseq
        %v1987 = vshrl.u32 %v1986, 7
        %v1988 = vsub.s32 0, %v1987
        %v1989 = vrot.slane %v1984, %v1988
        %v1990 = vlaneseq
        %v1991 = vshrl.u32 %v1990, 7
        %v1992 = vsub.s32 1, %v1991
        %v1993 = vrot.slane %v1984, %v1992
        %1994 = vrot.lane.b32.xlu0 %v1989, 16
        %v1995 = vpop.permute.xlu0 %1994
        %1996 = vrot.lane.b32.xlu0 %v1993, 16
        %v1997 = vpop.permute.xlu0 %1996
        %v1998 = vsel %vm809, %v1995, %v1997
        %v2002 = vmul.f32 %v1978, %v1995
        %v2003 = vmul.f32 %v1979, %v1998
        %v2004 = vmul.f32 %v1980, %v1997
        %v2005 = vmul.f32 %v1981, %v1995
        %v2006 = vmul.f32 %v1982, %v1998
        %v2007 = vmul.f32 %v1983, %v1997
        %2014 = vrot.lane.b32.xlu0 %v2002, 126
        %v2015 = vpop.permute.xlu0 %2014
        %2016 = vrot.lane.b32.xlu0 %v2003, 126
        %v2017 = vpop.permute.xlu0 %2016
        %2018 = vrot.lane.b32.xlu0 %v2004, 126
        %v2019 = vpop.permute.xlu0 %2018
        %2020 = vrot.lane.b32.xlu0 %v2005, 126
        %v2021 = vpop.permute.xlu0 %2020
        %2022 = vrot.lane.b32.xlu0 %v2006, 126
        %v2023 = vpop.permute.xlu0 %2022
        %2024 = vrot.lane.b32.xlu0 %v2007, 126
        %v2025 = vpop.permute.xlu0 %2024
        %vm2026 = vcmask 1031168
        %v2027 = vsel %vm2026, %v2015, %v2017
        %v2028 = vsel %vm2026, %v2017, %v2019
        %v2029 = vsel %vm2026, %v2021, %v2023
        %v2030 = vsel %vm2026, %v2023, %v2025
        %v2037 = vadd.f32 %v1964, %v2027
        %v2038 = vadd.f32 %v1965, %v2028
        %v2039 = vadd.f32 %v1966, %v2019
        %v2040 = vadd.f32 %v1967, %v2029
        %v2041 = vadd.f32 %v1968, %v2030
        %v2042 = vadd.f32 %v1969, %v2025
        %2043 = vset.pattern.permute.xlu0 3
        %2044 = vperm.xlu0 %2043, %v1847
        %v2045 = vpop.permute.xlu0 %2044
        %2047 = vset.pattern.permute.xlu0 3
        %2048 = vperm.xlu0 %2047, %v1848
        %v2049 = vpop.permute.xlu0 %2048
        %v2051 = vmul.f32 %v1841, %v2045
        %v2052 = vmul.f32 %v1842, %v2045
        %v2053 = vmul.f32 %v1843, %v2045
        %v2054 = vmul.f32 %v1844, %v2049
        %v2055 = vmul.f32 %v1845, %v2049
        %v2056 = vmul.f32 %v1846, %v2049
        %v2057 = vld [vmem:[%s1681] ss:$8 sm:$0x3]
        %v2059 = vlaneseq
        %v2060 = vshrl.u32 %v2059, 7
        %v2061 = vsub.s32 0, %v2060
        %v2062 = vrot.slane %v2057, %v2061
        %v2063 = vlaneseq
        %v2064 = vshrl.u32 %v2063, 7
        %v2065 = vsub.s32 1, %v2064
        %v2066 = vrot.slane %v2057, %v2065
        %2067 = vrot.lane.b32.xlu0 %v2062, 17
        %v2068 = vpop.permute.xlu0 %2067
        %2069 = vrot.lane.b32.xlu0 %v2066, 17
        %v2070 = vpop.permute.xlu0 %2069
        %vm2071 = vcmask 138240
        %v2072 = vsel %vm2071, %v2068, %v2070
        %v2076 = vmul.f32 %v2051, %v2068
        %v2077 = vmul.f32 %v2052, %v2072
        %v2078 = vmul.f32 %v2053, %v2070
        %v2079 = vmul.f32 %v2054, %v2068
        %v2080 = vmul.f32 %v2055, %v2072
        %v2081 = vmul.f32 %v2056, %v2070
        %2088 = vrot.lane.b32.xlu0 %v2076, 125
        %v2089 = vpop.permute.xlu0 %2088
        %2090 = vrot.lane.b32.xlu0 %v2077, 125
        %v2091 = vpop.permute.xlu0 %2090
        %2092 = vrot.lane.b32.xlu0 %v2078, 125
        %v2093 = vpop.permute.xlu0 %2092
        %2094 = vrot.lane.b32.xlu0 %v2079, 125
        %v2095 = vpop.permute.xlu0 %2094
        %2096 = vrot.lane.b32.xlu0 %v2080, 125
        %v2097 = vpop.permute.xlu0 %2096
        %2098 = vrot.lane.b32.xlu0 %v2081, 125
        %v2099 = vpop.permute.xlu0 %2098
        %vm2100 = vcmask 1022976
        %v2101 = vsel %vm2100, %v2089, %v2091
        %v2102 = vsel %vm2100, %v2091, %v2093
        %v2103 = vsel %vm2100, %v2095, %v2097
        %v2104 = vsel %vm2100, %v2097, %v2099
        %v2111 = vadd.f32 %v2037, %v2101
        %v2112 = vadd.f32 %v2038, %v2102
        %v2113 = vadd.f32 %v2039, %v2093
        %v2114 = vadd.f32 %v2040, %v2103
        %v2115 = vadd.f32 %v2041, %v2104
        %v2116 = vadd.f32 %v2042, %v2099
        %2117 = vset.pattern.permute.xlu0 4
        %2118 = vperm.xlu0 %2117, %v1847
        %v2119 = vpop.permute.xlu0 %2118
        %2121 = vset.pattern.permute.xlu0 4
        %2122 = vperm.xlu0 %2121, %v1848
        %v2123 = vpop.permute.xlu0 %2122
        %v2125 = vmul.f32 %v1841, %v2119
        %v2126 = vmul.f32 %v1842, %v2119
        %v2127 = vmul.f32 %v1843, %v2119
        %v2128 = vmul.f32 %v1844, %v2123
        %v2129 = vmul.f32 %v1845, %v2123
        %v2130 = vmul.f32 %v1846, %v2123
        %s2131 = scalar_lea.vmem [#allocation14], 19
        %v2132 = vld [vmem:[%s2131] ss:$8 sm:$0x3]
        %v2134 = vlaneseq
        %v2135 = vshrl.u32 %v2134, 7
        %v2136 = vsub.s32 0, %v2135
        %v2137 = vrot.slane %v2132, %v2136
        %v2138 = vlaneseq
        %v2139 = vshrl.u32 %v2138, 7
        %v2140 = vsub.s32 1, %v2139
        %v2141 = vrot.slane %v2132, %v2140
        %2142 = vrot.lane.b32.xlu0 %v2137, 18
        %v2143 = vpop.permute.xlu0 %2142
        %2144 = vrot.lane.b32.xlu0 %v2141, 18
        %v2145 = vpop.permute.xlu0 %2144
        %vm2146 = vcmask 146432
        %v2147 = vsel %vm2146, %v2143, %v2145
        %v2151 = vmul.f32 %v2125, %v2143
        %v2152 = vmul.f32 %v2126, %v2147
        %v2153 = vmul.f32 %v2127, %v2145
        %v2154 = vmul.f32 %v2128, %v2143
        %v2155 = vmul.f32 %v2129, %v2147
        %v2156 = vmul.f32 %v2130, %v2145
        %2163 = vrot.lane.b32.xlu0 %v2151, 124
        %v2164 = vpop.permute.xlu0 %2163
        %2165 = vrot.lane.b32.xlu0 %v2152, 124
        %v2166 = vpop.permute.xlu0 %2165
        %2167 = vrot.lane.b32.xlu0 %v2153, 124
        %v2168 = vpop.permute.xlu0 %2167
        %2169 = vrot.lane.b32.xlu0 %v2154, 124
        %v2170 = vpop.permute.xlu0 %2169
        %2171 = vrot.lane.b32.xlu0 %v2155, 124
        %v2172 = vpop.permute.xlu0 %2171
        %2173 = vrot.lane.b32.xlu0 %v2156, 124
        %v2174 = vpop.permute.xlu0 %2173
        %vm2175 = vcmask 1014784
        %v2176 = vsel %vm2175, %v2164, %v2166
        %v2177 = vsel %vm2175, %v2166, %v2168
        %v2178 = vsel %vm2175, %v2170, %v2172
        %v2179 = vsel %vm2175, %v2172, %v2174
        %v2186 = vadd.f32 %v2111, %v2176
        %v2187 = vadd.f32 %v2112, %v2177
        %v2188 = vadd.f32 %v2113, %v2168
        %v2189 = vadd.f32 %v2114, %v2178
        %v2190 = vadd.f32 %v2115, %v2179
        %v2191 = vadd.f32 %v2116, %v2174
        %2198 = vrot.lane.b32.xlu0 %v2186, 2
        %v2199 = vpop.permute.xlu0 %2198
        %2200 = vrot.lane.b32.xlu0 %v2187, 2
        %v2201 = vpop.permute.xlu0 %2200
        %2202 = vrot.lane.b32.xlu0 %v2188, 2
        %v2203 = vpop.permute.xlu0 %2202
        %2204 = vrot.lane.b32.xlu0 %v2189, 2
        %v2205 = vpop.permute.xlu0 %2204
        %2206 = vrot.lane.b32.xlu0 %v2190, 2
        %v2207 = vpop.permute.xlu0 %2206
        %2208 = vrot.lane.b32.xlu0 %v2191, 2
        %v2209 = vpop.permute.xlu0 %2208
        %vm2210 = vcmask 15360
        %v2211 = vsel %vm2210, %v2199, %v2201
        %v2212 = vsel %vm2210, %v2201, %v2203
        %v2213 = vsel %vm2210, %v2205, %v2207
        %v2214 = vsel %vm2210, %v2207, %v2209
        %2221 = vst.msk [vmem:[#allocation2 + $0x8] sm:$0xff] %vm813, %v2199
        %2222 = vst [vmem:[#allocation2 + $0x10] sm:$0xff] %v2211
        %2223 = vst.msk [vmem:[#allocation2 + $0x18] sm:$0xff] %vm809, %v2212
        %2224 = vst.msk [vmem:[#allocation2 + $0x30] sm:$0xff] %vm813, %v2205
        %2225 = vst [vmem:[#allocation2 + $0x38] sm:$0xff] %v2213
        %2226 = vst.msk [vmem:[#allocation2 + $0x40] sm:$0xff] %vm809, %v2214
        %v2227 = vld [vmem:[%s8] sm:$0xff]
        %v2228 = vld [vmem:[%s8 + $0x8] sm:$0xff]
        %2230 = vset.pattern.permute.xlu0 2
        %2231 = vperm.xlu0 %2230, %v2227
        %v2232 = vpop.permute.xlu0 %2231
        %2235 = vset.pattern.permute.xlu0 2
        %2236 = vperm.xlu0 %2235, %v2228
        %v2237 = vpop.permute.xlu0 %2236
        %v2239 = vld [vmem:[#allocation2] sm:$0xff]
        %v2240 = vld [vmem:[#allocation2 + $0x8] sm:$0xff]
        %v2241 = vld [vmem:[#allocation2 + $0x10] sm:$0xff]
        %v2242 = vld [vmem:[#allocation2 + $0x28] sm:$0xff]
        %v2243 = vld [vmem:[#allocation2 + $0x30] sm:$0xff]
        %v2244 = vld [vmem:[#allocation2 + $0x38] sm:$0xff]
        %v2245 = vld [vmem:[#allocation8] sm:$0xff]
        %v2246 = vld [vmem:[#allocation8 + $0x8] sm:$0xff]
        %2248 = vset.pattern.permute.xlu0 5
        %2249 = vperm.xlu0 %2248, %v2245
        %v2250 = vpop.permute.xlu0 %2249
        %2253 = vset.pattern.permute.xlu0 5
        %2254 = vperm.xlu0 %2253, %v2246
        %v2255 = vpop.permute.xlu0 %2254
        %v2257 = vmul.f32 %v2239, %v2250
        %v2258 = vmul.f32 %v2240, %v2250
        %v2259 = vmul.f32 %v2241, %v2250
        %v2260 = vmul.f32 %v2242, %v2255
        %v2261 = vmul.f32 %v2243, %v2255
        %v2262 = vmul.f32 %v2244, %v2255
        %v2263 = vadd.f32 %v2232, %v2257
        %v2264 = vadd.f32 %v2232, %v2258
        %v2265 = vadd.f32 %v2232, %v2259
        %v2266 = vadd.f32 %v2237, %v2260
        %v2267 = vadd.f32 %v2237, %v2261
        %v2268 = vadd.f32 %v2237, %v2262
        %2269 = vset.pattern.permute.xlu0 6
        %2270 = vperm.xlu0 %2269, %v2245
        %v2271 = vpop.permute.xlu0 %2270
        %2273 = vset.pattern.permute.xlu0 6
        %2274 = vperm.xlu0 %2273, %v2246
        %v2275 = vpop.permute.xlu0 %2274
        %v2277 = vmul.f32 %v2240, %v2271
        %v2278 = vmul.f32 %v2241, %v2271
        %v2279 = vmul.f32 %v2243, %v2275
        %v2280 = vmul.f32 %v2244, %v2275
        %2285 = vrot.lane.b32.xlu0 %v2277, 112
        %v2286 = vpop.permute.xlu0 %2285
        %2287 = vrot.lane.b32.xlu0 %v2278, 112
        %v2288 = vpop.permute.xlu0 %2287
        %2289 = vrot.lane.b32.xlu0 %v2279, 112
        %v2290 = vpop.permute.xlu0 %2289
        %2291 = vrot.lane.b32.xlu0 %v2280, 112
        %v2292 = vpop.permute.xlu0 %2291
        %v2293 = vsel %vm1145, %v2286, %v2288
        %v2294 = vsel %vm1145, %v2290, %v2292
        %v2301 = vadd.f32 %v2263, %v2286
        %v2302 = vadd.f32 %v2264, %v2293
        %v2303 = vadd.f32 %v2265, %v2288
        %v2304 = vadd.f32 %v2266, %v2290
        %v2305 = vadd.f32 %v2267, %v2294
        %v2306 = vadd.f32 %v2268, %v2292
        %v2307 = vld [vmem:[#allocation2 + $0x8] sm:$0xff]
        %v2308 = vld [vmem:[#allocation2 + $0x10] sm:$0xff]
        %v2309 = vld [vmem:[#allocation2 + $0x18] sm:$0xff]
        %v2310 = vld [vmem:[#allocation2 + $0x30] sm:$0xff]
        %v2311 = vld [vmem:[#allocation2 + $0x38] sm:$0xff]
        %v2312 = vld [vmem:[#allocation2 + $0x40] sm:$0xff]
        %2313 = vset.pattern.permute.xlu0 7
        %2314 = vperm.xlu0 %2313, %v2245
        %v2315 = vpop.permute.xlu0 %2314
        %2317 = vset.pattern.permute.xlu0 7
        %2318 = vperm.xlu0 %2317, %v2246
        %v2319 = vpop.permute.xlu0 %2318
        %v2321 = vmul.f32 %v2307, %v2315
        %v2322 = vmul.f32 %v2308, %v2315
        %v2323 = vmul.f32 %v2309, %v2315
        %v2324 = vmul.f32 %v2310, %v2319
        %v2325 = vmul.f32 %v2311, %v2319
        %v2326 = vmul.f32 %v2312, %v2319
        %2333 = vrot.lane.b32.xlu0 %v2321, 96
        %v2334 = vpop.permute.xlu0 %2333
        %2335 = vrot.lane.b32.xlu0 %v2322, 96
        %v2336 = vpop.permute.xlu0 %2335
        %2337 = vrot.lane.b32.xlu0 %v2323, 96
        %v2338 = vpop.permute.xlu0 %2337
        %2339 = vrot.lane.b32.xlu0 %v2324, 96
        %v2340 = vpop.permute.xlu0 %2339
        %2341 = vrot.lane.b32.xlu0 %v2325, 96
        %v2342 = vpop.permute.xlu0 %2341
        %2343 = vrot.lane.b32.xlu0 %v2326, 96
        %v2344 = vpop.permute.xlu0 %2343
        %v2345 = vsel %vm1312, %v2334, %v2336
        %v2346 = vsel %vm1312, %v2336, %v2338
        %v2347 = vsel %vm1312, %v2340, %v2342
        %v2348 = vsel %vm1312, %v2342, %v2344
        %v2355 = vadd.f32 %v2301, %v2334
        %v2356 = vadd.f32 %v2302, %v2345
        %v2357 = vadd.f32 %v2303, %v2346
        %v2358 = vadd.f32 %v2304, %v2340
        %v2359 = vadd.f32 %v2305, %v2347
        %v2360 = vadd.f32 %v2306, %v2348
        %2361 = vset.pattern.permute.xlu0 8
        %2362 = vperm.xlu0 %2361, %v2245
        %v2363 = vpop.permute.xlu0 %2362
        %2365 = vset.pattern.permute.xlu0 8
        %2366 = vperm.xlu0 %2365, %v2246
        %v2367 = vpop.permute.xlu0 %2366
        %v2369 = vmul.f32 %v2307, %v2363
        %v2370 = vmul.f32 %v2308, %v2363
        %v2371 = vmul.f32 %v2309, %v2363
        %v2372 = vmul.f32 %v2310, %v2367
        %v2373 = vmul.f32 %v2311, %v2367
        %v2374 = vmul.f32 %v2312, %v2367
        %2381 = vrot.lane.b32.xlu0 %v2369, 80
        %v2382 = vpop.permute.xlu0 %2381
        %2383 = vrot.lane.b32.xlu0 %v2370, 80
        %v2384 = vpop.permute.xlu0 %2383
        %2385 = vrot.lane.b32.xlu0 %v2371, 80
        %v2386 = vpop.permute.xlu0 %2385
        %2387 = vrot.lane.b32.xlu0 %v2372, 80
        %v2388 = vpop.permute.xlu0 %2387
        %2389 = vrot.lane.b32.xlu0 %v2373, 80
        %v2390 = vpop.permute.xlu0 %2389
        %2391 = vrot.lane.b32.xlu0 %v2374, 80
        %v2392 = vpop.permute.xlu0 %2391
        %vm2393 = vcmask 654336
        %v2394 = vsel %vm2393, %v2382, %v2384
        %v2395 = vsel %vm2393, %v2384, %v2386
        %v2396 = vsel %vm2393, %v2388, %v2390
        %v2397 = vsel %vm2393, %v2390, %v2392
        %v2404 = vadd.f32 %v2355, %v2382
        %v2405 = vadd.f32 %v2356, %v2394
        %v2406 = vadd.f32 %v2357, %v2395
        %v2407 = vadd.f32 %v2358, %v2388
        %v2408 = vadd.f32 %v2359, %v2396
        %v2409 = vadd.f32 %v2360, %v2397
        %2410 = vset.pattern.permute.xlu0 9
        %2411 = vperm.xlu0 %2410, %v2245
        %v2412 = vpop.permute.xlu0 %2411
        %2414 = vset.pattern.permute.xlu0 9
        %2415 = vperm.xlu0 %2414, %v2246
        %v2416 = vpop.permute.xlu0 %2415
        %v2418 = vmul.f32 %v2307, %v2412
        %v2419 = vmul.f32 %v2308, %v2412
        %v2420 = vmul.f32 %v2309, %v2412
        %v2421 = vmul.f32 %v2310, %v2416
        %v2422 = vmul.f32 %v2311, %v2416
        %v2423 = vmul.f32 %v2312, %v2416
        %2430 = vrot.lane.b32.xlu0 %v2418, 64
        %v2431 = vpop.permute.xlu0 %2430
        %2432 = vrot.lane.b32.xlu0 %v2419, 64
        %v2433 = vpop.permute.xlu0 %2432
        %2434 = vrot.lane.b32.xlu0 %v2420, 64
        %v2435 = vpop.permute.xlu0 %2434
        %2436 = vrot.lane.b32.xlu0 %v2421, 64
        %v2437 = vpop.permute.xlu0 %2436
        %2438 = vrot.lane.b32.xlu0 %v2422, 64
        %v2439 = vpop.permute.xlu0 %2438
        %2440 = vrot.lane.b32.xlu0 %v2423, 64
        %v2441 = vpop.permute.xlu0 %2440
        %vm2442 = vcmask 523264
        %v2443 = vsel %vm2442, %v2431, %v2433
        %v2444 = vsel %vm2442, %v2433, %v2435
        %v2445 = vsel %vm2442, %v2437, %v2439
        %v2446 = vsel %vm2442, %v2439, %v2441
        %v2453 = vadd.f32 %v2404, %v2431
        %v2454 = vadd.f32 %v2405, %v2443
        %v2455 = vadd.f32 %v2406, %v2444
        %v2456 = vadd.f32 %v2407, %v2437
        %v2457 = vadd.f32 %v2408, %v2445
        %v2458 = vadd.f32 %v2409, %v2446
        %2465 = vrot.lane.b32.xlu0 %v2453, 32
        %v2466 = vpop.permute.xlu0 %2465
        %2467 = vrot.lane.b32.xlu0 %v2454, 32
        %v2468 = vpop.permute.xlu0 %2467
        %2469 = vrot.lane.b32.xlu0 %v2455, 32
        %v2470 = vpop.permute.xlu0 %2469
        %2471 = vrot.lane.b32.xlu0 %v2456, 32
        %v2472 = vpop.permute.xlu0 %2471
        %2473 = vrot.lane.b32.xlu0 %v2457, 32
        %v2474 = vpop.permute.xlu0 %2473
        %2475 = vrot.lane.b32.xlu0 %v2458, 32
        %v2476 = vpop.permute.xlu0 %2475
        %v2477 = vsel %vm815, %v2466, %v2468
        %v2478 = vsel %vm815, %v2468, %v2470
        %v2479 = vsel %vm815, %v2472, %v2474
        %v2480 = vsel %vm815, %v2474, %v2476
        %2487 = vst.msk [vmem:[#allocation2 + $0x8] sm:$0xff] %vm813, %v2477
        %2488 = vst [vmem:[#allocation2 + $0x10] sm:$0xff] %v2478
        %2489 = vst.msk [vmem:[#allocation2 + $0x18] sm:$0xff] %vm809, %v2470
        %2490 = vst.msk [vmem:[#allocation2 + $0x30] sm:$0xff] %vm813, %v2479
        %2491 = vst [vmem:[#allocation2 + $0x38] sm:$0xff] %v2480
        %2492 = vst.msk [vmem:[#allocation2 + $0x40] sm:$0xff] %vm809, %v2476
        %v2493 = vld [vmem:[%s8] sm:$0xff]
        %v2494 = vld [vmem:[%s8 + $0x8] sm:$0xff]
        %2496 = vset.pattern.permute.xlu0 3
        %2497 = vperm.xlu0 %2496, %v2493
        %v2498 = vpop.permute.xlu0 %2497
        %2501 = vset.pattern.permute.xlu0 3
        %2502 = vperm.xlu0 %2501, %v2494
        %v2503 = vpop.permute.xlu0 %2502
        %v2505 = vld [vmem:[#allocation2 + $0x8] sm:$0xff]
        %v2506 = vld [vmem:[#allocation2 + $0x10] sm:$0xff]
        %v2507 = vld [vmem:[#allocation2 + $0x18] sm:$0xff]
        %v2508 = vld [vmem:[#allocation2 + $0x30] sm:$0xff]
        %v2509 = vld [vmem:[#allocation2 + $0x38] sm:$0xff]
        %v2510 = vld [vmem:[#allocation2 + $0x40] sm:$0xff]
        %v2511 = vld [vmem:[#allocation8] sm:$0xff]
        %v2512 = vld [vmem:[#allocation8 + $0x8] sm:$0xff]
        %2514 = vset.pattern.permute.xlu0 10
        %2515 = vperm.xlu0 %2514, %v2511
        %v2516 = vpop.permute.xlu0 %2515
        %2519 = vset.pattern.permute.xlu0 10
        %2520 = vperm.xlu0 %2519, %v2512
        %v2521 = vpop.permute.xlu0 %2520
        %v2523 = vmul.f32 %v2505, %v2516
        %v2524 = vmul.f32 %v2506, %v2516
        %v2525 = vmul.f32 %v2507, %v2516
        %v2526 = vmul.f32 %v2508, %v2521
        %v2527 = vmul.f32 %v2509, %v2521
        %v2528 = vmul.f32 %v2510, %v2521
        %v2529 = vld [vmem:[#allocation14] ss:$8 sm:$0x3]
        %v2531 = vlaneseq
        %v2532 = vshrl.u32 %v2531, 7
        %v2533 = vsub.s32 0, %v2532
        %v2534 = vrot.slane %v2529, %v2533
        %v2535 = vlaneseq
        %v2536 = vshrl.u32 %v2535, 7
        %v2537 = vsub.s32 1, %v2536
        %v2538 = vrot.slane %v2529, %v2537
        %2539 = vrot.lane.b32.xlu0 %v2534, 7
        %v2540 = vpop.permute.xlu0 %2539
        %2541 = vrot.lane.b32.xlu0 %v2538, 7
        %v2542 = vpop.permute.xlu0 %2541
        %vm2543 = vcmask 56320
        %v2544 = vsel %vm2543, %v2540, %v2542
        %v2548 = vmul.f32 %v2523, %v2540
        %v2549 = vmul.f32 %v2524, %v2544
        %v2550 = vmul.f32 %v2525, %v2542
        %v2551 = vmul.f32 %v2526, %v2540
        %v2552 = vmul.f32 %v2527, %v2544
        %v2553 = vmul.f32 %v2528, %v2542
        %v2554 = vadd.f32 %v2498, %v2548
        %v2555 = vadd.f32 %v2498, %v2549
        %v2556 = vadd.f32 %v2498, %v2550
        %v2557 = vadd.f32 %v2503, %v2551
        %v2558 = vadd.f32 %v2503, %v2552
        %v2559 = vadd.f32 %v2503, %v2553
        %2560 = vset.pattern.permute.xlu0 11
        %2561 = vperm.xlu0 %2560, %v2511
        %v2562 = vpop.permute.xlu0 %2561
        %2564 = vset.pattern.permute.xlu0 11
        %2565 = vperm.xlu0 %2564, %v2512
        %v2566 = vpop.permute.xlu0 %2565
        %v2568 = vmul.f32 %v2505, %v2562
        %v2569 = vmul.f32 %v2506, %v2562
        %v2570 = vmul.f32 %v2507, %v2562
        %v2571 = vmul.f32 %v2508, %v2566
        %v2572 = vmul.f32 %v2509, %v2566
        %v2573 = vmul.f32 %v2510, %v2566
        %s2574 = scalar_lea.vmem [#allocation14], 3
        %v2575 = vld [vmem:[%s2574] ss:$8 sm:$0x3]
        %v2577 = vlaneseq
        %v2578 = vshrl.u32 %v2577, 7
        %v2579 = vsub.s32 0, %v2578
        %v2580 = vrot.slane %v2575, %v2579
        %v2581 = vlaneseq
        %v2582 = vshrl.u32 %v2581, 7
        %v2583 = vsub.s32 1, %v2582
        %v2584 = vrot.slane %v2575, %v2583
        %2585 = vrot.lane.b32.xlu0 %v2580, 10
        %v2586 = vpop.permute.xlu0 %2585
        %2587 = vrot.lane.b32.xlu0 %v2584, 10
        %v2588 = vpop.permute.xlu0 %2587
        %vm2589 = vcmask 80896
        %v2590 = vsel %vm2589, %v2586, %v2588
        %v2594 = vmul.f32 %v2568, %v2586
        %v2595 = vmul.f32 %v2569, %v2590
        %v2596 = vmul.f32 %v2570, %v2588
        %v2597 = vmul.f32 %v2571, %v2586
        %v2598 = vmul.f32 %v2572, %v2590
        %v2599 = vmul.f32 %v2573, %v2588
        %2606 = vrot.lane.b32.xlu0 %v2594, 125
        %v2607 = vpop.permute.xlu0 %2606
        %2608 = vrot.lane.b32.xlu0 %v2595, 125
        %v2609 = vpop.permute.xlu0 %2608
        %2610 = vrot.lane.b32.xlu0 %v2596, 125
        %v2611 = vpop.permute.xlu0 %2610
        %2612 = vrot.lane.b32.xlu0 %v2597, 125
        %v2613 = vpop.permute.xlu0 %2612
        %2614 = vrot.lane.b32.xlu0 %v2598, 125
        %v2615 = vpop.permute.xlu0 %2614
        %2616 = vrot.lane.b32.xlu0 %v2599, 125
        %v2617 = vpop.permute.xlu0 %2616
        %v2618 = vsel %vm2100, %v2607, %v2609
        %v2619 = vsel %vm2100, %v2609, %v2611
        %v2620 = vsel %vm2100, %v2613, %v2615
        %v2621 = vsel %vm2100, %v2615, %v2617
        %v2628 = vadd.f32 %v2554, %v2618
        %v2629 = vadd.f32 %v2555, %v2619
        %v2630 = vadd.f32 %v2556, %v2611
        %v2631 = vadd.f32 %v2557, %v2620
        %v2632 = vadd.f32 %v2558, %v2621
        %v2633 = vadd.f32 %v2559, %v2617
        %2634 = vset.pattern.permute.xlu0 12
        %2635 = vperm.xlu0 %2634, %v2511
        %v2636 = vpop.permute.xlu0 %2635
        %2638 = vset.pattern.permute.xlu0 12
        %2639 = vperm.xlu0 %2638, %v2512
        %v2640 = vpop.permute.xlu0 %2639
        %v2642 = vmul.f32 %v2505, %v2636
        %v2643 = vmul.f32 %v2506, %v2636
        %v2644 = vmul.f32 %v2507, %v2636
        %v2645 = vmul.f32 %v2508, %v2640
        %v2646 = vmul.f32 %v2509, %v2640
        %v2647 = vmul.f32 %v2510, %v2640
        %s2648 = scalar_lea.vmem [#allocation14], 6
        %v2649 = vld [vmem:[%s2648] ss:$8 sm:$0x3]
        %v2651 = vlaneseq
        %v2652 = vshrl.u32 %v2651, 7
        %v2653 = vsub.s32 0, %v2652
        %v2654 = vrot.slane %v2649, %v2653
        %v2655 = vlaneseq
        %v2656 = vshrl.u32 %v2655, 7
        %v2657 = vsub.s32 1, %v2656
        %v2658 = vrot.slane %v2649, %v2657
        %2659 = vrot.lane.b32.xlu0 %v2654, 13
        %v2660 = vpop.permute.xlu0 %2659
        %2661 = vrot.lane.b32.xlu0 %v2658, 13
        %v2662 = vpop.permute.xlu0 %2661
        %vm2663 = vcmask 105472
        %v2664 = vsel %vm2663, %v2660, %v2662
        %v2668 = vmul.f32 %v2642, %v2660
        %v2669 = vmul.f32 %v2643, %v2664
        %v2670 = vmul.f32 %v2644, %v2662
        %v2671 = vmul.f32 %v2645, %v2660
        %v2672 = vmul.f32 %v2646, %v2664
        %v2673 = vmul.f32 %v2647, %v2662
        %2680 = vrot.lane.b32.xlu0 %v2668, 122
        %v2681 = vpop.permute.xlu0 %2680
        %2682 = vrot.lane.b32.xlu0 %v2669, 122
        %v2683 = vpop.permute.xlu0 %2682
        %2684 = vrot.lane.b32.xlu0 %v2670, 122
        %v2685 = vpop.permute.xlu0 %2684
        %2686 = vrot.lane.b32.xlu0 %v2671, 122
        %v2687 = vpop.permute.xlu0 %2686
        %2688 = vrot.lane.b32.xlu0 %v2672, 122
        %v2689 = vpop.permute.xlu0 %2688
        %2690 = vrot.lane.b32.xlu0 %v2673, 122
        %v2691 = vpop.permute.xlu0 %2690
        %vm2692 = vcmask 998400
        %v2693 = vsel %vm2692, %v2681, %v2683
        %v2694 = vsel %vm2692, %v2683, %v2685
        %v2695 = vsel %vm2692, %v2687, %v2689
        %v2696 = vsel %vm2692, %v2689, %v2691
        %v2703 = vadd.f32 %v2628, %v2693
        %v2704 = vadd.f32 %v2629, %v2694
        %v2705 = vadd.f32 %v2630, %v2685
        %v2706 = vadd.f32 %v2631, %v2695
        %v2707 = vadd.f32 %v2632, %v2696
        %v2708 = vadd.f32 %v2633, %v2691
        %2709 = vset.pattern.permute.xlu0 13
        %2710 = vperm.xlu0 %2709, %v2511
        %v2711 = vpop.permute.xlu0 %2710
        %2713 = vset.pattern.permute.xlu0 13
        %2714 = vperm.xlu0 %2713, %v2512
        %v2715 = vpop.permute.xlu0 %2714
        %v2717 = vmul.f32 %v2505, %v2711
        %v2718 = vmul.f32 %v2506, %v2711
        %v2719 = vmul.f32 %v2507, %v2711
        %v2720 = vmul.f32 %v2508, %v2715
        %v2721 = vmul.f32 %v2509, %v2715
        %v2722 = vmul.f32 %v2510, %v2715
        %v2723 = vld [vmem:[%s1395] ss:$8 sm:$0x3]
        %v2725 = vlaneseq
        %v2726 = vshrl.u32 %v2725, 7
        %v2727 = vsub.s32 0, %v2726
        %v2728 = vrot.slane %v2723, %v2727
        %v2729 = vlaneseq
        %v2730 = vshrl.u32 %v2729, 7
        %v2731 = vsub.s32 1, %v2730
        %v2732 = vrot.slane %v2723, %v2731
        %2733 = vrot.lane.b32.xlu0 %v2728, 16
        %v2734 = vpop.permute.xlu0 %2733
        %2735 = vrot.lane.b32.xlu0 %v2732, 16
        %v2736 = vpop.permute.xlu0 %2735
        %v2737 = vsel %vm809, %v2734, %v2736
        %v2741 = vmul.f32 %v2717, %v2734
        %v2742 = vmul.f32 %v2718, %v2737
        %v2743 = vmul.f32 %v2719, %v2736
        %v2744 = vmul.f32 %v2720, %v2734
        %v2745 = vmul.f32 %v2721, %v2737
        %v2746 = vmul.f32 %v2722, %v2736
        %2753 = vrot.lane.b32.xlu0 %v2741, 119
        %v2754 = vpop.permute.xlu0 %2753
        %2755 = vrot.lane.b32.xlu0 %v2742, 119
        %v2756 = vpop.permute.xlu0 %2755
        %2757 = vrot.lane.b32.xlu0 %v2743, 119
        %v2758 = vpop.permute.xlu0 %2757
        %2759 = vrot.lane.b32.xlu0 %v2744, 119
        %v2760 = vpop.permute.xlu0 %2759
        %2761 = vrot.lane.b32.xlu0 %v2745, 119
        %v2762 = vpop.permute.xlu0 %2761
        %2763 = vrot.lane.b32.xlu0 %v2746, 119
        %v2764 = vpop.permute.xlu0 %2763
        %vm2765 = vcmask 973824
        %v2766 = vsel %vm2765, %v2754, %v2756
        %v2767 = vsel %vm2765, %v2756, %v2758
        %v2768 = vsel %vm2765, %v2760, %v2762
        %v2769 = vsel %vm2765, %v2762, %v2764
        %v2776 = vadd.f32 %v2703, %v2766
        %v2777 = vadd.f32 %v2704, %v2767
        %v2778 = vadd.f32 %v2705, %v2758
        %v2779 = vadd.f32 %v2706, %v2768
        %v2780 = vadd.f32 %v2707, %v2769
        %v2781 = vadd.f32 %v2708, %v2764
        %2782 = vset.pattern.permute.xlu0 14
        %2783 = vperm.xlu0 %2782, %v2511
        %v2784 = vpop.permute.xlu0 %2783
        %2786 = vset.pattern.permute.xlu0 14
        %2787 = vperm.xlu0 %2786, %v2512
        %v2788 = vpop.permute.xlu0 %2787
        %v2790 = vmul.f32 %v2505, %v2784
        %v2791 = vmul.f32 %v2506, %v2784
        %v2792 = vmul.f32 %v2507, %v2784
        %v2793 = vmul.f32 %v2508, %v2788
        %v2794 = vmul.f32 %v2509, %v2788
        %v2795 = vmul.f32 %v2510, %v2788
        %s2796 = scalar_lea.vmem [#allocation14], 20
        %v2797 = vld [vmem:[%s2796] ss:$8 sm:$0x3]
        %v2799 = vlaneseq
        %v2800 = vshrl.u32 %v2799, 7
        %v2801 = vsub.s32 0, %v2800
        %v2802 = vrot.slane %v2797, %v2801
        %v2803 = vlaneseq
        %v2804 = vshrl.u32 %v2803, 7
        %v2805 = vsub.s32 1, %v2804
        %v2806 = vrot.slane %v2797, %v2805
        %2807 = vrot.lane.b32.xlu0 %v2802, 19
        %v2808 = vpop.permute.xlu0 %2807
        %2809 = vrot.lane.b32.xlu0 %v2806, 19
        %v2810 = vpop.permute.xlu0 %2809
        %vm2811 = vcmask 154624
        %v2812 = vsel %vm2811, %v2808, %v2810
        %v2816 = vmul.f32 %v2790, %v2808
        %v2817 = vmul.f32 %v2791, %v2812
        %v2818 = vmul.f32 %v2792, %v2810
        %v2819 = vmul.f32 %v2793, %v2808
        %v2820 = vmul.f32 %v2794, %v2812
        %v2821 = vmul.f32 %v2795, %v2810
        %2828 = vrot.lane.b32.xlu0 %v2816, 116
        %v2829 = vpop.permute.xlu0 %2828
        %2830 = vrot.lane.b32.xlu0 %v2817, 116
        %v2831 = vpop.permute.xlu0 %2830
        %2832 = vrot.lane.b32.xlu0 %v2818, 116
        %v2833 = vpop.permute.xlu0 %2832
        %2834 = vrot.lane.b32.xlu0 %v2819, 116
        %v2835 = vpop.permute.xlu0 %2834
        %2836 = vrot.lane.b32.xlu0 %v2820, 116
        %v2837 = vpop.permute.xlu0 %2836
        %2838 = vrot.lane.b32.xlu0 %v2821, 116
        %v2839 = vpop.permute.xlu0 %2838
        %vm2840 = vcmask 949248
        %v2841 = vsel %vm2840, %v2829, %v2831
        %v2842 = vsel %vm2840, %v2831, %v2833
        %v2843 = vsel %vm2840, %v2835, %v2837
        %v2844 = vsel %vm2840, %v2837, %v2839
        %v2851 = vadd.f32 %v2776, %v2841
        %v2852 = vadd.f32 %v2777, %v2842
        %v2853 = vadd.f32 %v2778, %v2833
        %v2854 = vadd.f32 %v2779, %v2843
        %v2855 = vadd.f32 %v2780, %v2844
        %v2856 = vadd.f32 %v2781, %v2839
        %2857 = vset.pattern.permute.xlu0 15
        %2858 = vperm.xlu0 %2857, %v2511
        %v2859 = vpop.permute.xlu0 %2858
        %2861 = vset.pattern.permute.xlu0 15
        %2862 = vperm.xlu0 %2861, %v2512
        %v2863 = vpop.permute.xlu0 %2862
        %v2865 = vmul.f32 %v2505, %v2859
        %v2866 = vmul.f32 %v2506, %v2859
        %v2867 = vmul.f32 %v2507, %v2859
        %v2868 = vmul.f32 %v2508, %v2863
        %v2869 = vmul.f32 %v2509, %v2863
        %v2870 = vmul.f32 %v2510, %v2863
        %s2871 = scalar_lea.vmem [#allocation14], 23
        %v2872 = vld [vmem:[%s2871] ss:$8 sm:$0x3]
        %v2874 = vlaneseq
        %v2875 = vshrl.u32 %v2874, 7
        %v2876 = vsub.s32 0, %v2875
        %v2877 = vrot.slane %v2872, %v2876
        %v2878 = vlaneseq
        %v2879 = vshrl.u32 %v2878, 7
        %v2880 = vsub.s32 1, %v2879
        %v2881 = vrot.slane %v2872, %v2880
        %2882 = vrot.lane.b32.xlu0 %v2877, 22
        %v2883 = vpop.permute.xlu0 %2882
        %2884 = vrot.lane.b32.xlu0 %v2881, 22
        %v2885 = vpop.permute.xlu0 %2884
        %vm2886 = vcmask 179200
        %v2887 = vsel %vm2886, %v2883, %v2885
        %v2891 = vmul.f32 %v2865, %v2883
        %v2892 = vmul.f32 %v2866, %v2887
        %v2893 = vmul.f32 %v2867, %v2885
        %v2894 = vmul.f32 %v2868, %v2883
        %v2895 = vmul.f32 %v2869, %v2887
        %v2896 = vmul.f32 %v2870, %v2885
        %2903 = vrot.lane.b32.xlu0 %v2891, 113
        %v2904 = vpop.permute.xlu0 %2903
        %2905 = vrot.lane.b32.xlu0 %v2892, 113
        %v2906 = vpop.permute.xlu0 %2905
        %2907 = vrot.lane.b32.xlu0 %v2893, 113
        %v2908 = vpop.permute.xlu0 %2907
        %2909 = vrot.lane.b32.xlu0 %v2894, 113
        %v2910 = vpop.permute.xlu0 %2909
        %2911 = vrot.lane.b32.xlu0 %v2895, 113
        %v2912 = vpop.permute.xlu0 %2911
        %2913 = vrot.lane.b32.xlu0 %v2896, 113
        %v2914 = vpop.permute.xlu0 %2913
        %v2915 = vsel %vm856, %v2904, %v2906
        %v2916 = vsel %vm856, %v2906, %v2908
        %v2917 = vsel %vm856, %v2910, %v2912
        %v2918 = vsel %vm856, %v2912, %v2914
        %v2925 = vadd.f32 %v2851, %v2915
        %v2926 = vadd.f32 %v2852, %v2916
        %v2927 = vadd.f32 %v2853, %v2908
        %v2928 = vadd.f32 %v2854, %v2917
        %v2929 = vadd.f32 %v2855, %v2918
        %v2930 = vadd.f32 %v2856, %v2914
        %2931 = vset.pattern.permute.xlu0 16
        %2932 = vperm.xlu0 %2931, %v2511
        %v2933 = vpop.permute.xlu0 %2932
        %2935 = vset.pattern.permute.xlu0 16
        %2936 = vperm.xlu0 %2935, %v2512
        %v2937 = vpop.permute.xlu0 %2936
        %v2939 = vmul.f32 %v2505, %v2933
        %v2940 = vmul.f32 %v2506, %v2933
        %v2941 = vmul.f32 %v2507, %v2933
        %v2942 = vmul.f32 %v2508, %v2937
        %v2943 = vmul.f32 %v2509, %v2937
        %v2944 = vmul.f32 %v2510, %v2937
        %s2945 = scalar_lea.vmem [#allocation14], 34
        %v2946 = vld [vmem:[%s2945] ss:$8 sm:$0x3]
        %v2948 = vlaneseq
        %v2949 = vshrl.u32 %v2948, 7
        %v2950 = vsub.s32 0, %v2949
        %v2951 = vrot.slane %v2946, %v2950
        %v2952 = vlaneseq
        %v2953 = vshrl.u32 %v2952, 7
        %v2954 = vsub.s32 1, %v2953
        %v2955 = vrot.slane %v2946, %v2954
        %2956 = vrot.lane.b32.xlu0 %v2951, 25
        %v2957 = vpop.permute.xlu0 %2956
        %2958 = vrot.lane.b32.xlu0 %v2955, 25
        %v2959 = vpop.permute.xlu0 %2958
        %vm2960 = vcmask 203776
        %v2961 = vsel %vm2960, %v2957, %v2959
        %v2965 = vmul.f32 %v2939, %v2957
        %v2966 = vmul.f32 %v2940, %v2961
        %v2967 = vmul.f32 %v2941, %v2959
        %v2968 = vmul.f32 %v2942, %v2957
        %v2969 = vmul.f32 %v2943, %v2961
        %v2970 = vmul.f32 %v2944, %v2959
        %2977 = vrot.lane.b32.xlu0 %v2965, 110
        %v2978 = vpop.permute.xlu0 %2977
        %2979 = vrot.lane.b32.xlu0 %v2966, 110
        %v2980 = vpop.permute.xlu0 %2979
        %2981 = vrot.lane.b32.xlu0 %v2967, 110
        %v2982 = vpop.permute.xlu0 %2981
        %2983 = vrot.lane.b32.xlu0 %v2968, 110
        %v2984 = vpop.permute.xlu0 %2983
        %2985 = vrot.lane.b32.xlu0 %v2969, 110
        %v2986 = vpop.permute.xlu0 %2985
        %2987 = vrot.lane.b32.xlu0 %v2970, 110
        %v2988 = vpop.permute.xlu0 %2987
        %vm2989 = vcmask 900096
        %v2990 = vsel %vm2989, %v2978, %v2980
        %v2991 = vsel %vm2989, %v2980, %v2982
        %v2992 = vsel %vm2989, %v2984, %v2986
        %v2993 = vsel %vm2989, %v2986, %v2988
        %v3000 = vadd.f32 %v2925, %v2990
        %v3001 = vadd.f32 %v2926, %v2991
        %v3002 = vadd.f32 %v2927, %v2982
        %v3003 = vadd.f32 %v2928, %v2992
        %v3004 = vadd.f32 %v2929, %v2993
        %v3005 = vadd.f32 %v2930, %v2988
        %3012 = vrot.lane.b32.xlu0 %v3000, 9
        %v3013 = vpop.permute.xlu0 %3012
        %3014 = vrot.lane.b32.xlu0 %v3001, 9
        %v3015 = vpop.permute.xlu0 %3014
        %3016 = vrot.lane.b32.xlu0 %v3002, 9
        %v3017 = vpop.permute.xlu0 %3016
        %3018 = vrot.lane.b32.xlu0 %v3003, 9
        %v3019 = vpop.permute.xlu0 %3018
        %3020 = vrot.lane.b32.xlu0 %v3004, 9
        %v3021 = vpop.permute.xlu0 %3020
        %3022 = vrot.lane.b32.xlu0 %v3005, 9
        %v3023 = vpop.permute.xlu0 %3022
        %vm3024 = vcmask 72704
        %v3025 = vsel %vm3024, %v3013, %v3015
        %v3026 = vsel %vm3024, %v3015, %v3017
        %v3027 = vsel %vm3024, %v3019, %v3021
        %v3028 = vsel %vm3024, %v3021, %v3023
        %3035 = vst.msk [vmem:[#allocation2 + $0x8] sm:$0xff] %vm813, %v3013
        %3036 = vst [vmem:[#allocation2 + $0x10] sm:$0xff] %v3025
        %3037 = vst.msk [vmem:[#allocation2 + $0x18] sm:$0xff] %vm809, %v3026
        %3038 = vst.msk [vmem:[#allocation2 + $0x30] sm:$0xff] %vm813, %v3019
        %3039 = vst [vmem:[#allocation2 + $0x38] sm:$0xff] %v3027
        %3040 = vst.msk [vmem:[#allocation2 + $0x40] sm:$0xff] %vm809, %v3028
        %v3041 = vld [vmem:[%s8] sm:$0xff]
        %v3042 = vld [vmem:[%s8 + $0x8] sm:$0xff]
        %3044 = vset.pattern.permute.xlu0 4
        %3045 = vperm.xlu0 %3044, %v3041
        %v3046 = vpop.permute.xlu0 %3045
        %3049 = vset.pattern.permute.xlu0 4
        %3050 = vperm.xlu0 %3049, %v3042
        %v3051 = vpop.permute.xlu0 %3050
        %v3053 = vld [vmem:[#allocation2] sm:$0xff]
        %v3054 = vld [vmem:[#allocation2 + $0x8] sm:$0xff]
        %v3055 = vld [vmem:[#allocation2 + $0x28] sm:$0xff]
        %v3056 = vld [vmem:[#allocation2 + $0x30] sm:$0xff]
        %v3057 = vld [vmem:[#allocation8] sm:$0xff]
        %v3058 = vld [vmem:[#allocation8 + $0x8] sm:$0xff]
        %3060 = vset.pattern.permute.xlu0 17
        %3061 = vperm.xlu0 %3060, %v3057
        %v3062 = vpop.permute.xlu0 %3061
        %3065 = vset.pattern.permute.xlu0 17
        %3066 = vperm.xlu0 %3065, %v3058
        %v3067 = vpop.permute.xlu0 %3066
        %v3069 = vmul.f32 %v3053, %v3062
        %v3070 = vmul.f32 %v3054, %v3062
        %v3071 = vmul.f32 %v3055, %v3067
        %v3072 = vmul.f32 %v3056, %v3067
        %v3073 = vadd.f32 %v3046, %v3069
        %v3074 = vadd.f32 %v3046, %v3070
        %v3075 = vadd.f32 %v3051, %v3071
        %v3076 = vadd.f32 %v3051, %v3072
        %v3077 = vld [vmem:[#allocation2] sm:$0xff]
        %v3078 = vld [vmem:[#allocation2 + $0x8] sm:$0xff]
        %v3079 = vld [vmem:[#allocation2 + $0x10] sm:$0xff]
        %v3080 = vld [vmem:[#allocation2 + $0x28] sm:$0xff]
        %v3081 = vld [vmem:[#allocation2 + $0x30] sm:$0xff]
        %v3082 = vld [vmem:[#allocation2 + $0x38] sm:$0xff]
        %3083 = vset.pattern.permute.xlu0 18
        %3084 = vperm.xlu0 %3083, %v3057
        %v3085 = vpop.permute.xlu0 %3084
        %3087 = vset.pattern.permute.xlu0 18
        %3088 = vperm.xlu0 %3087, %v3058
        %v3089 = vpop.permute.xlu0 %3088
        %v3091 = vmul.f32 %v3077, %v3085
        %v3092 = vmul.f32 %v3078, %v3085
        %v3093 = vmul.f32 %v3079, %v3085
        %v3094 = vmul.f32 %v3080, %v3089
        %v3095 = vmul.f32 %v3081, %v3089
        %v3096 = vmul.f32 %v3082, %v3089
        %3103 = vrot.lane.b32.xlu0 %v3091, 80
        %v3104 = vpop.permute.xlu0 %3103
        %3105 = vrot.lane.b32.xlu0 %v3092, 80
        %v3106 = vpop.permute.xlu0 %3105
        %3107 = vrot.lane.b32.xlu0 %v3093, 80
        %v3108 = vpop.permute.xlu0 %3107
        %3109 = vrot.lane.b32.xlu0 %v3094, 80
        %v3110 = vpop.permute.xlu0 %3109
        %3111 = vrot.lane.b32.xlu0 %v3095, 80
        %v3112 = vpop.permute.xlu0 %3111
        %3113 = vrot.lane.b32.xlu0 %v3096, 80
        %v3114 = vpop.permute.xlu0 %3113
        %v3115 = vsel %vm2393, %v3104, %v3106
        %v3116 = vsel %vm2393, %v3106, %v3108
        %v3117 = vsel %vm2393, %v3110, %v3112
        %v3118 = vsel %vm2393, %v3112, %v3114
        %v3123 = vadd.f32 %v3073, %v3115
        %v3124 = vadd.f32 %v3074, %v3116
        %v3125 = vadd.f32 %v3075, %v3117
        %v3126 = vadd.f32 %v3076, %v3118
        %3127 = vset.pattern.permute.xlu0 19
        %3128 = vperm.xlu0 %3127, %v3057
        %v3129 = vpop.permute.xlu0 %3128
        %3131 = vset.pattern.permute.xlu0 19
        %3132 = vperm.xlu0 %3131, %v3058
        %v3133 = vpop.permute.xlu0 %3132
        %v3135 = vmul.f32 %v3077, %v3129
        %v3136 = vmul.f32 %v3078, %v3129
        %v3137 = vmul.f32 %v3079, %v3129
        %v3138 = vmul.f32 %v3080, %v3133
        %v3139 = vmul.f32 %v3081, %v3133
        %v3140 = vmul.f32 %v3082, %v3133
        %3147 = vrot.lane.b32.xlu0 %v3135, 32
        %v3148 = vpop.permute.xlu0 %3147
        %3149 = vrot.lane.b32.xlu0 %v3136, 32
        %v3150 = vpop.permute.xlu0 %3149
        %3151 = vrot.lane.b32.xlu0 %v3137, 32
        %v3152 = vpop.permute.xlu0 %3151
        %3153 = vrot.lane.b32.xlu0 %v3138, 32
        %v3154 = vpop.permute.xlu0 %3153
        %3155 = vrot.lane.b32.xlu0 %v3139, 32
        %v3156 = vpop.permute.xlu0 %3155
        %3157 = vrot.lane.b32.xlu0 %v3140, 32
        %v3158 = vpop.permute.xlu0 %3157
        %v3159 = vsel %vm815, %v3148, %v3150
        %v3160 = vsel %vm815, %v3150, %v3152
        %v3161 = vsel %vm815, %v3154, %v3156
        %v3162 = vsel %vm815, %v3156, %v3158
        %v3167 = vadd.f32 %v3123, %v3159
        %v3168 = vadd.f32 %v3124, %v3160
        %v3169 = vadd.f32 %v3125, %v3161
        %v3170 = vadd.f32 %v3126, %v3162
        %v3171 = vld [vmem:[#allocation2 + $0x8] sm:$0xff]
        %v3172 = vld [vmem:[#allocation2 + $0x10] sm:$0xff]
        %v3173 = vld [vmem:[#allocation2 + $0x18] sm:$0xff]
        %v3174 = vld [vmem:[#allocation2 + $0x30] sm:$0xff]
        %v3175 = vld [vmem:[#allocation2 + $0x38] sm:$0xff]
        %v3176 = vld [vmem:[#allocation2 + $0x40] sm:$0xff]
        %3177 = vset.pattern.permute.xlu0 20
        %3178 = vperm.xlu0 %3177, %v3057
        %v3179 = vpop.permute.xlu0 %3178
        %3181 = vset.pattern.permute.xlu0 20
        %3182 = vperm.xlu0 %3181, %v3058
        %v3183 = vpop.permute.xlu0 %3182
        %v3185 = vmul.f32 %v3171, %v3179
        %v3186 = vmul.f32 %v3172, %v3179
        %v3187 = vmul.f32 %v3173, %v3179
        %v3188 = vmul.f32 %v3174, %v3183
        %v3189 = vmul.f32 %v3175, %v3183
        %v3190 = vmul.f32 %v3176, %v3183
        %3197 = vrot.lane.b32.xlu0 %v3185, 112
        %v3198 = vpop.permute.xlu0 %3197
        %3199 = vrot.lane.b32.xlu0 %v3186, 112
        %v3200 = vpop.permute.xlu0 %3199
        %3201 = vrot.lane.b32.xlu0 %v3187, 112
        %v3202 = vpop.permute.xlu0 %3201
        %3203 = vrot.lane.b32.xlu0 %v3188, 112
        %v3204 = vpop.permute.xlu0 %3203
        %3205 = vrot.lane.b32.xlu0 %v3189, 112
        %v3206 = vpop.permute.xlu0 %3205
        %3207 = vrot.lane.b32.xlu0 %v3190, 112
        %v3208 = vpop.permute.xlu0 %3207
        %v3209 = vsel %vm1145, %v3198, %v3200
        %v3210 = vsel %vm1145, %v3200, %v3202
        %v3211 = vsel %vm1145, %v3204, %v3206
        %v3212 = vsel %vm1145, %v3206, %v3208
        %v3217 = vadd.f32 %v3167, %v3209
        %v3218 = vadd.f32 %v3168, %v3210
        %v3219 = vadd.f32 %v3169, %v3211
        %v3220 = vadd.f32 %v3170, %v3212
        %3221 = vset.pattern.permute.xlu0 21
        %3222 = vperm.xlu0 %3221, %v3057
        %v3223 = vpop.permute.xlu0 %3222
        %3225 = vset.pattern.permute.xlu0 21
        %3226 = vperm.xlu0 %3225, %v3058
        %v3227 = vpop.permute.xlu0 %3226
        %v3229 = vmul.f32 %v3171, %v3223
        %v3230 = vmul.f32 %v3172, %v3223
        %v3231 = vmul.f32 %v3173, %v3223
        %v3232 = vmul.f32 %v3174, %v3227
        %v3233 = vmul.f32 %v3175, %v3227
        %v3234 = vmul.f32 %v3176, %v3227
        %3241 = vrot.lane.b32.xlu0 %v3229, 64
        %v3242 = vpop.permute.xlu0 %3241
        %3243 = vrot.lane.b32.xlu0 %v3230, 64
        %v3244 = vpop.permute.xlu0 %3243
        %3245 = vrot.lane.b32.xlu0 %v3231, 64
        %v3246 = vpop.permute.xlu0 %3245
        %3247 = vrot.lane.b32.xlu0 %v3232, 64
        %v3248 = vpop.permute.xlu0 %3247
        %3249 = vrot.lane.b32.xlu0 %v3233, 64
        %v3250 = vpop.permute.xlu0 %3249
        %3251 = vrot.lane.b32.xlu0 %v3234, 64
        %v3252 = vpop.permute.xlu0 %3251
        %v3253 = vsel %vm2442, %v3242, %v3244
        %v3254 = vsel %vm2442, %v3244, %v3246
        %v3255 = vsel %vm2442, %v3248, %v3250
        %v3256 = vsel %vm2442, %v3250, %v3252
        %v3261 = vadd.f32 %v3217, %v3253
        %v3262 = vadd.f32 %v3218, %v3254
        %v3263 = vadd.f32 %v3219, %v3255
        %v3264 = vadd.f32 %v3220, %v3256
        %3265 = vset.pattern.permute.xlu0 22
        %3266 = vperm.xlu0 %3265, %v3057
        %v3267 = vpop.permute.xlu0 %3266
        %3269 = vset.pattern.permute.xlu0 22
        %3270 = vperm.xlu0 %3269, %v3058
        %v3271 = vpop.permute.xlu0 %3270
        %v3273 = vmul.f32 %v3171, %v3267
        %v3274 = vmul.f32 %v3172, %v3267
        %v3275 = vmul.f32 %v3173, %v3267
        %v3276 = vmul.f32 %v3174, %v3271
        %v3277 = vmul.f32 %v3175, %v3271
        %v3278 = vmul.f32 %v3176, %v3271
        %3285 = vrot.lane.b32.xlu0 %v3273, 16
        %v3286 = vpop.permute.xlu0 %3285
        %3287 = vrot.lane.b32.xlu0 %v3274, 16
        %v3288 = vpop.permute.xlu0 %3287
        %3289 = vrot.lane.b32.xlu0 %v3275, 16
        %v3290 = vpop.permute.xlu0 %3289
        %3291 = vrot.lane.b32.xlu0 %v3276, 16
        %v3292 = vpop.permute.xlu0 %3291
        %3293 = vrot.lane.b32.xlu0 %v3277, 16
        %v3294 = vpop.permute.xlu0 %3293
        %3295 = vrot.lane.b32.xlu0 %v3278, 16
        %v3296 = vpop.permute.xlu0 %3295
        %v3297 = vsel %vm809, %v3286, %v3288
        %v3298 = vsel %vm809, %v3288, %v3290
        %v3299 = vsel %vm809, %v3292, %v3294
        %v3300 = vsel %vm809, %v3294, %v3296
        %v3305 = vadd.f32 %v3261, %v3297
        %v3306 = vadd.f32 %v3262, %v3298
        %v3307 = vadd.f32 %v3263, %v3299
        %v3308 = vadd.f32 %v3264, %v3300
        %v3309 = vld [vmem:[#allocation2 + $0x10] sm:$0xff]
        %v3310 = vld [vmem:[#allocation2 + $0x18] sm:$0xff]
        %v3311 = vld [vmem:[#allocation2 + $0x20] sm:$0xff]
        %v3312 = vld [vmem:[#allocation2 + $0x38] sm:$0xff]
        %v3313 = vld [vmem:[#allocation2 + $0x40] sm:$0xff]
        %v3314 = vld [vmem:[#allocation2 + $0x48] sm:$0xff]
        %3315 = vset.pattern.permute.xlu0 23
        %3316 = vperm.xlu0 %3315, %v3057
        %v3317 = vpop.permute.xlu0 %3316
        %3319 = vset.pattern.permute.xlu0 23
        %3320 = vperm.xlu0 %3319, %v3058
        %v3321 = vpop.permute.xlu0 %3320
        %v3323 = vmul.f32 %v3309, %v3317
        %v3324 = vmul.f32 %v3310, %v3317
        %v3325 = vmul.f32 %v3311, %v3317
        %v3326 = vmul.f32 %v3312, %v3321
        %v3327 = vmul.f32 %v3313, %v3321
        %v3328 = vmul.f32 %v3314, %v3321
        %3335 = vrot.lane.b32.xlu0 %v3323, 96
        %v3336 = vpop.permute.xlu0 %3335
        %3337 = vrot.lane.b32.xlu0 %v3324, 96
        %v3338 = vpop.permute.xlu0 %3337
        %3339 = vrot.lane.b32.xlu0 %v3325, 96
        %v3340 = vpop.permute.xlu0 %3339
        %3341 = vrot.lane.b32.xlu0 %v3326, 96
        %v3342 = vpop.permute.xlu0 %3341
        %3343 = vrot.lane.b32.xlu0 %v3327, 96
        %v3344 = vpop.permute.xlu0 %3343
        %3345 = vrot.lane.b32.xlu0 %v3328, 96
        %v3346 = vpop.permute.xlu0 %3345
        %v3347 = vsel %vm1312, %v3336, %v3338
        %v3348 = vsel %vm1312, %v3338, %v3340
        %v3349 = vsel %vm1312, %v3342, %v3344
        %v3350 = vsel %vm1312, %v3344, %v3346
        %v3355 = vadd.f32 %v3305, %v3347
        %v3356 = vadd.f32 %v3306, %v3348
        %v3357 = vadd.f32 %v3307, %v3349
        %v3358 = vadd.f32 %v3308, %v3350
        %v3359 = vld [vmem:[#allocation10] sm:$0xff]
        %v3360 = vld [vmem:[#allocation10 + $0x8] sm:$0xff]
        %3361 = vset.pattern.permute.xlu0 5
        %3362 = vperm.xlu0 %3361, %v3041
        %v3363 = vpop.permute.xlu0 %3362
        %3365 = vset.pattern.permute.xlu0 5
        %3366 = vperm.xlu0 %3365, %v3042
        %v3367 = vpop.permute.xlu0 %3366
        %v3370 = vsel %vm809, %v3359, 0
        %v3373 = vsel %vm809, %v3360, 0
        %3375 = vmatprep.subr.mxu0 %v3356
        %3376 = vmatpush1.msra.mxu0 %v3355
        %3377 = vmatprep.subr.mxu0 %v3358
        %3378 = vmatpush1.msra.mxu0 %v3357
        %3379 = vmatprep.subr.mxu0 0.0
        %3380 = vmatpush1.msra.mxu0 0.0
        %3381 = vmatprep.subr.mxu0 0.0
        %3382 = vmatpush1.msra.mxu0 0.0
        %3383 = vmatprep.subr.mxu0 0.0
        %3384 = vmatpush1.msra.mxu0 0.0
        %3385 = vmatprep.subr.mxu0 0.0
        %3386 = vmatpush1.msra.mxu0 0.0
        %3387 = vmatprep.subr.mxu0 0.0
        %3388 = vmatpush1.msra.mxu0 0.0
        %3389 = vmatprep.subr.mxu0 0.0
        %3390 = vmatpush1.msra.mxu0 0.0
        %3391 = vmatprep.subr.mxu0 0.0
        %3392 = vmatpush1.msra.mxu0 0.0
        %3393 = vmatprep.subr.mxu0 0.0
        %3394 = vmatpush1.msra.mxu0 0.0
        %3395 = vmatprep.subr.mxu0 0.0
        %3396 = vmatpush1.msra.mxu0 0.0
        %3397 = vmatprep.subr.mxu0 0.0
        %3398 = vmatpush1.msra.mxu0 0.0
        %3399 = vmatprep.subr.mxu0 0.0
        %3400 = vmatpush1.msra.mxu0 0.0
        %3401 = vmatprep.subr.mxu0 0.0
        %3402 = vmatpush1.msra.mxu0 0.0
        %3403 = vmatprep.subr.mxu0 0.0
        %3404 = vmatpush1.msra.mxu0 0.0
        %3405 = vmatprep.subr.mxu0 0.0
        %3406 = vmatpush1.msra.mxu0 0.0
        %3407 = vmatprep.subr.mxu0 0.0
        %3408 = vmatpush1.msra.mxu0 0.0
        %3409 = vmatprep.subr.mxu0 0.0
        %3410 = vmatpush1.msra.mxu0 0.0
        %3411 = vmatprep.subr.mxu0 0.0
        %3412 = vmatpush1.msra.mxu0 0.0
        %3413 = vmatprep.subr.mxu0 0.0
        %3414 = vmatpush1.msra.mxu0 0.0
        %3415 = vmatprep.subr.mxu0 0.0
        %3416 = vmatpush1.msra.mxu0 0.0
        %3417 = vmatprep.subr.mxu0 0.0
        %3418 = vmatpush1.msra.mxu0 0.0
        %3419 = vmatprep.subr.mxu0 0.0
        %3420 = vmatpush1.msra.mxu0 0.0
        %3421 = vmatprep.subr.mxu0 0.0
        %3422 = vmatpush1.msra.mxu0 0.0
        %3423 = vmatprep.subr.mxu0 0.0
        %3424 = vmatpush1.msra.mxu0 0.0
        %3425 = vmatprep.subr.mxu0 0.0
        %3426 = vmatpush1.msra.mxu0 0.0
        %3427 = vmatprep.subr.mxu0 0.0
        %3428 = vmatpush1.msra.mxu0 0.0
        %3429 = vmatprep.subr.mxu0 0.0
        %3430 = vmatpush1.msra.mxu0 0.0
        %3431 = vmatprep.subr.mxu0 0.0
        %3432 = vmatpush1.msra.mxu0 0.0
        %3433 = vmatprep.subr.mxu0 0.0
        %3434 = vmatpush1.msra.mxu0 0.0
        %3435 = vmatprep.subr.mxu0 0.0
        %3436 = vmatpush1.msra.mxu0 0.0
        %3437 = vmatprep.subr.mxu0 0.0
        %3438 = vmatpush1.msra.mxu0 0.0
        %3439 = vmatprep.mubr.f32.mxu0 0.0
        %3440 = vmatmul.mubr.f32.gmra.mrb[0].mxu0 %v3370
        %v3441 = vpop.f32.mrb[0].mxu0
        %v3442 = vadd.f32 %v3363, %v3441
        %v3443 = vpop.f32.mrb[0].mxu0
        %v3444 = vadd.f32 %v3363, %v3443
        %3445 = vmatprep.mubr.f32.mxu0 0.0
        %3446 = vmatmul.mubr.f32.gmra.mrb[0].mxu0 %v3373
        %v3447 = vpop.f32.mrb[0].mxu0
        %v3448 = vadd.f32 %v3367, %v3447
        %v3449 = vpop.f32.mrb[0].mxu0
        %v3450 = vadd.f32 %v3367, %v3449
        %3451 = vdwg.mxu0
        %v3452 = vmul.f32 %v1793, %v3442
        %v3453 = vmul.f32 %v1795, %v3444
        %v3454 = vmul.f32 %v1799, %v3448
        %v3455 = vmul.f32 %v1801, %v3450
        %v3456 = vadd.f32 %v3452, %v3453
        %3457 = vadd.xlane.f32.xlu0 %v3456
        %v3458 = vpop.xlane.xlu0 %3457
        %v3459 = vadd.f32 %v3454, %v3455
        %3460 = vadd.xlane.f32.xlu0 %v3459
        %v3461 = vpop.xlane.xlu0 %3460
        %v3462 = vrcp.pop 256.0
        %v3463 = vmul.f32 %v3458, %v3462
        %v3464 = vmul.f32 %v3461, %v3462
        %v3465 = vld [vmem:[#allocation11] sm:$0xf]
        %v3467 = vsel %vm809, %v3465, 0
        %3469 = vmatprep.subr.mxu0 0.0
        %3470 = vmatpush1.msra.mxu0 %v3463
        %3471 = vmatprep.subr.mxu0 0.0
        %3472 = vmatpush1.msra.mxu0 %v3464
        %3473 = vmatprep.subr.mxu0 0.0
        %3474 = vmatpush1.msra.mxu0 0.0
        %3475 = vmatprep.subr.mxu0 0.0
        %3476 = vmatpush1.msra.mxu0 0.0
        %3477 = vmatprep.subr.mxu0 0.0
        %3478 = vmatpush1.msra.mxu0 0.0
        %3479 = vmatprep.subr.mxu0 0.0
        %3480 = vmatpush1.msra.mxu0 0.0
        %3481 = vmatprep.subr.mxu0 0.0
        %3482 = vmatpush1.msra.mxu0 0.0
        %3483 = vmatprep.subr.mxu0 0.0
        %3484 = vmatpush1.msra.mxu0 0.0
        %3485 = vmatprep.subr.mxu0 0.0
        %3486 = vmatpush1.msra.mxu0 0.0
        %3487 = vmatprep.subr.mxu0 0.0
        %3488 = vmatpush1.msra.mxu0 0.0
        %3489 = vmatprep.subr.mxu0 0.0
        %3490 = vmatpush1.msra.mxu0 0.0
        %3491 = vmatprep.subr.mxu0 0.0
        %3492 = vmatpush1.msra.mxu0 0.0
        %3493 = vmatprep.subr.mxu0 0.0
        %3494 = vmatpush1.msra.mxu0 0.0
        %3495 = vmatprep.subr.mxu0 0.0
        %3496 = vmatpush1.msra.mxu0 0.0
        %3497 = vmatprep.subr.mxu0 0.0
        %3498 = vmatpush1.msra.mxu0 0.0
        %3499 = vmatprep.subr.mxu0 0.0
        %3500 = vmatpush1.msra.mxu0 0.0
        %3501 = vmatprep.subr.mxu0 0.0
        %3502 = vmatpush1.msra.mxu0 0.0
        %3503 = vmatprep.subr.mxu0 0.0
        %3504 = vmatpush1.msra.mxu0 0.0
        %3505 = vmatprep.subr.mxu0 0.0
        %3506 = vmatpush1.msra.mxu0 0.0
        %3507 = vmatprep.subr.mxu0 0.0
        %3508 = vmatpush1.msra.mxu0 0.0
        %3509 = vmatprep.subr.mxu0 0.0
        %3510 = vmatpush1.msra.mxu0 0.0
        %3511 = vmatprep.subr.mxu0 0.0
        %3512 = vmatpush1.msra.mxu0 0.0
        %3513 = vmatprep.subr.mxu0 0.0
        %3514 = vmatpush1.msra.mxu0 0.0
        %3515 = vmatprep.subr.mxu0 0.0
        %3516 = vmatpush1.msra.mxu0 0.0
        %3517 = vmatprep.subr.mxu0 0.0
        %3518 = vmatpush1.msra.mxu0 0.0
        %3519 = vmatprep.subr.mxu0 0.0
        %3520 = vmatpush1.msra.mxu0 0.0
        %3521 = vmatprep.subr.mxu0 0.0
        %3522 = vmatpush1.msra.mxu0 0.0
        %3523 = vmatprep.subr.mxu0 0.0
        %3524 = vmatpush1.msra.mxu0 0.0
        %3525 = vmatprep.subr.mxu0 0.0
        %3526 = vmatpush1.msra.mxu0 0.0
        %3527 = vmatprep.subr.mxu0 0.0
        %3528 = vmatpush1.msra.mxu0 0.0
        %3529 = vmatprep.subr.mxu0 0.0
        %3530 = vmatpush1.msra.mxu0 0.0
        %3531 = vmatprep.subr.mxu0 0.0
        %3532 = vmatpush1.msra.mxu0 0.0
        %3533 = vmatprep.mubr.f32.mxu0 0.0
        %3534 = vmatmul.mubr.f32.gmra.mrb[0].mxu0 %v3467
        %v3535 = vpop.f32.mrb[0].mxu0
        %v3536 = vadd.f32 0.0, %v3535
        %v3537 = vpop.f32.mrb[0].mxu0
        %3538 = vdwg.mxu0
        %v3539 = vmax.f32 %v3536, 0.0
        %v3540 = vld [vmem:[%s10] sm:$0xff]
        %v3541 = vld [vmem:[%s10 + $0x8] sm:$0xff]
        %v3543 = vsel %vm859, %v3540, 0
        %v3546 = vsel %vm859, %v3541, 0
        %v3549 = vsel %vm863, %v3539, 0
        %3551 = vmatprep.subr.mxu0 0.0
        %3552 = vmatpush1.msra.mxu0 %v3549
        %3553 = vmatprep.subr.mxu0 0.0
        %3554 = vmatpush1.msra.mxu0 0.0
        %3555 = vmatprep.subr.mxu0 0.0
        %3556 = vmatpush1.msra.mxu0 0.0
        %3557 = vmatprep.subr.mxu0 0.0
        %3558 = vmatpush1.msra.mxu0 0.0
        %3559 = vmatprep.subr.mxu0 0.0
        %3560 = vmatpush1.msra.mxu0 0.0
        %3561 = vmatprep.subr.mxu0 0.0
        %3562 = vmatpush1.msra.mxu0 0.0
        %3563 = vmatprep.subr.mxu0 0.0
        %3564 = vmatpush1.msra.mxu0 0.0
        %3565 = vmatprep.subr.mxu0 0.0
        %3566 = vmatpush1.msra.mxu0 0.0
        %3567 = vmatprep.subr.mxu0 0.0
        %3568 = vmatpush1.msra.mxu0 0.0
        %3569 = vmatprep.subr.mxu0 0.0
        %3570 = vmatpush1.msra.mxu0 0.0
        %3571 = vmatprep.subr.mxu0 0.0
        %3572 = vmatpush1.msra.mxu0 0.0
        %3573 = vmatprep.subr.mxu0 0.0
        %3574 = vmatpush1.msra.mxu0 0.0
        %3575 = vmatprep.subr.mxu0 0.0
        %3576 = vmatpush1.msra.mxu0 0.0
        %3577 = vmatprep.subr.mxu0 0.0
        %3578 = vmatpush1.msra.mxu0 0.0
        %3579 = vmatprep.subr.mxu0 0.0
        %3580 = vmatpush1.msra.mxu0 0.0
        %3581 = vmatprep.subr.mxu0 0.0
        %3582 = vmatpush1.msra.mxu0 0.0
        %3583 = vmatprep.subr.mxu0 0.0
        %3584 = vmatpush1.msra.mxu0 0.0
        %3585 = vmatprep.subr.mxu0 0.0
        %3586 = vmatpush1.msra.mxu0 0.0
        %3587 = vmatprep.subr.mxu0 0.0
        %3588 = vmatpush1.msra.mxu0 0.0
        %3589 = vmatprep.subr.mxu0 0.0
        %3590 = vmatpush1.msra.mxu0 0.0
        %3591 = vmatprep.subr.mxu0 0.0
        %3592 = vmatpush1.msra.mxu0 0.0
        %3593 = vmatprep.subr.mxu0 0.0
        %3594 = vmatpush1.msra.mxu0 0.0
        %3595 = vmatprep.subr.mxu0 0.0
        %3596 = vmatpush1.msra.mxu0 0.0
        %3597 = vmatprep.subr.mxu0 0.0
        %3598 = vmatpush1.msra.mxu0 0.0
        %3599 = vmatprep.subr.mxu0 0.0
        %3600 = vmatpush1.msra.mxu0 0.0
        %3601 = vmatprep.subr.mxu0 0.0
        %3602 = vmatpush1.msra.mxu0 0.0
        %3603 = vmatprep.subr.mxu0 0.0
        %3604 = vmatpush1.msra.mxu0 0.0
        %3605 = vmatprep.subr.mxu0 0.0
        %3606 = vmatpush1.msra.mxu0 0.0
        %3607 = vmatprep.subr.mxu0 0.0
        %3608 = vmatpush1.msra.mxu0 0.0
        %3609 = vmatprep.subr.mxu0 0.0
        %3610 = vmatpush1.msra.mxu0 0.0
        %3611 = vmatprep.subr.mxu0 0.0
        %3612 = vmatpush1.msra.mxu0 0.0
        %3613 = vmatprep.subr.mxu0 0.0
        %3614 = vmatpush1.msra.mxu0 0.0
        %3615 = vmatprep.mubr.f32.mxu0 0.0
        %3616 = vmatmul.mubr.f32.gmra.mrb[0].mxu0 %v3543
        %v3617 = vpop.f32.mrb[0].mxu0
        %v3618 = vadd.f32 0.0, %v3617
        %v3619 = vpop.f32.mrb[0].mxu0
        %3620 = vmatprep.mubr.f32.mxu0 0.0
        %3621 = vmatmul.mubr.f32.gmra.mrb[0].mxu0 %v3546
        %v3622 = vpop.f32.mrb[0].mxu0
        %v3623 = vadd.f32 0.0, %v3622
        %v3624 = vpop.f32.mrb[0].mxu0
        %3625 = vdwg.mxu0
        %v3626 = vxor.u32 %v3618, 2147483648
        %v3627 = vxor.u32 %v3623, 2147483648
        %v3628 = vmul.f32 %v3626, 1.442695
        %v3629 = vpow.pop %v3628
        %v3630 = vmul.f32 %v3627, 1.442695
        %v3631 = vpow.pop %v3630
        %v3632 = vadd.f32 %v3629, 1.0
        %v3633 = vadd.f32 %v3631, 1.0
        %v3634 = vrcp.pop %v3632
        %v3635 = vmul.f32 1.0, %v3634
        %v3636 = vrcp.pop %v3633
        %v3637 = vmul.f32 1.0, %v3636
        %3639 = vset.pattern.permute.xlu0 0
        %3640 = vperm.xlu0 %3639, %v3635
        %v3641 = vpop.permute.xlu0 %3640
        %3644 = vset.pattern.permute.xlu0 0
        %3645 = vperm.xlu0 %3644, %v3637
        %v3646 = vpop.permute.xlu0 %3645
        %v3648 = vmul.f32 %v3452, %v3641
        %v3649 = vmul.f32 %v3453, %v3641
        %v3650 = vmul.f32 %v3454, %v3646
        %v3651 = vmul.f32 %v3455, %v3646
        %3652 = vst.msk [vmem:[#allocation4] sm:$0xff] %vm2886, 0.0
        %3653 = vst.msk [vmem:[#allocation4 + $0x8] sm:$0xff] %vm2886, 0.0
        %3654 = vst.msk [vmem:[#allocation4 + $0x10] sm:$0xff] %vm2886, 0.0
        %3655 = vst.msk [vmem:[#allocation4 + $0x18] sm:$0xff] %vm2886, 0.0
        %3656 = vst.msk [vmem:[#allocation3] sm:$0xff] %vm2886, 0.0
        %3657 = vst.msk [vmem:[#allocation3 + $0x8] sm:$0xff] %vm2886, 0.0
        %3658 = vst.msk [vmem:[#allocation3 + $0x10] sm:$0xff] %vm2886, 0.0
        %3659 = vst.msk [vmem:[#allocation3 + $0x18] sm:$0xff] %vm2886, 0.0
        %v3660 = vsel %vm809, %v3648, -inf
        %3661 = vmax.xlane.f32.xlu0 %v3660
        %v3662 = vpop.xlane.xlu0 %3661
        %v3663 = vsel %vm809, %v3650, -inf
        %3664 = vmax.xlane.f32.xlu0 %v3663
        %v3665 = vpop.xlane.xlu0 %3664
        %vm3666 = vcmask 31768
        %3667 = vst.msk [vmem:[#allocation4] sm:$0xff] %vm3666, %v3662
        %3668 = vst.msk [vmem:[#allocation4 + $0x8] sm:$0xff] %vm3666, %v3665
        %v3669 = vsel %vm809, %v3648, 0.0
        %3670 = vadd.xlane.f32.xlu0 %v3669
        %v3671 = vpop.xlane.xlu0 %3670
        %v3672 = vsel %vm809, %v3650, 0.0
        %3673 = vadd.xlane.f32.xlu0 %v3672
        %v3674 = vpop.xlane.xlu0 %3673
        %3675 = vst.msk [vmem:[#allocation4 + $0x10] sm:$0xff] %vm3666, %v3671
        %3676 = vst.msk [vmem:[#allocation4 + $0x18] sm:$0xff] %vm3666, %v3674
        %3679 = vrot.lane.b32.xlu0 %v3648, 112
        %v3680 = vpop.permute.xlu0 %3679
        %3681 = vrot.lane.b32.xlu0 %v3650, 112
        %v3682 = vpop.permute.xlu0 %3681
        %v3685 = vmax.f32 %v3648, %v3680
        %v3686 = vmax.f32 %v3650, %v3682
        %v3687 = vadd.f32 %v3648, %v3680
        %v3688 = vadd.f32 %v3650, %v3682
        %vm3689 = vcmask 261248
        %v3690 = vsel %vm3689, %v3648, -inf
        %3691 = vmax.xlane.f32.xlu0 %v3690
        %v3692 = vpop.xlane.xlu0 %3691
        %v3693 = vsel %vm3689, %v3650, -inf
        %3694 = vmax.xlane.f32.xlu0 %v3693
        %v3695 = vpop.xlane.xlu0 %3694
        %vm3696 = vcmask 39968
        %3697 = vst.msk [vmem:[#allocation4] sm:$0xff] %vm3696, %v3692
        %3698 = vst.msk [vmem:[#allocation4 + $0x8] sm:$0xff] %vm3696, %v3695
        %v3699 = vsel %vm809, %v3680, 0.0
        %3700 = vadd.xlane.f32.xlu0 %v3699
        %v3701 = vpop.xlane.xlu0 %3700
        %v3702 = vsel %vm809, %v3682, 0.0
        %3703 = vadd.xlane.f32.xlu0 %v3702
        %v3704 = vpop.xlane.xlu0 %3703
        %3705 = vst.msk [vmem:[#allocation4 + $0x10] sm:$0xff] %vm3696, %v3701
        %3706 = vst.msk [vmem:[#allocation4 + $0x18] sm:$0xff] %vm3696, %v3704
        %3707 = vrot.lane.b32.xlu0 %v3648, 96
        %v3708 = vpop.permute.xlu0 %3707
        %3709 = vrot.lane.b32.xlu0 %v3650, 96
        %v3710 = vpop.permute.xlu0 %3709
        %v3713 = vmax.f32 %v3685, %v3708
        %v3714 = vmax.f32 %v3686, %v3710
        %v3715 = vadd.f32 %v3687, %v3708
        %v3716 = vadd.f32 %v3688, %v3710
        %vm3717 = vcmask 392448
        %v3718 = vsel %vm3717, %v3648, -inf
        %3719 = vmax.xlane.f32.xlu0 %v3718
        %v3720 = vpop.xlane.xlu0 %3719
        %v3721 = vsel %vm3717, %v3650, -inf
        %3722 = vmax.xlane.f32.xlu0 %v3721
        %v3723 = vpop.xlane.xlu0 %3722
        %vm3724 = vcmask 48168
        %3725 = vst.msk [vmem:[#allocation4] sm:$0xff] %vm3724, %v3720
        %3726 = vst.msk [vmem:[#allocation4 + $0x8] sm:$0xff] %vm3724, %v3723
        %v3727 = vsel %vm809, %v3708, 0.0
        %3728 = vadd.xlane.f32.xlu0 %v3727
        %v3729 = vpop.xlane.xlu0 %3728
        %v3730 = vsel %vm809, %v3710, 0.0
        %3731 = vadd.xlane.f32.xlu0 %v3730
        %v3732 = vpop.xlane.xlu0 %3731
        %3733 = vst.msk [vmem:[#allocation4 + $0x10] sm:$0xff] %vm3724, %v3729
        %3734 = vst.msk [vmem:[#allocation4 + $0x18] sm:$0xff] %vm3724, %v3732
        %3735 = vrot.lane.b32.xlu0 %v3648, 80
        %v3736 = vpop.permute.xlu0 %3735
        %3737 = vrot.lane.b32.xlu0 %v3650, 80
        %v3738 = vpop.permute.xlu0 %3737
        %v3741 = vmax.f32 %v3713, %v3736
        %v3742 = vmax.f32 %v3714, %v3738
        %v3743 = vadd.f32 %v3715, %v3736
        %v3744 = vadd.f32 %v3716, %v3738
        %vm3745 = vcmask 523648
        %v3746 = vsel %vm3745, %v3648, -inf
        %3747 = vmax.xlane.f32.xlu0 %v3746
        %v3748 = vpop.xlane.xlu0 %3747
        %v3749 = vsel %vm3745, %v3650, -inf
        %3750 = vmax.xlane.f32.xlu0 %v3749
        %v3751 = vpop.xlane.xlu0 %3750
        %vm3752 = vcmask 56368
        %3753 = vst.msk [vmem:[#allocation4] sm:$0xff] %vm3752, %v3748
        %3754 = vst.msk [vmem:[#allocation4 + $0x8] sm:$0xff] %vm3752, %v3751
        %v3755 = vsel %vm809, %v3736, 0.0
        %3756 = vadd.xlane.f32.xlu0 %v3755
        %v3757 = vpop.xlane.xlu0 %3756
        %v3758 = vsel %vm809, %v3738, 0.0
        %3759 = vadd.xlane.f32.xlu0 %v3758
        %v3760 = vpop.xlane.xlu0 %3759
        %3761 = vst.msk [vmem:[#allocation4 + $0x10] sm:$0xff] %vm3752, %v3757
        %3762 = vst.msk [vmem:[#allocation4 + $0x18] sm:$0xff] %vm3752, %v3760
        %3763 = vrot.lane.b32.xlu0 %v3648, 64
        %v3764 = vpop.permute.xlu0 %3763
        %3765 = vrot.lane.b32.xlu0 %v3650, 64
        %v3766 = vpop.permute.xlu0 %3765
        %v3769 = vmax.f32 %v3741, %v3764
        %v3770 = vmax.f32 %v3742, %v3766
        %v3771 = vadd.f32 %v3743, %v3764
        %v3772 = vadd.f32 %v3744, %v3766
        %vm3773 = vcmask 654848
        %v3774 = vsel %vm3773, %v3648, -inf
        %3775 = vmax.xlane.f32.xlu0 %v3774
        %v3776 = vpop.xlane.xlu0 %3775
        %v3777 = vsel %vm3773, %v3650, -inf
        %3778 = vmax.xlane.f32.xlu0 %v3777
        %v3779 = vpop.xlane.xlu0 %3778
        %vm3780 = vcmask 64568
        %3781 = vst.msk [vmem:[#allocation4] sm:$0xff] %vm3780, %v3776
        %3782 = vst.msk [vmem:[#allocation4 + $0x8] sm:$0xff] %vm3780, %v3779
        %v3783 = vsel %vm809, %v3764, 0.0
        %3784 = vadd.xlane.f32.xlu0 %v3783
        %v3785 = vpop.xlane.xlu0 %3784
        %v3786 = vsel %vm809, %v3766, 0.0
        %3787 = vadd.xlane.f32.xlu0 %v3786
        %v3788 = vpop.xlane.xlu0 %3787
        %3789 = vst.msk [vmem:[#allocation4 + $0x10] sm:$0xff] %vm3780, %v3785
        %3790 = vst.msk [vmem:[#allocation4 + $0x18] sm:$0xff] %vm3780, %v3788
        %3791 = vrot.lane.b32.xlu0 %v3648, 48
        %v3792 = vpop.permute.xlu0 %3791
        %3793 = vrot.lane.b32.xlu0 %v3650, 48
        %v3794 = vpop.permute.xlu0 %3793
        %v3797 = vmax.f32 %v3769, %v3792
        %v3798 = vmax.f32 %v3770, %v3794
        %v3799 = vadd.f32 %v3771, %v3792
        %v3800 = vadd.f32 %v3772, %v3794
        %vm3801 = vcmask 786048
        %v3802 = vsel %vm3801, %v3648, -inf
        %3803 = vmax.xlane.f32.xlu0 %v3802
        %v3804 = vpop.xlane.xlu0 %3803
        %v3805 = vsel %vm3801, %v3650, -inf
        %3806 = vmax.xlane.f32.xlu0 %v3805
        %v3807 = vpop.xlane.xlu0 %3806
        %vm3808 = vcmask 72768
        %3809 = vst.msk [vmem:[#allocation4] sm:$0xff] %vm3808, %v3804
        %3810 = vst.msk [vmem:[#allocation4 + $0x8] sm:$0xff] %vm3808, %v3807
        %v3811 = vsel %vm809, %v3792, 0.0
        %3812 = vadd.xlane.f32.xlu0 %v3811
        %v3813 = vpop.xlane.xlu0 %3812
        %v3814 = vsel %vm809, %v3794, 0.0
        %3815 = vadd.xlane.f32.xlu0 %v3814
        %v3816 = vpop.xlane.xlu0 %3815
        %3817 = vst.msk [vmem:[#allocation4 + $0x10] sm:$0xff] %vm3808, %v3813
        %3818 = vst.msk [vmem:[#allocation4 + $0x18] sm:$0xff] %vm3808, %v3816
        %3819 = vrot.lane.b32.xlu0 %v3648, 32
        %v3820 = vpop.permute.xlu0 %3819
        %3821 = vrot.lane.b32.xlu0 %v3650, 32
        %v3822 = vpop.permute.xlu0 %3821
        %v3825 = vmax.f32 %v3797, %v3820
        %v3826 = vmax.f32 %v3798, %v3822
        %v3827 = vadd.f32 %v3799, %v3820
        %v3828 = vadd.f32 %v3800, %v3822
        %vm3829 = vcmask 917248
        %v3830 = vsel %vm3829, %v3648, -inf
        %3831 = vmax.xlane.f32.xlu0 %v3830
        %v3832 = vpop.xlane.xlu0 %3831
        %v3833 = vsel %vm3829, %v3650, -inf
        %3834 = vmax.xlane.f32.xlu0 %v3833
        %v3835 = vpop.xlane.xlu0 %3834
        %vm3836 = vcmask 80968
        %3837 = vst.msk [vmem:[#allocation4] sm:$0xff] %vm3836, %v3832
        %3838 = vst.msk [vmem:[#allocation4 + $0x8] sm:$0xff] %vm3836, %v3835
        %v3839 = vsel %vm809, %v3820, 0.0
        %3840 = vadd.xlane.f32.xlu0 %v3839
        %v3841 = vpop.xlane.xlu0 %3840
        %v3842 = vsel %vm809, %v3822, 0.0
        %3843 = vadd.xlane.f32.xlu0 %v3842
        %v3844 = vpop.xlane.xlu0 %3843
        %3845 = vst.msk [vmem:[#allocation4 + $0x10] sm:$0xff] %vm3836, %v3841
        %3846 = vst.msk [vmem:[#allocation4 + $0x18] sm:$0xff] %vm3836, %v3844
        %3847 = vrot.lane.b32.xlu0 %v3648, 16
        %v3848 = vpop.permute.xlu0 %3847
        %3849 = vrot.lane.b32.xlu0 %v3650, 16
        %v3850 = vpop.permute.xlu0 %3849
        %v3853 = vmax.f32 %v3825, %v3848
        %v3854 = vmax.f32 %v3826, %v3850
        %v3855 = vadd.f32 %v3827, %v3848
        %v3856 = vadd.f32 %v3828, %v3850
        %vm3857 = vcmask 1048448
        %v3858 = vsel %vm3857, %v3648, -inf
        %3859 = vmax.xlane.f32.xlu0 %v3858
        %v3860 = vpop.xlane.xlu0 %3859
        %v3861 = vsel %vm3857, %v3650, -inf
        %3862 = vmax.xlane.f32.xlu0 %v3861
        %v3863 = vpop.xlane.xlu0 %3862
        %vm3864 = vcmask 89168
        %3865 = vst.msk [vmem:[#allocation4] sm:$0xff] %vm3864, %v3860
        %3866 = vst.msk [vmem:[#allocation4 + $0x8] sm:$0xff] %vm3864, %v3863
        %v3867 = vsel %vm809, %v3848, 0.0
        %3868 = vadd.xlane.f32.xlu0 %v3867
        %v3869 = vpop.xlane.xlu0 %3868
        %v3870 = vsel %vm809, %v3850, 0.0
        %3871 = vadd.xlane.f32.xlu0 %v3870
        %v3872 = vpop.xlane.xlu0 %3871
        %3873 = vst.msk [vmem:[#allocation4 + $0x10] sm:$0xff] %vm3864, %v3869
        %3874 = vst.msk [vmem:[#allocation4 + $0x18] sm:$0xff] %vm3864, %v3872
        %v3875 = vmax.f32 %v3853, %v3649
        %v3876 = vmax.f32 %v3854, %v3651
        %v3877 = vadd.f32 %v3855, %v3649
        %v3878 = vadd.f32 %v3856, %v3651
        %v3879 = vsel %vm809, %v3649, -inf
        %3880 = vmax.xlane.f32.xlu0 %v3879
        %v3881 = vpop.xlane.xlu0 %3880
        %v3882 = vsel %vm809, %v3651, -inf
        %3883 = vmax.xlane.f32.xlu0 %v3882
        %v3884 = vpop.xlane.xlu0 %3883
        %vm3885 = vcmask 97368
        %3886 = vst.msk [vmem:[#allocation4] sm:$0xff] %vm3885, %v3881
        %3887 = vst.msk [vmem:[#allocation4 + $0x8] sm:$0xff] %vm3885, %v3884
        %v3888 = vsel %vm809, %v3649, 0.0
        %3889 = vadd.xlane.f32.xlu0 %v3888
        %v3890 = vpop.xlane.xlu0 %3889
        %v3891 = vsel %vm809, %v3651, 0.0
        %3892 = vadd.xlane.f32.xlu0 %v3891
        %v3893 = vpop.xlane.xlu0 %3892
        %3894 = vst.msk [vmem:[#allocation4 + $0x10] sm:$0xff] %vm3885, %v3890
        %3895 = vst.msk [vmem:[#allocation4 + $0x18] sm:$0xff] %vm3885, %v3893
        %3898 = vrot.lane.b32.xlu0 %v3649, 112
        %v3899 = vpop.permute.xlu0 %3898
        %3900 = vrot.lane.b32.xlu0 %v3651, 112
        %v3901 = vpop.permute.xlu0 %3900
        %v3904 = vmax.f32 %v3875, %v3899
        %v3905 = vmax.f32 %v3876, %v3901
        %v3906 = vadd.f32 %v3877, %v3899
        %v3907 = vadd.f32 %v3878, %v3901
        %v3908 = vsel %vm3689, %v3649, -inf
        %3909 = vmax.xlane.f32.xlu0 %v3908
        %v3910 = vpop.xlane.xlu0 %3909
        %v3911 = vsel %vm3689, %v3651, -inf
        %3912 = vmax.xlane.f32.xlu0 %v3911
        %v3913 = vpop.xlane.xlu0 %3912
        %vm3914 = vcmask 105568
        %3915 = vst.msk [vmem:[#allocation4] sm:$0xff] %vm3914, %v3910
        %3916 = vst.msk [vmem:[#allocation4 + $0x8] sm:$0xff] %vm3914, %v3913
        %v3917 = vsel %vm809, %v3899, 0.0
        %3918 = vadd.xlane.f32.xlu0 %v3917
        %v3919 = vpop.xlane.xlu0 %3918
        %v3920 = vsel %vm809, %v3901, 0.0
        %3921 = vadd.xlane.f32.xlu0 %v3920
        %v3922 = vpop.xlane.xlu0 %3921
        %3923 = vst.msk [vmem:[#allocation4 + $0x10] sm:$0xff] %vm3914, %v3919
        %3924 = vst.msk [vmem:[#allocation4 + $0x18] sm:$0xff] %vm3914, %v3922
        %3925 = vrot.lane.b32.xlu0 %v3649, 96
        %v3926 = vpop.permute.xlu0 %3925
        %3927 = vrot.lane.b32.xlu0 %v3651, 96
        %v3928 = vpop.permute.xlu0 %3927
        %v3931 = vmax.f32 %v3904, %v3926
        %v3932 = vmax.f32 %v3905, %v3928
        %v3933 = vadd.f32 %v3906, %v3926
        %v3934 = vadd.f32 %v3907, %v3928
        %v3935 = vsel %vm3717, %v3649, -inf
        %3936 = vmax.xlane.f32.xlu0 %v3935
        %v3937 = vpop.xlane.xlu0 %3936
        %v3938 = vsel %vm3717, %v3651, -inf
        %3939 = vmax.xlane.f32.xlu0 %v3938
        %v3940 = vpop.xlane.xlu0 %3939
        %vm3941 = vcmask 113768
        %3942 = vst.msk [vmem:[#allocation4] sm:$0xff] %vm3941, %v3937
        %3943 = vst.msk [vmem:[#allocation4 + $0x8] sm:$0xff] %vm3941, %v3940
        %v3944 = vsel %vm809, %v3926, 0.0
        %3945 = vadd.xlane.f32.xlu0 %v3944
        %v3946 = vpop.xlane.xlu0 %3945
        %v3947 = vsel %vm809, %v3928, 0.0
        %3948 = vadd.xlane.f32.xlu0 %v3947
        %v3949 = vpop.xlane.xlu0 %3948
        %3950 = vst.msk [vmem:[#allocation4 + $0x10] sm:$0xff] %vm3941, %v3946
        %3951 = vst.msk [vmem:[#allocation4 + $0x18] sm:$0xff] %vm3941, %v3949
        %3952 = vrot.lane.b32.xlu0 %v3649, 80
        %v3953 = vpop.permute.xlu0 %3952
        %3954 = vrot.lane.b32.xlu0 %v3651, 80
        %v3955 = vpop.permute.xlu0 %3954
        %v3958 = vmax.f32 %v3931, %v3953
        %v3959 = vmax.f32 %v3932, %v3955
        %v3960 = vadd.f32 %v3933, %v3953
        %v3961 = vadd.f32 %v3934, %v3955
        %v3962 = vsel %vm3745, %v3649, -inf
        %3963 = vmax.xlane.f32.xlu0 %v3962
        %v3964 = vpop.xlane.xlu0 %3963
        %v3965 = vsel %vm3745, %v3651, -inf
        %3966 = vmax.xlane.f32.xlu0 %v3965
        %v3967 = vpop.xlane.xlu0 %3966
        %vm3968 = vcmask 121968
        %3969 = vst.msk [vmem:[#allocation4] sm:$0xff] %vm3968, %v3964
        %3970 = vst.msk [vmem:[#allocation4 + $0x8] sm:$0xff] %vm3968, %v3967
        %v3971 = vsel %vm809, %v3953, 0.0
        %3972 = vadd.xlane.f32.xlu0 %v3971
        %v3973 = vpop.xlane.xlu0 %3972
        %v3974 = vsel %vm809, %v3955, 0.0
        %3975 = vadd.xlane.f32.xlu0 %v3974
        %v3976 = vpop.xlane.xlu0 %3975
        %3977 = vst.msk [vmem:[#allocation4 + $0x10] sm:$0xff] %vm3968, %v3973
        %3978 = vst.msk [vmem:[#allocation4 + $0x18] sm:$0xff] %vm3968, %v3976
        %3979 = vrot.lane.b32.xlu0 %v3649, 64
        %v3980 = vpop.permute.xlu0 %3979
        %3981 = vrot.lane.b32.xlu0 %v3651, 64
        %v3982 = vpop.permute.xlu0 %3981
        %v3985 = vmax.f32 %v3958, %v3980
        %v3986 = vmax.f32 %v3959, %v3982
        %v3987 = vadd.f32 %v3960, %v3980
        %v3988 = vadd.f32 %v3961, %v3982
        %v3989 = vsel %vm3773, %v3649, -inf
        %3990 = vmax.xlane.f32.xlu0 %v3989
        %v3991 = vpop.xlane.xlu0 %3990
        %v3992 = vsel %vm3773, %v3651, -inf
        %3993 = vmax.xlane.f32.xlu0 %v3992
        %v3994 = vpop.xlane.xlu0 %3993
        %vm3995 = vcmask 130168
        %3996 = vst.msk [vmem:[#allocation4] sm:$0xff] %vm3995, %v3991
        %3997 = vst.msk [vmem:[#allocation4 + $0x8] sm:$0xff] %vm3995, %v3994
        %v3998 = vsel %vm809, %v3980, 0.0
        %3999 = vadd.xlane.f32.xlu0 %v3998
        %v4000 = vpop.xlane.xlu0 %3999
        %v4001 = vsel %vm809, %v3982, 0.0
        %4002 = vadd.xlane.f32.xlu0 %v4001
        %v4003 = vpop.xlane.xlu0 %4002
        %4004 = vst.msk [vmem:[#allocation4 + $0x10] sm:$0xff] %vm3995, %v4000
        %4005 = vst.msk [vmem:[#allocation4 + $0x18] sm:$0xff] %vm3995, %v4003
        %4006 = vrot.lane.b32.xlu0 %v3649, 48
        %v4007 = vpop.permute.xlu0 %4006
        %4008 = vrot.lane.b32.xlu0 %v3651, 48
        %v4009 = vpop.permute.xlu0 %4008
        %v4012 = vmax.f32 %v3985, %v4007
        %v4013 = vmax.f32 %v3986, %v4009
        %v4014 = vadd.f32 %v3987, %v4007
        %v4015 = vadd.f32 %v3988, %v4009
        %v4016 = vsel %vm3801, %v3649, -inf
        %4017 = vmax.xlane.f32.xlu0 %v4016
        %v4018 = vpop.xlane.xlu0 %4017
        %v4019 = vsel %vm3801, %v3651, -inf
        %4020 = vmax.xlane.f32.xlu0 %v4019
        %v4021 = vpop.xlane.xlu0 %4020
        %vm4022 = vcmask 138368
        %4023 = vst.msk [vmem:[#allocation4] sm:$0xff] %vm4022, %v4018
        %4024 = vst.msk [vmem:[#allocation4 + $0x8] sm:$0xff] %vm4022, %v4021
        %v4025 = vsel %vm809, %v4007, 0.0
        %4026 = vadd.xlane.f32.xlu0 %v4025
        %v4027 = vpop.xlane.xlu0 %4026
        %v4028 = vsel %vm809, %v4009, 0.0
        %4029 = vadd.xlane.f32.xlu0 %v4028
        %v4030 = vpop.xlane.xlu0 %4029
        %4031 = vst.msk [vmem:[#allocation4 + $0x10] sm:$0xff] %vm4022, %v4027
        %4032 = vst.msk [vmem:[#allocation4 + $0x18] sm:$0xff] %vm4022, %v4030
        %4033 = vrot.lane.b32.xlu0 %v3649, 32
        %v4034 = vpop.permute.xlu0 %4033
        %4035 = vrot.lane.b32.xlu0 %v3651, 32
        %v4036 = vpop.permute.xlu0 %4035
        %v4039 = vmax.f32 %v4012, %v4034
        %v4040 = vmax.f32 %v4013, %v4036
        %v4041 = vadd.f32 %v4014, %v4034
        %v4042 = vadd.f32 %v4015, %v4036
        %v4043 = vsel %vm3829, %v3649, -inf
        %4044 = vmax.xlane.f32.xlu0 %v4043
        %v4045 = vpop.xlane.xlu0 %4044
        %v4046 = vsel %vm3829, %v3651, -inf
        %4047 = vmax.xlane.f32.xlu0 %v4046
        %v4048 = vpop.xlane.xlu0 %4047
        %vm4049 = vcmask 146568
        %4050 = vst.msk [vmem:[#allocation4] sm:$0xff] %vm4049, %v4045
        %4051 = vst.msk [vmem:[#allocation4 + $0x8] sm:$0xff] %vm4049, %v4048
        %v4052 = vsel %vm809, %v4034, 0.0
        %4053 = vadd.xlane.f32.xlu0 %v4052
        %v4054 = vpop.xlane.xlu0 %4053
        %v4055 = vsel %vm809, %v4036, 0.0
        %4056 = vadd.xlane.f32.xlu0 %v4055
        %v4057 = vpop.xlane.xlu0 %4056
        %4058 = vst.msk [vmem:[#allocation4 + $0x10] sm:$0xff] %vm4049, %v4054
        %4059 = vst.msk [vmem:[#allocation4 + $0x18] sm:$0xff] %vm4049, %v4057
        %4060 = vrot.lane.b32.xlu0 %v3649, 16
        %v4061 = vpop.permute.xlu0 %4060
        %4062 = vrot.lane.b32.xlu0 %v3651, 16
        %v4063 = vpop.permute.xlu0 %4062
        %v4066 = vmax.f32 %v4039, %v4061
        %v4067 = vmax.f32 %v4040, %v4063
        %v4068 = vadd.f32 %v4041, %v4061
        %v4069 = vadd.f32 %v4042, %v4063
        %v4070 = vsel %vm3857, %v3649, -inf
        %4071 = vmax.xlane.f32.xlu0 %v4070
        %v4072 = vpop.xlane.xlu0 %4071
        %v4073 = vsel %vm3857, %v3651, -inf
        %4074 = vmax.xlane.f32.xlu0 %v4073
        %v4075 = vpop.xlane.xlu0 %4074
        %vm4076 = vcmask 154768
        %4077 = vst.msk [vmem:[#allocation4] sm:$0xff] %vm4076, %v4072
        %4078 = vst.msk [vmem:[#allocation4 + $0x8] sm:$0xff] %vm4076, %v4075
        %v4079 = vsel %vm809, %v4061, 0.0
        %4080 = vadd.xlane.f32.xlu0 %v4079
        %v4081 = vpop.xlane.xlu0 %4080
        %v4082 = vsel %vm809, %v4063, 0.0
        %4083 = vadd.xlane.f32.xlu0 %v4082
        %v4084 = vpop.xlane.xlu0 %4083
        %4085 = vst.msk [vmem:[#allocation4 + $0x10] sm:$0xff] %vm4076, %v4081
        %4086 = vst.msk [vmem:[#allocation4 + $0x18] sm:$0xff] %vm4076, %v4084
        %4089 = vrot.lane.b32.xlu0 %v4066, 3
        %v4090 = vpop.permute.xlu0 %4089
        %4091 = vrot.lane.b32.xlu0 %v4067, 3
        %v4092 = vpop.permute.xlu0 %4091
        %vm4095 = vcmask 154648
        %4096 = vst.msk [vmem:[#allocation3] sm:$0xff] %vm4095, %v4090
        %4097 = vst.msk [vmem:[#allocation3 + $0x8] sm:$0xff] %vm4095, %v4092
        %4100 = vrot.lane.b32.xlu0 %v4068, 3
        %v4101 = vpop.permute.xlu0 %4100
        %4102 = vrot.lane.b32.xlu0 %v4069, 3
        %v4103 = vpop.permute.xlu0 %4102
        %4106 = vst.msk [vmem:[#allocation3 + $0x10] sm:$0xff] %vm4095, %v4101
        %4107 = vst.msk [vmem:[#allocation3 + $0x18] sm:$0xff] %vm4095, %v4103
        %v4108 = vmax.f32 %v3648, %v3650
        %v4109 = vrot.slane %v4108, 4
        %v4110 = vmax.f32 %v4108, %v4109
        %v4111 = vrot.slane %v4110, 2
        %v4112 = vmax.f32 %v4110, %v4111
        %v4113 = vrot.slane %v4112, 1
        %v4114 = vmax.f32 %v4112, %v4113
        %v4115 = vmax.f32 %v3649, %v3651
        %v4116 = vrot.slane %v4115, 4
        %v4117 = vmax.f32 %v4115, %v4116
        %v4118 = vrot.slane %v4117, 2
        %v4119 = vmax.f32 %v4117, %v4118
        %v4120 = vrot.slane %v4119, 1
        %v4121 = vmax.f32 %v4119, %v4120
        %v4124 = vcombine.low %v4114, %v4121
        %v4126 = vunpack.c.l.s4 1966171168
        %v4127 = vunpack.c.0.s8 %v4126
        %v4128 = vlaneseq
        %v4129 = vshrl.u32 %v4128, 7
        %v4130 = vsub.s32 %v4127, %v4129
        %v4131 = vrot.slane %v4124, %v4130
        %v4133 = vunpack.c.l.s4 1966171168
        %v4134 = vunpack.c.0.s8 %v4133
        %v4135 = vlaneseq
        %v4136 = vshrl.u32 %v4135, 7
        %v4137 = vsub.s32 %v4134, %v4136
        %v4138 = vrot.slane %v4131, %v4137
        %4139 = vrot.lane.b32.xlu0 %v4138, 16
        %v4140 = vpop.permute.xlu0 %4139
        %v4141 = vrot.slane %v4140, 7
        %v4142 = vsel %vm809, %v4141, %v4140
        %v4144 = vlaneseq
        %vm4145 = vcmp.ge.s32.totalorder %v4144, 16
        %vm4146 = vcmp.lt.s32.totalorder %v4144, 272
        %vm4147 = vmand %vm4145, %vm4146
        %s4148 = scalar_lea.vmem [#allocation2], 8
        %4149 = vst.msk [vmem:[%s4148] ss:$8 sm:$0x7] %vm4147, %v4142
        %4150 = vst.msk [vmem:[%s4148] ss:$8 sm:$0x0] %vm4147, %v4142
        %v4151 = vadd.f32 %v3648, %v3650
        %v4152 = vrot.slane %v4151, 4
        %v4153 = vadd.f32 %v4151, %v4152
        %v4154 = vrot.slane %v4153, 2
        %v4155 = vadd.f32 %v4153, %v4154
        %v4156 = vrot.slane %v4155, 1
        %v4157 = vadd.f32 %v4155, %v4156
        %v4158 = vadd.f32 %v3649, %v3651
        %v4159 = vrot.slane %v4158, 4
        %v4160 = vadd.f32 %v4158, %v4159
        %v4161 = vrot.slane %v4160, 2
        %v4162 = vadd.f32 %v4160, %v4161
        %v4163 = vrot.slane %v4162, 1
        %v4164 = vadd.f32 %v4162, %v4163
        %v4165 = vrcp.pop 16.0
        %v4166 = vmul.f32 %v4157, %v4165
        %v4167 = vmul.f32 %v4164, %v4165
        %v4170 = vcombine.low %v4166, %v4167
        %v4172 = vunpack.c.l.s4 1966171168
        %v4173 = vunpack.c.0.s8 %v4172
        %v4174 = vlaneseq
        %v4175 = vshrl.u32 %v4174, 7
        %v4176 = vsub.s32 %v4173, %v4175
        %v4177 = vrot.slane %v4170, %v4176
        %v4179 = vunpack.c.l.s4 1966171168
        %v4180 = vunpack.c.0.s8 %v4179
        %v4181 = vlaneseq
        %v4182 = vshrl.u32 %v4181, 7
        %v4183 = vsub.s32 %v4180, %v4182
        %v4184 = vrot.slane %v4177, %v4183
        %4185 = vrot.lane.b32.xlu0 %v4184, 16
        %v4186 = vpop.permute.xlu0 %4185
        %v4187 = vrot.slane %v4186, 7
        %v4188 = vsel %vm809, %v4187, %v4186
        %s4190 = scalar_lea.vmem [#allocation2], 9
        %4191 = vst.msk [vmem:[%s4190] ss:$8 sm:$0x7] %vm4147, %v4188
        %4192 = vst.msk [vmem:[%s4190] ss:$8 sm:$0x0] %vm4147, %v4188
        %v4193 = vld [vmem:[%s14] sm:$0x1]
        %4195 = vset.pattern.permute.xlu0 0
        %4196 = vperm.xlu0 %4195, %v4193
        %v4197 = vpop.permute.xlu0 %4196
        %v4199 = vld [vmem:[#allocation2] sm:$0x3]
        %v4200 = vld [vmem:[#allocation2 + $0x8] sm:$0x3]
        %v4201 = vld [vmem:[#allocation2 + $0x10] sm:$0x3]
        %v4202 = vld [vmem:[#allocation13] sm:$0x3]
        %4204 = vset.pattern.permute.xlu0 0
        %4205 = vperm.xlu0 %4204, %v4202
        %v4206 = vpop.permute.xlu0 %4205
        %v4208 = vmul.f32 %v4199, %v4206
        %v4209 = vmul.f32 %v4200, %v4206
        %v4210 = vmul.f32 %v4201, %v4206
        %v4211 = vadd.f32 %v4208, 0.0
        %v4212 = vadd.f32 %v4209, 0.0
        %v4213 = vadd.f32 %v4210, 0.0
        %4214 = vset.pattern.permute.xlu0 7
        %4215 = vperm.xlu0 %4214, %v4202
        %v4216 = vpop.permute.xlu0 %4215
        %v4218 = vmul.f32 %v4199, %v4216
        %v4219 = vmul.f32 %v4200, %v4216
        %v4220 = vmul.f32 %v4201, %v4216
        %4224 = vrot.lane.b32.xlu0 %v4218, 112
        %v4225 = vpop.permute.xlu0 %4224
        %4226 = vrot.lane.b32.xlu0 %v4219, 112
        %v4227 = vpop.permute.xlu0 %4226
        %4228 = vrot.lane.b32.xlu0 %v4220, 112
        %v4229 = vpop.permute.xlu0 %4228
        %v4230 = vsel %vm1145, %v4225, %v4227
        %v4231 = vsel %vm1145, %v4227, %v4229
        %v4235 = vadd.f32 %v4211, %v4230
        %v4236 = vadd.f32 %v4212, %v4231
        %v4237 = vadd.f32 %v4213, %v4229
        %4238 = vset.pattern.permute.xlu0 14
        %4239 = vperm.xlu0 %4238, %v4202
        %v4240 = vpop.permute.xlu0 %4239
        %v4242 = vmul.f32 %v4199, %v4240
        %v4243 = vmul.f32 %v4200, %v4240
        %v4244 = vmul.f32 %v4201, %v4240
        %4248 = vrot.lane.b32.xlu0 %v4242, 96
        %v4249 = vpop.permute.xlu0 %4248
        %4250 = vrot.lane.b32.xlu0 %v4243, 96
        %v4251 = vpop.permute.xlu0 %4250
        %4252 = vrot.lane.b32.xlu0 %v4244, 96
        %v4253 = vpop.permute.xlu0 %4252
        %v4254 = vsel %vm1312, %v4249, %v4251
        %v4255 = vsel %vm1312, %v4251, %v4253
        %v4259 = vadd.f32 %v4235, %v4254
        %v4260 = vadd.f32 %v4236, %v4255
        %v4261 = vadd.f32 %v4237, %v4253
        %v4262 = vld [vmem:[#allocation2 + $0x8] sm:$0x3]
        %v4263 = vld [vmem:[#allocation2 + $0x10] sm:$0x3]
        %v4264 = vld [vmem:[#allocation2 + $0x18] sm:$0x3]
        %4265 = vset.pattern.permute.xlu0 21
        %4266 = vperm.xlu0 %4265, %v4202
        %v4267 = vpop.permute.xlu0 %4266
        %v4269 = vmul.f32 %v4262, %v4267
        %v4270 = vmul.f32 %v4263, %v4267
        %v4271 = vmul.f32 %v4264, %v4267
        %4275 = vrot.lane.b32.xlu0 %v4269, 80
        %v4276 = vpop.permute.xlu0 %4275
        %4277 = vrot.lane.b32.xlu0 %v4270, 80
        %v4278 = vpop.permute.xlu0 %4277
        %4279 = vrot.lane.b32.xlu0 %v4271, 80
        %v4280 = vpop.permute.xlu0 %4279
        %v4281 = vsel %vm2393, %v4276, %v4278
        %v4282 = vsel %vm2393, %v4278, %v4280
        %v4286 = vadd.f32 %v4259, %v4276
        %v4287 = vadd.f32 %v4260, %v4281
        %v4288 = vadd.f32 %v4261, %v4282
        %4289 = vset.pattern.permute.xlu0 28
        %4290 = vperm.xlu0 %4289, %v4202
        %v4291 = vpop.permute.xlu0 %4290
        %v4293 = vmul.f32 %v4262, %v4291
        %v4294 = vmul.f32 %v4263, %v4291
        %v4295 = vmul.f32 %v4264, %v4291
        %4299 = vrot.lane.b32.xlu0 %v4293, 64
        %v4300 = vpop.permute.xlu0 %4299
        %4301 = vrot.lane.b32.xlu0 %v4294, 64
        %v4302 = vpop.permute.xlu0 %4301
        %4303 = vrot.lane.b32.xlu0 %v4295, 64
        %v4304 = vpop.permute.xlu0 %4303
        %v4305 = vsel %vm2442, %v4300, %v4302
        %v4306 = vsel %vm2442, %v4302, %v4304
        %v4310 = vadd.f32 %v4286, %v4300
        %v4311 = vadd.f32 %v4287, %v4305
        %v4312 = vadd.f32 %v4288, %v4306
        %4313 = vset.pattern.permute.xlu0 35
        %4314 = vperm.xlu0 %4313, %v4202
        %v4315 = vpop.permute.xlu0 %4314
        %v4317 = vmul.f32 %v4262, %v4315
        %v4318 = vmul.f32 %v4263, %v4315
        %v4319 = vmul.f32 %v4264, %v4315
        %4323 = vrot.lane.b32.xlu0 %v4317, 48
        %v4324 = vpop.permute.xlu0 %4323
        %4325 = vrot.lane.b32.xlu0 %v4318, 48
        %v4326 = vpop.permute.xlu0 %4325
        %4327 = vrot.lane.b32.xlu0 %v4319, 48
        %v4328 = vpop.permute.xlu0 %4327
        %vm4329 = vcmask 392192
        %v4330 = vsel %vm4329, %v4324, %v4326
        %v4331 = vsel %vm4329, %v4326, %v4328
        %v4335 = vadd.f32 %v4310, %v4324
        %v4336 = vadd.f32 %v4311, %v4330
        %v4337 = vadd.f32 %v4312, %v4331
        %4338 = vset.pattern.permute.xlu0 42
        %4339 = vperm.xlu0 %4338, %v4202
        %v4340 = vpop.permute.xlu0 %4339
        %v4342 = vmul.f32 %v4262, %v4340
        %v4343 = vmul.f32 %v4263, %v4340
        %v4344 = vmul.f32 %v4264, %v4340
        %4348 = vrot.lane.b32.xlu0 %v4342, 32
        %v4349 = vpop.permute.xlu0 %4348
        %4350 = vrot.lane.b32.xlu0 %v4343, 32
        %v4351 = vpop.permute.xlu0 %4350
        %4352 = vrot.lane.b32.xlu0 %v4344, 32
        %v4353 = vpop.permute.xlu0 %4352
        %v4354 = vsel %vm815, %v4349, %v4351
        %v4355 = vsel %vm815, %v4351, %v4353
        %v4359 = vadd.f32 %v4335, %v4349
        %v4360 = vadd.f32 %v4336, %v4354
        %v4361 = vadd.f32 %v4337, %v4355
        %v4365 = vrot.slane %v4359, 1
        %v4366 = vrot.slane %v4360, 1
        %v4367 = vrot.slane %v4361, 1
        %v4371 = vadd.f32 %v4359, %v4365
        %v4372 = vadd.f32 %v4360, %v4366
        %v4373 = vadd.f32 %v4361, %v4367
        %v4374 = vld [vmem:[%s2648] ss:$8 sm:$0x3]
        %v4376 = vlaneseq
        %v4377 = vshrl.u32 %v4376, 7
        %v4378 = vsub.s32 0, %v4377
        %v4379 = vrot.slane %v4374, %v4378
        %v4380 = vlaneseq
        %v4381 = vshrl.u32 %v4380, 7
        %v4382 = vsub.s32 1, %v4381
        %v4383 = vrot.slane %v4374, %v4382
        %4384 = vrot.lane.b32.xlu0 %v4379, 93
        %v4385 = vpop.permute.xlu0 %4384
        %4386 = vrot.lane.b32.xlu0 %v4383, 93
        %v4387 = vpop.permute.xlu0 %4386
        %vm4388 = vcmask 760832
        %v4389 = vsel %vm4388, %v4385, %v4387
        %v4393 = vmul.f32 %v4371, %v4385
        %v4394 = vmul.f32 %v4372, %v4389
        %v4395 = vmul.f32 %v4373, %v4387
        %v4396 = vadd.f32 %v4197, %v4393
        %v4397 = vadd.f32 %v4197, %v4394
        %v4398 = vadd.f32 %v4197, %v4395
        %4399 = vset.pattern.permute.xlu0 1
        %4400 = vperm.xlu0 %4399, %v4202
        %v4401 = vpop.permute.xlu0 %4400
        %v4403 = vmul.f32 %v4199, %v4401
        %v4404 = vmul.f32 %v4200, %v4401
        %v4405 = vmul.f32 %v4201, %v4401
        %v4406 = vadd.f32 %v4403, 0.0
        %v4407 = vadd.f32 %v4404, 0.0
        %v4408 = vadd.f32 %v4405, 0.0
        %4409 = vset.pattern.permute.xlu0 8
        %4410 = vperm.xlu0 %4409, %v4202
        %v4411 = vpop.permute.xlu0 %4410
        %v4413 = vmul.f32 %v4199, %v4411
        %v4414 = vmul.f32 %v4200, %v4411
        %v4415 = vmul.f32 %v4201, %v4411
        %4419 = vrot.lane.b32.xlu0 %v4413, 112
        %v4420 = vpop.permute.xlu0 %4419
        %4421 = vrot.lane.b32.xlu0 %v4414, 112
        %v4422 = vpop.permute.xlu0 %4421
        %4423 = vrot.lane.b32.xlu0 %v4415, 112
        %v4424 = vpop.permute.xlu0 %4423
        %v4425 = vsel %vm1145, %v4420, %v4422
        %v4426 = vsel %vm1145, %v4422, %v4424
        %v4430 = vadd.f32 %v4406, %v4425
        %v4431 = vadd.f32 %v4407, %v4426
        %v4432 = vadd.f32 %v4408, %v4424
        %4433 = vset.pattern.permute.xlu0 15
        %4434 = vperm.xlu0 %4433, %v4202
        %v4435 = vpop.permute.xlu0 %4434
        %v4437 = vmul.f32 %v4199, %v4435
        %v4438 = vmul.f32 %v4200, %v4435
        %v4439 = vmul.f32 %v4201, %v4435
        %4443 = vrot.lane.b32.xlu0 %v4437, 96
        %v4444 = vpop.permute.xlu0 %4443
        %4445 = vrot.lane.b32.xlu0 %v4438, 96
        %v4446 = vpop.permute.xlu0 %4445
        %4447 = vrot.lane.b32.xlu0 %v4439, 96
        %v4448 = vpop.permute.xlu0 %4447
        %v4449 = vsel %vm1312, %v4444, %v4446
        %v4450 = vsel %vm1312, %v4446, %v4448
        %v4454 = vadd.f32 %v4430, %v4449
        %v4455 = vadd.f32 %v4431, %v4450
        %v4456 = vadd.f32 %v4432, %v4448
        %4457 = vset.pattern.permute.xlu0 22
        %4458 = vperm.xlu0 %4457, %v4202
        %v4459 = vpop.permute.xlu0 %4458
        %v4461 = vmul.f32 %v4262, %v4459
        %v4462 = vmul.f32 %v4263, %v4459
        %v4463 = vmul.f32 %v4264, %v4459
        %4467 = vrot.lane.b32.xlu0 %v4461, 80
        %v4468 = vpop.permute.xlu0 %4467
        %4469 = vrot.lane.b32.xlu0 %v4462, 80
        %v4470 = vpop.permute.xlu0 %4469
        %4471 = vrot.lane.b32.xlu0 %v4463, 80
        %v4472 = vpop.permute.xlu0 %4471
        %v4473 = vsel %vm2393, %v4468, %v4470
        %v4474 = vsel %vm2393, %v4470, %v4472
        %v4478 = vadd.f32 %v4454, %v4468
        %v4479 = vadd.f32 %v4455, %v4473
        %v4480 = vadd.f32 %v4456, %v4474
        %4481 = vset.pattern.permute.xlu0 29
        %4482 = vperm.xlu0 %4481, %v4202
        %v4483 = vpop.permute.xlu0 %4482
        %v4485 = vmul.f32 %v4262, %v4483
        %v4486 = vmul.f32 %v4263, %v4483
        %v4487 = vmul.f32 %v4264, %v4483
        %4491 = vrot.lane.b32.xlu0 %v4485, 64
        %v4492 = vpop.permute.xlu0 %4491
        %4493 = vrot.lane.b32.xlu0 %v4486, 64
        %v4494 = vpop.permute.xlu0 %4493
        %4495 = vrot.lane.b32.xlu0 %v4487, 64
        %v4496 = vpop.permute.xlu0 %4495
        %v4497 = vsel %vm2442, %v4492, %v4494
        %v4498 = vsel %vm2442, %v4494, %v4496
        %v4502 = vadd.f32 %v4478, %v4492
        %v4503 = vadd.f32 %v4479, %v4497
        %v4504 = vadd.f32 %v4480, %v4498
        %4505 = vset.pattern.permute.xlu0 36
        %4506 = vperm.xlu0 %4505, %v4202
        %v4507 = vpop.permute.xlu0 %4506
        %v4509 = vmul.f32 %v4262, %v4507
        %v4510 = vmul.f32 %v4263, %v4507
        %v4511 = vmul.f32 %v4264, %v4507
        %4515 = vrot.lane.b32.xlu0 %v4509, 48
        %v4516 = vpop.permute.xlu0 %4515
        %4517 = vrot.lane.b32.xlu0 %v4510, 48
        %v4518 = vpop.permute.xlu0 %4517
        %4519 = vrot.lane.b32.xlu0 %v4511, 48
        %v4520 = vpop.permute.xlu0 %4519
        %v4521 = vsel %vm4329, %v4516, %v4518
        %v4522 = vsel %vm4329, %v4518, %v4520
        %v4526 = vadd.f32 %v4502, %v4516
        %v4527 = vadd.f32 %v4503, %v4521
        %v4528 = vadd.f32 %v4504, %v4522
        %4529 = vset.pattern.permute.xlu0 43
        %4530 = vperm.xlu0 %4529, %v4202
        %v4531 = vpop.permute.xlu0 %4530
        %v4533 = vmul.f32 %v4262, %v4531
        %v4534 = vmul.f32 %v4263, %v4531
        %v4535 = vmul.f32 %v4264, %v4531
        %4539 = vrot.lane.b32.xlu0 %v4533, 32
        %v4540 = vpop.permute.xlu0 %4539
        %4541 = vrot.lane.b32.xlu0 %v4534, 32
        %v4542 = vpop.permute.xlu0 %4541
        %4543 = vrot.lane.b32.xlu0 %v4535, 32
        %v4544 = vpop.permute.xlu0 %4543
        %v4545 = vsel %vm815, %v4540, %v4542
        %v4546 = vsel %vm815, %v4542, %v4544
        %v4550 = vadd.f32 %v4526, %v4540
        %v4551 = vadd.f32 %v4527, %v4545
        %v4552 = vadd.f32 %v4528, %v4546
        %v4556 = vrot.slane %v4550, 1
        %v4557 = vrot.slane %v4551, 1
        %v4558 = vrot.slane %v4552, 1
        %v4562 = vadd.f32 %v4550, %v4556
        %v4563 = vadd.f32 %v4551, %v4557
        %v4564 = vadd.f32 %v4552, %v4558
        %v4565 = vld [vmem:[%s1865] ss:$8 sm:$0x3]
        %v4567 = vlaneseq
        %v4568 = vshrl.u32 %v4567, 7
        %v4569 = vsub.s32 0, %v4568
        %v4570 = vrot.slane %v4565, %v4569
        %v4571 = vlaneseq
        %v4572 = vshrl.u32 %v4571, 7
        %v4573 = vsub.s32 1, %v4572
        %v4574 = vrot.slane %v4565, %v4573
        %4575 = vrot.lane.b32.xlu0 %v4570, 94
        %v4576 = vpop.permute.xlu0 %4575
        %4577 = vrot.lane.b32.xlu0 %v4574, 94
        %v4578 = vpop.permute.xlu0 %4577
        %vm4579 = vcmask 769024
        %v4580 = vsel %vm4579, %v4576, %v4578
        %v4584 = vmul.f32 %v4562, %v4576
        %v4585 = vmul.f32 %v4563, %v4580
        %v4586 = vmul.f32 %v4564, %v4578
        %4590 = vrot.lane.b32.xlu0 %v4584, 127
        %v4591 = vpop.permute.xlu0 %4590
        %4592 = vrot.lane.b32.xlu0 %v4585, 127
        %v4593 = vpop.permute.xlu0 %4592
        %4594 = vrot.lane.b32.xlu0 %v4586, 127
        %v4595 = vpop.permute.xlu0 %4594
        %v4596 = vsel %vm1509, %v4591, %v4593
        %v4597 = vsel %vm1509, %v4593, %v4595
        %v4601 = vadd.f32 %v4396, %v4596
        %v4602 = vadd.f32 %v4397, %v4597
        %v4603 = vadd.f32 %v4398, %v4595
        %4604 = vset.pattern.permute.xlu0 2
        %4605 = vperm.xlu0 %4604, %v4202
        %v4606 = vpop.permute.xlu0 %4605
        %v4608 = vmul.f32 %v4199, %v4606
        %v4609 = vmul.f32 %v4200, %v4606
        %v4610 = vmul.f32 %v4201, %v4606
        %v4611 = vadd.f32 %v4608, 0.0
        %v4612 = vadd.f32 %v4609, 0.0
        %v4613 = vadd.f32 %v4610, 0.0
        %4614 = vset.pattern.permute.xlu0 9
        %4615 = vperm.xlu0 %4614, %v4202
        %v4616 = vpop.permute.xlu0 %4615
        %v4618 = vmul.f32 %v4199, %v4616
        %v4619 = vmul.f32 %v4200, %v4616
        %v4620 = vmul.f32 %v4201, %v4616
        %4624 = vrot.lane.b32.xlu0 %v4618, 112
        %v4625 = vpop.permute.xlu0 %4624
        %4626 = vrot.lane.b32.xlu0 %v4619, 112
        %v4627 = vpop.permute.xlu0 %4626
        %4628 = vrot.lane.b32.xlu0 %v4620, 112
        %v4629 = vpop.permute.xlu0 %4628
        %v4630 = vsel %vm1145, %v4625, %v4627
        %v4631 = vsel %vm1145, %v4627, %v4629
        %v4635 = vadd.f32 %v4611, %v4630
        %v4636 = vadd.f32 %v4612, %v4631
        %v4637 = vadd.f32 %v4613, %v4629
        %4638 = vset.pattern.permute.xlu0 16
        %4639 = vperm.xlu0 %4638, %v4202
        %v4640 = vpop.permute.xlu0 %4639
        %v4642 = vmul.f32 %v4199, %v4640
        %v4643 = vmul.f32 %v4200, %v4640
        %v4644 = vmul.f32 %v4201, %v4640
        %4648 = vrot.lane.b32.xlu0 %v4642, 96
        %v4649 = vpop.permute.xlu0 %4648
        %4650 = vrot.lane.b32.xlu0 %v4643, 96
        %v4651 = vpop.permute.xlu0 %4650
        %4652 = vrot.lane.b32.xlu0 %v4644, 96
        %v4653 = vpop.permute.xlu0 %4652
        %v4654 = vsel %vm1312, %v4649, %v4651
        %v4655 = vsel %vm1312, %v4651, %v4653
        %v4659 = vadd.f32 %v4635, %v4654
        %v4660 = vadd.f32 %v4636, %v4655
        %v4661 = vadd.f32 %v4637, %v4653
        %4662 = vset.pattern.permute.xlu0 23
        %4663 = vperm.xlu0 %4662, %v4202
        %v4664 = vpop.permute.xlu0 %4663
        %v4666 = vmul.f32 %v4262, %v4664
        %v4667 = vmul.f32 %v4263, %v4664
        %v4668 = vmul.f32 %v4264, %v4664
        %4672 = vrot.lane.b32.xlu0 %v4666, 80
        %v4673 = vpop.permute.xlu0 %4672
        %4674 = vrot.lane.b32.xlu0 %v4667, 80
        %v4675 = vpop.permute.xlu0 %4674
        %4676 = vrot.lane.b32.xlu0 %v4668, 80
        %v4677 = vpop.permute.xlu0 %4676
        %v4678 = vsel %vm2393, %v4673, %v4675
        %v4679 = vsel %vm2393, %v4675, %v4677
        %v4683 = vadd.f32 %v4659, %v4673
        %v4684 = vadd.f32 %v4660, %v4678
        %v4685 = vadd.f32 %v4661, %v4679
        %4686 = vset.pattern.permute.xlu0 30
        %4687 = vperm.xlu0 %4686, %v4202
        %v4688 = vpop.permute.xlu0 %4687
        %v4690 = vmul.f32 %v4262, %v4688
        %v4691 = vmul.f32 %v4263, %v4688
        %v4692 = vmul.f32 %v4264, %v4688
        %4696 = vrot.lane.b32.xlu0 %v4690, 64
        %v4697 = vpop.permute.xlu0 %4696
        %4698 = vrot.lane.b32.xlu0 %v4691, 64
        %v4699 = vpop.permute.xlu0 %4698
        %4700 = vrot.lane.b32.xlu0 %v4692, 64
        %v4701 = vpop.permute.xlu0 %4700
        %v4702 = vsel %vm2442, %v4697, %v4699
        %v4703 = vsel %vm2442, %v4699, %v4701
        %v4707 = vadd.f32 %v4683, %v4697
        %v4708 = vadd.f32 %v4684, %v4702
        %v4709 = vadd.f32 %v4685, %v4703
        %4710 = vset.pattern.permute.xlu0 37
        %4711 = vperm.xlu0 %4710, %v4202
        %v4712 = vpop.permute.xlu0 %4711
        %v4714 = vmul.f32 %v4262, %v4712
        %v4715 = vmul.f32 %v4263, %v4712
        %v4716 = vmul.f32 %v4264, %v4712
        %4720 = vrot.lane.b32.xlu0 %v4714, 48
        %v4721 = vpop.permute.xlu0 %4720
        %4722 = vrot.lane.b32.xlu0 %v4715, 48
        %v4723 = vpop.permute.xlu0 %4722
        %4724 = vrot.lane.b32.xlu0 %v4716, 48
        %v4725 = vpop.permute.xlu0 %4724
        %v4726 = vsel %vm4329, %v4721, %v4723
        %v4727 = vsel %vm4329, %v4723, %v4725
        %v4731 = vadd.f32 %v4707, %v4721
        %v4732 = vadd.f32 %v4708, %v4726
        %v4733 = vadd.f32 %v4709, %v4727
        %4734 = vset.pattern.permute.xlu0 44
        %4735 = vperm.xlu0 %4734, %v4202
        %v4736 = vpop.permute.xlu0 %4735
        %v4738 = vmul.f32 %v4262, %v4736
        %v4739 = vmul.f32 %v4263, %v4736
        %v4740 = vmul.f32 %v4264, %v4736
        %4744 = vrot.lane.b32.xlu0 %v4738, 32
        %v4745 = vpop.permute.xlu0 %4744
        %4746 = vrot.lane.b32.xlu0 %v4739, 32
        %v4747 = vpop.permute.xlu0 %4746
        %4748 = vrot.lane.b32.xlu0 %v4740, 32
        %v4749 = vpop.permute.xlu0 %4748
        %v4750 = vsel %vm815, %v4745, %v4747
        %v4751 = vsel %vm815, %v4747, %v4749
        %v4755 = vadd.f32 %v4731, %v4745
        %v4756 = vadd.f32 %v4732, %v4750
        %v4757 = vadd.f32 %v4733, %v4751
        %v4761 = vrot.slane %v4755, 1
        %v4762 = vrot.slane %v4756, 1
        %v4763 = vrot.slane %v4757, 1
        %v4767 = vadd.f32 %v4755, %v4761
        %v4768 = vadd.f32 %v4756, %v4762
        %v4769 = vadd.f32 %v4757, %v4763
        %v4770 = vld [vmem:[%s1118] ss:$8 sm:$0x3]
        %v4772 = vlaneseq
        %v4773 = vshrl.u32 %v4772, 7
        %v4774 = vsub.s32 0, %v4773
        %v4775 = vrot.slane %v4770, %v4774
        %v4776 = vlaneseq
        %v4777 = vshrl.u32 %v4776, 7
        %v4778 = vsub.s32 1, %v4777
        %v4779 = vrot.slane %v4770, %v4778
        %4780 = vrot.lane.b32.xlu0 %v4775, 95
        %v4781 = vpop.permute.xlu0 %4780
        %4782 = vrot.lane.b32.xlu0 %v4779, 95
        %v4783 = vpop.permute.xlu0 %4782
        %v4784 = vsel %vm1598, %v4781, %v4783
        %v4788 = vmul.f32 %v4767, %v4781
        %v4789 = vmul.f32 %v4768, %v4784
        %v4790 = vmul.f32 %v4769, %v4783
        %4794 = vrot.lane.b32.xlu0 %v4788, 126
        %v4795 = vpop.permute.xlu0 %4794
        %4796 = vrot.lane.b32.xlu0 %v4789, 126
        %v4797 = vpop.permute.xlu0 %4796
        %4798 = vrot.lane.b32.xlu0 %v4790, 126
        %v4799 = vpop.permute.xlu0 %4798
        %v4800 = vsel %vm2026, %v4795, %v4797
        %v4801 = vsel %vm2026, %v4797, %v4799
        %v4805 = vadd.f32 %v4601, %v4800
        %v4806 = vadd.f32 %v4602, %v4801
        %v4807 = vadd.f32 %v4603, %v4799
        %4808 = vset.pattern.permute.xlu0 3
        %4809 = vperm.xlu0 %4808, %v4202
        %v4810 = vpop.permute.xlu0 %4809
        %v4812 = vmul.f32 %v4199, %v4810
        %v4813 = vmul.f32 %v4200, %v4810
        %v4814 = vmul.f32 %v4201, %v4810
        %v4815 = vadd.f32 %v4812, 0.0
        %v4816 = vadd.f32 %v4813, 0.0
        %v4817 = vadd.f32 %v4814, 0.0
        %4818 = vset.pattern.permute.xlu0 10
        %4819 = vperm.xlu0 %4818, %v4202
        %v4820 = vpop.permute.xlu0 %4819
        %v4822 = vmul.f32 %v4199, %v4820
        %v4823 = vmul.f32 %v4200, %v4820
        %v4824 = vmul.f32 %v4201, %v4820
        %4828 = vrot.lane.b32.xlu0 %v4822, 112
        %v4829 = vpop.permute.xlu0 %4828
        %4830 = vrot.lane.b32.xlu0 %v4823, 112
        %v4831 = vpop.permute.xlu0 %4830
        %4832 = vrot.lane.b32.xlu0 %v4824, 112
        %v4833 = vpop.permute.xlu0 %4832
        %v4834 = vsel %vm1145, %v4829, %v4831
        %v4835 = vsel %vm1145, %v4831, %v4833
        %v4839 = vadd.f32 %v4815, %v4834
        %v4840 = vadd.f32 %v4816, %v4835
        %v4841 = vadd.f32 %v4817, %v4833
        %4842 = vset.pattern.permute.xlu0 17
        %4843 = vperm.xlu0 %4842, %v4202
        %v4844 = vpop.permute.xlu0 %4843
        %v4846 = vmul.f32 %v4200, %v4844
        %v4847 = vmul.f32 %v4201, %v4844
        %4850 = vrot.lane.b32.xlu0 %v4846, 96
        %v4851 = vpop.permute.xlu0 %4850
        %4852 = vrot.lane.b32.xlu0 %v4847, 96
        %v4853 = vpop.permute.xlu0 %4852
        %v4854 = vsel %vm1312, %v4851, %v4853
        %v4858 = vadd.f32 %v4839, %v4851
        %v4859 = vadd.f32 %v4840, %v4854
        %v4860 = vadd.f32 %v4841, %v4853
        %4861 = vset.pattern.permute.xlu0 24
        %4862 = vperm.xlu0 %4861, %v4202
        %v4863 = vpop.permute.xlu0 %4862
        %v4865 = vmul.f32 %v4262, %v4863
        %v4866 = vmul.f32 %v4263, %v4863
        %v4867 = vmul.f32 %v4264, %v4863
        %4871 = vrot.lane.b32.xlu0 %v4865, 80
        %v4872 = vpop.permute.xlu0 %4871
        %4873 = vrot.lane.b32.xlu0 %v4866, 80
        %v4874 = vpop.permute.xlu0 %4873
        %4875 = vrot.lane.b32.xlu0 %v4867, 80
        %v4876 = vpop.permute.xlu0 %4875
        %v4877 = vsel %vm2393, %v4872, %v4874
        %v4878 = vsel %vm2393, %v4874, %v4876
        %v4882 = vadd.f32 %v4858, %v4872
        %v4883 = vadd.f32 %v4859, %v4877
        %v4884 = vadd.f32 %v4860, %v4878
        %4885 = vset.pattern.permute.xlu0 31
        %4886 = vperm.xlu0 %4885, %v4202
        %v4887 = vpop.permute.xlu0 %4886
        %v4889 = vmul.f32 %v4262, %v4887
        %v4890 = vmul.f32 %v4263, %v4887
        %v4891 = vmul.f32 %v4264, %v4887
        %4895 = vrot.lane.b32.xlu0 %v4889, 64
        %v4896 = vpop.permute.xlu0 %4895
        %4897 = vrot.lane.b32.xlu0 %v4890, 64
        %v4898 = vpop.permute.xlu0 %4897
        %4899 = vrot.lane.b32.xlu0 %v4891, 64
        %v4900 = vpop.permute.xlu0 %4899
        %v4901 = vsel %vm2442, %v4896, %v4898
        %v4902 = vsel %vm2442, %v4898, %v4900
        %v4906 = vadd.f32 %v4882, %v4896
        %v4907 = vadd.f32 %v4883, %v4901
        %v4908 = vadd.f32 %v4884, %v4902
        %4909 = vset.pattern.permute.xlu0 38
        %4910 = vperm.xlu0 %4909, %v4202
        %v4911 = vpop.permute.xlu0 %4910
        %v4913 = vmul.f32 %v4262, %v4911
        %v4914 = vmul.f32 %v4263, %v4911
        %v4915 = vmul.f32 %v4264, %v4911
        %4919 = vrot.lane.b32.xlu0 %v4913, 48
        %v4920 = vpop.permute.xlu0 %4919
        %4921 = vrot.lane.b32.xlu0 %v4914, 48
        %v4922 = vpop.permute.xlu0 %4921
        %4923 = vrot.lane.b32.xlu0 %v4915, 48
        %v4924 = vpop.permute.xlu0 %4923
        %v4925 = vsel %vm4329, %v4920, %v4922
        %v4926 = vsel %vm4329, %v4922, %v4924
        %v4930 = vadd.f32 %v4906, %v4920
        %v4931 = vadd.f32 %v4907, %v4925
        %v4932 = vadd.f32 %v4908, %v4926
        %4933 = vset.pattern.permute.xlu0 45
        %4934 = vperm.xlu0 %4933, %v4202
        %v4935 = vpop.permute.xlu0 %4934
        %v4937 = vmul.f32 %v4262, %v4935
        %v4938 = vmul.f32 %v4263, %v4935
        %v4939 = vmul.f32 %v4264, %v4935
        %4943 = vrot.lane.b32.xlu0 %v4937, 32
        %v4944 = vpop.permute.xlu0 %4943
        %4945 = vrot.lane.b32.xlu0 %v4938, 32
        %v4946 = vpop.permute.xlu0 %4945
        %4947 = vrot.lane.b32.xlu0 %v4939, 32
        %v4948 = vpop.permute.xlu0 %4947
        %v4949 = vsel %vm815, %v4944, %v4946
        %v4950 = vsel %vm815, %v4946, %v4948
        %v4954 = vadd.f32 %v4930, %v4944
        %v4955 = vadd.f32 %v4931, %v4949
        %v4956 = vadd.f32 %v4932, %v4950
        %v4960 = vrot.slane %v4954, 1
        %v4961 = vrot.slane %v4955, 1
        %v4962 = vrot.slane %v4956, 1
        %v4966 = vadd.f32 %v4954, %v4960
        %v4967 = vadd.f32 %v4955, %v4961
        %v4968 = vadd.f32 %v4956, %v4962
        %v4969 = vld [vmem:[%s1395] ss:$8 sm:$0x3]
        %v4971 = vlaneseq
        %v4972 = vshrl.u32 %v4971, 7
        %v4973 = vsub.s32 0, %v4972
        %v4974 = vrot.slane %v4969, %v4973
        %v4975 = vlaneseq
        %v4976 = vshrl.u32 %v4975, 7
        %v4977 = vsub.s32 1, %v4976
        %v4978 = vrot.slane %v4969, %v4977
        %4979 = vrot.lane.b32.xlu0 %v4974, 96
        %v4980 = vpop.permute.xlu0 %4979
        %4981 = vrot.lane.b32.xlu0 %v4978, 96
        %v4982 = vpop.permute.xlu0 %4981
        %v4983 = vsel %vm1312, %v4980, %v4982
        %v4987 = vmul.f32 %v4966, %v4980
        %v4988 = vmul.f32 %v4967, %v4983
        %v4989 = vmul.f32 %v4968, %v4982
        %4993 = vrot.lane.b32.xlu0 %v4987, 125
        %v4994 = vpop.permute.xlu0 %4993
        %4995 = vrot.lane.b32.xlu0 %v4988, 125
        %v4996 = vpop.permute.xlu0 %4995
        %4997 = vrot.lane.b32.xlu0 %v4989, 125
        %v4998 = vpop.permute.xlu0 %4997
        %v4999 = vsel %vm2100, %v4994, %v4996
        %v5000 = vsel %vm2100, %v4996, %v4998
        %v5004 = vadd.f32 %v4805, %v4999
        %v5005 = vadd.f32 %v4806, %v5000
        %v5006 = vadd.f32 %v4807, %v4998
        %5007 = vset.pattern.permute.xlu0 4
        %5008 = vperm.xlu0 %5007, %v4202
        %v5009 = vpop.permute.xlu0 %5008
        %v5011 = vmul.f32 %v4199, %v5009
        %v5012 = vmul.f32 %v4200, %v5009
        %v5013 = vmul.f32 %v4201, %v5009
        %v5014 = vadd.f32 %v5011, 0.0
        %v5015 = vadd.f32 %v5012, 0.0
        %v5016 = vadd.f32 %v5013, 0.0
        %5017 = vset.pattern.permute.xlu0 11
        %5018 = vperm.xlu0 %5017, %v4202
        %v5019 = vpop.permute.xlu0 %5018
        %v5021 = vmul.f32 %v4199, %v5019
        %v5022 = vmul.f32 %v4200, %v5019
        %v5023 = vmul.f32 %v4201, %v5019
        %5027 = vrot.lane.b32.xlu0 %v5021, 112
        %v5028 = vpop.permute.xlu0 %5027
        %5029 = vrot.lane.b32.xlu0 %v5022, 112
        %v5030 = vpop.permute.xlu0 %5029
        %5031 = vrot.lane.b32.xlu0 %v5023, 112
        %v5032 = vpop.permute.xlu0 %5031
        %v5033 = vsel %vm1145, %v5028, %v5030
        %v5034 = vsel %vm1145, %v5030, %v5032
        %v5038 = vadd.f32 %v5014, %v5033
        %v5039 = vadd.f32 %v5015, %v5034
        %v5040 = vadd.f32 %v5016, %v5032
        %5041 = vset.pattern.permute.xlu0 18
        %5042 = vperm.xlu0 %5041, %v4202
        %v5043 = vpop.permute.xlu0 %5042
        %v5045 = vmul.f32 %v4262, %v5043
        %v5046 = vmul.f32 %v4263, %v5043
        %v5047 = vmul.f32 %v4264, %v5043
        %5051 = vrot.lane.b32.xlu0 %v5045, 96
        %v5052 = vpop.permute.xlu0 %5051
        %5053 = vrot.lane.b32.xlu0 %v5046, 96
        %v5054 = vpop.permute.xlu0 %5053
        %5055 = vrot.lane.b32.xlu0 %v5047, 96
        %v5056 = vpop.permute.xlu0 %5055
        %v5057 = vsel %vm1312, %v5052, %v5054
        %v5058 = vsel %vm1312, %v5054, %v5056
        %v5062 = vadd.f32 %v5038, %v5052
        %v5063 = vadd.f32 %v5039, %v5057
        %v5064 = vadd.f32 %v5040, %v5058
        %5065 = vset.pattern.permute.xlu0 25
        %5066 = vperm.xlu0 %5065, %v4202
        %v5067 = vpop.permute.xlu0 %5066
        %v5069 = vmul.f32 %v4262, %v5067
        %v5070 = vmul.f32 %v4263, %v5067
        %v5071 = vmul.f32 %v4264, %v5067
        %5075 = vrot.lane.b32.xlu0 %v5069, 80
        %v5076 = vpop.permute.xlu0 %5075
        %5077 = vrot.lane.b32.xlu0 %v5070, 80
        %v5078 = vpop.permute.xlu0 %5077
        %5079 = vrot.lane.b32.xlu0 %v5071, 80
        %v5080 = vpop.permute.xlu0 %5079
        %v5081 = vsel %vm2393, %v5076, %v5078
        %v5082 = vsel %vm2393, %v5078, %v5080
        %v5086 = vadd.f32 %v5062, %v5076
        %v5087 = vadd.f32 %v5063, %v5081
        %v5088 = vadd.f32 %v5064, %v5082
        %5089 = vset.pattern.permute.xlu0 32
        %5090 = vperm.xlu0 %5089, %v4202
        %v5091 = vpop.permute.xlu0 %5090
        %v5093 = vmul.f32 %v4262, %v5091
        %v5094 = vmul.f32 %v4263, %v5091
        %v5095 = vmul.f32 %v4264, %v5091
        %5099 = vrot.lane.b32.xlu0 %v5093, 64
        %v5100 = vpop.permute.xlu0 %5099
        %5101 = vrot.lane.b32.xlu0 %v5094, 64
        %v5102 = vpop.permute.xlu0 %5101
        %5103 = vrot.lane.b32.xlu0 %v5095, 64
        %v5104 = vpop.permute.xlu0 %5103
        %v5105 = vsel %vm2442, %v5100, %v5102
        %v5106 = vsel %vm2442, %v5102, %v5104
        %v5110 = vadd.f32 %v5086, %v5100
        %v5111 = vadd.f32 %v5087, %v5105
        %v5112 = vadd.f32 %v5088, %v5106
        %5113 = vset.pattern.permute.xlu0 39
        %5114 = vperm.xlu0 %5113, %v4202
        %v5115 = vpop.permute.xlu0 %5114
        %v5117 = vmul.f32 %v4262, %v5115
        %v5118 = vmul.f32 %v4263, %v5115
        %v5119 = vmul.f32 %v4264, %v5115
        %5123 = vrot.lane.b32.xlu0 %v5117, 48
        %v5124 = vpop.permute.xlu0 %5123
        %5125 = vrot.lane.b32.xlu0 %v5118, 48
        %v5126 = vpop.permute.xlu0 %5125
        %5127 = vrot.lane.b32.xlu0 %v5119, 48
        %v5128 = vpop.permute.xlu0 %5127
        %v5129 = vsel %vm4329, %v5124, %v5126
        %v5130 = vsel %vm4329, %v5126, %v5128
        %v5134 = vadd.f32 %v5110, %v5124
        %v5135 = vadd.f32 %v5111, %v5129
        %v5136 = vadd.f32 %v5112, %v5130
        %5137 = vset.pattern.permute.xlu0 46
        %5138 = vperm.xlu0 %5137, %v4202
        %v5139 = vpop.permute.xlu0 %5138
        %v5141 = vmul.f32 %v4262, %v5139
        %v5142 = vmul.f32 %v4263, %v5139
        %v5143 = vmul.f32 %v4264, %v5139
        %5147 = vrot.lane.b32.xlu0 %v5141, 32
        %v5148 = vpop.permute.xlu0 %5147
        %5149 = vrot.lane.b32.xlu0 %v5142, 32
        %v5150 = vpop.permute.xlu0 %5149
        %5151 = vrot.lane.b32.xlu0 %v5143, 32
        %v5152 = vpop.permute.xlu0 %5151
        %v5153 = vsel %vm815, %v5148, %v5150
        %v5154 = vsel %vm815, %v5150, %v5152
        %v5158 = vadd.f32 %v5134, %v5148
        %v5159 = vadd.f32 %v5135, %v5153
        %v5160 = vadd.f32 %v5136, %v5154
        %v5164 = vrot.slane %v5158, 1
        %v5165 = vrot.slane %v5159, 1
        %v5166 = vrot.slane %v5160, 1
        %v5170 = vadd.f32 %v5158, %v5164
        %v5171 = vadd.f32 %v5159, %v5165
        %v5172 = vadd.f32 %v5160, %v5166
        %v5173 = vld [vmem:[%s1681] ss:$8 sm:$0x3]
        %v5175 = vlaneseq
        %v5176 = vshrl.u32 %v5175, 7
        %v5177 = vsub.s32 0, %v5176
        %v5178 = vrot.slane %v5173, %v5177
        %v5179 = vlaneseq
        %v5180 = vshrl.u32 %v5179, 7
        %v5181 = vsub.s32 1, %v5180
        %v5182 = vrot.slane %v5173, %v5181
        %5183 = vrot.lane.b32.xlu0 %v5178, 97
        %v5184 = vpop.permute.xlu0 %5183
        %5185 = vrot.lane.b32.xlu0 %v5182, 97
        %v5186 = vpop.permute.xlu0 %5185
        %v5187 = vsel %vm1035, %v5184, %v5186
        %v5191 = vmul.f32 %v5170, %v5184
        %v5192 = vmul.f32 %v5171, %v5187
        %v5193 = vmul.f32 %v5172, %v5186
        %5197 = vrot.lane.b32.xlu0 %v5191, 124
        %v5198 = vpop.permute.xlu0 %5197
        %5199 = vrot.lane.b32.xlu0 %v5192, 124
        %v5200 = vpop.permute.xlu0 %5199
        %5201 = vrot.lane.b32.xlu0 %v5193, 124
        %v5202 = vpop.permute.xlu0 %5201
        %v5203 = vsel %vm2175, %v5198, %v5200
        %v5204 = vsel %vm2175, %v5200, %v5202
        %v5208 = vadd.f32 %v5004, %v5203
        %v5209 = vadd.f32 %v5005, %v5204
        %v5210 = vadd.f32 %v5006, %v5202
        %5211 = vset.pattern.permute.xlu0 5
        %5212 = vperm.xlu0 %5211, %v4202
        %v5213 = vpop.permute.xlu0 %5212
        %v5215 = vmul.f32 %v4199, %v5213
        %v5216 = vmul.f32 %v4200, %v5213
        %v5217 = vmul.f32 %v4201, %v5213
        %v5218 = vadd.f32 %v5215, 0.0
        %v5219 = vadd.f32 %v5216, 0.0
        %v5220 = vadd.f32 %v5217, 0.0
        %5221 = vset.pattern.permute.xlu0 12
        %5222 = vperm.xlu0 %5221, %v4202
        %v5223 = vpop.permute.xlu0 %5222
        %v5225 = vmul.f32 %v4199, %v5223
        %v5226 = vmul.f32 %v4200, %v5223
        %v5227 = vmul.f32 %v4201, %v5223
        %5231 = vrot.lane.b32.xlu0 %v5225, 112
        %v5232 = vpop.permute.xlu0 %5231
        %5233 = vrot.lane.b32.xlu0 %v5226, 112
        %v5234 = vpop.permute.xlu0 %5233
        %5235 = vrot.lane.b32.xlu0 %v5227, 112
        %v5236 = vpop.permute.xlu0 %5235
        %v5237 = vsel %vm1145, %v5232, %v5234
        %v5238 = vsel %vm1145, %v5234, %v5236
        %v5242 = vadd.f32 %v5218, %v5237
        %v5243 = vadd.f32 %v5219, %v5238
        %v5244 = vadd.f32 %v5220, %v5236
        %5245 = vset.pattern.permute.xlu0 19
        %5246 = vperm.xlu0 %5245, %v4202
        %v5247 = vpop.permute.xlu0 %5246
        %v5249 = vmul.f32 %v4262, %v5247
        %v5250 = vmul.f32 %v4263, %v5247
        %v5251 = vmul.f32 %v4264, %v5247
        %5255 = vrot.lane.b32.xlu0 %v5249, 96
        %v5256 = vpop.permute.xlu0 %5255
        %5257 = vrot.lane.b32.xlu0 %v5250, 96
        %v5258 = vpop.permute.xlu0 %5257
        %5259 = vrot.lane.b32.xlu0 %v5251, 96
        %v5260 = vpop.permute.xlu0 %5259
        %v5261 = vsel %vm1312, %v5256, %v5258
        %v5262 = vsel %vm1312, %v5258, %v5260
        %v5266 = vadd.f32 %v5242, %v5256
        %v5267 = vadd.f32 %v5243, %v5261
        %v5268 = vadd.f32 %v5244, %v5262
        %5269 = vset.pattern.permute.xlu0 26
        %5270 = vperm.xlu0 %5269, %v4202
        %v5271 = vpop.permute.xlu0 %5270
        %v5273 = vmul.f32 %v4262, %v5271
        %v5274 = vmul.f32 %v4263, %v5271
        %v5275 = vmul.f32 %v4264, %v5271
        %5279 = vrot.lane.b32.xlu0 %v5273, 80
        %v5280 = vpop.permute.xlu0 %5279
        %5281 = vrot.lane.b32.xlu0 %v5274, 80
        %v5282 = vpop.permute.xlu0 %5281
        %5283 = vrot.lane.b32.xlu0 %v5275, 80
        %v5284 = vpop.permute.xlu0 %5283
        %v5285 = vsel %vm2393, %v5280, %v5282
        %v5286 = vsel %vm2393, %v5282, %v5284
        %v5290 = vadd.f32 %v5266, %v5280
        %v5291 = vadd.f32 %v5267, %v5285
        %v5292 = vadd.f32 %v5268, %v5286
        %5293 = vset.pattern.permute.xlu0 33
        %5294 = vperm.xlu0 %5293, %v4202
        %v5295 = vpop.permute.xlu0 %5294
        %v5297 = vmul.f32 %v4262, %v5295
        %v5298 = vmul.f32 %v4263, %v5295
        %v5299 = vmul.f32 %v4264, %v5295
        %5303 = vrot.lane.b32.xlu0 %v5297, 64
        %v5304 = vpop.permute.xlu0 %5303
        %5305 = vrot.lane.b32.xlu0 %v5298, 64
        %v5306 = vpop.permute.xlu0 %5305
        %5307 = vrot.lane.b32.xlu0 %v5299, 64
        %v5308 = vpop.permute.xlu0 %5307
        %v5309 = vsel %vm2442, %v5304, %v5306
        %v5310 = vsel %vm2442, %v5306, %v5308
        %v5314 = vadd.f32 %v5290, %v5304
        %v5315 = vadd.f32 %v5291, %v5309
        %v5316 = vadd.f32 %v5292, %v5310
        %5317 = vset.pattern.permute.xlu0 40
        %5318 = vperm.xlu0 %5317, %v4202
        %v5319 = vpop.permute.xlu0 %5318
        %v5321 = vmul.f32 %v4262, %v5319
        %v5322 = vmul.f32 %v4263, %v5319
        %v5323 = vmul.f32 %v4264, %v5319
        %5327 = vrot.lane.b32.xlu0 %v5321, 48
        %v5328 = vpop.permute.xlu0 %5327
        %5329 = vrot.lane.b32.xlu0 %v5322, 48
        %v5330 = vpop.permute.xlu0 %5329
        %5331 = vrot.lane.b32.xlu0 %v5323, 48
        %v5332 = vpop.permute.xlu0 %5331
        %v5333 = vsel %vm4329, %v5328, %v5330
        %v5334 = vsel %vm4329, %v5330, %v5332
        %v5338 = vadd.f32 %v5314, %v5328
        %v5339 = vadd.f32 %v5315, %v5333
        %v5340 = vadd.f32 %v5316, %v5334
        %5341 = vset.pattern.permute.xlu0 47
        %5342 = vperm.xlu0 %5341, %v4202
        %v5343 = vpop.permute.xlu0 %5342
        %v5345 = vmul.f32 %v4262, %v5343
        %v5346 = vmul.f32 %v4263, %v5343
        %v5347 = vmul.f32 %v4264, %v5343
        %5351 = vrot.lane.b32.xlu0 %v5345, 32
        %v5352 = vpop.permute.xlu0 %5351
        %5353 = vrot.lane.b32.xlu0 %v5346, 32
        %v5354 = vpop.permute.xlu0 %5353
        %5355 = vrot.lane.b32.xlu0 %v5347, 32
        %v5356 = vpop.permute.xlu0 %5355
        %v5357 = vsel %vm815, %v5352, %v5354
        %v5358 = vsel %vm815, %v5354, %v5356
        %v5362 = vadd.f32 %v5338, %v5352
        %v5363 = vadd.f32 %v5339, %v5357
        %v5364 = vadd.f32 %v5340, %v5358
        %v5368 = vrot.slane %v5362, 1
        %v5369 = vrot.slane %v5363, 1
        %v5370 = vrot.slane %v5364, 1
        %v5374 = vadd.f32 %v5362, %v5368
        %v5375 = vadd.f32 %v5363, %v5369
        %v5376 = vadd.f32 %v5364, %v5370
        %v5377 = vld [vmem:[%s2131] ss:$8 sm:$0x3]
        %v5379 = vlaneseq
        %v5380 = vshrl.u32 %v5379, 7
        %v5381 = vsub.s32 0, %v5380
        %v5382 = vrot.slane %v5377, %v5381
        %v5383 = vlaneseq
        %v5384 = vshrl.u32 %v5383, 7
        %v5385 = vsub.s32 1, %v5384
        %v5386 = vrot.slane %v5377, %v5385
        %5387 = vrot.lane.b32.xlu0 %v5382, 98
        %v5388 = vpop.permute.xlu0 %5387
        %5389 = vrot.lane.b32.xlu0 %v5386, 98
        %v5390 = vpop.permute.xlu0 %5389
        %vm5391 = vcmask 801792
        %v5392 = vsel %vm5391, %v5388, %v5390
        %v5396 = vmul.f32 %v5374, %v5388
        %v5397 = vmul.f32 %v5375, %v5392
        %v5398 = vmul.f32 %v5376, %v5390
        %5402 = vrot.lane.b32.xlu0 %v5396, 123
        %v5403 = vpop.permute.xlu0 %5402
        %5404 = vrot.lane.b32.xlu0 %v5397, 123
        %v5405 = vpop.permute.xlu0 %5404
        %5406 = vrot.lane.b32.xlu0 %v5398, 123
        %v5407 = vpop.permute.xlu0 %5406
        %vm5408 = vcmask 1006592
        %v5409 = vsel %vm5408, %v5403, %v5405
        %v5410 = vsel %vm5408, %v5405, %v5407
        %v5414 = vadd.f32 %v5208, %v5409
        %v5415 = vadd.f32 %v5209, %v5410
        %v5416 = vadd.f32 %v5210, %v5407
        %5417 = vset.pattern.permute.xlu0 6
        %5418 = vperm.xlu0 %5417, %v4202
        %v5419 = vpop.permute.xlu0 %5418
        %v5421 = vmul.f32 %v4199, %v5419
        %v5422 = vmul.f32 %v4200, %v5419
        %v5423 = vmul.f32 %v4201, %v5419
        %v5424 = vadd.f32 %v5421, 0.0
        %v5425 = vadd.f32 %v5422, 0.0
        %v5426 = vadd.f32 %v5423, 0.0
        %5427 = vset.pattern.permute.xlu0 13
        %5428 = vperm.xlu0 %5427, %v4202
        %v5429 = vpop.permute.xlu0 %5428
        %v5431 = vmul.f32 %v4199, %v5429
        %v5432 = vmul.f32 %v4200, %v5429
        %v5433 = vmul.f32 %v4201, %v5429
        %5437 = vrot.lane.b32.xlu0 %v5431, 112
        %v5438 = vpop.permute.xlu0 %5437
        %5439 = vrot.lane.b32.xlu0 %v5432, 112
        %v5440 = vpop.permute.xlu0 %5439
        %5441 = vrot.lane.b32.xlu0 %v5433, 112
        %v5442 = vpop.permute.xlu0 %5441
        %v5443 = vsel %vm1145, %v5438, %v5440
        %v5444 = vsel %vm1145, %v5440, %v5442
        %v5448 = vadd.f32 %v5424, %v5443
        %v5449 = vadd.f32 %v5425, %v5444
        %v5450 = vadd.f32 %v5426, %v5442
        %5451 = vset.pattern.permute.xlu0 20
        %5452 = vperm.xlu0 %5451, %v4202
        %v5453 = vpop.permute.xlu0 %5452
        %v5455 = vmul.f32 %v4262, %v5453
        %v5456 = vmul.f32 %v4263, %v5453
        %v5457 = vmul.f32 %v4264, %v5453
        %5461 = vrot.lane.b32.xlu0 %v5455, 96
        %v5462 = vpop.permute.xlu0 %5461
        %5463 = vrot.lane.b32.xlu0 %v5456, 96
        %v5464 = vpop.permute.xlu0 %5463
        %5465 = vrot.lane.b32.xlu0 %v5457, 96
        %v5466 = vpop.permute.xlu0 %5465
        %v5467 = vsel %vm1312, %v5462, %v5464
        %v5468 = vsel %vm1312, %v5464, %v5466
        %v5472 = vadd.f32 %v5448, %v5462
        %v5473 = vadd.f32 %v5449, %v5467
        %v5474 = vadd.f32 %v5450, %v5468
        %5475 = vset.pattern.permute.xlu0 27
        %5476 = vperm.xlu0 %5475, %v4202
        %v5477 = vpop.permute.xlu0 %5476
        %v5479 = vmul.f32 %v4262, %v5477
        %v5480 = vmul.f32 %v4263, %v5477
        %v5481 = vmul.f32 %v4264, %v5477
        %5485 = vrot.lane.b32.xlu0 %v5479, 80
        %v5486 = vpop.permute.xlu0 %5485
        %5487 = vrot.lane.b32.xlu0 %v5480, 80
        %v5488 = vpop.permute.xlu0 %5487
        %5489 = vrot.lane.b32.xlu0 %v5481, 80
        %v5490 = vpop.permute.xlu0 %5489
        %v5491 = vsel %vm2393, %v5486, %v5488
        %v5492 = vsel %vm2393, %v5488, %v5490
        %v5496 = vadd.f32 %v5472, %v5486
        %v5497 = vadd.f32 %v5473, %v5491
        %v5498 = vadd.f32 %v5474, %v5492
        %5499 = vset.pattern.permute.xlu0 34
        %5500 = vperm.xlu0 %5499, %v4202
        %v5501 = vpop.permute.xlu0 %5500
        %v5503 = vmul.f32 %v4262, %v5501
        %v5504 = vmul.f32 %v4263, %v5501
        %v5505 = vmul.f32 %v4264, %v5501
        %5509 = vrot.lane.b32.xlu0 %v5503, 64
        %v5510 = vpop.permute.xlu0 %5509
        %5511 = vrot.lane.b32.xlu0 %v5504, 64
        %v5512 = vpop.permute.xlu0 %5511
        %5513 = vrot.lane.b32.xlu0 %v5505, 64
        %v5514 = vpop.permute.xlu0 %5513
        %v5515 = vsel %vm2442, %v5510, %v5512
        %v5516 = vsel %vm2442, %v5512, %v5514
        %v5520 = vadd.f32 %v5496, %v5510
        %v5521 = vadd.f32 %v5497, %v5515
        %v5522 = vadd.f32 %v5498, %v5516
        %5523 = vset.pattern.permute.xlu0 41
        %5524 = vperm.xlu0 %5523, %v4202
        %v5525 = vpop.permute.xlu0 %5524
        %v5527 = vmul.f32 %v4262, %v5525
        %v5528 = vmul.f32 %v4263, %v5525
        %v5529 = vmul.f32 %v4264, %v5525
        %5533 = vrot.lane.b32.xlu0 %v5527, 48
        %v5534 = vpop.permute.xlu0 %5533
        %5535 = vrot.lane.b32.xlu0 %v5528, 48
        %v5536 = vpop.permute.xlu0 %5535
        %5537 = vrot.lane.b32.xlu0 %v5529, 48
        %v5538 = vpop.permute.xlu0 %5537
        %v5539 = vsel %vm4329, %v5534, %v5536
        %v5540 = vsel %vm4329, %v5536, %v5538
        %v5544 = vadd.f32 %v5520, %v5534
        %v5545 = vadd.f32 %v5521, %v5539
        %v5546 = vadd.f32 %v5522, %v5540
        %5547 = vset.pattern.permute.xlu0 48
        %5548 = vperm.xlu0 %5547, %v4202
        %v5549 = vpop.permute.xlu0 %5548
        %v5551 = vmul.f32 %v4262, %v5549
        %v5552 = vmul.f32 %v4263, %v5549
        %v5553 = vmul.f32 %v4264, %v5549
        %5557 = vrot.lane.b32.xlu0 %v5551, 32
        %v5558 = vpop.permute.xlu0 %5557
        %5559 = vrot.lane.b32.xlu0 %v5552, 32
        %v5560 = vpop.permute.xlu0 %5559
        %5561 = vrot.lane.b32.xlu0 %v5553, 32
        %v5562 = vpop.permute.xlu0 %5561
        %v5563 = vsel %vm815, %v5558, %v5560
        %v5564 = vsel %vm815, %v5560, %v5562
        %v5568 = vadd.f32 %v5544, %v5558
        %v5569 = vadd.f32 %v5545, %v5563
        %v5570 = vadd.f32 %v5546, %v5564
        %v5574 = vrot.slane %v5568, 1
        %v5575 = vrot.slane %v5569, 1
        %v5576 = vrot.slane %v5570, 1
        %v5580 = vadd.f32 %v5568, %v5574
        %v5581 = vadd.f32 %v5569, %v5575
        %v5582 = vadd.f32 %v5570, %v5576
        %v5583 = vld [vmem:[%s2796] ss:$8 sm:$0x3]
        %v5585 = vlaneseq
        %v5586 = vshrl.u32 %v5585, 7
        %v5587 = vsub.s32 0, %v5586
        %v5588 = vrot.slane %v5583, %v5587
        %v5589 = vlaneseq
        %v5590 = vshrl.u32 %v5589, 7
        %v5591 = vsub.s32 1, %v5590
        %v5592 = vrot.slane %v5583, %v5591
        %5593 = vrot.lane.b32.xlu0 %v5588, 99
        %v5594 = vpop.permute.xlu0 %5593
        %5595 = vrot.lane.b32.xlu0 %v5592, 99
        %v5596 = vpop.permute.xlu0 %5595
        %vm5597 = vcmask 809984
        %v5598 = vsel %vm5597, %v5594, %v5596
        %v5602 = vmul.f32 %v5580, %v5594
        %v5603 = vmul.f32 %v5581, %v5598
        %v5604 = vmul.f32 %v5582, %v5596
        %5608 = vrot.lane.b32.xlu0 %v5602, 122
        %v5609 = vpop.permute.xlu0 %5608
        %5610 = vrot.lane.b32.xlu0 %v5603, 122
        %v5611 = vpop.permute.xlu0 %5610
        %5612 = vrot.lane.b32.xlu0 %v5604, 122
        %v5613 = vpop.permute.xlu0 %5612
        %v5614 = vsel %vm2692, %v5609, %v5611
        %v5615 = vsel %vm2692, %v5611, %v5613
        %v5619 = vadd.f32 %v5414, %v5614
        %v5620 = vadd.f32 %v5415, %v5615
        %v5621 = vadd.f32 %v5416, %v5613
        %v5622 = vxor.u32 %v5619, 2147483648
        %v5623 = vxor.u32 %v5620, 2147483648
        %v5624 = vxor.u32 %v5621, 2147483648
        %v5625 = vmul.f32 %v5622, 1.442695
        %v5626 = vpow.pop %v5625
        %v5627 = vmul.f32 %v5623, 1.442695
        %v5628 = vpow.pop %v5627
        %v5629 = vmul.f32 %v5624, 1.442695
        %v5630 = vpow.pop %v5629
        %v5631 = vadd.f32 %v5626, 1.0
        %v5632 = vadd.f32 %v5628, 1.0
        %v5633 = vadd.f32 %v5630, 1.0
        %v5634 = vrcp.pop %v5631
        %v5635 = vmul.f32 1.0, %v5634
        %v5636 = vrcp.pop %v5632
        %v5637 = vmul.f32 1.0, %v5636
        %v5638 = vrcp.pop %v5633
        %v5639 = vmul.f32 1.0, %v5638
        %v5640 = vld [vmem:[%s14 + $0x1] sm:$0x1]
        %s5642 = vtos %v5640
        %v5643 = vstv %s5642
        %v5645 = vld [vmem:[%s12] sm:$0xff]
        %v5646 = vld [vmem:[%s12 + $0x8] sm:$0xff]
        %v5647 = vld [vmem:[#allocation3] sm:$0xff]
        %v5648 = vld [vmem:[#allocation3 + $0x8] sm:$0xff]
        %v5649 = vld [vmem:[#allocation3 + $0x10] sm:$0xff]
        %v5650 = vld [vmem:[#allocation3 + $0x18] sm:$0xff]
        %v5652 = vsel %vm815, %v5645, 0
        %v5655 = vsel %vm815, %v5646, 0
        %5657 = vmatprep.subr.mxu0 0.0
        %5658 = vmatpush1.msra.mxu0 %v5647
        %5659 = vmatprep.subr.mxu0 0.0
        %5660 = vmatpush1.msra.mxu0 %v5648
        %5661 = vmatprep.subr.mxu0 0.0
        %5662 = vmatpush1.msra.mxu0 %v5649
        %5663 = vmatprep.subr.mxu0 0.0
        %5664 = vmatpush1.msra.mxu0 %v5650
        %5665 = vmatprep.subr.mxu0 0.0
        %5666 = vmatpush1.msra.mxu0 0.0
        %5667 = vmatprep.subr.mxu0 0.0
        %5668 = vmatpush1.msra.mxu0 0.0
        %5669 = vmatprep.subr.mxu0 0.0
        %5670 = vmatpush1.msra.mxu0 0.0
        %5671 = vmatprep.subr.mxu0 0.0
        %5672 = vmatpush1.msra.mxu0 0.0
        %5673 = vmatprep.subr.mxu0 0.0
        %5674 = vmatpush1.msra.mxu0 0.0
        %5675 = vmatprep.subr.mxu0 0.0
        %5676 = vmatpush1.msra.mxu0 0.0
        %5677 = vmatprep.subr.mxu0 0.0
        %5678 = vmatpush1.msra.mxu0 0.0
        %5679 = vmatprep.subr.mxu0 0.0
        %5680 = vmatpush1.msra.mxu0 0.0
        %5681 = vmatprep.subr.mxu0 0.0
        %5682 = vmatpush1.msra.mxu0 0.0
        %5683 = vmatprep.subr.mxu0 0.0
        %5684 = vmatpush1.msra.mxu0 0.0
        %5685 = vmatprep.subr.mxu0 0.0
        %5686 = vmatpush1.msra.mxu0 0.0
        %5687 = vmatprep.subr.mxu0 0.0
        %5688 = vmatpush1.msra.mxu0 0.0
        %5689 = vmatprep.subr.mxu0 0.0
        %5690 = vmatpush1.msra.mxu0 0.0
        %5691 = vmatprep.subr.mxu0 0.0
        %5692 = vmatpush1.msra.mxu0 0.0
        %5693 = vmatprep.subr.mxu0 0.0
        %5694 = vmatpush1.msra.mxu0 0.0
        %5695 = vmatprep.subr.mxu0 0.0
        %5696 = vmatpush1.msra.mxu0 0.0
        %5697 = vmatprep.subr.mxu0 0.0
        %5698 = vmatpush1.msra.mxu0 0.0
        %5699 = vmatprep.subr.mxu0 0.0
        %5700 = vmatpush1.msra.mxu0 0.0
        %5701 = vmatprep.subr.mxu0 0.0
        %5702 = vmatpush1.msra.mxu0 0.0
        %5703 = vmatprep.subr.mxu0 0.0
        %5704 = vmatpush1.msra.mxu0 0.0
        %5705 = vmatprep.subr.mxu0 0.0
        %5706 = vmatpush1.msra.mxu0 0.0
        %5707 = vmatprep.subr.mxu0 0.0
        %5708 = vmatpush1.msra.mxu0 0.0
        %5709 = vmatprep.subr.mxu0 0.0
        %5710 = vmatpush1.msra.mxu0 0.0
        %5711 = vmatprep.subr.mxu0 0.0
        %5712 = vmatpush1.msra.mxu0 0.0
        %5713 = vmatprep.subr.mxu0 0.0
        %5714 = vmatpush1.msra.mxu0 0.0
        %5715 = vmatprep.subr.mxu0 0.0
        %5716 = vmatpush1.msra.mxu0 0.0
        %5717 = vmatprep.subr.mxu0 0.0
        %5718 = vmatpush1.msra.mxu0 0.0
        %5719 = vmatprep.subr.mxu0 0.0
        %5720 = vmatpush1.msra.mxu0 0.0
        %5721 = vmatprep.mubr.f32.mxu0 0.0
        %5722 = vmatmul.mubr.f32.gmra.mrb[0].mxu0 %v5652
        %v5723 = vpop.f32.mrb[0].mxu0
        %v5724 = vadd.f32 0.0, %v5723
        %v5725 = vpop.f32.mrb[0].mxu0
        %5726 = vmatprep.mubr.f32.mxu0 0.0
        %5727 = vmatmul.mubr.f32.gmra.mrb[0].mxu0 %v5655
        %v5728 = vpop.f32.mrb[0].mxu0
        %v5729 = vadd.f32 0.0, %v5728
        %v5730 = vpop.f32.mrb[0].mxu0
        %5731 = vdwg.mxu0
        %v5732 = vadd.f32 %v5643, %v5724
        %v5733 = vadd.f32 %v5643, %v5729
        %s5734 = scalar_lea.vmem %s12, 16
        %v5735 = vld [vmem:[%s5734] sm:$0xff]
        %v5736 = vld [vmem:[%s5734 + $0x8] sm:$0xff]
        %5741 = vrot.lane.b32.xlu0 %v5647, 127
        %v5742 = vpop.permute.xlu0 %5741
        %5743 = vrot.lane.b32.xlu0 %v5648, 127
        %v5744 = vpop.permute.xlu0 %5743
        %5745 = vrot.lane.b32.xlu0 %v5649, 127
        %v5746 = vpop.permute.xlu0 %5745
        %5747 = vrot.lane.b32.xlu0 %v5650, 127
        %v5748 = vpop.permute.xlu0 %5747
        %v5754 = vsel %vm815, %v5735, 0
        %v5757 = vsel %vm815, %v5736, 0
        %5759 = vmatprep.subr.mxu0 0.0
        %5760 = vmatpush1.msra.mxu0 %v5742
        %5761 = vmatprep.subr.mxu0 0.0
        %5762 = vmatpush1.msra.mxu0 %v5744
        %5763 = vmatprep.subr.mxu0 0.0
        %5764 = vmatpush1.msra.mxu0 %v5746
        %5765 = vmatprep.subr.mxu0 0.0
        %5766 = vmatpush1.msra.mxu0 %v5748
        %5767 = vmatprep.subr.mxu0 0.0
        %5768 = vmatpush1.msra.mxu0 0.0
        %5769 = vmatprep.subr.mxu0 0.0
        %5770 = vmatpush1.msra.mxu0 0.0
        %5771 = vmatprep.subr.mxu0 0.0
        %5772 = vmatpush1.msra.mxu0 0.0
        %5773 = vmatprep.subr.mxu0 0.0
        %5774 = vmatpush1.msra.mxu0 0.0
        %5775 = vmatprep.subr.mxu0 0.0
        %5776 = vmatpush1.msra.mxu0 0.0
        %5777 = vmatprep.subr.mxu0 0.0
        %5778 = vmatpush1.msra.mxu0 0.0
        %5779 = vmatprep.subr.mxu0 0.0
        %5780 = vmatpush1.msra.mxu0 0.0
        %5781 = vmatprep.subr.mxu0 0.0
        %5782 = vmatpush1.msra.mxu0 0.0
        %5783 = vmatprep.subr.mxu0 0.0
        %5784 = vmatpush1.msra.mxu0 0.0
        %5785 = vmatprep.subr.mxu0 0.0
        %5786 = vmatpush1.msra.mxu0 0.0
        %5787 = vmatprep.subr.mxu0 0.0
        %5788 = vmatpush1.msra.mxu0 0.0
        %5789 = vmatprep.subr.mxu0 0.0
        %5790 = vmatpush1.msra.mxu0 0.0
        %5791 = vmatprep.subr.mxu0 0.0
        %5792 = vmatpush1.msra.mxu0 0.0
        %5793 = vmatprep.subr.mxu0 0.0
        %5794 = vmatpush1.msra.mxu0 0.0
        %5795 = vmatprep.subr.mxu0 0.0
        %5796 = vmatpush1.msra.mxu0 0.0
        %5797 = vmatprep.subr.mxu0 0.0
        %5798 = vmatpush1.msra.mxu0 0.0
        %5799 = vmatprep.subr.mxu0 0.0
        %5800 = vmatpush1.msra.mxu0 0.0
        %5801 = vmatprep.subr.mxu0 0.0
        %5802 = vmatpush1.msra.mxu0 0.0
        %5803 = vmatprep.subr.mxu0 0.0
        %5804 = vmatpush1.msra.mxu0 0.0
        %5805 = vmatprep.subr.mxu0 0.0
        %5806 = vmatpush1.msra.mxu0 0.0
        %5807 = vmatprep.subr.mxu0 0.0
        %5808 = vmatpush1.msra.mxu0 0.0
        %5809 = vmatprep.subr.mxu0 0.0
        %5810 = vmatpush1.msra.mxu0 0.0
        %5811 = vmatprep.subr.mxu0 0.0
        %5812 = vmatpush1.msra.mxu0 0.0
        %5813 = vmatprep.subr.mxu0 0.0
        %5814 = vmatpush1.msra.mxu0 0.0
        %5815 = vmatprep.subr.mxu0 0.0
        %5816 = vmatpush1.msra.mxu0 0.0
        %5817 = vmatprep.subr.mxu0 0.0
        %5818 = vmatpush1.msra.mxu0 0.0
        %5819 = vmatprep.subr.mxu0 0.0
        %5820 = vmatpush1.msra.mxu0 0.0
        %5821 = vmatprep.subr.mxu0 0.0
        %5822 = vmatpush1.msra.mxu0 0.0
        %5823 = vmatprep.mubr.f32.mxu0 0.0
        %5824 = vmatmul.mubr.f32.gmra.mrb[0].mxu0 %v5754
        %v5825 = vpop.f32.mrb[0].mxu0
        %v5826 = vadd.f32 0.0, %v5825
        %v5827 = vpop.f32.mrb[0].mxu0
        %5828 = vmatprep.mubr.f32.mxu0 0.0
        %5829 = vmatmul.mubr.f32.gmra.mrb[0].mxu0 %v5757
        %v5830 = vpop.f32.mrb[0].mxu0
        %v5831 = vadd.f32 0.0, %v5830
        %v5832 = vpop.f32.mrb[0].mxu0
        %5833 = vdwg.mxu0
        %v5834 = vadd.f32 %v5732, %v5826
        %v5835 = vadd.f32 %v5733, %v5831
        %s5836 = scalar_lea.vmem %s12, 32
        %v5837 = vld [vmem:[%s5836] sm:$0xff]
        %v5838 = vld [vmem:[%s5836 + $0x8] sm:$0xff]
        %5839 = vrot.lane.b32.xlu0 %v5647, 126
        %v5840 = vpop.permute.xlu0 %5839
        %5841 = vrot.lane.b32.xlu0 %v5648, 126
        %v5842 = vpop.permute.xlu0 %5841
        %5843 = vrot.lane.b32.xlu0 %v5649, 126
        %v5844 = vpop.permute.xlu0 %5843
        %5845 = vrot.lane.b32.xlu0 %v5650, 126
        %v5846 = vpop.permute.xlu0 %5845
        %v5852 = vsel %vm815, %v5837, 0
        %v5855 = vsel %vm815, %v5838, 0
        %5857 = vmatprep.subr.mxu0 0.0
        %5858 = vmatpush1.msra.mxu0 %v5840
        %5859 = vmatprep.subr.mxu0 0.0
        %5860 = vmatpush1.msra.mxu0 %v5842
        %5861 = vmatprep.subr.mxu0 0.0
        %5862 = vmatpush1.msra.mxu0 %v5844
        %5863 = vmatprep.subr.mxu0 0.0
        %5864 = vmatpush1.msra.mxu0 %v5846
        %5865 = vmatprep.subr.mxu0 0.0
        %5866 = vmatpush1.msra.mxu0 0.0
        %5867 = vmatprep.subr.mxu0 0.0
        %5868 = vmatpush1.msra.mxu0 0.0
        %5869 = vmatprep.subr.mxu0 0.0
        %5870 = vmatpush1.msra.mxu0 0.0
        %5871 = vmatprep.subr.mxu0 0.0
        %5872 = vmatpush1.msra.mxu0 0.0
        %5873 = vmatprep.subr.mxu0 0.0
        %5874 = vmatpush1.msra.mxu0 0.0
        %5875 = vmatprep.subr.mxu0 0.0
        %5876 = vmatpush1.msra.mxu0 0.0
        %5877 = vmatprep.subr.mxu0 0.0
        %5878 = vmatpush1.msra.mxu0 0.0
        %5879 = vmatprep.subr.mxu0 0.0
        %5880 = vmatpush1.msra.mxu0 0.0
        %5881 = vmatprep.subr.mxu0 0.0
        %5882 = vmatpush1.msra.mxu0 0.0
        %5883 = vmatprep.subr.mxu0 0.0
        %5884 = vmatpush1.msra.mxu0 0.0
        %5885 = vmatprep.subr.mxu0 0.0
        %5886 = vmatpush1.msra.mxu0 0.0
        %5887 = vmatprep.subr.mxu0 0.0
        %5888 = vmatpush1.msra.mxu0 0.0
        %5889 = vmatprep.subr.mxu0 0.0
        %5890 = vmatpush1.msra.mxu0 0.0
        %5891 = vmatprep.subr.mxu0 0.0
        %5892 = vmatpush1.msra.mxu0 0.0
        %5893 = vmatprep.subr.mxu0 0.0
        %5894 = vmatpush1.msra.mxu0 0.0
        %5895 = vmatprep.subr.mxu0 0.0
        %5896 = vmatpush1.msra.mxu0 0.0
        %5897 = vmatprep.subr.mxu0 0.0
        %5898 = vmatpush1.msra.mxu0 0.0
        %5899 = vmatprep.subr.mxu0 0.0
        %5900 = vmatpush1.msra.mxu0 0.0
        %5901 = vmatprep.subr.mxu0 0.0
        %5902 = vmatpush1.msra.mxu0 0.0
        %5903 = vmatprep.subr.mxu0 0.0
        %5904 = vmatpush1.msra.mxu0 0.0
        %5905 = vmatprep.subr.mxu0 0.0
        %5906 = vmatpush1.msra.mxu0 0.0
        %5907 = vmatprep.subr.mxu0 0.0
        %5908 = vmatpush1.msra.mxu0 0.0
        %5909 = vmatprep.subr.mxu0 0.0
        %5910 = vmatpush1.msra.mxu0 0.0
        %5911 = vmatprep.subr.mxu0 0.0
        %5912 = vmatpush1.msra.mxu0 0.0
        %5913 = vmatprep.subr.mxu0 0.0
        %5914 = vmatpush1.msra.mxu0 0.0
        %5915 = vmatprep.subr.mxu0 0.0
        %5916 = vmatpush1.msra.mxu0 0.0
        %5917 = vmatprep.subr.mxu0 0.0
        %5918 = vmatpush1.msra.mxu0 0.0
        %5919 = vmatprep.subr.mxu0 0.0
        %5920 = vmatpush1.msra.mxu0 0.0
        %5921 = vmatprep.mubr.f32.mxu0 0.0
        %5922 = vmatmul.mubr.f32.gmra.mrb[0].mxu0 %v5852
        %v5923 = vpop.f32.mrb[0].mxu0
        %v5924 = vadd.f32 0.0, %v5923
        %v5925 = vpop.f32.mrb[0].mxu0
        %5926 = vmatprep.mubr.f32.mxu0 0.0
        %5927 = vmatmul.mubr.f32.gmra.mrb[0].mxu0 %v5855
        %v5928 = vpop.f32.mrb[0].mxu0
        %v5929 = vadd.f32 0.0, %v5928
        %v5930 = vpop.f32.mrb[0].mxu0
        %5931 = vdwg.mxu0
        %v5932 = vadd.f32 %v5834, %v5924
        %v5933 = vadd.f32 %v5835, %v5929
        %s5934 = scalar_lea.vmem %s12, 48
        %v5935 = vld [vmem:[%s5934] sm:$0xff]
        %v5936 = vld [vmem:[%s5934 + $0x8] sm:$0xff]
        %5937 = vrot.lane.b32.xlu0 %v5647, 125
        %v5938 = vpop.permute.xlu0 %5937
        %5939 = vrot.lane.b32.xlu0 %v5648, 125
        %v5940 = vpop.permute.xlu0 %5939
        %5941 = vrot.lane.b32.xlu0 %v5649, 125
        %v5942 = vpop.permute.xlu0 %5941
        %5943 = vrot.lane.b32.xlu0 %v5650, 125
        %v5944 = vpop.permute.xlu0 %5943
        %v5950 = vsel %vm815, %v5935, 0
        %v5953 = vsel %vm815, %v5936, 0
        %5955 = vmatprep.subr.mxu0 0.0
        %5956 = vmatpush1.msra.mxu0 %v5938
        %5957 = vmatprep.subr.mxu0 0.0
        %5958 = vmatpush1.msra.mxu0 %v5940
        %5959 = vmatprep.subr.mxu0 0.0
        %5960 = vmatpush1.msra.mxu0 %v5942
        %5961 = vmatprep.subr.mxu0 0.0
        %5962 = vmatpush1.msra.mxu0 %v5944
        %5963 = vmatprep.subr.mxu0 0.0
        %5964 = vmatpush1.msra.mxu0 0.0
        %5965 = vmatprep.subr.mxu0 0.0
        %5966 = vmatpush1.msra.mxu0 0.0
        %5967 = vmatprep.subr.mxu0 0.0
        %5968 = vmatpush1.msra.mxu0 0.0
        %5969 = vmatprep.subr.mxu0 0.0
        %5970 = vmatpush1.msra.mxu0 0.0
        %5971 = vmatprep.subr.mxu0 0.0
        %5972 = vmatpush1.msra.mxu0 0.0
        %5973 = vmatprep.subr.mxu0 0.0
        %5974 = vmatpush1.msra.mxu0 0.0
        %5975 = vmatprep.subr.mxu0 0.0
        %5976 = vmatpush1.msra.mxu0 0.0
        %5977 = vmatprep.subr.mxu0 0.0
        %5978 = vmatpush1.msra.mxu0 0.0
        %5979 = vmatprep.subr.mxu0 0.0
        %5980 = vmatpush1.msra.mxu0 0.0
        %5981 = vmatprep.subr.mxu0 0.0
        %5982 = vmatpush1.msra.mxu0 0.0
        %5983 = vmatprep.subr.mxu0 0.0
        %5984 = vmatpush1.msra.mxu0 0.0
        %5985 = vmatprep.subr.mxu0 0.0
        %5986 = vmatpush1.msra.mxu0 0.0
        %5987 = vmatprep.subr.mxu0 0.0
        %5988 = vmatpush1.msra.mxu0 0.0
        %5989 = vmatprep.subr.mxu0 0.0
        %5990 = vmatpush1.msra.mxu0 0.0
        %5991 = vmatprep.subr.mxu0 0.0
        %5992 = vmatpush1.msra.mxu0 0.0
        %5993 = vmatprep.subr.mxu0 0.0
        %5994 = vmatpush1.msra.mxu0 0.0
        %5995 = vmatprep.subr.mxu0 0.0
        %5996 = vmatpush1.msra.mxu0 0.0
        %5997 = vmatprep.subr.mxu0 0.0
        %5998 = vmatpush1.msra.mxu0 0.0
        %5999 = vmatprep.subr.mxu0 0.0
        %6000 = vmatpush1.msra.mxu0 0.0
        %6001 = vmatprep.subr.mxu0 0.0
        %6002 = vmatpush1.msra.mxu0 0.0
        %6003 = vmatprep.subr.mxu0 0.0
        %6004 = vmatpush1.msra.mxu0 0.0
        %6005 = vmatprep.subr.mxu0 0.0
        %6006 = vmatpush1.msra.mxu0 0.0
        %6007 = vmatprep.subr.mxu0 0.0
        %6008 = vmatpush1.msra.mxu0 0.0
        %6009 = vmatprep.subr.mxu0 0.0
        %6010 = vmatpush1.msra.mxu0 0.0
        %6011 = vmatprep.subr.mxu0 0.0
        %6012 = vmatpush1.msra.mxu0 0.0
        %6013 = vmatprep.subr.mxu0 0.0
        %6014 = vmatpush1.msra.mxu0 0.0
        %6015 = vmatprep.subr.mxu0 0.0
        %6016 = vmatpush1.msra.mxu0 0.0
        %6017 = vmatprep.subr.mxu0 0.0
        %6018 = vmatpush1.msra.mxu0 0.0
        %6019 = vmatprep.mubr.f32.mxu0 0.0
        %6020 = vmatmul.mubr.f32.gmra.mrb[0].mxu0 %v5950
        %v6021 = vpop.f32.mrb[0].mxu0
        %v6022 = vadd.f32 0.0, %v6021
        %v6023 = vpop.f32.mrb[0].mxu0
        %6024 = vmatprep.mubr.f32.mxu0 0.0
        %6025 = vmatmul.mubr.f32.gmra.mrb[0].mxu0 %v5953
        %v6026 = vpop.f32.mrb[0].mxu0
        %v6027 = vadd.f32 0.0, %v6026
        %v6028 = vpop.f32.mrb[0].mxu0
        %6029 = vdwg.mxu0
        %v6030 = vadd.f32 %v5932, %v6022
        %v6031 = vadd.f32 %v5933, %v6027
        %s6032 = scalar_lea.vmem %s12, 64
        %v6033 = vld [vmem:[%s6032] sm:$0xff]
        %v6034 = vld [vmem:[%s6032 + $0x8] sm:$0xff]
        %6035 = vrot.lane.b32.xlu0 %v5647, 124
        %v6036 = vpop.permute.xlu0 %6035
        %6037 = vrot.lane.b32.xlu0 %v5648, 124
        %v6038 = vpop.permute.xlu0 %6037
        %6039 = vrot.lane.b32.xlu0 %v5649, 124
        %v6040 = vpop.permute.xlu0 %6039
        %6041 = vrot.lane.b32.xlu0 %v5650, 124
        %v6042 = vpop.permute.xlu0 %6041
        %v6048 = vsel %vm815, %v6033, 0
        %v6051 = vsel %vm815, %v6034, 0
        %6053 = vmatprep.subr.mxu0 0.0
        %6054 = vmatpush1.msra.mxu0 %v6036
        %6055 = vmatprep.subr.mxu0 0.0
        %6056 = vmatpush1.msra.mxu0 %v6038
        %6057 = vmatprep.subr.mxu0 0.0
        %6058 = vmatpush1.msra.mxu0 %v6040
        %6059 = vmatprep.subr.mxu0 0.0
        %6060 = vmatpush1.msra.mxu0 %v6042
        %6061 = vmatprep.subr.mxu0 0.0
        %6062 = vmatpush1.msra.mxu0 0.0
        %6063 = vmatprep.subr.mxu0 0.0
        %6064 = vmatpush1.msra.mxu0 0.0
        %6065 = vmatprep.subr.mxu0 0.0
        %6066 = vmatpush1.msra.mxu0 0.0
        %6067 = vmatprep.subr.mxu0 0.0
        %6068 = vmatpush1.msra.mxu0 0.0
        %6069 = vmatprep.subr.mxu0 0.0
        %6070 = vmatpush1.msra.mxu0 0.0
        %6071 = vmatprep.subr.mxu0 0.0
        %6072 = vmatpush1.msra.mxu0 0.0
        %6073 = vmatprep.subr.mxu0 0.0
        %6074 = vmatpush1.msra.mxu0 0.0
        %6075 = vmatprep.subr.mxu0 0.0
        %6076 = vmatpush1.msra.mxu0 0.0
        %6077 = vmatprep.subr.mxu0 0.0
        %6078 = vmatpush1.msra.mxu0 0.0
        %6079 = vmatprep.subr.mxu0 0.0
        %6080 = vmatpush1.msra.mxu0 0.0
        %6081 = vmatprep.subr.mxu0 0.0
        %6082 = vmatpush1.msra.mxu0 0.0
        %6083 = vmatprep.subr.mxu0 0.0
        %6084 = vmatpush1.msra.mxu0 0.0
        %6085 = vmatprep.subr.mxu0 0.0
        %6086 = vmatpush1.msra.mxu0 0.0
        %6087 = vmatprep.subr.mxu0 0.0
        %6088 = vmatpush1.msra.mxu0 0.0
        %6089 = vmatprep.subr.mxu0 0.0
        %6090 = vmatpush1.msra.mxu0 0.0
        %6091 = vmatprep.subr.mxu0 0.0
        %6092 = vmatpush1.msra.mxu0 0.0
        %6093 = vmatprep.subr.mxu0 0.0
        %6094 = vmatpush1.msra.mxu0 0.0
        %6095 = vmatprep.subr.mxu0 0.0
        %6096 = vmatpush1.msra.mxu0 0.0
        %6097 = vmatprep.subr.mxu0 0.0
        %6098 = vmatpush1.msra.mxu0 0.0
        %6099 = vmatprep.subr.mxu0 0.0
        %6100 = vmatpush1.msra.mxu0 0.0
        %6101 = vmatprep.subr.mxu0 0.0
        %6102 = vmatpush1.msra.mxu0 0.0
        %6103 = vmatprep.subr.mxu0 0.0
        %6104 = vmatpush1.msra.mxu0 0.0
        %6105 = vmatprep.subr.mxu0 0.0
        %6106 = vmatpush1.msra.mxu0 0.0
        %6107 = vmatprep.subr.mxu0 0.0
        %6108 = vmatpush1.msra.mxu0 0.0
        %6109 = vmatprep.subr.mxu0 0.0
        %6110 = vmatpush1.msra.mxu0 0.0
        %6111 = vmatprep.subr.mxu0 0.0
        %6112 = vmatpush1.msra.mxu0 0.0
        %6113 = vmatprep.subr.mxu0 0.0
        %6114 = vmatpush1.msra.mxu0 0.0
        %6115 = vmatprep.subr.mxu0 0.0
        %6116 = vmatpush1.msra.mxu0 0.0
        %6117 = vmatprep.mubr.f32.mxu0 0.0
        %6118 = vmatmul.mubr.f32.gmra.mrb[0].mxu0 %v6048
        %v6119 = vpop.f32.mrb[0].mxu0
        %v6120 = vadd.f32 0.0, %v6119
        %v6121 = vpop.f32.mrb[0].mxu0
        %6122 = vmatprep.mubr.f32.mxu0 0.0
        %6123 = vmatmul.mubr.f32.gmra.mrb[0].mxu0 %v6051
        %v6124 = vpop.f32.mrb[0].mxu0
        %v6125 = vadd.f32 0.0, %v6124
        %v6126 = vpop.f32.mrb[0].mxu0
        %6127 = vdwg.mxu0
        %v6128 = vadd.f32 %v6030, %v6120
        %v6129 = vadd.f32 %v6031, %v6125
        %s6130 = scalar_lea.vmem %s12, 80
        %v6131 = vld [vmem:[%s6130] sm:$0xff]
        %v6132 = vld [vmem:[%s6130 + $0x8] sm:$0xff]
        %6133 = vrot.lane.b32.xlu0 %v5647, 123
        %v6134 = vpop.permute.xlu0 %6133
        %6135 = vrot.lane.b32.xlu0 %v5648, 123
        %v6136 = vpop.permute.xlu0 %6135
        %6137 = vrot.lane.b32.xlu0 %v5649, 123
        %v6138 = vpop.permute.xlu0 %6137
        %6139 = vrot.lane.b32.xlu0 %v5650, 123
        %v6140 = vpop.permute.xlu0 %6139
        %v6146 = vsel %vm815, %v6131, 0
        %v6149 = vsel %vm815, %v6132, 0
        %6151 = vmatprep.subr.mxu0 0.0
        %6152 = vmatpush1.msra.mxu0 %v6134
        %6153 = vmatprep.subr.mxu0 0.0
        %6154 = vmatpush1.msra.mxu0 %v6136
        %6155 = vmatprep.subr.mxu0 0.0
        %6156 = vmatpush1.msra.mxu0 %v6138
        %6157 = vmatprep.subr.mxu0 0.0
        %6158 = vmatpush1.msra.mxu0 %v6140
        %6159 = vmatprep.subr.mxu0 0.0
        %6160 = vmatpush1.msra.mxu0 0.0
        %6161 = vmatprep.subr.mxu0 0.0
        %6162 = vmatpush1.msra.mxu0 0.0
        %6163 = vmatprep.subr.mxu0 0.0
        %6164 = vmatpush1.msra.mxu0 0.0
        %6165 = vmatprep.subr.mxu0 0.0
        %6166 = vmatpush1.msra.mxu0 0.0
        %6167 = vmatprep.subr.mxu0 0.0
        %6168 = vmatpush1.msra.mxu0 0.0
        %6169 = vmatprep.subr.mxu0 0.0
        %6170 = vmatpush1.msra.mxu0 0.0
        %6171 = vmatprep.subr.mxu0 0.0
        %6172 = vmatpush1.msra.mxu0 0.0
        %6173 = vmatprep.subr.mxu0 0.0
        %6174 = vmatpush1.msra.mxu0 0.0
        %6175 = vmatprep.subr.mxu0 0.0
        %6176 = vmatpush1.msra.mxu0 0.0
        %6177 = vmatprep.subr.mxu0 0.0
        %6178 = vmatpush1.msra.mxu0 0.0
        %6179 = vmatprep.subr.mxu0 0.0
        %6180 = vmatpush1.msra.mxu0 0.0
        %6181 = vmatprep.subr.mxu0 0.0
        %6182 = vmatpush1.msra.mxu0 0.0
        %6183 = vmatprep.subr.mxu0 0.0
        %6184 = vmatpush1.msra.mxu0 0.0
        %6185 = vmatprep.subr.mxu0 0.0
        %6186 = vmatpush1.msra.mxu0 0.0
        %6187 = vmatprep.subr.mxu0 0.0
        %6188 = vmatpush1.msra.mxu0 0.0
        %6189 = vmatprep.subr.mxu0 0.0
        %6190 = vmatpush1.msra.mxu0 0.0
        %6191 = vmatprep.subr.mxu0 0.0
        %6192 = vmatpush1.msra.mxu0 0.0
        %6193 = vmatprep.subr.mxu0 0.0
        %6194 = vmatpush1.msra.mxu0 0.0
        %6195 = vmatprep.subr.mxu0 0.0
        %6196 = vmatpush1.msra.mxu0 0.0
        %6197 = vmatprep.subr.mxu0 0.0
        %6198 = vmatpush1.msra.mxu0 0.0
        %6199 = vmatprep.subr.mxu0 0.0
        %6200 = vmatpush1.msra.mxu0 0.0
        %6201 = vmatprep.subr.mxu0 0.0
        %6202 = vmatpush1.msra.mxu0 0.0
        %6203 = vmatprep.subr.mxu0 0.0
        %6204 = vmatpush1.msra.mxu0 0.0
        %6205 = vmatprep.subr.mxu0 0.0
        %6206 = vmatpush1.msra.mxu0 0.0
        %6207 = vmatprep.subr.mxu0 0.0
        %6208 = vmatpush1.msra.mxu0 0.0
        %6209 = vmatprep.subr.mxu0 0.0
        %6210 = vmatpush1.msra.mxu0 0.0
        %6211 = vmatprep.subr.mxu0 0.0
        %6212 = vmatpush1.msra.mxu0 0.0
        %6213 = vmatprep.subr.mxu0 0.0
        %6214 = vmatpush1.msra.mxu0 0.0
        %6215 = vmatprep.mubr.f32.mxu0 0.0
        %6216 = vmatmul.mubr.f32.gmra.mrb[0].mxu0 %v6146
        %v6217 = vpop.f32.mrb[0].mxu0
        %v6218 = vadd.f32 0.0, %v6217
        %v6219 = vpop.f32.mrb[0].mxu0
        %6220 = vmatprep.mubr.f32.mxu0 0.0
        %6221 = vmatmul.mubr.f32.gmra.mrb[0].mxu0 %v6149
        %v6222 = vpop.f32.mrb[0].mxu0
        %v6223 = vadd.f32 0.0, %v6222
        %v6224 = vpop.f32.mrb[0].mxu0
        %6225 = vdwg.mxu0
        %v6226 = vadd.f32 %v6128, %v6218
        %v6227 = vadd.f32 %v6129, %v6223
        %s6228 = scalar_lea.vmem %s12, 96
        %v6229 = vld [vmem:[%s6228] sm:$0xff]
        %v6230 = vld [vmem:[%s6228 + $0x8] sm:$0xff]
        %6231 = vrot.lane.b32.xlu0 %v5647, 122
        %v6232 = vpop.permute.xlu0 %6231
        %6233 = vrot.lane.b32.xlu0 %v5648, 122
        %v6234 = vpop.permute.xlu0 %6233
        %6235 = vrot.lane.b32.xlu0 %v5649, 122
        %v6236 = vpop.permute.xlu0 %6235
        %6237 = vrot.lane.b32.xlu0 %v5650, 122
        %v6238 = vpop.permute.xlu0 %6237
        %v6244 = vsel %vm815, %v6229, 0
        %v6247 = vsel %vm815, %v6230, 0
        %6249 = vmatprep.subr.mxu0 0.0
        %6250 = vmatpush1.msra.mxu0 %v6232
        %6251 = vmatprep.subr.mxu0 0.0
        %6252 = vmatpush1.msra.mxu0 %v6234
        %6253 = vmatprep.subr.mxu0 0.0
        %6254 = vmatpush1.msra.mxu0 %v6236
        %6255 = vmatprep.subr.mxu0 0.0
        %6256 = vmatpush1.msra.mxu0 %v6238
        %6257 = vmatprep.subr.mxu0 0.0
        %6258 = vmatpush1.msra.mxu0 0.0
        %6259 = vmatprep.subr.mxu0 0.0
        %6260 = vmatpush1.msra.mxu0 0.0
        %6261 = vmatprep.subr.mxu0 0.0
        %6262 = vmatpush1.msra.mxu0 0.0
        %6263 = vmatprep.subr.mxu0 0.0
        %6264 = vmatpush1.msra.mxu0 0.0
        %6265 = vmatprep.subr.mxu0 0.0
        %6266 = vmatpush1.msra.mxu0 0.0
        %6267 = vmatprep.subr.mxu0 0.0
        %6268 = vmatpush1.msra.mxu0 0.0
        %6269 = vmatprep.subr.mxu0 0.0
        %6270 = vmatpush1.msra.mxu0 0.0
        %6271 = vmatprep.subr.mxu0 0.0
        %6272 = vmatpush1.msra.mxu0 0.0
        %6273 = vmatprep.subr.mxu0 0.0
        %6274 = vmatpush1.msra.mxu0 0.0
        %6275 = vmatprep.subr.mxu0 0.0
        %6276 = vmatpush1.msra.mxu0 0.0
        %6277 = vmatprep.subr.mxu0 0.0
        %6278 = vmatpush1.msra.mxu0 0.0
        %6279 = vmatprep.subr.mxu0 0.0
        %6280 = vmatpush1.msra.mxu0 0.0
        %6281 = vmatprep.subr.mxu0 0.0
        %6282 = vmatpush1.msra.mxu0 0.0
        %6283 = vmatprep.subr.mxu0 0.0
        %6284 = vmatpush1.msra.mxu0 0.0
        %6285 = vmatprep.subr.mxu0 0.0
        %6286 = vmatpush1.msra.mxu0 0.0
        %6287 = vmatprep.subr.mxu0 0.0
        %6288 = vmatpush1.msra.mxu0 0.0
        %6289 = vmatprep.subr.mxu0 0.0
        %6290 = vmatpush1.msra.mxu0 0.0
        %6291 = vmatprep.subr.mxu0 0.0
        %6292 = vmatpush1.msra.mxu0 0.0
        %6293 = vmatprep.subr.mxu0 0.0
        %6294 = vmatpush1.msra.mxu0 0.0
        %6295 = vmatprep.subr.mxu0 0.0
        %6296 = vmatpush1.msra.mxu0 0.0
        %6297 = vmatprep.subr.mxu0 0.0
        %6298 = vmatpush1.msra.mxu0 0.0
        %6299 = vmatprep.subr.mxu0 0.0
        %6300 = vmatpush1.msra.mxu0 0.0
        %6301 = vmatprep.subr.mxu0 0.0
        %6302 = vmatpush1.msra.mxu0 0.0
        %6303 = vmatprep.subr.mxu0 0.0
        %6304 = vmatpush1.msra.mxu0 0.0
        %6305 = vmatprep.subr.mxu0 0.0
        %6306 = vmatpush1.msra.mxu0 0.0
        %6307 = vmatprep.subr.mxu0 0.0
        %6308 = vmatpush1.msra.mxu0 0.0
        %6309 = vmatprep.subr.mxu0 0.0
        %6310 = vmatpush1.msra.mxu0 0.0
        %6311 = vmatprep.subr.mxu0 0.0
        %6312 = vmatpush1.msra.mxu0 0.0
        %6313 = vmatprep.mubr.f32.mxu0 0.0
        %6314 = vmatmul.mubr.f32.gmra.mrb[0].mxu0 %v6244
        %v6315 = vpop.f32.mrb[0].mxu0
        %v6316 = vadd.f32 0.0, %v6315
        %v6317 = vpop.f32.mrb[0].mxu0
        %6318 = vmatprep.mubr.f32.mxu0 0.0
        %6319 = vmatmul.mubr.f32.gmra.mrb[0].mxu0 %v6247
        %v6320 = vpop.f32.mrb[0].mxu0
        %v6321 = vadd.f32 0.0, %v6320
        %v6322 = vpop.f32.mrb[0].mxu0
        %6323 = vdwg.mxu0
        %v6324 = vadd.f32 %v6226, %v6316
        %v6325 = vadd.f32 %v6227, %v6321
        %v6326 = vxor.u32 %v6324, 2147483648
        %v6327 = vxor.u32 %v6325, 2147483648
        %v6328 = vmul.f32 %v6326, 1.442695
        %v6329 = vpow.pop %v6328
        %v6330 = vmul.f32 %v6327, 1.442695
        %v6331 = vpow.pop %v6330
        %v6332 = vadd.f32 %v6329, 1.0
        %v6333 = vadd.f32 %v6331, 1.0
        %v6334 = vrcp.pop %v6332
        %v6335 = vmul.f32 1.0, %v6334
        %v6336 = vrcp.pop %v6333
        %v6337 = vmul.f32 1.0, %v6336
        %v6338 = vld [vmem:[%s14 + $0x2] sm:$0x1]
        %s6340 = vtos %v6338
        %v6341 = vstv %s6340
        %v6343 = vld [vmem:[%s13] sm:$0xff]
        %v6344 = vld [vmem:[%s13 + $0x8] sm:$0xff]
        %v6345 = vld [vmem:[#allocation4] sm:$0xff]
        %v6346 = vld [vmem:[#allocation4 + $0x8] sm:$0xff]
        %v6347 = vld [vmem:[#allocation4 + $0x10] sm:$0xff]
        %v6348 = vld [vmem:[#allocation4 + $0x18] sm:$0xff]
        %v6350 = vsel %vm815, %v6343, 0
        %v6353 = vsel %vm815, %v6344, 0
        %6355 = vmatprep.subr.mxu0 0.0
        %6356 = vmatpush1.msra.mxu0 %v6345
        %6357 = vmatprep.subr.mxu0 0.0
        %6358 = vmatpush1.msra.mxu0 %v6346
        %6359 = vmatprep.subr.mxu0 0.0
        %6360 = vmatpush1.msra.mxu0 %v6347
        %6361 = vmatprep.subr.mxu0 0.0
        %6362 = vmatpush1.msra.mxu0 %v6348
        %6363 = vmatprep.subr.mxu0 0.0
        %6364 = vmatpush1.msra.mxu0 0.0
        %6365 = vmatprep.subr.mxu0 0.0
        %6366 = vmatpush1.msra.mxu0 0.0
        %6367 = vmatprep.subr.mxu0 0.0
        %6368 = vmatpush1.msra.mxu0 0.0
        %6369 = vmatprep.subr.mxu0 0.0
        %6370 = vmatpush1.msra.mxu0 0.0
        %6371 = vmatprep.subr.mxu0 0.0
        %6372 = vmatpush1.msra.mxu0 0.0
        %6373 = vmatprep.subr.mxu0 0.0
        %6374 = vmatpush1.msra.mxu0 0.0
        %6375 = vmatprep.subr.mxu0 0.0
        %6376 = vmatpush1.msra.mxu0 0.0
        %6377 = vmatprep.subr.mxu0 0.0
        %6378 = vmatpush1.msra.mxu0 0.0
        %6379 = vmatprep.subr.mxu0 0.0
        %6380 = vmatpush1.msra.mxu0 0.0
        %6381 = vmatprep.subr.mxu0 0.0
        %6382 = vmatpush1.msra.mxu0 0.0
        %6383 = vmatprep.subr.mxu0 0.0
        %6384 = vmatpush1.msra.mxu0 0.0
        %6385 = vmatprep.subr.mxu0 0.0
        %6386 = vmatpush1.msra.mxu0 0.0
        %6387 = vmatprep.subr.mxu0 0.0
        %6388 = vmatpush1.msra.mxu0 0.0
        %6389 = vmatprep.subr.mxu0 0.0
        %6390 = vmatpush1.msra.mxu0 0.0
        %6391 = vmatprep.subr.mxu0 0.0
        %6392 = vmatpush1.msra.mxu0 0.0
        %6393 = vmatprep.subr.mxu0 0.0
        %6394 = vmatpush1.msra.mxu0 0.0
        %6395 = vmatprep.subr.mxu0 0.0
        %6396 = vmatpush1.msra.mxu0 0.0
        %6397 = vmatprep.subr.mxu0 0.0
        %6398 = vmatpush1.msra.mxu0 0.0
        %6399 = vmatprep.subr.mxu0 0.0
        %6400 = vmatpush1.msra.mxu0 0.0
        %6401 = vmatprep.subr.mxu0 0.0
        %6402 = vmatpush1.msra.mxu0 0.0
        %6403 = vmatprep.subr.mxu0 0.0
        %6404 = vmatpush1.msra.mxu0 0.0
        %6405 = vmatprep.subr.mxu0 0.0
        %6406 = vmatpush1.msra.mxu0 0.0
        %6407 = vmatprep.subr.mxu0 0.0
        %6408 = vmatpush1.msra.mxu0 0.0
        %6409 = vmatprep.subr.mxu0 0.0
        %6410 = vmatpush1.msra.mxu0 0.0
        %6411 = vmatprep.subr.mxu0 0.0
        %6412 = vmatpush1.msra.mxu0 0.0
        %6413 = vmatprep.subr.mxu0 0.0
        %6414 = vmatpush1.msra.mxu0 0.0
        %6415 = vmatprep.subr.mxu0 0.0
        %6416 = vmatpush1.msra.mxu0 0.0
        %6417 = vmatprep.subr.mxu0 0.0
        %6418 = vmatpush1.msra.mxu0 0.0
        %6419 = vmatprep.mubr.f32.mxu0 0.0
        %6420 = vmatmul.mubr.f32.gmra.mrb[0].mxu0 %v6350
        %v6421 = vpop.f32.mrb[0].mxu0
        %v6422 = vadd.f32 0.0, %v6421
        %v6423 = vpop.f32.mrb[0].mxu0
        %6424 = vmatprep.mubr.f32.mxu0 0.0
        %6425 = vmatmul.mubr.f32.gmra.mrb[0].mxu0 %v6353
        %v6426 = vpop.f32.mrb[0].mxu0
        %v6427 = vadd.f32 0.0, %v6426
        %v6428 = vpop.f32.mrb[0].mxu0
        %6429 = vdwg.mxu0
        %v6430 = vadd.f32 %v6341, %v6422
        %v6431 = vadd.f32 %v6341, %v6427
        %s6432 = scalar_lea.vmem %s13, 16
        %v6433 = vld [vmem:[%s6432] sm:$0xff]
        %v6434 = vld [vmem:[%s6432 + $0x8] sm:$0xff]
        %6439 = vrot.lane.b32.xlu0 %v6345, 127
        %v6440 = vpop.permute.xlu0 %6439
        %6441 = vrot.lane.b32.xlu0 %v6346, 127
        %v6442 = vpop.permute.xlu0 %6441
        %6443 = vrot.lane.b32.xlu0 %v6347, 127
        %v6444 = vpop.permute.xlu0 %6443
        %6445 = vrot.lane.b32.xlu0 %v6348, 127
        %v6446 = vpop.permute.xlu0 %6445
        %v6452 = vsel %vm815, %v6433, 0
        %v6455 = vsel %vm815, %v6434, 0
        %6457 = vmatprep.subr.mxu0 0.0
        %6458 = vmatpush1.msra.mxu0 %v6440
        %6459 = vmatprep.subr.mxu0 0.0
        %6460 = vmatpush1.msra.mxu0 %v6442
        %6461 = vmatprep.subr.mxu0 0.0
        %6462 = vmatpush1.msra.mxu0 %v6444
        %6463 = vmatprep.subr.mxu0 0.0
        %6464 = vmatpush1.msra.mxu0 %v6446
        %6465 = vmatprep.subr.mxu0 0.0
        %6466 = vmatpush1.msra.mxu0 0.0
        %6467 = vmatprep.subr.mxu0 0.0
        %6468 = vmatpush1.msra.mxu0 0.0
        %6469 = vmatprep.subr.mxu0 0.0
        %6470 = vmatpush1.msra.mxu0 0.0
        %6471 = vmatprep.subr.mxu0 0.0
        %6472 = vmatpush1.msra.mxu0 0.0
        %6473 = vmatprep.subr.mxu0 0.0
        %6474 = vmatpush1.msra.mxu0 0.0
        %6475 = vmatprep.subr.mxu0 0.0
        %6476 = vmatpush1.msra.mxu0 0.0
        %6477 = vmatprep.subr.mxu0 0.0
        %6478 = vmatpush1.msra.mxu0 0.0
        %6479 = vmatprep.subr.mxu0 0.0
        %6480 = vmatpush1.msra.mxu0 0.0
        %6481 = vmatprep.subr.mxu0 0.0
        %6482 = vmatpush1.msra.mxu0 0.0
        %6483 = vmatprep.subr.mxu0 0.0
        %6484 = vmatpush1.msra.mxu0 0.0
        %6485 = vmatprep.subr.mxu0 0.0
        %6486 = vmatpush1.msra.mxu0 0.0
        %6487 = vmatprep.subr.mxu0 0.0
        %6488 = vmatpush1.msra.mxu0 0.0
        %6489 = vmatprep.subr.mxu0 0.0
        %6490 = vmatpush1.msra.mxu0 0.0
        %6491 = vmatprep.subr.mxu0 0.0
        %6492 = vmatpush1.msra.mxu0 0.0
        %6493 = vmatprep.subr.mxu0 0.0
        %6494 = vmatpush1.msra.mxu0 0.0
        %6495 = vmatprep.subr.mxu0 0.0
        %6496 = vmatpush1.msra.mxu0 0.0
        %6497 = vmatprep.subr.mxu0 0.0
        %6498 = vmatpush1.msra.mxu0 0.0
        %6499 = vmatprep.subr.mxu0 0.0
        %6500 = vmatpush1.msra.mxu0 0.0
        %6501 = vmatprep.subr.mxu0 0.0
        %6502 = vmatpush1.msra.mxu0 0.0
        %6503 = vmatprep.subr.mxu0 0.0
        %6504 = vmatpush1.msra.mxu0 0.0
        %6505 = vmatprep.subr.mxu0 0.0
        %6506 = vmatpush1.msra.mxu0 0.0
        %6507 = vmatprep.subr.mxu0 0.0
        %6508 = vmatpush1.msra.mxu0 0.0
        %6509 = vmatprep.subr.mxu0 0.0
        %6510 = vmatpush1.msra.mxu0 0.0
        %6511 = vmatprep.subr.mxu0 0.0
        %6512 = vmatpush1.msra.mxu0 0.0
        %6513 = vmatprep.subr.mxu0 0.0
        %6514 = vmatpush1.msra.mxu0 0.0
        %6515 = vmatprep.subr.mxu0 0.0
        %6516 = vmatpush1.msra.mxu0 0.0
        %6517 = vmatprep.subr.mxu0 0.0
        %6518 = vmatpush1.msra.mxu0 0.0
        %6519 = vmatprep.subr.mxu0 0.0
        %6520 = vmatpush1.msra.mxu0 0.0
        %6521 = vmatprep.mubr.f32.mxu0 0.0
        %6522 = vmatmul.mubr.f32.gmra.mrb[0].mxu0 %v6452
        %v6523 = vpop.f32.mrb[0].mxu0
        %v6524 = vadd.f32 0.0, %v6523
        %v6525 = vpop.f32.mrb[0].mxu0
        %6526 = vmatprep.mubr.f32.mxu0 0.0
        %6527 = vmatmul.mubr.f32.gmra.mrb[0].mxu0 %v6455
        %v6528 = vpop.f32.mrb[0].mxu0
        %v6529 = vadd.f32 0.0, %v6528
        %v6530 = vpop.f32.mrb[0].mxu0
        %6531 = vdwg.mxu0
        %v6532 = vadd.f32 %v6430, %v6524
        %v6533 = vadd.f32 %v6431, %v6529
        %s6534 = scalar_lea.vmem %s13, 32
        %v6535 = vld [vmem:[%s6534] sm:$0xff]
        %v6536 = vld [vmem:[%s6534 + $0x8] sm:$0xff]
        %6537 = vrot.lane.b32.xlu0 %v6345, 126
        %v6538 = vpop.permute.xlu0 %6537
        %6539 = vrot.lane.b32.xlu0 %v6346, 126
        %v6540 = vpop.permute.xlu0 %6539
        %6541 = vrot.lane.b32.xlu0 %v6347, 126
        %v6542 = vpop.permute.xlu0 %6541
        %6543 = vrot.lane.b32.xlu0 %v6348, 126
        %v6544 = vpop.permute.xlu0 %6543
        %v6550 = vsel %vm815, %v6535, 0
        %v6553 = vsel %vm815, %v6536, 0
        %6555 = vmatprep.subr.mxu0 0.0
        %6556 = vmatpush1.msra.mxu0 %v6538
        %6557 = vmatprep.subr.mxu0 0.0
        %6558 = vmatpush1.msra.mxu0 %v6540
        %6559 = vmatprep.subr.mxu0 0.0
        %6560 = vmatpush1.msra.mxu0 %v6542
        %6561 = vmatprep.subr.mxu0 0.0
        %6562 = vmatpush1.msra.mxu0 %v6544
        %6563 = vmatprep.subr.mxu0 0.0
        %6564 = vmatpush1.msra.mxu0 0.0
        %6565 = vmatprep.subr.mxu0 0.0
        %6566 = vmatpush1.msra.mxu0 0.0
        %6567 = vmatprep.subr.mxu0 0.0
        %6568 = vmatpush1.msra.mxu0 0.0
        %6569 = vmatprep.subr.mxu0 0.0
        %6570 = vmatpush1.msra.mxu0 0.0
        %6571 = vmatprep.subr.mxu0 0.0
        %6572 = vmatpush1.msra.mxu0 0.0
        %6573 = vmatprep.subr.mxu0 0.0
        %6574 = vmatpush1.msra.mxu0 0.0
        %6575 = vmatprep.subr.mxu0 0.0
        %6576 = vmatpush1.msra.mxu0 0.0
        %6577 = vmatprep.subr.mxu0 0.0
        %6578 = vmatpush1.msra.mxu0 0.0
        %6579 = vmatprep.subr.mxu0 0.0
        %6580 = vmatpush1.msra.mxu0 0.0
        %6581 = vmatprep.subr.mxu0 0.0
        %6582 = vmatpush1.msra.mxu0 0.0
        %6583 = vmatprep.subr.mxu0 0.0
        %6584 = vmatpush1.msra.mxu0 0.0
        %6585 = vmatprep.subr.mxu0 0.0
        %6586 = vmatpush1.msra.mxu0 0.0
        %6587 = vmatprep.subr.mxu0 0.0
        %6588 = vmatpush1.msra.mxu0 0.0
        %6589 = vmatprep.subr.mxu0 0.0
        %6590 = vmatpush1.msra.mxu0 0.0
        %6591 = vmatprep.subr.mxu0 0.0
        %6592 = vmatpush1.msra.mxu0 0.0
        %6593 = vmatprep.subr.mxu0 0.0
        %6594 = vmatpush1.msra.mxu0 0.0
        %6595 = vmatprep.subr.mxu0 0.0
        %6596 = vmatpush1.msra.mxu0 0.0
        %6597 = vmatprep.subr.mxu0 0.0
        %6598 = vmatpush1.msra.mxu0 0.0
        %6599 = vmatprep.subr.mxu0 0.0
        %6600 = vmatpush1.msra.mxu0 0.0
        %6601 = vmatprep.subr.mxu0 0.0
        %6602 = vmatpush1.msra.mxu0 0.0
        %6603 = vmatprep.subr.mxu0 0.0
        %6604 = vmatpush1.msra.mxu0 0.0
        %6605 = vmatprep.subr.mxu0 0.0
        %6606 = vmatpush1.msra.mxu0 0.0
        %6607 = vmatprep.subr.mxu0 0.0
        %6608 = vmatpush1.msra.mxu0 0.0
        %6609 = vmatprep.subr.mxu0 0.0
        %6610 = vmatpush1.msra.mxu0 0.0
        %6611 = vmatprep.subr.mxu0 0.0
        %6612 = vmatpush1.msra.mxu0 0.0
        %6613 = vmatprep.subr.mxu0 0.0
        %6614 = vmatpush1.msra.mxu0 0.0
        %6615 = vmatprep.subr.mxu0 0.0
        %6616 = vmatpush1.msra.mxu0 0.0
        %6617 = vmatprep.subr.mxu0 0.0
        %6618 = vmatpush1.msra.mxu0 0.0
        %6619 = vmatprep.mubr.f32.mxu0 0.0
        %6620 = vmatmul.mubr.f32.gmra.mrb[0].mxu0 %v6550
        %v6621 = vpop.f32.mrb[0].mxu0
        %v6622 = vadd.f32 0.0, %v6621
        %v6623 = vpop.f32.mrb[0].mxu0
        %6624 = vmatprep.mubr.f32.mxu0 0.0
        %6625 = vmatmul.mubr.f32.gmra.mrb[0].mxu0 %v6553
        %v6626 = vpop.f32.mrb[0].mxu0
        %v6627 = vadd.f32 0.0, %v6626
        %v6628 = vpop.f32.mrb[0].mxu0
        %6629 = vdwg.mxu0
        %v6630 = vadd.f32 %v6532, %v6622
        %v6631 = vadd.f32 %v6533, %v6627
        %s6632 = scalar_lea.vmem %s13, 48
        %v6633 = vld [vmem:[%s6632] sm:$0xff]
        %v6634 = vld [vmem:[%s6632 + $0x8] sm:$0xff]
        %6635 = vrot.lane.b32.xlu0 %v6345, 125
        %v6636 = vpop.permute.xlu0 %6635
        %6637 = vrot.lane.b32.xlu0 %v6346, 125
        %v6638 = vpop.permute.xlu0 %6637
        %6639 = vrot.lane.b32.xlu0 %v6347, 125
        %v6640 = vpop.permute.xlu0 %6639
        %6641 = vrot.lane.b32.xlu0 %v6348, 125
        %v6642 = vpop.permute.xlu0 %6641
        %v6648 = vsel %vm815, %v6633, 0
        %v6651 = vsel %vm815, %v6634, 0
        %6653 = vmatprep.subr.mxu0 0.0
        %6654 = vmatpush1.msra.mxu0 %v6636
        %6655 = vmatprep.subr.mxu0 0.0
        %6656 = vmatpush1.msra.mxu0 %v6638
        %6657 = vmatprep.subr.mxu0 0.0
        %6658 = vmatpush1.msra.mxu0 %v6640
        %6659 = vmatprep.subr.mxu0 0.0
        %6660 = vmatpush1.msra.mxu0 %v6642
        %6661 = vmatprep.subr.mxu0 0.0
        %6662 = vmatpush1.msra.mxu0 0.0
        %6663 = vmatprep.subr.mxu0 0.0
        %6664 = vmatpush1.msra.mxu0 0.0
        %6665 = vmatprep.subr.mxu0 0.0
        %6666 = vmatpush1.msra.mxu0 0.0
        %6667 = vmatprep.subr.mxu0 0.0
        %6668 = vmatpush1.msra.mxu0 0.0
        %6669 = vmatprep.subr.mxu0 0.0
        %6670 = vmatpush1.msra.mxu0 0.0
        %6671 = vmatprep.subr.mxu0 0.0
        %6672 = vmatpush1.msra.mxu0 0.0
        %6673 = vmatprep.subr.mxu0 0.0
        %6674 = vmatpush1.msra.mxu0 0.0
        %6675 = vmatprep.subr.mxu0 0.0
        %6676 = vmatpush1.msra.mxu0 0.0
        %6677 = vmatprep.subr.mxu0 0.0
        %6678 = vmatpush1.msra.mxu0 0.0
        %6679 = vmatprep.subr.mxu0 0.0
        %6680 = vmatpush1.msra.mxu0 0.0
        %6681 = vmatprep.subr.mxu0 0.0
        %6682 = vmatpush1.msra.mxu0 0.0
        %6683 = vmatprep.subr.mxu0 0.0
        %6684 = vmatpush1.msra.mxu0 0.0
        %6685 = vmatprep.subr.mxu0 0.0
        %6686 = vmatpush1.msra.mxu0 0.0
        %6687 = vmatprep.subr.mxu0 0.0
        %6688 = vmatpush1.msra.mxu0 0.0
        %6689 = vmatprep.subr.mxu0 0.0
        %6690 = vmatpush1.msra.mxu0 0.0
        %6691 = vmatprep.subr.mxu0 0.0
        %6692 = vmatpush1.msra.mxu0 0.0
        %6693 = vmatprep.subr.mxu0 0.0
        %6694 = vmatpush1.msra.mxu0 0.0
        %6695 = vmatprep.subr.mxu0 0.0
        %6696 = vmatpush1.msra.mxu0 0.0
        %6697 = vmatprep.subr.mxu0 0.0
        %6698 = vmatpush1.msra.mxu0 0.0
        %6699 = vmatprep.subr.mxu0 0.0
        %6700 = vmatpush1.msra.mxu0 0.0
        %6701 = vmatprep.subr.mxu0 0.0
        %6702 = vmatpush1.msra.mxu0 0.0
        %6703 = vmatprep.subr.mxu0 0.0
        %6704 = vmatpush1.msra.mxu0 0.0
        %6705 = vmatprep.subr.mxu0 0.0
        %6706 = vmatpush1.msra.mxu0 0.0
        %6707 = vmatprep.subr.mxu0 0.0
        %6708 = vmatpush1.msra.mxu0 0.0
        %6709 = vmatprep.subr.mxu0 0.0
        %6710 = vmatpush1.msra.mxu0 0.0
        %6711 = vmatprep.subr.mxu0 0.0
        %6712 = vmatpush1.msra.mxu0 0.0
        %6713 = vmatprep.subr.mxu0 0.0
        %6714 = vmatpush1.msra.mxu0 0.0
        %6715 = vmatprep.subr.mxu0 0.0
        %6716 = vmatpush1.msra.mxu0 0.0
        %6717 = vmatprep.mubr.f32.mxu0 0.0
        %6718 = vmatmul.mubr.f32.gmra.mrb[0].mxu0 %v6648
        %v6719 = vpop.f32.mrb[0].mxu0
        %v6720 = vadd.f32 0.0, %v6719
        %v6721 = vpop.f32.mrb[0].mxu0
        %6722 = vmatprep.mubr.f32.mxu0 0.0
        %6723 = vmatmul.mubr.f32.gmra.mrb[0].mxu0 %v6651
        %v6724 = vpop.f32.mrb[0].mxu0
        %v6725 = vadd.f32 0.0, %v6724
        %v6726 = vpop.f32.mrb[0].mxu0
        %6727 = vdwg.mxu0
        %v6728 = vadd.f32 %v6630, %v6720
        %v6729 = vadd.f32 %v6631, %v6725
        %s6730 = scalar_lea.vmem %s13, 64
        %v6731 = vld [vmem:[%s6730] sm:$0xff]
        %v6732 = vld [vmem:[%s6730 + $0x8] sm:$0xff]
        %6733 = vrot.lane.b32.xlu0 %v6345, 124
        %v6734 = vpop.permute.xlu0 %6733
        %6735 = vrot.lane.b32.xlu0 %v6346, 124
        %v6736 = vpop.permute.xlu0 %6735
        %6737 = vrot.lane.b32.xlu0 %v6347, 124
        %v6738 = vpop.permute.xlu0 %6737
        %6739 = vrot.lane.b32.xlu0 %v6348, 124
        %v6740 = vpop.permute.xlu0 %6739
        %v6746 = vsel %vm815, %v6731, 0
        %v6749 = vsel %vm815, %v6732, 0
        %6751 = vmatprep.subr.mxu0 0.0
        %6752 = vmatpush1.msra.mxu0 %v6734
        %6753 = vmatprep.subr.mxu0 0.0
        %6754 = vmatpush1.msra.mxu0 %v6736
        %6755 = vmatprep.subr.mxu0 0.0
        %6756 = vmatpush1.msra.mxu0 %v6738
        %6757 = vmatprep.subr.mxu0 0.0
        %6758 = vmatpush1.msra.mxu0 %v6740
        %6759 = vmatprep.subr.mxu0 0.0
        %6760 = vmatpush1.msra.mxu0 0.0
        %6761 = vmatprep.subr.mxu0 0.0
        %6762 = vmatpush1.msra.mxu0 0.0
        %6763 = vmatprep.subr.mxu0 0.0
        %6764 = vmatpush1.msra.mxu0 0.0
        %6765 = vmatprep.subr.mxu0 0.0
        %6766 = vmatpush1.msra.mxu0 0.0
        %6767 = vmatprep.subr.mxu0 0.0
        %6768 = vmatpush1.msra.mxu0 0.0
        %6769 = vmatprep.subr.mxu0 0.0
        %6770 = vmatpush1.msra.mxu0 0.0
        %6771 = vmatprep.subr.mxu0 0.0
        %6772 = vmatpush1.msra.mxu0 0.0
        %6773 = vmatprep.subr.mxu0 0.0
        %6774 = vmatpush1.msra.mxu0 0.0
        %6775 = vmatprep.subr.mxu0 0.0
        %6776 = vmatpush1.msra.mxu0 0.0
        %6777 = vmatprep.subr.mxu0 0.0
        %6778 = vmatpush1.msra.mxu0 0.0
        %6779 = vmatprep.subr.mxu0 0.0
        %6780 = vmatpush1.msra.mxu0 0.0
        %6781 = vmatprep.subr.mxu0 0.0
        %6782 = vmatpush1.msra.mxu0 0.0
        %6783 = vmatprep.subr.mxu0 0.0
        %6784 = vmatpush1.msra.mxu0 0.0
        %6785 = vmatprep.subr.mxu0 0.0
        %6786 = vmatpush1.msra.mxu0 0.0
        %6787 = vmatprep.subr.mxu0 0.0
        %6788 = vmatpush1.msra.mxu0 0.0
        %6789 = vmatprep.subr.mxu0 0.0
        %6790 = vmatpush1.msra.mxu0 0.0
        %6791 = vmatprep.subr.mxu0 0.0
        %6792 = vmatpush1.msra.mxu0 0.0
        %6793 = vmatprep.subr.mxu0 0.0
        %6794 = vmatpush1.msra.mxu0 0.0
        %6795 = vmatprep.subr.mxu0 0.0
        %6796 = vmatpush1.msra.mxu0 0.0
        %6797 = vmatprep.subr.mxu0 0.0
        %6798 = vmatpush1.msra.mxu0 0.0
        %6799 = vmatprep.subr.mxu0 0.0
        %6800 = vmatpush1.msra.mxu0 0.0
        %6801 = vmatprep.subr.mxu0 0.0
        %6802 = vmatpush1.msra.mxu0 0.0
        %6803 = vmatprep.subr.mxu0 0.0
        %6804 = vmatpush1.msra.mxu0 0.0
        %6805 = vmatprep.subr.mxu0 0.0
        %6806 = vmatpush1.msra.mxu0 0.0
        %6807 = vmatprep.subr.mxu0 0.0
        %6808 = vmatpush1.msra.mxu0 0.0
        %6809 = vmatprep.subr.mxu0 0.0
        %6810 = vmatpush1.msra.mxu0 0.0
        %6811 = vmatprep.subr.mxu0 0.0
        %6812 = vmatpush1.msra.mxu0 0.0
        %6813 = vmatprep.subr.mxu0 0.0
        %6814 = vmatpush1.msra.mxu0 0.0
        %6815 = vmatprep.mubr.f32.mxu0 0.0
        %6816 = vmatmul.mubr.f32.gmra.mrb[0].mxu0 %v6746
        %v6817 = vpop.f32.mrb[0].mxu0
        %v6818 = vadd.f32 0.0, %v6817
        %v6819 = vpop.f32.mrb[0].mxu0
        %6820 = vmatprep.mubr.f32.mxu0 0.0
        %6821 = vmatmul.mubr.f32.gmra.mrb[0].mxu0 %v6749
        %v6822 = vpop.f32.mrb[0].mxu0
        %v6823 = vadd.f32 0.0, %v6822
        %v6824 = vpop.f32.mrb[0].mxu0
        %6825 = vdwg.mxu0
        %v6826 = vadd.f32 %v6728, %v6818
        %v6827 = vadd.f32 %v6729, %v6823
        %s6828 = scalar_lea.vmem %s13, 80
        %v6829 = vld [vmem:[%s6828] sm:$0xff]
        %v6830 = vld [vmem:[%s6828 + $0x8] sm:$0xff]
        %6831 = vrot.lane.b32.xlu0 %v6345, 123
        %v6832 = vpop.permute.xlu0 %6831
        %6833 = vrot.lane.b32.xlu0 %v6346, 123
        %v6834 = vpop.permute.xlu0 %6833
        %6835 = vrot.lane.b32.xlu0 %v6347, 123
        %v6836 = vpop.permute.xlu0 %6835
        %6837 = vrot.lane.b32.xlu0 %v6348, 123
        %v6838 = vpop.permute.xlu0 %6837
        %v6844 = vsel %vm815, %v6829, 0
        %v6847 = vsel %vm815, %v6830, 0
        %6849 = vmatprep.subr.mxu0 0.0
        %6850 = vmatpush1.msra.mxu0 %v6832
        %6851 = vmatprep.subr.mxu0 0.0
        %6852 = vmatpush1.msra.mxu0 %v6834
        %6853 = vmatprep.subr.mxu0 0.0
        %6854 = vmatpush1.msra.mxu0 %v6836
        %6855 = vmatprep.subr.mxu0 0.0
        %6856 = vmatpush1.msra.mxu0 %v6838
        %6857 = vmatprep.subr.mxu0 0.0
        %6858 = vmatpush1.msra.mxu0 0.0
        %6859 = vmatprep.subr.mxu0 0.0
        %6860 = vmatpush1.msra.mxu0 0.0
        %6861 = vmatprep.subr.mxu0 0.0
        %6862 = vmatpush1.msra.mxu0 0.0
        %6863 = vmatprep.subr.mxu0 0.0
        %6864 = vmatpush1.msra.mxu0 0.0
        %6865 = vmatprep.subr.mxu0 0.0
        %6866 = vmatpush1.msra.mxu0 0.0
        %6867 = vmatprep.subr.mxu0 0.0
        %6868 = vmatpush1.msra.mxu0 0.0
        %6869 = vmatprep.subr.mxu0 0.0
        %6870 = vmatpush1.msra.mxu0 0.0
        %6871 = vmatprep.subr.mxu0 0.0
        %6872 = vmatpush1.msra.mxu0 0.0
        %6873 = vmatprep.subr.mxu0 0.0
        %6874 = vmatpush1.msra.mxu0 0.0
        %6875 = vmatprep.subr.mxu0 0.0
        %6876 = vmatpush1.msra.mxu0 0.0
        %6877 = vmatprep.subr.mxu0 0.0
        %6878 = vmatpush1.msra.mxu0 0.0
        %6879 = vmatprep.subr.mxu0 0.0
        %6880 = vmatpush1.msra.mxu0 0.0
        %6881 = vmatprep.subr.mxu0 0.0
        %6882 = vmatpush1.msra.mxu0 0.0
        %6883 = vmatprep.subr.mxu0 0.0
        %6884 = vmatpush1.msra.mxu0 0.0
        %6885 = vmatprep.subr.mxu0 0.0
        %6886 = vmatpush1.msra.mxu0 0.0
        %6887 = vmatprep.subr.mxu0 0.0
        %6888 = vmatpush1.msra.mxu0 0.0
        %6889 = vmatprep.subr.mxu0 0.0
        %6890 = vmatpush1.msra.mxu0 0.0
        %6891 = vmatprep.subr.mxu0 0.0
        %6892 = vmatpush1.msra.mxu0 0.0
        %6893 = vmatprep.subr.mxu0 0.0
        %6894 = vmatpush1.msra.mxu0 0.0
        %6895 = vmatprep.subr.mxu0 0.0
        %6896 = vmatpush1.msra.mxu0 0.0
        %6897 = vmatprep.subr.mxu0 0.0
        %6898 = vmatpush1.msra.mxu0 0.0
        %6899 = vmatprep.subr.mxu0 0.0
        %6900 = vmatpush1.msra.mxu0 0.0
        %6901 = vmatprep.subr.mxu0 0.0
        %6902 = vmatpush1.msra.mxu0 0.0
        %6903 = vmatprep.subr.mxu0 0.0
        %6904 = vmatpush1.msra.mxu0 0.0
        %6905 = vmatprep.subr.mxu0 0.0
        %6906 = vmatpush1.msra.mxu0 0.0
        %6907 = vmatprep.subr.mxu0 0.0
        %6908 = vmatpush1.msra.mxu0 0.0
        %6909 = vmatprep.subr.mxu0 0.0
        %6910 = vmatpush1.msra.mxu0 0.0
        %6911 = vmatprep.subr.mxu0 0.0
        %6912 = vmatpush1.msra.mxu0 0.0
        %6913 = vmatprep.mubr.f32.mxu0 0.0
        %6914 = vmatmul.mubr.f32.gmra.mrb[0].mxu0 %v6844
        %v6915 = vpop.f32.mrb[0].mxu0
        %v6916 = vadd.f32 0.0, %v6915
        %v6917 = vpop.f32.mrb[0].mxu0
        %6918 = vmatprep.mubr.f32.mxu0 0.0
        %6919 = vmatmul.mubr.f32.gmra.mrb[0].mxu0 %v6847
        %v6920 = vpop.f32.mrb[0].mxu0
        %v6921 = vadd.f32 0.0, %v6920
        %v6922 = vpop.f32.mrb[0].mxu0
        %6923 = vdwg.mxu0
        %v6924 = vadd.f32 %v6826, %v6916
        %v6925 = vadd.f32 %v6827, %v6921
        %s6926 = scalar_lea.vmem %s13, 96
        %v6927 = vld [vmem:[%s6926] sm:$0xff]
        %v6928 = vld [vmem:[%s6926 + $0x8] sm:$0xff]
        %6929 = vrot.lane.b32.xlu0 %v6345, 122
        %v6930 = vpop.permute.xlu0 %6929
        %6931 = vrot.lane.b32.xlu0 %v6346, 122
        %v6932 = vpop.permute.xlu0 %6931
        %6933 = vrot.lane.b32.xlu0 %v6347, 122
        %v6934 = vpop.permute.xlu0 %6933
        %6935 = vrot.lane.b32.xlu0 %v6348, 122
        %v6936 = vpop.permute.xlu0 %6935
        %v6942 = vsel %vm815, %v6927, 0
        %v6945 = vsel %vm815, %v6928, 0
        %6947 = vmatprep.subr.mxu0 0.0
        %6948 = vmatpush1.msra.mxu0 %v6930
        %6949 = vmatprep.subr.mxu0 0.0
        %6950 = vmatpush1.msra.mxu0 %v6932
        %6951 = vmatprep.subr.mxu0 0.0
        %6952 = vmatpush1.msra.mxu0 %v6934
        %6953 = vmatprep.subr.mxu0 0.0
        %6954 = vmatpush1.msra.mxu0 %v6936
        %6955 = vmatprep.subr.mxu0 0.0
        %6956 = vmatpush1.msra.mxu0 0.0
        %6957 = vmatprep.subr.mxu0 0.0
        %6958 = vmatpush1.msra.mxu0 0.0
        %6959 = vmatprep.subr.mxu0 0.0
        %6960 = vmatpush1.msra.mxu0 0.0
        %6961 = vmatprep.subr.mxu0 0.0
        %6962 = vmatpush1.msra.mxu0 0.0
        %6963 = vmatprep.subr.mxu0 0.0
        %6964 = vmatpush1.msra.mxu0 0.0
        %6965 = vmatprep.subr.mxu0 0.0
        %6966 = vmatpush1.msra.mxu0 0.0
        %6967 = vmatprep.subr.mxu0 0.0
        %6968 = vmatpush1.msra.mxu0 0.0
        %6969 = vmatprep.subr.mxu0 0.0
        %6970 = vmatpush1.msra.mxu0 0.0
        %6971 = vmatprep.subr.mxu0 0.0
        %6972 = vmatpush1.msra.mxu0 0.0
        %6973 = vmatprep.subr.mxu0 0.0
        %6974 = vmatpush1.msra.mxu0 0.0
        %6975 = vmatprep.subr.mxu0 0.0
        %6976 = vmatpush1.msra.mxu0 0.0
        %6977 = vmatprep.subr.mxu0 0.0
        %6978 = vmatpush1.msra.mxu0 0.0
        %6979 = vmatprep.subr.mxu0 0.0
        %6980 = vmatpush1.msra.mxu0 0.0
        %6981 = vmatprep.subr.mxu0 0.0
        %6982 = vmatpush1.msra.mxu0 0.0
        %6983 = vmatprep.subr.mxu0 0.0
        %6984 = vmatpush1.msra.mxu0 0.0
        %6985 = vmatprep.subr.mxu0 0.0
        %6986 = vmatpush1.msra.mxu0 0.0
        %6987 = vmatprep.subr.mxu0 0.0
        %6988 = vmatpush1.msra.mxu0 0.0
        %6989 = vmatprep.subr.mxu0 0.0
        %6990 = vmatpush1.msra.mxu0 0.0
        %6991 = vmatprep.subr.mxu0 0.0
        %6992 = vmatpush1.msra.mxu0 0.0
        %6993 = vmatprep.subr.mxu0 0.0
        %6994 = vmatpush1.msra.mxu0 0.0
        %6995 = vmatprep.subr.mxu0 0.0
        %6996 = vmatpush1.msra.mxu0 0.0
        %6997 = vmatprep.subr.mxu0 0.0
        %6998 = vmatpush1.msra.mxu0 0.0
        %6999 = vmatprep.subr.mxu0 0.0
        %7000 = vmatpush1.msra.mxu0 0.0
        %7001 = vmatprep.subr.mxu0 0.0
        %7002 = vmatpush1.msra.mxu0 0.0
        %7003 = vmatprep.subr.mxu0 0.0
        %7004 = vmatpush1.msra.mxu0 0.0
        %7005 = vmatprep.subr.mxu0 0.0
        %7006 = vmatpush1.msra.mxu0 0.0
        %7007 = vmatprep.subr.mxu0 0.0
        %7008 = vmatpush1.msra.mxu0 0.0
        %7009 = vmatprep.subr.mxu0 0.0
        %7010 = vmatpush1.msra.mxu0 0.0
        %7011 = vmatprep.mubr.f32.mxu0 0.0
        %7012 = vmatmul.mubr.f32.gmra.mrb[0].mxu0 %v6942
        %v7013 = vpop.f32.mrb[0].mxu0
        %v7014 = vadd.f32 0.0, %v7013
        %v7015 = vpop.f32.mrb[0].mxu0
        %7016 = vmatprep.mubr.f32.mxu0 0.0
        %7017 = vmatmul.mubr.f32.gmra.mrb[0].mxu0 %v6945
        %v7018 = vpop.f32.mrb[0].mxu0
        %v7019 = vadd.f32 0.0, %v7018
        %v7020 = vpop.f32.mrb[0].mxu0
        %7021 = vdwg.mxu0
        %v7022 = vadd.f32 %v6924, %v7014
        %v7023 = vadd.f32 %v6925, %v7019
        %v7024 = vxor.u32 %v7022, 2147483648
        %v7025 = vxor.u32 %v7023, 2147483648
        %v7026 = vmul.f32 %v7024, 1.442695
        %v7027 = vpow.pop %v7026
        %v7028 = vmul.f32 %v7025, 1.442695
        %v7029 = vpow.pop %v7028
        %v7030 = vadd.f32 %v7027, 1.0
        %v7031 = vadd.f32 %v7029, 1.0
        %v7032 = vrcp.pop %v7030
        %v7033 = vmul.f32 1.0, %v7032
        %v7034 = vrcp.pop %v7031
        %v7035 = vmul.f32 1.0, %v7034
        %v7036 = vld [vmem:[#allocation16] sm:$0xff]
        %v7037 = vld [vmem:[#allocation16 + $0x8] sm:$0xff]
        %v7038 = vld [vmem:[#allocation16 + $0x10] sm:$0xff]
        %v7039 = vld [vmem:[#allocation16 + $0x18] sm:$0xff]
        %v7041 = vsel %vm809, %v6335, 0
        %v7044 = vsel %vm809, %v6337, 0
        %7046 = vmatprep.subr.mxu0 %v7037
        %7047 = vmatpush1.msra.mxu0 %v7036
        %7048 = vmatprep.subr.mxu0 %v7039
        %7049 = vmatpush1.msra.mxu0 %v7038
        %7050 = vmatprep.subr.mxu0 0.0
        %7051 = vmatpush1.msra.mxu0 0.0
        %7052 = vmatprep.subr.mxu0 0.0
        %7053 = vmatpush1.msra.mxu0 0.0
        %7054 = vmatprep.subr.mxu0 0.0
        %7055 = vmatpush1.msra.mxu0 0.0
        %7056 = vmatprep.subr.mxu0 0.0
        %7057 = vmatpush1.msra.mxu0 0.0
        %7058 = vmatprep.subr.mxu0 0.0
        %7059 = vmatpush1.msra.mxu0 0.0
        %7060 = vmatprep.subr.mxu0 0.0
        %7061 = vmatpush1.msra.mxu0 0.0
        %7062 = vmatprep.subr.mxu0 0.0
        %7063 = vmatpush1.msra.mxu0 0.0
        %7064 = vmatprep.subr.mxu0 0.0
        %7065 = vmatpush1.msra.mxu0 0.0
        %7066 = vmatprep.subr.mxu0 0.0
        %7067 = vmatpush1.msra.mxu0 0.0
        %7068 = vmatprep.subr.mxu0 0.0
        %7069 = vmatpush1.msra.mxu0 0.0
        %7070 = vmatprep.subr.mxu0 0.0
        %7071 = vmatpush1.msra.mxu0 0.0
        %7072 = vmatprep.subr.mxu0 0.0
        %7073 = vmatpush1.msra.mxu0 0.0
        %7074 = vmatprep.subr.mxu0 0.0
        %7075 = vmatpush1.msra.mxu0 0.0
        %7076 = vmatprep.subr.mxu0 0.0
        %7077 = vmatpush1.msra.mxu0 0.0
        %7078 = vmatprep.subr.mxu0 0.0
        %7079 = vmatpush1.msra.mxu0 0.0
        %7080 = vmatprep.subr.mxu0 0.0
        %7081 = vmatpush1.msra.mxu0 0.0
        %7082 = vmatprep.subr.mxu0 0.0
        %7083 = vmatpush1.msra.mxu0 0.0
        %7084 = vmatprep.subr.mxu0 0.0
        %7085 = vmatpush1.msra.mxu0 0.0
        %7086 = vmatprep.subr.mxu0 0.0
        %7087 = vmatpush1.msra.mxu0 0.0
        %7088 = vmatprep.subr.mxu0 0.0
        %7089 = vmatpush1.msra.mxu0 0.0
        %7090 = vmatprep.subr.mxu0 0.0
        %7091 = vmatpush1.msra.mxu0 0.0
        %7092 = vmatprep.subr.mxu0 0.0
        %7093 = vmatpush1.msra.mxu0 0.0
        %7094 = vmatprep.subr.mxu0 0.0
        %7095 = vmatpush1.msra.mxu0 0.0
        %7096 = vmatprep.subr.mxu0 0.0
        %7097 = vmatpush1.msra.mxu0 0.0
        %7098 = vmatprep.subr.mxu0 0.0
        %7099 = vmatpush1.msra.mxu0 0.0
        %7100 = vmatprep.subr.mxu0 0.0
        %7101 = vmatpush1.msra.mxu0 0.0
        %7102 = vmatprep.subr.mxu0 0.0
        %7103 = vmatpush1.msra.mxu0 0.0
        %7104 = vmatprep.subr.mxu0 0.0
        %7105 = vmatpush1.msra.mxu0 0.0
        %7106 = vmatprep.subr.mxu0 0.0
        %7107 = vmatpush1.msra.mxu0 0.0
        %7108 = vmatprep.subr.mxu0 0.0
        %7109 = vmatpush1.msra.mxu0 0.0
        %7110 = vmatprep.mubr.f32.mxu0 0.0
        %7111 = vmatmul.mubr.f32.gmra.mrb[0].mxu0 %v7041
        %v7112 = vpop.f32.mrb[0].mxu0
        %v7113 = vadd.f32 0.0, %v7112
        %v7114 = vpop.f32.mrb[0].mxu0
        %v7115 = vadd.f32 0.0, %v7114
        %7116 = vmatprep.mubr.f32.mxu0 0.0
        %7117 = vmatmul.mubr.f32.gmra.mrb[0].mxu0 %v7044
        %v7118 = vpop.f32.mrb[0].mxu0
        %v7119 = vadd.f32 0.0, %v7118
        %v7120 = vpop.f32.mrb[0].mxu0
        %v7121 = vadd.f32 0.0, %v7120
        %7122 = vdwg.mxu0
        %v7123 = vld [vmem:[#allocation17] sm:$0xff]
        %v7124 = vld [vmem:[#allocation17 + $0x8] sm:$0xff]
        %v7125 = vld [vmem:[#allocation17 + $0x10] sm:$0xff]
        %v7126 = vld [vmem:[#allocation17 + $0x18] sm:$0xff]
        %v7128 = vsel %vm809, %v7033, 0
        %v7131 = vsel %vm809, %v7035, 0
        %7133 = vmatprep.subr.mxu0 %v7124
        %7134 = vmatpush1.msra.mxu0 %v7123
        %7135 = vmatprep.subr.mxu0 %v7126
        %7136 = vmatpush1.msra.mxu0 %v7125
        %7137 = vmatprep.subr.mxu0 0.0
        %7138 = vmatpush1.msra.mxu0 0.0
        %7139 = vmatprep.subr.mxu0 0.0
        %7140 = vmatpush1.msra.mxu0 0.0
        %7141 = vmatprep.subr.mxu0 0.0
        %7142 = vmatpush1.msra.mxu0 0.0
        %7143 = vmatprep.subr.mxu0 0.0
        %7144 = vmatpush1.msra.mxu0 0.0
        %7145 = vmatprep.subr.mxu0 0.0
        %7146 = vmatpush1.msra.mxu0 0.0
        %7147 = vmatprep.subr.mxu0 0.0
        %7148 = vmatpush1.msra.mxu0 0.0
        %7149 = vmatprep.subr.mxu0 0.0
        %7150 = vmatpush1.msra.mxu0 0.0
        %7151 = vmatprep.subr.mxu0 0.0
        %7152 = vmatpush1.msra.mxu0 0.0
        %7153 = vmatprep.subr.mxu0 0.0
        %7154 = vmatpush1.msra.mxu0 0.0
        %7155 = vmatprep.subr.mxu0 0.0
        %7156 = vmatpush1.msra.mxu0 0.0
        %7157 = vmatprep.subr.mxu0 0.0
        %7158 = vmatpush1.msra.mxu0 0.0
        %7159 = vmatprep.subr.mxu0 0.0
        %7160 = vmatpush1.msra.mxu0 0.0
        %7161 = vmatprep.subr.mxu0 0.0
        %7162 = vmatpush1.msra.mxu0 0.0
        %7163 = vmatprep.subr.mxu0 0.0
        %7164 = vmatpush1.msra.mxu0 0.0
        %7165 = vmatprep.subr.mxu0 0.0
        %7166 = vmatpush1.msra.mxu0 0.0
        %7167 = vmatprep.subr.mxu0 0.0
        %7168 = vmatpush1.msra.mxu0 0.0
        %7169 = vmatprep.subr.mxu0 0.0
        %7170 = vmatpush1.msra.mxu0 0.0
        %7171 = vmatprep.subr.mxu0 0.0
        %7172 = vmatpush1.msra.mxu0 0.0
        %7173 = vmatprep.subr.mxu0 0.0
        %7174 = vmatpush1.msra.mxu0 0.0
        %7175 = vmatprep.subr.mxu0 0.0
        %7176 = vmatpush1.msra.mxu0 0.0
        %7177 = vmatprep.subr.mxu0 0.0
        %7178 = vmatpush1.msra.mxu0 0.0
        %7179 = vmatprep.subr.mxu0 0.0
        %7180 = vmatpush1.msra.mxu0 0.0
        %7181 = vmatprep.subr.mxu0 0.0
        %7182 = vmatpush1.msra.mxu0 0.0
        %7183 = vmatprep.subr.mxu0 0.0
        %7184 = vmatpush1.msra.mxu0 0.0
        %7185 = vmatprep.subr.mxu0 0.0
        %7186 = vmatpush1.msra.mxu0 0.0
        %7187 = vmatprep.subr.mxu0 0.0
        %7188 = vmatpush1.msra.mxu0 0.0
        %7189 = vmatprep.subr.mxu0 0.0
        %7190 = vmatpush1.msra.mxu0 0.0
        %7191 = vmatprep.subr.mxu0 0.0
        %7192 = vmatpush1.msra.mxu0 0.0
        %7193 = vmatprep.subr.mxu0 0.0
        %7194 = vmatpush1.msra.mxu0 0.0
        %7195 = vmatprep.subr.mxu0 0.0
        %7196 = vmatpush1.msra.mxu0 0.0
        %7197 = vmatprep.mubr.f32.mxu0 0.0
        %7198 = vmatmul.mubr.f32.gmra.mrb[0].mxu0 %v7128
        %v7199 = vpop.f32.mrb[0].mxu0
        %v7200 = vadd.f32 0.0, %v7199
        %v7201 = vpop.f32.mrb[0].mxu0
        %v7202 = vadd.f32 0.0, %v7201
        %7203 = vmatprep.mubr.f32.mxu0 0.0
        %7204 = vmatmul.mubr.f32.gmra.mrb[0].mxu0 %v7131
        %v7205 = vpop.f32.mrb[0].mxu0
        %v7206 = vadd.f32 0.0, %v7205
        %v7207 = vpop.f32.mrb[0].mxu0
        %v7208 = vadd.f32 0.0, %v7207
        %7209 = vdwg.mxu0
        %v7210 = vlaneseq
        %v7211 = vshrl.u32 %v7210, 7
        %v7212 = vsub.s32 0, %v7211
        %v7213 = vrot.slane %v5635, %v7212
        %v7214 = vlaneseq
        %v7215 = vshrl.u32 %v7214, 7
        %v7216 = vsub.s32 0, %v7215
        %v7217 = vrot.slane %v5637, %v7216
        %v7218 = vlaneseq
        %v7219 = vshrl.u32 %v7218, 7
        %v7220 = vsub.s32 0, %v7219
        %v7221 = vrot.slane %v5639, %v7220
        %7226 = vrot.lane.b32.xlu0 %v7113, 93
        %v7227 = vpop.permute.xlu0 %7226
        %7228 = vrot.lane.b32.xlu0 %v7115, 93
        %v7229 = vpop.permute.xlu0 %7228
        %7230 = vrot.lane.b32.xlu0 %v7119, 93
        %v7231 = vpop.permute.xlu0 %7230
        %7232 = vrot.lane.b32.xlu0 %v7121, 93
        %v7233 = vpop.permute.xlu0 %7232
        %v7234 = vsel %vm4388, %v7227, %v7229
        %v7235 = vsel %vm4388, %v7231, %v7233
        %v7242 = vadd.f32 %v7213, %v7227
        %v7243 = vadd.f32 %v7217, %v7234
        %v7244 = vadd.f32 %v7221, %v7229
        %v7245 = vadd.f32 %v7213, %v7231
        %v7246 = vadd.f32 %v7217, %v7235
        %v7247 = vadd.f32 %v7221, %v7233
        %7252 = vrot.lane.b32.xlu0 %v7200, 93
        %v7253 = vpop.permute.xlu0 %7252
        %7254 = vrot.lane.b32.xlu0 %v7202, 93
        %v7255 = vpop.permute.xlu0 %7254
        %7256 = vrot.lane.b32.xlu0 %v7206, 93
        %v7257 = vpop.permute.xlu0 %7256
        %7258 = vrot.lane.b32.xlu0 %v7208, 93
        %v7259 = vpop.permute.xlu0 %7258
        %v7260 = vsel %vm4388, %v7253, %v7255
        %v7261 = vsel %vm4388, %v7257, %v7259
        %v7268 = vadd.f32 %v7242, %v7253
        %v7269 = vadd.f32 %v7243, %v7260
        %v7270 = vadd.f32 %v7244, %v7255
        %v7271 = vadd.f32 %v7245, %v7257
        %v7272 = vadd.f32 %v7246, %v7261
        %v7273 = vadd.f32 %v7247, %v7259
        %7280 = vrot.lane.b32.xlu0 %v7268, 35
        %v7281 = vpop.permute.xlu0 %7280
        %7282 = vrot.lane.b32.xlu0 %v7269, 35
        %v7283 = vpop.permute.xlu0 %7282
        %7284 = vrot.lane.b32.xlu0 %v7270, 35
        %v7285 = vpop.permute.xlu0 %7284
        %7286 = vrot.lane.b32.xlu0 %v7271, 35
        %v7287 = vpop.permute.xlu0 %7286
        %7288 = vrot.lane.b32.xlu0 %v7272, 35
        %v7289 = vpop.permute.xlu0 %7288
        %7290 = vrot.lane.b32.xlu0 %v7273, 35
        %v7291 = vpop.permute.xlu0 %7290
        %vm7292 = vcmask 285696
        %v7293 = vsel %vm7292, %v7281, %v7283
        %v7294 = vsel %vm7292, %v7283, %v7285
        %v7295 = vsel %vm7292, %v7287, %v7289
        %v7296 = vsel %vm7292, %v7289, %v7291
        %v7301 = vmul.f32 %v3648, %v7293
        %v7302 = vmul.f32 %v3649, %v7294
        %v7303 = vmul.f32 %v3650, %v7295
        %v7304 = vmul.f32 %v3651, %v7296
        %v7305 = vmul.f32 %v7301, 0.33333334
        %v7306 = vmul.f32 %v7302, 0.33333334
        %v7307 = vmul.f32 %v7303, 0.33333334
        %v7308 = vmul.f32 %v7304, 0.33333334
        %v7315 = vrot.slane %v790, 4
        %v7316 = vrot.slane %v796, 4
        %v7317 = vsel %vm863, %v7315, %v7316
        %v7318 = vrot.slane %v792, 4
        %v7319 = vrot.slane %v798, 4
        %v7320 = vsel %vm863, %v7318, %v7319
        %v7321 = vrot.slane %v802, 4
        %v7322 = vsel %vm863, %v7316, %v7321
        %v7323 = vrot.slane %v804, 4
        %v7324 = vsel %vm863, %v7319, %v7323
        %v7329 = vadd.f32 %v7305, %v7317
        %v7330 = vadd.f32 %v7306, %v7320
        %v7331 = vadd.f32 %v7307, %v7322
        %v7332 = vadd.f32 %v7308, %v7324
        %v7333 = vmax.f32 %v7329, 0.0
        %v7334 = vmax.f32 %v7330, 0.0
        %v7335 = vmax.f32 %v7331, 0.0
        %v7336 = vmax.f32 %v7332, 0.0
        %7337 = vst [vmem:[%s689] sm:$0xff] %v7333
        %7338 = vst [vmem:[%s689 + $0x8] sm:$0xff] %v7334
        %7339 = vst [vmem:[%s689 + $0x10] sm:$0xff] %v7335
        %7340 = vst [vmem:[%s689 + $0x18] sm:$0xff] %v7336
        %s7341 = sand.u32 %s430, 1
        %s7342 = scalar_lea.sflag [#allocation7], %s7341
        %s7343 = sand.u32 %s430, 1
        %s7344 = smul.addr %s7343, 32
        %s7345 = scalar_lea.vmem [#allocation19], %s7344
        // Predicated region
        $region125: #{tpu_custom_call.1} parent=91 // pred_check
          %p7346 = pneg %p440
        $region126: #{tpu_custom_call.1} parent=91 // pred_check_branch
          %7348 = sbr.rel (%p7346) target = $region128
        $region127: #{tpu_custom_call.1} parent=91 // pred_region
          %s7350 = ssub.s32 512, 512
          %7351 = vsyncadd %s7342, %s7350
          %s7352 = smul.addr %s39, 4
          %s7353 = smul.addr %s7352, 128
          %s7354 = scalar_lea.hbm %s18, %s7353
          %s7355 = sshll.u32 %s7345, 4
          %s7356 = int_to_ptr.vmem [resolvable:$true] %s7355
          %7361 = dma.vmem_to_hbm [thread:$0]  %s7356, 512, %s7354, %s7342, 256, 256, 16
        $region128: #{tpu_custom_call.1} parent=91 // pred_fallthru
          _
      $region92: #{tpu_custom_call.1} parent=5 // pred_fallthru
        _
      %p7362 = scmp.le.s32.totalorder 2, %s34
      // Predicated region
      $region129: #{tpu_custom_call.1} parent=5 // pred_check
        %p7363 = pneg %p7362
      $region130: #{tpu_custom_call.1} parent=5 // pred_check_branch
        %7365 = sbr.rel (%p7363) target = $region132
      $region131: #{tpu_custom_call.1} parent=5 // pred_region
        %s7366 = ssub.s32 %s34, 2
        // Predicated region
        $region133: #{tpu_custom_call.1} parent=131 // pred_check
          %p7367 = pneg %p446
        $region134: #{tpu_custom_call.1} parent=131 // pred_check_branch
          %7369 = sbr.rel (%p7367) target = $region136
        $region135: #{tpu_custom_call.1} parent=131 // pred_region
          %s7370 = sand.u32 %s431, 1
          %s7371 = scalar_lea.sflag [#allocation7], %s7370
          %s7372 = sand.u32 %s431, 1
          %s7373 = smul.addr %s7372, 32
          %s7374 = scalar_lea.vmem [#allocation19], %s7373
          %7375 = dma.done %s7371, 512
        $region136: #{tpu_custom_call.1} parent=131 // pred_fallthru
          _
      $region132: #{tpu_custom_call.1} parent=5 // pred_fallthru
        _
    $region6: #{tpu_custom_call.1} parent=1 // loop_footer
      %s38 = sadd.s32 1, %s34
    $region7: #{tpu_custom_call.1} parent=1 // loop_footer_branch
      %33 = sbr.rel target = $region3
    $region8: #{tpu_custom_call.1} parent=1 // loop_exit
      _
    %7376 = vsyncpa [#allocation6], 1
    %s7377 = scalar_lea.sflag [#allocation6], 1
    %7378 = vsyncpa %s7377, 1
    %7379 = vsyncpa [#allocation9], 1
    %7380 = vsyncpa [#allocation12], 1
    %7381 = vsyncpa [#allocation15], 1
    %7382 = vsyncpa [#allocation18], 1
    %7383 = vsyncpa [#allocation7], 1
    %s7384 = scalar_lea.sflag [#allocation7], 1
    %7385 = vsyncpa %s7384, 1

</llo_original>
